<compile_context>
chip_gen: v7x
topology: tpu7x:2x2x1
jax: 0.10.0
libtpu: 0.0.40
codegen_flags: <defaults>
</compile_context>

<pallas_src>
import jax
import jax.numpy as jnp
import numpy as np
from jax.experimental import pallas as pl
from jax.experimental.pallas import tpu as pltpu

SLAB_LANES = 128   # slab width = one lane tile; every packed piece is <= 128 cols wide
ROW_ALIGN = 8      # sublane-tile alignment for each piece's starting row


def _round_up(n, m):
    return -(-n // m) * m


# -----------------------------------------------------------------------------
# Weight packing (host-side, once): torch layout -> single lane-aligned slab
# -----------------------------------------------------------------------------
def pack_params(raw, lin_w, lin_b, input_size, hidden_size):
    """Pack all weights into one contiguous (rows, 128) f32 slab (single DMA).

    Per LSTM layer (torch gate order i, f, g, o), gates packed into 4*H
    contiguous lanes (gate stride H):
        w_ih^T     : (Din, 4H)
        w_hh^T     : (H,   4H)
        b_ih+b_hh  : (1,   4H)
    Final Linear is split by rows of the concatenated feature:
        lin_w_line (H1, out), lin_w_verti (H1, out), lin_b (1, out).
    Returns (slab, layout) with layout[name] = (row_off, rows, cols).
    """
    I0, I1 = input_size
    H0, H1 = hidden_size
    assert I0 % I1 == 0, "input_size[0] must be a multiple of input_size[1]"
    assert H0 % I0 == 0, "hidden_size[0] must be a multiple of input_size[0]"
    assert 4 * max(H0, H1) <= SLAB_LANES, "gate-packed layout assumes 4*H <= 128"

    pieces = []

    def add(name, arr):
        arr = np.asarray(arr, np.float32)
        assert arr.ndim == 2 and arr.shape[1] <= SLAB_LANES
        pieces.append((name, arr))

    for stack in ("line0", "line1", "verti0", "verti1"):
        for li, layer in enumerate(raw[stack]):
            add(f"{stack}.{li}.w_ih", np.asarray(layer["w_ih"]).T)          # (Din, 4H)
            add(f"{stack}.{li}.w_hh", np.asarray(layer["w_hh"]).T)          # (H, 4H)
            add(f"{stack}.{li}.b",
                (np.asarray(layer["b_ih"]) + np.asarray(layer["b_hh"])).reshape(1, -1))
    add("lin_w_line", np.asarray(lin_w)[:, :H1].T)                          # (H1, out)
    add("lin_w_verti", np.asarray(lin_w)[:, H1:].T)                         # (H1, out)
    add("lin_b", np.asarray(lin_b).reshape(1, -1))                          # (1, out)

    layout = {}
    placed = []
    off = 0
    for name, arr in pieces:
        off = _round_up(off, ROW_ALIGN)
        layout[name] = (off, arr.shape[0], arr.shape[1])
        placed.append((off, arr))
        off += arr.shape[0]
    total_rows = _round_up(off, ROW_ALIGN)
    slab = np.zeros((total_rows, SLAB_LANES), np.float32)
    for o, arr in placed:
        slab[o:o + arr.shape[0], :arr.shape[1]] = arr
    return jnp.asarray(slab), layout


# -----------------------------------------------------------------------------
# Fused forward pass (single pallas_call)
# -----------------------------------------------------------------------------
def predictor_lstm_forward(x, slab, layout, input_size, hidden_size, num_layers,
                           out_size):
    """Mirrors PredictorLSTM.forward. x: (B, T, input_size[0]) batch-first f32."""
    B, T, I0 = x.shape
    I1 = input_size[1]
    H0, H1 = hidden_size

    def kernel(x_ref, slab_ref, out_ref):
        def wget(name):
            off, rows, cols = layout[name]
            return slab_ref[off:off + rows, 0:cols]     # static slice of the slab

        def lstm_layer(x_2d, S, prefix, li, H, last_layer):
            """x_2d: (S*B, Din) step-major stacked inputs -> final h or all hs."""
            SB = x_2d.shape[0]
            Bb = SB // S
            w_ih = wget(f"{prefix}.{li}.w_ih")          # (Din, 4H)
            w_hh = wget(f"{prefix}.{li}.w_hh")          # (H,   4H)
            b = wget(f"{prefix}.{li}.b")                # (1,   4H)
            # One batched input projection for every step (off the serial chain).
            xproj = jnp.dot(x_2d, w_ih, preferred_element_type=jnp.float32) + b
            h = None
            c = None
            hs = []
            for t in range(S):
                g_pre = xproj[t * Bb:(t + 1) * Bb, :]   # (B, 4H) sublane select
                if t == 0:
                    gates = g_pre                       # h == 0: skip h @ W_hh
                else:
                    gates = g_pre + jnp.dot(h, w_hh,
                                            preferred_element_type=jnp.float32)
                # One sigmoid + one tanh over the whole 4H-lane vreg, then
                # exact-H lane slices (no padded-lane garbage leaks into h/c).
                sig = jax.nn.sigmoid(gates)
                tnh = jnp.tanh(gates)
                i_g = sig[:, 0 * H:1 * H]
                f_g = sig[:, 1 * H:2 * H]
                o_g = sig[:, 3 * H:4 * H]
                g_g = tnh[:, 2 * H:3 * H]
                c = i_g * g_g if t == 0 else f_g * c + i_g * g_g
                h = o_g * jnp.tanh(c)
                if not last_layer:
                    hs.append(h)
            if last_layer:
                return h                                # (B, H) last-step hidden
            return jnp.concatenate(hs, axis=0)          # (S*B, H) step-major

        def run_stack(x_2d, S, prefix, H):
            seq = x_2d
            for li in range(num_layers):
                seq = lstm_layer(seq, S, prefix, li, H, li == num_layers - 1)
            return seq                                  # (B, H)

        x_val = x_ref[...]                              # (B, T, I0) in VMEM

        # --- line branch ------------------------------------------------------
        x_line0 = jnp.concatenate([x_val[:, t, :] for t in range(T)], axis=0)
        h_line0 = run_stack(x_line0, T, "line0", H0)                    # (B, H0)
        n_l1 = H0 // I0
        x_line1 = jnp.concatenate(
            [h_line0[:, k * I0:(k + 1) * I0] for k in range(n_l1)], axis=0)
        h_line1 = run_stack(x_line1, n_l1, "line1", H1)                 # (B, H1)

        # --- verti branch -----------------------------------------------------
        ratio = I0 // I1
        x_verti0 = jnp.concatenate(
            [x_val[:, t, r * I1:(r + 1) * I1] for t in range(T) for r in range(ratio)],
            axis=0)
        h_verti0 = run_stack(x_verti0, T * ratio, "verti0", H0)         # (B, H0)
        n_v1 = H0 // I1
        x_verti1 = jnp.concatenate(
            [h_verti0[:, k * I1:(k + 1) * I1] for k in range(n_v1)], axis=0)
        h_verti1 = run_stack(x_verti1, n_v1, "verti1", H1)              # (B, H1)

        # --- final linear (concat folded into two row-split matmuls) -----------
        out = (jnp.dot(h_line1, wget("lin_w_line"), preferred_element_type=jnp.float32)
               + jnp.dot(h_verti1, wget("lin_w_verti"), preferred_element_type=jnp.float32)
               + wget("lin_b"))
        out_ref[...] = out.astype(out_ref.dtype)

    return pl.pallas_call(
        kernel,
        out_shape=jax.ShapeDtypeStruct((B, out_size), jnp.float32),
        grid=(1,),
        in_specs=[pl.BlockSpec((B, T, I0), lambda i: (0, 0, 0)),
                  pl.BlockSpec(slab.shape, lambda i: (0, 0))],
        out_specs=pl.BlockSpec((B, out_size), lambda i: (0, 0)),
        compiler_params=pltpu.CompilerParams(
            dimension_semantics=("arbitrary",),
            vmem_limit_bytes=4 * 1024 * 1024),
    )(x, slab)


# -----------------------------------------------------------------------------
# Deterministic parameter init (mimics torch.nn.LSTM / nn.Linear U(-k, k))
# -----------------------------------------------------------------------------
def init_lstm_params(key, input_dim, hidden, num_layers):
    layers = []
    k = 1.0 / np.sqrt(hidden)
    for layer in range(num_layers):
        d = input_dim if layer == 0 else hidden
        key, k1, k2, k3, k4 = jax.random.split(key, 5)
        layers.append(dict(
            w_ih=jax.random.uniform(k1, (4 * hidden, d), jnp.float32, -k, k),
            w_hh=jax.random.uniform(k2, (4 * hidden, hidden), jnp.float32, -k, k),
            b_ih=jax.random.uniform(k3, (4 * hidden,), jnp.float32, -k, k),
            b_hh=jax.random.uniform(k4, (4 * hidden,), jnp.float32, -k, k)))
    return key, layers


# -----------------------------------------------------------------------------
# Pure-JAX reference (lax.scan) for correctness check
# -----------------------------------------------------------------------------
def _ref_lstm_layer(x_bf, w_ih, w_hh, b_ih, b_hh):
    B = x_bf.shape[0]
    H = w_hh.shape[1]
    w_ih_t, w_hh_t = w_ih.T, w_hh.T
    b = (b_ih + b_hh).reshape(1, -1)

    def step(carry, x_t):
        h, c = carry
        gates = x_t @ w_ih_t + h @ w_hh_t + b
        i = jax.nn.sigmoid(gates[:, 0 * H:1 * H])
        f = jax.nn.sigmoid(gates[:, 1 * H:2 * H])
        g = jnp.tanh(gates[:, 2 * H:3 * H])
        o = jax.nn.sigmoid(gates[:, 3 * H:4 * H])
        c = f * c + i * g
        h = o * jnp.tanh(c)
        return (h, c), h

    h0 = jnp.zeros((B, H), jnp.float32)
    (_, _), hs = jax.lax.scan(step, (h0, h0), jnp.transpose(x_bf, (1, 0, 2)))
    return jnp.transpose(hs, (1, 0, 2))


def _ref_run_lstm(x_bf, layers):
    h = x_bf
    for lp in layers:
        h = _ref_lstm_layer(h, lp["w_ih"], lp["w_hh"], lp["b_ih"], lp["b_hh"])
    return h


def ref_forward(x, raw, lin_w, lin_b, input_size):
    B = x.shape[0]
    I0, I1 = input_size
    out_line0 = _ref_run_lstm(x, raw["line0"])
    out_line1 = _ref_run_lstm(out_line0[:, -1, :].reshape(B, -1, I0), raw["line1"])
    out_verti0 = _ref_run_lstm(x.reshape(B, -1, I1), raw["verti0"])
    out_verti1 = _ref_run_lstm(out_verti0[:, -1, :].reshape(B, -1, I1), raw["verti1"])
    # .squeeze() in the PyTorch reference is a no-op for batch >= 2
    feat = jnp.concatenate([out_line1[:, -1, :], out_verti1[:, -1, :]], axis=-1)
    return feat @ lin_w.T + lin_b.reshape(1, -1)


# -----------------------------------------------------------------------------
if __name__ == "__main__":
    B, T = 2, 8
    input_size = (8, 4)       # (input_size[0], input_size[1])
    hidden_size = (16, 32)    # (hidden_size[0], hidden_size[1])
    num_layers = 2
    out_size = 4

    key = jax.random.PRNGKey(0)
    key, xk = jax.random.split(key)
    x = jax.random.normal(xk, (B, T, input_size[0]), jnp.float32)

    raw = {}
    key, raw["line0"] = init_lstm_params(key, input_size[0], hidden_size[0], num_layers)
    key, raw["line1"] = init_lstm_params(key, input_size[0], hidden_size[1], num_layers)
    key, raw["verti0"] = init_lstm_params(key, input_size[1], hidden_size[0], num_layers)
    key, raw["verti1"] = init_lstm_params(key, input_size[1], hidden_size[1], num_layers)

    key, wk, bk = jax.random.split(key, 3)
    klin = 1.0 / np.sqrt(2 * hidden_size[1])
    lin_w = jax.random.uniform(wk, (out_size, 2 * hidden_size[1]), jnp.float32, -klin, klin)
    lin_b = jax.random.uniform(bk, (out_size,), jnp.float32, -klin, klin)

    slab, layout = pack_params(raw, lin_w, lin_b, input_size, hidden_size)

    out = predictor_lstm_forward(x, slab, layout, input_size, hidden_size,
                                 num_layers, out_size)
    out = jax.block_until_ready(out)
    assert out.shape == (B, out_size)

    ref = ref_forward(x, raw, lin_w, lin_b, input_size)
    np.testing.assert_allclose(np.asarray(out), np.asarray(ref), rtol=1e-4, atol=1e-4)

    print("KERNEL_OK")
</pallas_src>

<mosaic_0001>
module attributes {stable_mosaic.version = 11 : i64} {
  func.func @kernel(%arg0: i32, %arg1: memref<2x8x8xf32, #tpu.memory_space<vmem>>, %arg2: memref<456x128xf32, #tpu.memory_space<vmem>>, %arg3: memref<2x4xf32, #tpu.memory_space<vmem>>) attributes {dimension_semantics = [#tpu.dimension_semantics<arbitrary>], iteration_bounds = array<i64: 1>, scalar_prefetch = 0 : i64, scratch_operands = 0 : i64, tpu.core_type = #tpu.core_type<tc>, window_params = [{pipeline_mode = #tpu.pipeline_mode<synchronous>, transform_indices = @transform_0, window_bounds = array<i64: 2, 8, 8>}, {pipeline_mode = #tpu.pipeline_mode<synchronous>, transform_indices = @transform_1, window_bounds = array<i64: 456, 128>}, {pipeline_mode = #tpu.pipeline_mode<synchronous>, transform_indices = @transform_2, window_bounds = array<i64: 2, 4>}]} {
    %c0 = arith.constant 0 : index
    %c0_0 = arith.constant 0 : index
    %c0_1 = arith.constant 0 : index
    %0 = vector.load %arg1[%c0, %c0_0, %c0_1] : memref<2x8x8xf32, #tpu.memory_space<vmem>>, vector<2x8x8xf32>
    %1 = vector.extract_strided_slice %0 {offsets = [0, 0, 0], sizes = [2, 1, 8], strides = [1, 1, 1]} : vector<2x8x8xf32> to vector<2x1x8xf32>
    %2 = vector.shape_cast %1 : vector<2x1x8xf32> to vector<2x8xf32>
    %3 = vector.extract_strided_slice %0 {offsets = [0, 1, 0], sizes = [2, 1, 8], strides = [1, 1, 1]} : vector<2x8x8xf32> to vector<2x1x8xf32>
    %4 = vector.shape_cast %3 : vector<2x1x8xf32> to vector<2x8xf32>
    %5 = vector.extract_strided_slice %0 {offsets = [0, 2, 0], sizes = [2, 1, 8], strides = [1, 1, 1]} : vector<2x8x8xf32> to vector<2x1x8xf32>
    %6 = vector.shape_cast %5 : vector<2x1x8xf32> to vector<2x8xf32>
    %7 = vector.extract_strided_slice %0 {offsets = [0, 3, 0], sizes = [2, 1, 8], strides = [1, 1, 1]} : vector<2x8x8xf32> to vector<2x1x8xf32>
    %8 = vector.shape_cast %7 : vector<2x1x8xf32> to vector<2x8xf32>
    %9 = vector.extract_strided_slice %0 {offsets = [0, 4, 0], sizes = [2, 1, 8], strides = [1, 1, 1]} : vector<2x8x8xf32> to vector<2x1x8xf32>
    %10 = vector.shape_cast %9 : vector<2x1x8xf32> to vector<2x8xf32>
    %11 = vector.extract_strided_slice %0 {offsets = [0, 5, 0], sizes = [2, 1, 8], strides = [1, 1, 1]} : vector<2x8x8xf32> to vector<2x1x8xf32>
    %12 = vector.shape_cast %11 : vector<2x1x8xf32> to vector<2x8xf32>
    %13 = vector.extract_strided_slice %0 {offsets = [0, 6, 0], sizes = [2, 1, 8], strides = [1, 1, 1]} : vector<2x8x8xf32> to vector<2x1x8xf32>
    %14 = vector.shape_cast %13 : vector<2x1x8xf32> to vector<2x8xf32>
    %15 = vector.extract_strided_slice %0 {offsets = [0, 7, 0], sizes = [2, 1, 8], strides = [1, 1, 1]} : vector<2x8x8xf32> to vector<2x1x8xf32>
    %16 = vector.shape_cast %15 : vector<2x1x8xf32> to vector<2x8xf32>
    %17 = tpu.concatenate %2, %4, %6, %8, %10, %12, %14, %16 in 0 : vector<2x8xf32>, vector<2x8xf32>, vector<2x8xf32>, vector<2x8xf32>, vector<2x8xf32>, vector<2x8xf32>, vector<2x8xf32>, vector<2x8xf32> -> vector<16x8xf32>
    %c0_2 = arith.constant 0 : index
    %c0_3 = arith.constant 0 : index
    %18 = vector.load %arg2[%c0_2, %c0_3] : memref<456x128xf32, #tpu.memory_space<vmem>>, vector<8x64xf32>
    %c8 = arith.constant 8 : index
    %c0_4 = arith.constant 0 : index
    %19 = vector.load %arg2[%c8, %c0_4] : memref<456x128xf32, #tpu.memory_space<vmem>>, vector<16x64xf32>
    %c24 = arith.constant 24 : index
    %c0_5 = arith.constant 0 : index
    %20 = vector.load %arg2[%c24, %c0_5] : memref<456x128xf32, #tpu.memory_space<vmem>>, vector<1x64xf32>
    %cst = arith.constant dense<0.000000e+00> : vector<16x64xf32>
    %21 = tpu.matmul %17, %18, %cst {dimension_numbers = #tpu.dot_dimension_numbers<[1], [0], [0], [1], [0, 0, 1, 1], [], []>} : vector<16x8xf32>, vector<8x64xf32>, vector<16x64xf32> -> vector<16x64xf32>
    %22 = vector.broadcast %20 : vector<1x64xf32> to vector<16x64xf32>
    %23 = arith.addf %21, %22 : vector<16x64xf32>
    %24 = vector.extract_strided_slice %23 {offsets = [0, 0], sizes = [2, 64], strides = [1, 1]} : vector<16x64xf32> to vector<2x64xf32>
    %25 = arith.negf %24 : vector<2x64xf32>
    %26 = math.exp %25 : vector<2x64xf32>
    %cst_6 = arith.constant 1.000000e+00 : f32
    %27 = vector.broadcast %cst_6 : f32 to vector<2x64xf32>
    %28 = arith.addf %27, %26 : vector<2x64xf32>
    %29 = arith.divf %27, %28 : vector<2x64xf32>
    %30 = math.tanh %24 : vector<2x64xf32>
    %31 = vector.extract_strided_slice %29 {offsets = [0, 0], sizes = [2, 16], strides = [1, 1]} : vector<2x64xf32> to vector<2x16xf32>
    %32 = vector.extract_strided_slice %29 {offsets = [0, 48], sizes = [2, 16], strides = [1, 1]} : vector<2x64xf32> to vector<2x16xf32>
    %33 = vector.extract_strided_slice %30 {offsets = [0, 32], sizes = [2, 16], strides = [1, 1]} : vector<2x64xf32> to vector<2x16xf32>
    %34 = arith.mulf %31, %33 : vector<2x16xf32>
    %35 = math.tanh %34 : vector<2x16xf32>
    %36 = arith.mulf %32, %35 : vector<2x16xf32>
    %37 = vector.extract_strided_slice %23 {offsets = [2, 0], sizes = [2, 64], strides = [1, 1]} : vector<16x64xf32> to vector<2x64xf32>
    %cst_7 = arith.constant dense<0.000000e+00> : vector<2x64xf32>
    %38 = tpu.matmul %36, %19, %cst_7 {dimension_numbers = #tpu.dot_dimension_numbers<[1], [0], [0], [1], [0, 0, 1, 1], [], []>} : vector<2x16xf32>, vector<16x64xf32>, vector<2x64xf32> -> vector<2x64xf32>
    %39 = arith.addf %37, %38 : vector<2x64xf32>
    %40 = arith.negf %39 : vector<2x64xf32>
    %41 = math.exp %40 : vector<2x64xf32>
    %cst_8 = arith.constant 1.000000e+00 : f32
    %42 = vector.broadcast %cst_8 : f32 to vector<2x64xf32>
    %43 = arith.addf %42, %41 : vector<2x64xf32>
    %44 = arith.divf %42, %43 : vector<2x64xf32>
    %45 = math.tanh %39 : vector<2x64xf32>
    %46 = vector.extract_strided_slice %44 {offsets = [0, 0], sizes = [2, 16], strides = [1, 1]} : vector<2x64xf32> to vector<2x16xf32>
    %47 = vector.extract_strided_slice %44 {offsets = [0, 16], sizes = [2, 16], strides = [1, 1]} : vector<2x64xf32> to vector<2x16xf32>
    %48 = vector.extract_strided_slice %44 {offsets = [0, 48], sizes = [2, 16], strides = [1, 1]} : vector<2x64xf32> to vector<2x16xf32>
    %49 = vector.extract_strided_slice %45 {offsets = [0, 32], sizes = [2, 16], strides = [1, 1]} : vector<2x64xf32> to vector<2x16xf32>
    %50 = arith.mulf %47, %34 : vector<2x16xf32>
    %51 = arith.mulf %46, %49 : vector<2x16xf32>
    %52 = arith.addf %50, %51 : vector<2x16xf32>
    %53 = math.tanh %52 : vector<2x16xf32>
    %54 = arith.mulf %48, %53 : vector<2x16xf32>
    %55 = vector.extract_strided_slice %23 {offsets = [4, 0], sizes = [2, 64], strides = [1, 1]} : vector<16x64xf32> to vector<2x64xf32>
    %cst_9 = arith.constant dense<0.000000e+00> : vector<2x64xf32>
    %56 = tpu.matmul %54, %19, %cst_9 {dimension_numbers = #tpu.dot_dimension_numbers<[1], [0], [0], [1], [0, 0, 1, 1], [], []>} : vector<2x16xf32>, vector<16x64xf32>, vector<2x64xf32> -> vector<2x64xf32>
    %57 = arith.addf %55, %56 : vector<2x64xf32>
    %58 = arith.negf %57 : vector<2x64xf32>
    %59 = math.exp %58 : vector<2x64xf32>
    %cst_10 = arith.constant 1.000000e+00 : f32
    %60 = vector.broadcast %cst_10 : f32 to vector<2x64xf32>
    %61 = arith.addf %60, %59 : vector<2x64xf32>
    %62 = arith.divf %60, %61 : vector<2x64xf32>
    %63 = math.tanh %57 : vector<2x64xf32>
    %64 = vector.extract_strided_slice %62 {offsets = [0, 0], sizes = [2, 16], strides = [1, 1]} : vector<2x64xf32> to vector<2x16xf32>
    %65 = vector.extract_strided_slice %62 {offsets = [0, 16], sizes = [2, 16], strides = [1, 1]} : vector<2x64xf32> to vector<2x16xf32>
    %66 = vector.extract_strided_slice %62 {offsets = [0, 48], sizes = [2, 16], strides = [1, 1]} : vector<2x64xf32> to vector<2x16xf32>
    %67 = vector.extract_strided_slice %63 {offsets = [0, 32], sizes = [2, 16], strides = [1, 1]} : vector<2x64xf32> to vector<2x16xf32>
    %68 = arith.mulf %65, %52 : vector<2x16xf32>
    %69 = arith.mulf %64, %67 : vector<2x16xf32>
    %70 = arith.addf %68, %69 : vector<2x16xf32>
    %71 = math.tanh %70 : vector<2x16xf32>
    %72 = arith.mulf %66, %71 : vector<2x16xf32>
    %73 = vector.extract_strided_slice %23 {offsets = [6, 0], sizes = [2, 64], strides = [1, 1]} : vector<16x64xf32> to vector<2x64xf32>
    %cst_11 = arith.constant dense<0.000000e+00> : vector<2x64xf32>
    %74 = tpu.matmul %72, %19, %cst_11 {dimension_numbers = #tpu.dot_dimension_numbers<[1], [0], [0], [1], [0, 0, 1, 1], [], []>} : vector<2x16xf32>, vector<16x64xf32>, vector<2x64xf32> -> vector<2x64xf32>
    %75 = arith.addf %73, %74 : vector<2x64xf32>
    %76 = arith.negf %75 : vector<2x64xf32>
    %77 = math.exp %76 : vector<2x64xf32>
    %cst_12 = arith.constant 1.000000e+00 : f32
    %78 = vector.broadcast %cst_12 : f32 to vector<2x64xf32>
    %79 = arith.addf %78, %77 : vector<2x64xf32>
    %80 = arith.divf %78, %79 : vector<2x64xf32>
    %81 = math.tanh %75 : vector<2x64xf32>
    %82 = vector.extract_strided_slice %80 {offsets = [0, 0], sizes = [2, 16], strides = [1, 1]} : vector<2x64xf32> to vector<2x16xf32>
    %83 = vector.extract_strided_slice %80 {offsets = [0, 16], sizes = [2, 16], strides = [1, 1]} : vector<2x64xf32> to vector<2x16xf32>
    %84 = vector.extract_strided_slice %80 {offsets = [0, 48], sizes = [2, 16], strides = [1, 1]} : vector<2x64xf32> to vector<2x16xf32>
    %85 = vector.extract_strided_slice %81 {offsets = [0, 32], sizes = [2, 16], strides = [1, 1]} : vector<2x64xf32> to vector<2x16xf32>
    %86 = arith.mulf %83, %70 : vector<2x16xf32>
    %87 = arith.mulf %82, %85 : vector<2x16xf32>
    %88 = arith.addf %86, %87 : vector<2x16xf32>
    %89 = math.tanh %88 : vector<2x16xf32>
    %90 = arith.mulf %84, %89 : vector<2x16xf32>
    %91 = vector.extract_strided_slice %23 {offsets = [8, 0], sizes = [2, 64], strides = [1, 1]} : vector<16x64xf32> to vector<2x64xf32>
    %cst_13 = arith.constant dense<0.000000e+00> : vector<2x64xf32>
    %92 = tpu.matmul %90, %19, %cst_13 {dimension_numbers = #tpu.dot_dimension_numbers<[1], [0], [0], [1], [0, 0, 1, 1], [], []>} : vector<2x16xf32>, vector<16x64xf32>, vector<2x64xf32> -> vector<2x64xf32>
    %93 = arith.addf %91, %92 : vector<2x64xf32>
    %94 = arith.negf %93 : vector<2x64xf32>
    %95 = math.exp %94 : vector<2x64xf32>
    %cst_14 = arith.constant 1.000000e+00 : f32
    %96 = vector.broadcast %cst_14 : f32 to vector<2x64xf32>
    %97 = arith.addf %96, %95 : vector<2x64xf32>
    %98 = arith.divf %96, %97 : vector<2x64xf32>
    %99 = math.tanh %93 : vector<2x64xf32>
    %100 = vector.extract_strided_slice %98 {offsets = [0, 0], sizes = [2, 16], strides = [1, 1]} : vector<2x64xf32> to vector<2x16xf32>
    %101 = vector.extract_strided_slice %98 {offsets = [0, 16], sizes = [2, 16], strides = [1, 1]} : vector<2x64xf32> to vector<2x16xf32>
    %102 = vector.extract_strided_slice %98 {offsets = [0, 48], sizes = [2, 16], strides = [1, 1]} : vector<2x64xf32> to vector<2x16xf32>
    %103 = vector.extract_strided_slice %99 {offsets = [0, 32], sizes = [2, 16], strides = [1, 1]} : vector<2x64xf32> to vector<2x16xf32>
    %104 = arith.mulf %101, %88 : vector<2x16xf32>
    %105 = arith.mulf %100, %103 : vector<2x16xf32>
    %106 = arith.addf %104, %105 : vector<2x16xf32>
    %107 = math.tanh %106 : vector<2x16xf32>
    %108 = arith.mulf %102, %107 : vector<2x16xf32>
    %109 = vector.extract_strided_slice %23 {offsets = [10, 0], sizes = [2, 64], strides = [1, 1]} : vector<16x64xf32> to vector<2x64xf32>
    %cst_15 = arith.constant dense<0.000000e+00> : vector<2x64xf32>
    %110 = tpu.matmul %108, %19, %cst_15 {dimension_numbers = #tpu.dot_dimension_numbers<[1], [0], [0], [1], [0, 0, 1, 1], [], []>} : vector<2x16xf32>, vector<16x64xf32>, vector<2x64xf32> -> vector<2x64xf32>
    %111 = arith.addf %109, %110 : vector<2x64xf32>
    %112 = arith.negf %111 : vector<2x64xf32>
    %113 = math.exp %112 : vector<2x64xf32>
    %cst_16 = arith.constant 1.000000e+00 : f32
    %114 = vector.broadcast %cst_16 : f32 to vector<2x64xf32>
    %115 = arith.addf %114, %113 : vector<2x64xf32>
    %116 = arith.divf %114, %115 : vector<2x64xf32>
    %117 = math.tanh %111 : vector<2x64xf32>
    %118 = vector.extract_strided_slice %116 {offsets = [0, 0], sizes = [2, 16], strides = [1, 1]} : vector<2x64xf32> to vector<2x16xf32>
    %119 = vector.extract_strided_slice %116 {offsets = [0, 16], sizes = [2, 16], strides = [1, 1]} : vector<2x64xf32> to vector<2x16xf32>
    %120 = vector.extract_strided_slice %116 {offsets = [0, 48], sizes = [2, 16], strides = [1, 1]} : vector<2x64xf32> to vector<2x16xf32>
    %121 = vector.extract_strided_slice %117 {offsets = [0, 32], sizes = [2, 16], strides = [1, 1]} : vector<2x64xf32> to vector<2x16xf32>
    %122 = arith.mulf %119, %106 : vector<2x16xf32>
    %123 = arith.mulf %118, %121 : vector<2x16xf32>
    %124 = arith.addf %122, %123 : vector<2x16xf32>
    %125 = math.tanh %124 : vector<2x16xf32>
    %126 = arith.mulf %120, %125 : vector<2x16xf32>
    %127 = vector.extract_strided_slice %23 {offsets = [12, 0], sizes = [2, 64], strides = [1, 1]} : vector<16x64xf32> to vector<2x64xf32>
    %cst_17 = arith.constant dense<0.000000e+00> : vector<2x64xf32>
    %128 = tpu.matmul %126, %19, %cst_17 {dimension_numbers = #tpu.dot_dimension_numbers<[1], [0], [0], [1], [0, 0, 1, 1], [], []>} : vector<2x16xf32>, vector<16x64xf32>, vector<2x64xf32> -> vector<2x64xf32>
    %129 = arith.addf %127, %128 : vector<2x64xf32>
    %130 = arith.negf %129 : vector<2x64xf32>
    %131 = math.exp %130 : vector<2x64xf32>
    %cst_18 = arith.constant 1.000000e+00 : f32
    %132 = vector.broadcast %cst_18 : f32 to vector<2x64xf32>
    %133 = arith.addf %132, %131 : vector<2x64xf32>
    %134 = arith.divf %132, %133 : vector<2x64xf32>
    %135 = math.tanh %129 : vector<2x64xf32>
    %136 = vector.extract_strided_slice %134 {offsets = [0, 0], sizes = [2, 16], strides = [1, 1]} : vector<2x64xf32> to vector<2x16xf32>
    %137 = vector.extract_strided_slice %134 {offsets = [0, 16], sizes = [2, 16], strides = [1, 1]} : vector<2x64xf32> to vector<2x16xf32>
    %138 = vector.extract_strided_slice %134 {offsets = [0, 48], sizes = [2, 16], strides = [1, 1]} : vector<2x64xf32> to vector<2x16xf32>
    %139 = vector.extract_strided_slice %135 {offsets = [0, 32], sizes = [2, 16], strides = [1, 1]} : vector<2x64xf32> to vector<2x16xf32>
    %140 = arith.mulf %137, %124 : vector<2x16xf32>
    %141 = arith.mulf %136, %139 : vector<2x16xf32>
    %142 = arith.addf %140, %141 : vector<2x16xf32>
    %143 = math.tanh %142 : vector<2x16xf32>
    %144 = arith.mulf %138, %143 : vector<2x16xf32>
    %145 = vector.extract_strided_slice %23 {offsets = [14, 0], sizes = [2, 64], strides = [1, 1]} : vector<16x64xf32> to vector<2x64xf32>
    %cst_19 = arith.constant dense<0.000000e+00> : vector<2x64xf32>
    %146 = tpu.matmul %144, %19, %cst_19 {dimension_numbers = #tpu.dot_dimension_numbers<[1], [0], [0], [1], [0, 0, 1, 1], [], []>} : vector<2x16xf32>, vector<16x64xf32>, vector<2x64xf32> -> vector<2x64xf32>
    %147 = arith.addf %145, %146 : vector<2x64xf32>
    %148 = arith.negf %147 : vector<2x64xf32>
    %149 = math.exp %148 : vector<2x64xf32>
    %cst_20 = arith.constant 1.000000e+00 : f32
    %150 = vector.broadcast %cst_20 : f32 to vector<2x64xf32>
    %151 = arith.addf %150, %149 : vector<2x64xf32>
    %152 = arith.divf %150, %151 : vector<2x64xf32>
    %153 = math.tanh %147 : vector<2x64xf32>
    %154 = vector.extract_strided_slice %152 {offsets = [0, 0], sizes = [2, 16], strides = [1, 1]} : vector<2x64xf32> to vector<2x16xf32>
    %155 = vector.extract_strided_slice %152 {offsets = [0, 16], sizes = [2, 16], strides = [1, 1]} : vector<2x64xf32> to vector<2x16xf32>
    %156 = vector.extract_strided_slice %152 {offsets = [0, 48], sizes = [2, 16], strides = [1, 1]} : vector<2x64xf32> to vector<2x16xf32>
    %157 = vector.extract_strided_slice %153 {offsets = [0, 32], sizes = [2, 16], strides = [1, 1]} : vector<2x64xf32> to vector<2x16xf32>
    %158 = arith.mulf %155, %142 : vector<2x16xf32>
    %159 = arith.mulf %154, %157 : vector<2x16xf32>
    %160 = arith.addf %158, %159 : vector<2x16xf32>
    %161 = math.tanh %160 : vector<2x16xf32>
    %162 = arith.mulf %156, %161 : vector<2x16xf32>
    %163 = tpu.concatenate %36, %54, %72, %90, %108, %126, %144, %162 in 0 : vector<2x16xf32>, vector<2x16xf32>, vector<2x16xf32>, vector<2x16xf32>, vector<2x16xf32>, vector<2x16xf32>, vector<2x16xf32>, vector<2x16xf32> -> vector<16x16xf32>
    %c32 = arith.constant 32 : index
    %c0_21 = arith.constant 0 : index
    %164 = vector.load %arg2[%c32, %c0_21] : memref<456x128xf32, #tpu.memory_space<vmem>>, vector<16x64xf32>
    %c48 = arith.constant 48 : index
    %c0_22 = arith.constant 0 : index
    %165 = vector.load %arg2[%c48, %c0_22] : memref<456x128xf32, #tpu.memory_space<vmem>>, vector<16x64xf32>
    %c64 = arith.constant 64 : index
    %c0_23 = arith.constant 0 : index
    %166 = vector.load %arg2[%c64, %c0_23] : memref<456x128xf32, #tpu.memory_space<vmem>>, vector<1x64xf32>
    %cst_24 = arith.constant dense<0.000000e+00> : vector<16x64xf32>
    %167 = tpu.matmul %163, %164, %cst_24 {dimension_numbers = #tpu.dot_dimension_numbers<[1], [0], [0], [1], [0, 0, 1, 1], [], []>} : vector<16x16xf32>, vector<16x64xf32>, vector<16x64xf32> -> vector<16x64xf32>
    %168 = vector.broadcast %166 : vector<1x64xf32> to vector<16x64xf32>
    %169 = arith.addf %167, %168 : vector<16x64xf32>
    %170 = vector.extract_strided_slice %169 {offsets = [0, 0], sizes = [2, 64], strides = [1, 1]} : vector<16x64xf32> to vector<2x64xf32>
    %171 = arith.negf %170 : vector<2x64xf32>
    %172 = math.exp %171 : vector<2x64xf32>
    %cst_25 = arith.constant 1.000000e+00 : f32
    %173 = vector.broadcast %cst_25 : f32 to vector<2x64xf32>
    %174 = arith.addf %173, %172 : vector<2x64xf32>
    %175 = arith.divf %173, %174 : vector<2x64xf32>
    %176 = math.tanh %170 : vector<2x64xf32>
    %177 = vector.extract_strided_slice %175 {offsets = [0, 0], sizes = [2, 16], strides = [1, 1]} : vector<2x64xf32> to vector<2x16xf32>
    %178 = vector.extract_strided_slice %175 {offsets = [0, 48], sizes = [2, 16], strides = [1, 1]} : vector<2x64xf32> to vector<2x16xf32>
    %179 = vector.extract_strided_slice %176 {offsets = [0, 32], sizes = [2, 16], strides = [1, 1]} : vector<2x64xf32> to vector<2x16xf32>
    %180 = arith.mulf %177, %179 : vector<2x16xf32>
    %181 = math.tanh %180 : vector<2x16xf32>
    %182 = arith.mulf %178, %181 : vector<2x16xf32>
    %183 = vector.extract_strided_slice %169 {offsets = [2, 0], sizes = [2, 64], strides = [1, 1]} : vector<16x64xf32> to vector<2x64xf32>
    %cst_26 = arith.constant dense<0.000000e+00> : vector<2x64xf32>
    %184 = tpu.matmul %182, %165, %cst_26 {dimension_numbers = #tpu.dot_dimension_numbers<[1], [0], [0], [1], [0, 0, 1, 1], [], []>} : vector<2x16xf32>, vector<16x64xf32>, vector<2x64xf32> -> vector<2x64xf32>
    %185 = arith.addf %183, %184 : vector<2x64xf32>
    %186 = arith.negf %185 : vector<2x64xf32>
    %187 = math.exp %186 : vector<2x64xf32>
    %cst_27 = arith.constant 1.000000e+00 : f32
    %188 = vector.broadcast %cst_27 : f32 to vector<2x64xf32>
    %189 = arith.addf %188, %187 : vector<2x64xf32>
    %190 = arith.divf %188, %189 : vector<2x64xf32>
    %191 = math.tanh %185 : vector<2x64xf32>
    %192 = vector.extract_strided_slice %190 {offsets = [0, 0], sizes = [2, 16], strides = [1, 1]} : vector<2x64xf32> to vector<2x16xf32>
    %193 = vector.extract_strided_slice %190 {offsets = [0, 16], sizes = [2, 16], strides = [1, 1]} : vector<2x64xf32> to vector<2x16xf32>
    %194 = vector.extract_strided_slice %190 {offsets = [0, 48], sizes = [2, 16], strides = [1, 1]} : vector<2x64xf32> to vector<2x16xf32>
    %195 = vector.extract_strided_slice %191 {offsets = [0, 32], sizes = [2, 16], strides = [1, 1]} : vector<2x64xf32> to vector<2x16xf32>
    %196 = arith.mulf %193, %180 : vector<2x16xf32>
    %197 = arith.mulf %192, %195 : vector<2x16xf32>
    %198 = arith.addf %196, %197 : vector<2x16xf32>
    %199 = math.tanh %198 : vector<2x16xf32>
    %200 = arith.mulf %194, %199 : vector<2x16xf32>
    %201 = vector.extract_strided_slice %169 {offsets = [4, 0], sizes = [2, 64], strides = [1, 1]} : vector<16x64xf32> to vector<2x64xf32>
    %cst_28 = arith.constant dense<0.000000e+00> : vector<2x64xf32>
    %202 = tpu.matmul %200, %165, %cst_28 {dimension_numbers = #tpu.dot_dimension_numbers<[1], [0], [0], [1], [0, 0, 1, 1], [], []>} : vector<2x16xf32>, vector<16x64xf32>, vector<2x64xf32> -> vector<2x64xf32>
    %203 = arith.addf %201, %202 : vector<2x64xf32>
    %204 = arith.negf %203 : vector<2x64xf32>
    %205 = math.exp %204 : vector<2x64xf32>
    %cst_29 = arith.constant 1.000000e+00 : f32
    %206 = vector.broadcast %cst_29 : f32 to vector<2x64xf32>
    %207 = arith.addf %206, %205 : vector<2x64xf32>
    %208 = arith.divf %206, %207 : vector<2x64xf32>
    %209 = math.tanh %203 : vector<2x64xf32>
    %210 = vector.extract_strided_slice %208 {offsets = [0, 0], sizes = [2, 16], strides = [1, 1]} : vector<2x64xf32> to vector<2x16xf32>
    %211 = vector.extract_strided_slice %208 {offsets = [0, 16], sizes = [2, 16], strides = [1, 1]} : vector<2x64xf32> to vector<2x16xf32>
    %212 = vector.extract_strided_slice %208 {offsets = [0, 48], sizes = [2, 16], strides = [1, 1]} : vector<2x64xf32> to vector<2x16xf32>
    %213 = vector.extract_strided_slice %209 {offsets = [0, 32], sizes = [2, 16], strides = [1, 1]} : vector<2x64xf32> to vector<2x16xf32>
    %214 = arith.mulf %211, %198 : vector<2x16xf32>
    %215 = arith.mulf %210, %213 : vector<2x16xf32>
    %216 = arith.addf %214, %215 : vector<2x16xf32>
    %217 = math.tanh %216 : vector<2x16xf32>
    %218 = arith.mulf %212, %217 : vector<2x16xf32>
    %219 = vector.extract_strided_slice %169 {offsets = [6, 0], sizes = [2, 64], strides = [1, 1]} : vector<16x64xf32> to vector<2x64xf32>
    %cst_30 = arith.constant dense<0.000000e+00> : vector<2x64xf32>
    %220 = tpu.matmul %218, %165, %cst_30 {dimension_numbers = #tpu.dot_dimension_numbers<[1], [0], [0], [1], [0, 0, 1, 1], [], []>} : vector<2x16xf32>, vector<16x64xf32>, vector<2x64xf32> -> vector<2x64xf32>
    %221 = arith.addf %219, %220 : vector<2x64xf32>
    %222 = arith.negf %221 : vector<2x64xf32>
    %223 = math.exp %222 : vector<2x64xf32>
    %cst_31 = arith.constant 1.000000e+00 : f32
    %224 = vector.broadcast %cst_31 : f32 to vector<2x64xf32>
    %225 = arith.addf %224, %223 : vector<2x64xf32>
    %226 = arith.divf %224, %225 : vector<2x64xf32>
    %227 = math.tanh %221 : vector<2x64xf32>
    %228 = vector.extract_strided_slice %226 {offsets = [0, 0], sizes = [2, 16], strides = [1, 1]} : vector<2x64xf32> to vector<2x16xf32>
    %229 = vector.extract_strided_slice %226 {offsets = [0, 16], sizes = [2, 16], strides = [1, 1]} : vector<2x64xf32> to vector<2x16xf32>
    %230 = vector.extract_strided_slice %226 {offsets = [0, 48], sizes = [2, 16], strides = [1, 1]} : vector<2x64xf32> to vector<2x16xf32>
    %231 = vector.extract_strided_slice %227 {offsets = [0, 32], sizes = [2, 16], strides = [1, 1]} : vector<2x64xf32> to vector<2x16xf32>
    %232 = arith.mulf %229, %216 : vector<2x16xf32>
    %233 = arith.mulf %228, %231 : vector<2x16xf32>
    %234 = arith.addf %232, %233 : vector<2x16xf32>
    %235 = math.tanh %234 : vector<2x16xf32>
    %236 = arith.mulf %230, %235 : vector<2x16xf32>
    %237 = vector.extract_strided_slice %169 {offsets = [8, 0], sizes = [2, 64], strides = [1, 1]} : vector<16x64xf32> to vector<2x64xf32>
    %cst_32 = arith.constant dense<0.000000e+00> : vector<2x64xf32>
    %238 = tpu.matmul %236, %165, %cst_32 {dimension_numbers = #tpu.dot_dimension_numbers<[1], [0], [0], [1], [0, 0, 1, 1], [], []>} : vector<2x16xf32>, vector<16x64xf32>, vector<2x64xf32> -> vector<2x64xf32>
    %239 = arith.addf %237, %238 : vector<2x64xf32>
    %240 = arith.negf %239 : vector<2x64xf32>
    %241 = math.exp %240 : vector<2x64xf32>
    %cst_33 = arith.constant 1.000000e+00 : f32
    %242 = vector.broadcast %cst_33 : f32 to vector<2x64xf32>
    %243 = arith.addf %242, %241 : vector<2x64xf32>
    %244 = arith.divf %242, %243 : vector<2x64xf32>
    %245 = math.tanh %239 : vector<2x64xf32>
    %246 = vector.extract_strided_slice %244 {offsets = [0, 0], sizes = [2, 16], strides = [1, 1]} : vector<2x64xf32> to vector<2x16xf32>
    %247 = vector.extract_strided_slice %244 {offsets = [0, 16], sizes = [2, 16], strides = [1, 1]} : vector<2x64xf32> to vector<2x16xf32>
    %248 = vector.extract_strided_slice %244 {offsets = [0, 48], sizes = [2, 16], strides = [1, 1]} : vector<2x64xf32> to vector<2x16xf32>
    %249 = vector.extract_strided_slice %245 {offsets = [0, 32], sizes = [2, 16], strides = [1, 1]} : vector<2x64xf32> to vector<2x16xf32>
    %250 = arith.mulf %247, %234 : vector<2x16xf32>
    %251 = arith.mulf %246, %249 : vector<2x16xf32>
    %252 = arith.addf %250, %251 : vector<2x16xf32>
    %253 = math.tanh %252 : vector<2x16xf32>
    %254 = arith.mulf %248, %253 : vector<2x16xf32>
    %255 = vector.extract_strided_slice %169 {offsets = [10, 0], sizes = [2, 64], strides = [1, 1]} : vector<16x64xf32> to vector<2x64xf32>
    %cst_34 = arith.constant dense<0.000000e+00> : vector<2x64xf32>
    %256 = tpu.matmul %254, %165, %cst_34 {dimension_numbers = #tpu.dot_dimension_numbers<[1], [0], [0], [1], [0, 0, 1, 1], [], []>} : vector<2x16xf32>, vector<16x64xf32>, vector<2x64xf32> -> vector<2x64xf32>
    %257 = arith.addf %255, %256 : vector<2x64xf32>
    %258 = arith.negf %257 : vector<2x64xf32>
    %259 = math.exp %258 : vector<2x64xf32>
    %cst_35 = arith.constant 1.000000e+00 : f32
    %260 = vector.broadcast %cst_35 : f32 to vector<2x64xf32>
    %261 = arith.addf %260, %259 : vector<2x64xf32>
    %262 = arith.divf %260, %261 : vector<2x64xf32>
    %263 = math.tanh %257 : vector<2x64xf32>
    %264 = vector.extract_strided_slice %262 {offsets = [0, 0], sizes = [2, 16], strides = [1, 1]} : vector<2x64xf32> to vector<2x16xf32>
    %265 = vector.extract_strided_slice %262 {offsets = [0, 16], sizes = [2, 16], strides = [1, 1]} : vector<2x64xf32> to vector<2x16xf32>
    %266 = vector.extract_strided_slice %262 {offsets = [0, 48], sizes = [2, 16], strides = [1, 1]} : vector<2x64xf32> to vector<2x16xf32>
    %267 = vector.extract_strided_slice %263 {offsets = [0, 32], sizes = [2, 16], strides = [1, 1]} : vector<2x64xf32> to vector<2x16xf32>
    %268 = arith.mulf %265, %252 : vector<2x16xf32>
    %269 = arith.mulf %264, %267 : vector<2x16xf32>
    %270 = arith.addf %268, %269 : vector<2x16xf32>
    %271 = math.tanh %270 : vector<2x16xf32>
    %272 = arith.mulf %266, %271 : vector<2x16xf32>
    %273 = vector.extract_strided_slice %169 {offsets = [12, 0], sizes = [2, 64], strides = [1, 1]} : vector<16x64xf32> to vector<2x64xf32>
    %cst_36 = arith.constant dense<0.000000e+00> : vector<2x64xf32>
    %274 = tpu.matmul %272, %165, %cst_36 {dimension_numbers = #tpu.dot_dimension_numbers<[1], [0], [0], [1], [0, 0, 1, 1], [], []>} : vector<2x16xf32>, vector<16x64xf32>, vector<2x64xf32> -> vector<2x64xf32>
    %275 = arith.addf %273, %274 : vector<2x64xf32>
    %276 = arith.negf %275 : vector<2x64xf32>
    %277 = math.exp %276 : vector<2x64xf32>
    %cst_37 = arith.constant 1.000000e+00 : f32
    %278 = vector.broadcast %cst_37 : f32 to vector<2x64xf32>
    %279 = arith.addf %278, %277 : vector<2x64xf32>
    %280 = arith.divf %278, %279 : vector<2x64xf32>
    %281 = math.tanh %275 : vector<2x64xf32>
    %282 = vector.extract_strided_slice %280 {offsets = [0, 0], sizes = [2, 16], strides = [1, 1]} : vector<2x64xf32> to vector<2x16xf32>
    %283 = vector.extract_strided_slice %280 {offsets = [0, 16], sizes = [2, 16], strides = [1, 1]} : vector<2x64xf32> to vector<2x16xf32>
    %284 = vector.extract_strided_slice %280 {offsets = [0, 48], sizes = [2, 16], strides = [1, 1]} : vector<2x64xf32> to vector<2x16xf32>
    %285 = vector.extract_strided_slice %281 {offsets = [0, 32], sizes = [2, 16], strides = [1, 1]} : vector<2x64xf32> to vector<2x16xf32>
    %286 = arith.mulf %283, %270 : vector<2x16xf32>
    %287 = arith.mulf %282, %285 : vector<2x16xf32>
    %288 = arith.addf %286, %287 : vector<2x16xf32>
    %289 = math.tanh %288 : vector<2x16xf32>
    %290 = arith.mulf %284, %289 : vector<2x16xf32>
    %291 = vector.extract_strided_slice %169 {offsets = [14, 0], sizes = [2, 64], strides = [1, 1]} : vector<16x64xf32> to vector<2x64xf32>
    %cst_38 = arith.constant dense<0.000000e+00> : vector<2x64xf32>
    %292 = tpu.matmul %290, %165, %cst_38 {dimension_numbers = #tpu.dot_dimension_numbers<[1], [0], [0], [1], [0, 0, 1, 1], [], []>} : vector<2x16xf32>, vector<16x64xf32>, vector<2x64xf32> -> vector<2x64xf32>
    %293 = arith.addf %291, %292 : vector<2x64xf32>
    %294 = arith.negf %293 : vector<2x64xf32>
    %295 = math.exp %294 : vector<2x64xf32>
    %cst_39 = arith.constant 1.000000e+00 : f32
    %296 = vector.broadcast %cst_39 : f32 to vector<2x64xf32>
    %297 = arith.addf %296, %295 : vector<2x64xf32>
    %298 = arith.divf %296, %297 : vector<2x64xf32>
    %299 = math.tanh %293 : vector<2x64xf32>
    %300 = vector.extract_strided_slice %298 {offsets = [0, 0], sizes = [2, 16], strides = [1, 1]} : vector<2x64xf32> to vector<2x16xf32>
    %301 = vector.extract_strided_slice %298 {offsets = [0, 16], sizes = [2, 16], strides = [1, 1]} : vector<2x64xf32> to vector<2x16xf32>
    %302 = vector.extract_strided_slice %298 {offsets = [0, 48], sizes = [2, 16], strides = [1, 1]} : vector<2x64xf32> to vector<2x16xf32>
    %303 = vector.extract_strided_slice %299 {offsets = [0, 32], sizes = [2, 16], strides = [1, 1]} : vector<2x64xf32> to vector<2x16xf32>
    %304 = arith.mulf %301, %288 : vector<2x16xf32>
    %305 = arith.mulf %300, %303 : vector<2x16xf32>
    %306 = arith.addf %304, %305 : vector<2x16xf32>
    %307 = math.tanh %306 : vector<2x16xf32>
    %308 = arith.mulf %302, %307 : vector<2x16xf32>
    %309 = vector.extract_strided_slice %308 {offsets = [0, 0], sizes = [2, 8], strides = [1, 1]} : vector<2x16xf32> to vector<2x8xf32>
    %310 = vector.extract_strided_slice %308 {offsets = [0, 8], sizes = [2, 8], strides = [1, 1]} : vector<2x16xf32> to vector<2x8xf32>
    %311 = tpu.concatenate %309, %310 in 0 : vector<2x8xf32>, vector<2x8xf32> -> vector<4x8xf32>
    %c72 = arith.constant 72 : index
    %c0_40 = arith.constant 0 : index
    %312 = vector.load %arg2[%c72, %c0_40] : memref<456x128xf32, #tpu.memory_space<vmem>>, vector<8x128xf32>
    %c80 = arith.constant 80 : index
    %c0_41 = arith.constant 0 : index
    %313 = vector.load %arg2[%c80, %c0_41] : memref<456x128xf32, #tpu.memory_space<vmem>>, vector<32x128xf32>
    %c112 = arith.constant 112 : index
    %c0_42 = arith.constant 0 : index
    %314 = vector.load %arg2[%c112, %c0_42] : memref<456x128xf32, #tpu.memory_space<vmem>>, vector<1x128xf32>
    %cst_43 = arith.constant dense<0.000000e+00> : vector<4x128xf32>
    %315 = tpu.matmul %311, %312, %cst_43 {dimension_numbers = #tpu.dot_dimension_numbers<[1], [0], [0], [1], [0, 0, 1, 1], [], []>} : vector<4x8xf32>, vector<8x128xf32>, vector<4x128xf32> -> vector<4x128xf32>
    %316 = vector.broadcast %314 : vector<1x128xf32> to vector<4x128xf32>
    %317 = arith.addf %315, %316 : vector<4x128xf32>
    %318 = vector.extract_strided_slice %317 {offsets = [0, 0], sizes = [2, 128], strides = [1, 1]} : vector<4x128xf32> to vector<2x128xf32>
    %319 = arith.negf %318 : vector<2x128xf32>
    %320 = math.exp %319 : vector<2x128xf32>
    %cst_44 = arith.constant 1.000000e+00 : f32
    %321 = vector.broadcast %cst_44 : f32 to vector<2x128xf32>
    %322 = arith.addf %321, %320 : vector<2x128xf32>
    %323 = arith.divf %321, %322 : vector<2x128xf32>
    %324 = math.tanh %318 : vector<2x128xf32>
    %325 = vector.extract_strided_slice %323 {offsets = [0, 0], sizes = [2, 32], strides = [1, 1]} : vector<2x128xf32> to vector<2x32xf32>
    %326 = vector.extract_strided_slice %323 {offsets = [0, 96], sizes = [2, 32], strides = [1, 1]} : vector<2x128xf32> to vector<2x32xf32>
    %327 = vector.extract_strided_slice %324 {offsets = [0, 64], sizes = [2, 32], strides = [1, 1]} : vector<2x128xf32> to vector<2x32xf32>
    %328 = arith.mulf %325, %327 : vector<2x32xf32>
    %329 = math.tanh %328 : vector<2x32xf32>
    %330 = arith.mulf %326, %329 : vector<2x32xf32>
    %331 = vector.extract_strided_slice %317 {offsets = [2, 0], sizes = [2, 128], strides = [1, 1]} : vector<4x128xf32> to vector<2x128xf32>
    %cst_45 = arith.constant dense<0.000000e+00> : vector<2x128xf32>
    %332 = tpu.matmul %330, %313, %cst_45 {dimension_numbers = #tpu.dot_dimension_numbers<[1], [0], [0], [1], [0, 0, 1, 1], [], []>} : vector<2x32xf32>, vector<32x128xf32>, vector<2x128xf32> -> vector<2x128xf32>
    %333 = arith.addf %331, %332 : vector<2x128xf32>
    %334 = arith.negf %333 : vector<2x128xf32>
    %335 = math.exp %334 : vector<2x128xf32>
    %cst_46 = arith.constant 1.000000e+00 : f32
    %336 = vector.broadcast %cst_46 : f32 to vector<2x128xf32>
    %337 = arith.addf %336, %335 : vector<2x128xf32>
    %338 = arith.divf %336, %337 : vector<2x128xf32>
    %339 = math.tanh %333 : vector<2x128xf32>
    %340 = vector.extract_strided_slice %338 {offsets = [0, 0], sizes = [2, 32], strides = [1, 1]} : vector<2x128xf32> to vector<2x32xf32>
    %341 = vector.extract_strided_slice %338 {offsets = [0, 32], sizes = [2, 32], strides = [1, 1]} : vector<2x128xf32> to vector<2x32xf32>
    %342 = vector.extract_strided_slice %338 {offsets = [0, 96], sizes = [2, 32], strides = [1, 1]} : vector<2x128xf32> to vector<2x32xf32>
    %343 = vector.extract_strided_slice %339 {offsets = [0, 64], sizes = [2, 32], strides = [1, 1]} : vector<2x128xf32> to vector<2x32xf32>
    %344 = arith.mulf %341, %328 : vector<2x32xf32>
    %345 = arith.mulf %340, %343 : vector<2x32xf32>
    %346 = arith.addf %344, %345 : vector<2x32xf32>
    %347 = math.tanh %346 : vector<2x32xf32>
    %348 = arith.mulf %342, %347 : vector<2x32xf32>
    %349 = tpu.concatenate %330, %348 in 0 : vector<2x32xf32>, vector<2x32xf32> -> vector<4x32xf32>
    %c120 = arith.constant 120 : index
    %c0_47 = arith.constant 0 : index
    %350 = vector.load %arg2[%c120, %c0_47] : memref<456x128xf32, #tpu.memory_space<vmem>>, vector<32x128xf32>
    %c152 = arith.constant 152 : index
    %c0_48 = arith.constant 0 : index
    %351 = vector.load %arg2[%c152, %c0_48] : memref<456x128xf32, #tpu.memory_space<vmem>>, vector<32x128xf32>
    %c184 = arith.constant 184 : index
    %c0_49 = arith.constant 0 : index
    %352 = vector.load %arg2[%c184, %c0_49] : memref<456x128xf32, #tpu.memory_space<vmem>>, vector<1x128xf32>
    %cst_50 = arith.constant dense<0.000000e+00> : vector<4x128xf32>
    %353 = tpu.matmul %349, %350, %cst_50 {dimension_numbers = #tpu.dot_dimension_numbers<[1], [0], [0], [1], [0, 0, 1, 1], [], []>} : vector<4x32xf32>, vector<32x128xf32>, vector<4x128xf32> -> vector<4x128xf32>
    %354 = vector.broadcast %352 : vector<1x128xf32> to vector<4x128xf32>
    %355 = arith.addf %353, %354 : vector<4x128xf32>
    %356 = vector.extract_strided_slice %355 {offsets = [0, 0], sizes = [2, 128], strides = [1, 1]} : vector<4x128xf32> to vector<2x128xf32>
    %357 = arith.negf %356 : vector<2x128xf32>
    %358 = math.exp %357 : vector<2x128xf32>
    %cst_51 = arith.constant 1.000000e+00 : f32
    %359 = vector.broadcast %cst_51 : f32 to vector<2x128xf32>
    %360 = arith.addf %359, %358 : vector<2x128xf32>
    %361 = arith.divf %359, %360 : vector<2x128xf32>
    %362 = math.tanh %356 : vector<2x128xf32>
    %363 = vector.extract_strided_slice %361 {offsets = [0, 0], sizes = [2, 32], strides = [1, 1]} : vector<2x128xf32> to vector<2x32xf32>
    %364 = vector.extract_strided_slice %361 {offsets = [0, 96], sizes = [2, 32], strides = [1, 1]} : vector<2x128xf32> to vector<2x32xf32>
    %365 = vector.extract_strided_slice %362 {offsets = [0, 64], sizes = [2, 32], strides = [1, 1]} : vector<2x128xf32> to vector<2x32xf32>
    %366 = arith.mulf %363, %365 : vector<2x32xf32>
    %367 = math.tanh %366 : vector<2x32xf32>
    %368 = arith.mulf %364, %367 : vector<2x32xf32>
    %369 = vector.extract_strided_slice %355 {offsets = [2, 0], sizes = [2, 128], strides = [1, 1]} : vector<4x128xf32> to vector<2x128xf32>
    %cst_52 = arith.constant dense<0.000000e+00> : vector<2x128xf32>
    %370 = tpu.matmul %368, %351, %cst_52 {dimension_numbers = #tpu.dot_dimension_numbers<[1], [0], [0], [1], [0, 0, 1, 1], [], []>} : vector<2x32xf32>, vector<32x128xf32>, vector<2x128xf32> -> vector<2x128xf32>
    %371 = arith.addf %369, %370 : vector<2x128xf32>
    %372 = arith.negf %371 : vector<2x128xf32>
    %373 = math.exp %372 : vector<2x128xf32>
    %cst_53 = arith.constant 1.000000e+00 : f32
    %374 = vector.broadcast %cst_53 : f32 to vector<2x128xf32>
    %375 = arith.addf %374, %373 : vector<2x128xf32>
    %376 = arith.divf %374, %375 : vector<2x128xf32>
    %377 = math.tanh %371 : vector<2x128xf32>
    %378 = vector.extract_strided_slice %376 {offsets = [0, 0], sizes = [2, 32], strides = [1, 1]} : vector<2x128xf32> to vector<2x32xf32>
    %379 = vector.extract_strided_slice %376 {offsets = [0, 32], sizes = [2, 32], strides = [1, 1]} : vector<2x128xf32> to vector<2x32xf32>
    %380 = vector.extract_strided_slice %376 {offsets = [0, 96], sizes = [2, 32], strides = [1, 1]} : vector<2x128xf32> to vector<2x32xf32>
    %381 = vector.extract_strided_slice %377 {offsets = [0, 64], sizes = [2, 32], strides = [1, 1]} : vector<2x128xf32> to vector<2x32xf32>
    %382 = arith.mulf %379, %366 : vector<2x32xf32>
    %383 = arith.mulf %378, %381 : vector<2x32xf32>
    %384 = arith.addf %382, %383 : vector<2x32xf32>
    %385 = math.tanh %384 : vector<2x32xf32>
    %386 = arith.mulf %380, %385 : vector<2x32xf32>
    %387 = vector.extract_strided_slice %0 {offsets = [0, 0, 0], sizes = [2, 1, 4], strides = [1, 1, 1]} : vector<2x8x8xf32> to vector<2x1x4xf32>
    %388 = vector.shape_cast %387 : vector<2x1x4xf32> to vector<2x4xf32>
    %389 = vector.extract_strided_slice %0 {offsets = [0, 0, 4], sizes = [2, 1, 4], strides = [1, 1, 1]} : vector<2x8x8xf32> to vector<2x1x4xf32>
    %390 = vector.shape_cast %389 : vector<2x1x4xf32> to vector<2x4xf32>
    %391 = vector.extract_strided_slice %0 {offsets = [0, 1, 0], sizes = [2, 1, 4], strides = [1, 1, 1]} : vector<2x8x8xf32> to vector<2x1x4xf32>
    %392 = vector.shape_cast %391 : vector<2x1x4xf32> to vector<2x4xf32>
    %393 = vector.extract_strided_slice %0 {offsets = [0, 1, 4], sizes = [2, 1, 4], strides = [1, 1, 1]} : vector<2x8x8xf32> to vector<2x1x4xf32>
    %394 = vector.shape_cast %393 : vector<2x1x4xf32> to vector<2x4xf32>
    %395 = vector.extract_strided_slice %0 {offsets = [0, 2, 0], sizes = [2, 1, 4], strides = [1, 1, 1]} : vector<2x8x8xf32> to vector<2x1x4xf32>
    %396 = vector.shape_cast %395 : vector<2x1x4xf32> to vector<2x4xf32>
    %397 = vector.extract_strided_slice %0 {offsets = [0, 2, 4], sizes = [2, 1, 4], strides = [1, 1, 1]} : vector<2x8x8xf32> to vector<2x1x4xf32>
    %398 = vector.shape_cast %397 : vector<2x1x4xf32> to vector<2x4xf32>
    %399 = vector.extract_strided_slice %0 {offsets = [0, 3, 0], sizes = [2, 1, 4], strides = [1, 1, 1]} : vector<2x8x8xf32> to vector<2x1x4xf32>
    %400 = vector.shape_cast %399 : vector<2x1x4xf32> to vector<2x4xf32>
    %401 = vector.extract_strided_slice %0 {offsets = [0, 3, 4], sizes = [2, 1, 4], strides = [1, 1, 1]} : vector<2x8x8xf32> to vector<2x1x4xf32>
    %402 = vector.shape_cast %401 : vector<2x1x4xf32> to vector<2x4xf32>
    %403 = vector.extract_strided_slice %0 {offsets = [0, 4, 0], sizes = [2, 1, 4], strides = [1, 1, 1]} : vector<2x8x8xf32> to vector<2x1x4xf32>
    %404 = vector.shape_cast %403 : vector<2x1x4xf32> to vector<2x4xf32>
    %405 = vector.extract_strided_slice %0 {offsets = [0, 4, 4], sizes = [2, 1, 4], strides = [1, 1, 1]} : vector<2x8x8xf32> to vector<2x1x4xf32>
    %406 = vector.shape_cast %405 : vector<2x1x4xf32> to vector<2x4xf32>
    %407 = vector.extract_strided_slice %0 {offsets = [0, 5, 0], sizes = [2, 1, 4], strides = [1, 1, 1]} : vector<2x8x8xf32> to vector<2x1x4xf32>
    %408 = vector.shape_cast %407 : vector<2x1x4xf32> to vector<2x4xf32>
    %409 = vector.extract_strided_slice %0 {offsets = [0, 5, 4], sizes = [2, 1, 4], strides = [1, 1, 1]} : vector<2x8x8xf32> to vector<2x1x4xf32>
    %410 = vector.shape_cast %409 : vector<2x1x4xf32> to vector<2x4xf32>
    %411 = vector.extract_strided_slice %0 {offsets = [0, 6, 0], sizes = [2, 1, 4], strides = [1, 1, 1]} : vector<2x8x8xf32> to vector<2x1x4xf32>
    %412 = vector.shape_cast %411 : vector<2x1x4xf32> to vector<2x4xf32>
    %413 = vector.extract_strided_slice %0 {offsets = [0, 6, 4], sizes = [2, 1, 4], strides = [1, 1, 1]} : vector<2x8x8xf32> to vector<2x1x4xf32>
    %414 = vector.shape_cast %413 : vector<2x1x4xf32> to vector<2x4xf32>
    %415 = vector.extract_strided_slice %0 {offsets = [0, 7, 0], sizes = [2, 1, 4], strides = [1, 1, 1]} : vector<2x8x8xf32> to vector<2x1x4xf32>
    %416 = vector.shape_cast %415 : vector<2x1x4xf32> to vector<2x4xf32>
    %417 = vector.extract_strided_slice %0 {offsets = [0, 7, 4], sizes = [2, 1, 4], strides = [1, 1, 1]} : vector<2x8x8xf32> to vector<2x1x4xf32>
    %418 = vector.shape_cast %417 : vector<2x1x4xf32> to vector<2x4xf32>
    %419 = tpu.concatenate %388, %390, %392, %394, %396, %398, %400, %402, %404, %406, %408, %410, %412, %414, %416, %418 in 0 : vector<2x4xf32>, vector<2x4xf32>, vector<2x4xf32>, vector<2x4xf32>, vector<2x4xf32>, vector<2x4xf32>, vector<2x4xf32>, vector<2x4xf32>, vector<2x4xf32>, vector<2x4xf32>, vector<2x4xf32>, vector<2x4xf32>, vector<2x4xf32>, vector<2x4xf32>, vector<2x4xf32>, vector<2x4xf32> -> vector<32x4xf32>
    %c192 = arith.constant 192 : index
    %c0_54 = arith.constant 0 : index
    %420 = vector.load %arg2[%c192, %c0_54] : memref<456x128xf32, #tpu.memory_space<vmem>>, vector<4x64xf32>
    %c200 = arith.constant 200 : index
    %c0_55 = arith.constant 0 : index
    %421 = vector.load %arg2[%c200, %c0_55] : memref<456x128xf32, #tpu.memory_space<vmem>>, vector<16x64xf32>
    %c216 = arith.constant 216 : index
    %c0_56 = arith.constant 0 : index
    %422 = vector.load %arg2[%c216, %c0_56] : memref<456x128xf32, #tpu.memory_space<vmem>>, vector<1x64xf32>
    %cst_57 = arith.constant dense<0.000000e+00> : vector<32x64xf32>
    %423 = tpu.matmul %419, %420, %cst_57 {dimension_numbers = #tpu.dot_dimension_numbers<[1], [0], [0], [1], [0, 0, 1, 1], [], []>} : vector<32x4xf32>, vector<4x64xf32>, vector<32x64xf32> -> vector<32x64xf32>
    %424 = vector.broadcast %422 : vector<1x64xf32> to vector<32x64xf32>
    %425 = arith.addf %423, %424 : vector<32x64xf32>
    %426 = vector.extract_strided_slice %425 {offsets = [0, 0], sizes = [2, 64], strides = [1, 1]} : vector<32x64xf32> to vector<2x64xf32>
    %427 = arith.negf %426 : vector<2x64xf32>
    %428 = math.exp %427 : vector<2x64xf32>
    %cst_58 = arith.constant 1.000000e+00 : f32
    %429 = vector.broadcast %cst_58 : f32 to vector<2x64xf32>
    %430 = arith.addf %429, %428 : vector<2x64xf32>
    %431 = arith.divf %429, %430 : vector<2x64xf32>
    %432 = math.tanh %426 : vector<2x64xf32>
    %433 = vector.extract_strided_slice %431 {offsets = [0, 0], sizes = [2, 16], strides = [1, 1]} : vector<2x64xf32> to vector<2x16xf32>
    %434 = vector.extract_strided_slice %431 {offsets = [0, 48], sizes = [2, 16], strides = [1, 1]} : vector<2x64xf32> to vector<2x16xf32>
    %435 = vector.extract_strided_slice %432 {offsets = [0, 32], sizes = [2, 16], strides = [1, 1]} : vector<2x64xf32> to vector<2x16xf32>
    %436 = arith.mulf %433, %435 : vector<2x16xf32>
    %437 = math.tanh %436 : vector<2x16xf32>
    %438 = arith.mulf %434, %437 : vector<2x16xf32>
    %439 = vector.extract_strided_slice %425 {offsets = [2, 0], sizes = [2, 64], strides = [1, 1]} : vector<32x64xf32> to vector<2x64xf32>
    %cst_59 = arith.constant dense<0.000000e+00> : vector<2x64xf32>
    %440 = tpu.matmul %438, %421, %cst_59 {dimension_numbers = #tpu.dot_dimension_numbers<[1], [0], [0], [1], [0, 0, 1, 1], [], []>} : vector<2x16xf32>, vector<16x64xf32>, vector<2x64xf32> -> vector<2x64xf32>
    %441 = arith.addf %439, %440 : vector<2x64xf32>
    %442 = arith.negf %441 : vector<2x64xf32>
    %443 = math.exp %442 : vector<2x64xf32>
    %cst_60 = arith.constant 1.000000e+00 : f32
    %444 = vector.broadcast %cst_60 : f32 to vector<2x64xf32>
    %445 = arith.addf %444, %443 : vector<2x64xf32>
    %446 = arith.divf %444, %445 : vector<2x64xf32>
    %447 = math.tanh %441 : vector<2x64xf32>
    %448 = vector.extract_strided_slice %446 {offsets = [0, 0], sizes = [2, 16], strides = [1, 1]} : vector<2x64xf32> to vector<2x16xf32>
    %449 = vector.extract_strided_slice %446 {offsets = [0, 16], sizes = [2, 16], strides = [1, 1]} : vector<2x64xf32> to vector<2x16xf32>
    %450 = vector.extract_strided_slice %446 {offsets = [0, 48], sizes = [2, 16], strides = [1, 1]} : vector<2x64xf32> to vector<2x16xf32>
    %451 = vector.extract_strided_slice %447 {offsets = [0, 32], sizes = [2, 16], strides = [1, 1]} : vector<2x64xf32> to vector<2x16xf32>
    %452 = arith.mulf %449, %436 : vector<2x16xf32>
    %453 = arith.mulf %448, %451 : vector<2x16xf32>
    %454 = arith.addf %452, %453 : vector<2x16xf32>
    %455 = math.tanh %454 : vector<2x16xf32>
    %456 = arith.mulf %450, %455 : vector<2x16xf32>
    %457 = vector.extract_strided_slice %425 {offsets = [4, 0], sizes = [2, 64], strides = [1, 1]} : vector<32x64xf32> to vector<2x64xf32>
    %cst_61 = arith.constant dense<0.000000e+00> : vector<2x64xf32>
    %458 = tpu.matmul %456, %421, %cst_61 {dimension_numbers = #tpu.dot_dimension_numbers<[1], [0], [0], [1], [0, 0, 1, 1], [], []>} : vector<2x16xf32>, vector<16x64xf32>, vector<2x64xf32> -> vector<2x64xf32>
    %459 = arith.addf %457, %458 : vector<2x64xf32>
    %460 = arith.negf %459 : vector<2x64xf32>
    %461 = math.exp %460 : vector<2x64xf32>
    %cst_62 = arith.constant 1.000000e+00 : f32
    %462 = vector.broadcast %cst_62 : f32 to vector<2x64xf32>
    %463 = arith.addf %462, %461 : vector<2x64xf32>
    %464 = arith.divf %462, %463 : vector<2x64xf32>
    %465 = math.tanh %459 : vector<2x64xf32>
    %466 = vector.extract_strided_slice %464 {offsets = [0, 0], sizes = [2, 16], strides = [1, 1]} : vector<2x64xf32> to vector<2x16xf32>
    %467 = vector.extract_strided_slice %464 {offsets = [0, 16], sizes = [2, 16], strides = [1, 1]} : vector<2x64xf32> to vector<2x16xf32>
    %468 = vector.extract_strided_slice %464 {offsets = [0, 48], sizes = [2, 16], strides = [1, 1]} : vector<2x64xf32> to vector<2x16xf32>
    %469 = vector.extract_strided_slice %465 {offsets = [0, 32], sizes = [2, 16], strides = [1, 1]} : vector<2x64xf32> to vector<2x16xf32>
    %470 = arith.mulf %467, %454 : vector<2x16xf32>
    %471 = arith.mulf %466, %469 : vector<2x16xf32>
    %472 = arith.addf %470, %471 : vector<2x16xf32>
    %473 = math.tanh %472 : vector<2x16xf32>
    %474 = arith.mulf %468, %473 : vector<2x16xf32>
    %475 = vector.extract_strided_slice %425 {offsets = [6, 0], sizes = [2, 64], strides = [1, 1]} : vector<32x64xf32> to vector<2x64xf32>
    %cst_63 = arith.constant dense<0.000000e+00> : vector<2x64xf32>
    %476 = tpu.matmul %474, %421, %cst_63 {dimension_numbers = #tpu.dot_dimension_numbers<[1], [0], [0], [1], [0, 0, 1, 1], [], []>} : vector<2x16xf32>, vector<16x64xf32>, vector<2x64xf32> -> vector<2x64xf32>
    %477 = arith.addf %475, %476 : vector<2x64xf32>
    %478 = arith.negf %477 : vector<2x64xf32>
    %479 = math.exp %478 : vector<2x64xf32>
    %cst_64 = arith.constant 1.000000e+00 : f32
    %480 = vector.broadcast %cst_64 : f32 to vector<2x64xf32>
    %481 = arith.addf %480, %479 : vector<2x64xf32>
    %482 = arith.divf %480, %481 : vector<2x64xf32>
    %483 = math.tanh %477 : vector<2x64xf32>
    %484 = vector.extract_strided_slice %482 {offsets = [0, 0], sizes = [2, 16], strides = [1, 1]} : vector<2x64xf32> to vector<2x16xf32>
    %485 = vector.extract_strided_slice %482 {offsets = [0, 16], sizes = [2, 16], strides = [1, 1]} : vector<2x64xf32> to vector<2x16xf32>
    %486 = vector.extract_strided_slice %482 {offsets = [0, 48], sizes = [2, 16], strides = [1, 1]} : vector<2x64xf32> to vector<2x16xf32>
    %487 = vector.extract_strided_slice %483 {offsets = [0, 32], sizes = [2, 16], strides = [1, 1]} : vector<2x64xf32> to vector<2x16xf32>
    %488 = arith.mulf %485, %472 : vector<2x16xf32>
    %489 = arith.mulf %484, %487 : vector<2x16xf32>
    %490 = arith.addf %488, %489 : vector<2x16xf32>
    %491 = math.tanh %490 : vector<2x16xf32>
    %492 = arith.mulf %486, %491 : vector<2x16xf32>
    %493 = vector.extract_strided_slice %425 {offsets = [8, 0], sizes = [2, 64], strides = [1, 1]} : vector<32x64xf32> to vector<2x64xf32>
    %cst_65 = arith.constant dense<0.000000e+00> : vector<2x64xf32>
    %494 = tpu.matmul %492, %421, %cst_65 {dimension_numbers = #tpu.dot_dimension_numbers<[1], [0], [0], [1], [0, 0, 1, 1], [], []>} : vector<2x16xf32>, vector<16x64xf32>, vector<2x64xf32> -> vector<2x64xf32>
    %495 = arith.addf %493, %494 : vector<2x64xf32>
    %496 = arith.negf %495 : vector<2x64xf32>
    %497 = math.exp %496 : vector<2x64xf32>
    %cst_66 = arith.constant 1.000000e+00 : f32
    %498 = vector.broadcast %cst_66 : f32 to vector<2x64xf32>
    %499 = arith.addf %498, %497 : vector<2x64xf32>
    %500 = arith.divf %498, %499 : vector<2x64xf32>
    %501 = math.tanh %495 : vector<2x64xf32>
    %502 = vector.extract_strided_slice %500 {offsets = [0, 0], sizes = [2, 16], strides = [1, 1]} : vector<2x64xf32> to vector<2x16xf32>
    %503 = vector.extract_strided_slice %500 {offsets = [0, 16], sizes = [2, 16], strides = [1, 1]} : vector<2x64xf32> to vector<2x16xf32>
    %504 = vector.extract_strided_slice %500 {offsets = [0, 48], sizes = [2, 16], strides = [1, 1]} : vector<2x64xf32> to vector<2x16xf32>
    %505 = vector.extract_strided_slice %501 {offsets = [0, 32], sizes = [2, 16], strides = [1, 1]} : vector<2x64xf32> to vector<2x16xf32>
    %506 = arith.mulf %503, %490 : vector<2x16xf32>
    %507 = arith.mulf %502, %505 : vector<2x16xf32>
    %508 = arith.addf %506, %507 : vector<2x16xf32>
    %509 = math.tanh %508 : vector<2x16xf32>
    %510 = arith.mulf %504, %509 : vector<2x16xf32>
    %511 = vector.extract_strided_slice %425 {offsets = [10, 0], sizes = [2, 64], strides = [1, 1]} : vector<32x64xf32> to vector<2x64xf32>
    %cst_67 = arith.constant dense<0.000000e+00> : vector<2x64xf32>
    %512 = tpu.matmul %510, %421, %cst_67 {dimension_numbers = #tpu.dot_dimension_numbers<[1], [0], [0], [1], [0, 0, 1, 1], [], []>} : vector<2x16xf32>, vector<16x64xf32>, vector<2x64xf32> -> vector<2x64xf32>
    %513 = arith.addf %511, %512 : vector<2x64xf32>
    %514 = arith.negf %513 : vector<2x64xf32>
    %515 = math.exp %514 : vector<2x64xf32>
    %cst_68 = arith.constant 1.000000e+00 : f32
    %516 = vector.broadcast %cst_68 : f32 to vector<2x64xf32>
    %517 = arith.addf %516, %515 : vector<2x64xf32>
    %518 = arith.divf %516, %517 : vector<2x64xf32>
    %519 = math.tanh %513 : vector<2x64xf32>
    %520 = vector.extract_strided_slice %518 {offsets = [0, 0], sizes = [2, 16], strides = [1, 1]} : vector<2x64xf32> to vector<2x16xf32>
    %521 = vector.extract_strided_slice %518 {offsets = [0, 16], sizes = [2, 16], strides = [1, 1]} : vector<2x64xf32> to vector<2x16xf32>
    %522 = vector.extract_strided_slice %518 {offsets = [0, 48], sizes = [2, 16], strides = [1, 1]} : vector<2x64xf32> to vector<2x16xf32>
    %523 = vector.extract_strided_slice %519 {offsets = [0, 32], sizes = [2, 16], strides = [1, 1]} : vector<2x64xf32> to vector<2x16xf32>
    %524 = arith.mulf %521, %508 : vector<2x16xf32>
    %525 = arith.mulf %520, %523 : vector<2x16xf32>
    %526 = arith.addf %524, %525 : vector<2x16xf32>
    %527 = math.tanh %526 : vector<2x16xf32>
    %528 = arith.mulf %522, %527 : vector<2x16xf32>
    %529 = vector.extract_strided_slice %425 {offsets = [12, 0], sizes = [2, 64], strides = [1, 1]} : vector<32x64xf32> to vector<2x64xf32>
    %cst_69 = arith.constant dense<0.000000e+00> : vector<2x64xf32>
    %530 = tpu.matmul %528, %421, %cst_69 {dimension_numbers = #tpu.dot_dimension_numbers<[1], [0], [0], [1], [0, 0, 1, 1], [], []>} : vector<2x16xf32>, vector<16x64xf32>, vector<2x64xf32> -> vector<2x64xf32>
    %531 = arith.addf %529, %530 : vector<2x64xf32>
    %532 = arith.negf %531 : vector<2x64xf32>
    %533 = math.exp %532 : vector<2x64xf32>
    %cst_70 = arith.constant 1.000000e+00 : f32
    %534 = vector.broadcast %cst_70 : f32 to vector<2x64xf32>
    %535 = arith.addf %534, %533 : vector<2x64xf32>
    %536 = arith.divf %534, %535 : vector<2x64xf32>
    %537 = math.tanh %531 : vector<2x64xf32>
    %538 = vector.extract_strided_slice %536 {offsets = [0, 0], sizes = [2, 16], strides = [1, 1]} : vector<2x64xf32> to vector<2x16xf32>
    %539 = vector.extract_strided_slice %536 {offsets = [0, 16], sizes = [2, 16], strides = [1, 1]} : vector<2x64xf32> to vector<2x16xf32>
    %540 = vector.extract_strided_slice %536 {offsets = [0, 48], sizes = [2, 16], strides = [1, 1]} : vector<2x64xf32> to vector<2x16xf32>
    %541 = vector.extract_strided_slice %537 {offsets = [0, 32], sizes = [2, 16], strides = [1, 1]} : vector<2x64xf32> to vector<2x16xf32>
    %542 = arith.mulf %539, %526 : vector<2x16xf32>
    %543 = arith.mulf %538, %541 : vector<2x16xf32>
    %544 = arith.addf %542, %543 : vector<2x16xf32>
    %545 = math.tanh %544 : vector<2x16xf32>
    %546 = arith.mulf %540, %545 : vector<2x16xf32>
    %547 = vector.extract_strided_slice %425 {offsets = [14, 0], sizes = [2, 64], strides = [1, 1]} : vector<32x64xf32> to vector<2x64xf32>
    %cst_71 = arith.constant dense<0.000000e+00> : vector<2x64xf32>
    %548 = tpu.matmul %546, %421, %cst_71 {dimension_numbers = #tpu.dot_dimension_numbers<[1], [0], [0], [1], [0, 0, 1, 1], [], []>} : vector<2x16xf32>, vector<16x64xf32>, vector<2x64xf32> -> vector<2x64xf32>
    %549 = arith.addf %547, %548 : vector<2x64xf32>
    %550 = arith.negf %549 : vector<2x64xf32>
    %551 = math.exp %550 : vector<2x64xf32>
    %cst_72 = arith.constant 1.000000e+00 : f32
    %552 = vector.broadcast %cst_72 : f32 to vector<2x64xf32>
    %553 = arith.addf %552, %551 : vector<2x64xf32>
    %554 = arith.divf %552, %553 : vector<2x64xf32>
    %555 = math.tanh %549 : vector<2x64xf32>
    %556 = vector.extract_strided_slice %554 {offsets = [0, 0], sizes = [2, 16], strides = [1, 1]} : vector<2x64xf32> to vector<2x16xf32>
    %557 = vector.extract_strided_slice %554 {offsets = [0, 16], sizes = [2, 16], strides = [1, 1]} : vector<2x64xf32> to vector<2x16xf32>
    %558 = vector.extract_strided_slice %554 {offsets = [0, 48], sizes = [2, 16], strides = [1, 1]} : vector<2x64xf32> to vector<2x16xf32>
    %559 = vector.extract_strided_slice %555 {offsets = [0, 32], sizes = [2, 16], strides = [1, 1]} : vector<2x64xf32> to vector<2x16xf32>
    %560 = arith.mulf %557, %544 : vector<2x16xf32>
    %561 = arith.mulf %556, %559 : vector<2x16xf32>
    %562 = arith.addf %560, %561 : vector<2x16xf32>
    %563 = math.tanh %562 : vector<2x16xf32>
    %564 = arith.mulf %558, %563 : vector<2x16xf32>
    %565 = vector.extract_strided_slice %425 {offsets = [16, 0], sizes = [2, 64], strides = [1, 1]} : vector<32x64xf32> to vector<2x64xf32>
    %cst_73 = arith.constant dense<0.000000e+00> : vector<2x64xf32>
    %566 = tpu.matmul %564, %421, %cst_73 {dimension_numbers = #tpu.dot_dimension_numbers<[1], [0], [0], [1], [0, 0, 1, 1], [], []>} : vector<2x16xf32>, vector<16x64xf32>, vector<2x64xf32> -> vector<2x64xf32>
    %567 = arith.addf %565, %566 : vector<2x64xf32>
    %568 = arith.negf %567 : vector<2x64xf32>
    %569 = math.exp %568 : vector<2x64xf32>
    %cst_74 = arith.constant 1.000000e+00 : f32
    %570 = vector.broadcast %cst_74 : f32 to vector<2x64xf32>
    %571 = arith.addf %570, %569 : vector<2x64xf32>
    %572 = arith.divf %570, %571 : vector<2x64xf32>
    %573 = math.tanh %567 : vector<2x64xf32>
    %574 = vector.extract_strided_slice %572 {offsets = [0, 0], sizes = [2, 16], strides = [1, 1]} : vector<2x64xf32> to vector<2x16xf32>
    %575 = vector.extract_strided_slice %572 {offsets = [0, 16], sizes = [2, 16], strides = [1, 1]} : vector<2x64xf32> to vector<2x16xf32>
    %576 = vector.extract_strided_slice %572 {offsets = [0, 48], sizes = [2, 16], strides = [1, 1]} : vector<2x64xf32> to vector<2x16xf32>
    %577 = vector.extract_strided_slice %573 {offsets = [0, 32], sizes = [2, 16], strides = [1, 1]} : vector<2x64xf32> to vector<2x16xf32>
    %578 = arith.mulf %575, %562 : vector<2x16xf32>
    %579 = arith.mulf %574, %577 : vector<2x16xf32>
    %580 = arith.addf %578, %579 : vector<2x16xf32>
    %581 = math.tanh %580 : vector<2x16xf32>
    %582 = arith.mulf %576, %581 : vector<2x16xf32>
    %583 = vector.extract_strided_slice %425 {offsets = [18, 0], sizes = [2, 64], strides = [1, 1]} : vector<32x64xf32> to vector<2x64xf32>
    %cst_75 = arith.constant dense<0.000000e+00> : vector<2x64xf32>
    %584 = tpu.matmul %582, %421, %cst_75 {dimension_numbers = #tpu.dot_dimension_numbers<[1], [0], [0], [1], [0, 0, 1, 1], [], []>} : vector<2x16xf32>, vector<16x64xf32>, vector<2x64xf32> -> vector<2x64xf32>
    %585 = arith.addf %583, %584 : vector<2x64xf32>
    %586 = arith.negf %585 : vector<2x64xf32>
    %587 = math.exp %586 : vector<2x64xf32>
    %cst_76 = arith.constant 1.000000e+00 : f32
    %588 = vector.broadcast %cst_76 : f32 to vector<2x64xf32>
    %589 = arith.addf %588, %587 : vector<2x64xf32>
    %590 = arith.divf %588, %589 : vector<2x64xf32>
    %591 = math.tanh %585 : vector<2x64xf32>
    %592 = vector.extract_strided_slice %590 {offsets = [0, 0], sizes = [2, 16], strides = [1, 1]} : vector<2x64xf32> to vector<2x16xf32>
    %593 = vector.extract_strided_slice %590 {offsets = [0, 16], sizes = [2, 16], strides = [1, 1]} : vector<2x64xf32> to vector<2x16xf32>
    %594 = vector.extract_strided_slice %590 {offsets = [0, 48], sizes = [2, 16], strides = [1, 1]} : vector<2x64xf32> to vector<2x16xf32>
    %595 = vector.extract_strided_slice %591 {offsets = [0, 32], sizes = [2, 16], strides = [1, 1]} : vector<2x64xf32> to vector<2x16xf32>
    %596 = arith.mulf %593, %580 : vector<2x16xf32>
    %597 = arith.mulf %592, %595 : vector<2x16xf32>
    %598 = arith.addf %596, %597 : vector<2x16xf32>
    %599 = math.tanh %598 : vector<2x16xf32>
    %600 = arith.mulf %594, %599 : vector<2x16xf32>
    %601 = vector.extract_strided_slice %425 {offsets = [20, 0], sizes = [2, 64], strides = [1, 1]} : vector<32x64xf32> to vector<2x64xf32>
    %cst_77 = arith.constant dense<0.000000e+00> : vector<2x64xf32>
    %602 = tpu.matmul %600, %421, %cst_77 {dimension_numbers = #tpu.dot_dimension_numbers<[1], [0], [0], [1], [0, 0, 1, 1], [], []>} : vector<2x16xf32>, vector<16x64xf32>, vector<2x64xf32> -> vector<2x64xf32>
    %603 = arith.addf %601, %602 : vector<2x64xf32>
    %604 = arith.negf %603 : vector<2x64xf32>
    %605 = math.exp %604 : vector<2x64xf32>
    %cst_78 = arith.constant 1.000000e+00 : f32
    %606 = vector.broadcast %cst_78 : f32 to vector<2x64xf32>
    %607 = arith.addf %606, %605 : vector<2x64xf32>
    %608 = arith.divf %606, %607 : vector<2x64xf32>
    %609 = math.tanh %603 : vector<2x64xf32>
    %610 = vector.extract_strided_slice %608 {offsets = [0, 0], sizes = [2, 16], strides = [1, 1]} : vector<2x64xf32> to vector<2x16xf32>
    %611 = vector.extract_strided_slice %608 {offsets = [0, 16], sizes = [2, 16], strides = [1, 1]} : vector<2x64xf32> to vector<2x16xf32>
    %612 = vector.extract_strided_slice %608 {offsets = [0, 48], sizes = [2, 16], strides = [1, 1]} : vector<2x64xf32> to vector<2x16xf32>
    %613 = vector.extract_strided_slice %609 {offsets = [0, 32], sizes = [2, 16], strides = [1, 1]} : vector<2x64xf32> to vector<2x16xf32>
    %614 = arith.mulf %611, %598 : vector<2x16xf32>
    %615 = arith.mulf %610, %613 : vector<2x16xf32>
    %616 = arith.addf %614, %615 : vector<2x16xf32>
    %617 = math.tanh %616 : vector<2x16xf32>
    %618 = arith.mulf %612, %617 : vector<2x16xf32>
    %619 = vector.extract_strided_slice %425 {offsets = [22, 0], sizes = [2, 64], strides = [1, 1]} : vector<32x64xf32> to vector<2x64xf32>
    %cst_79 = arith.constant dense<0.000000e+00> : vector<2x64xf32>
    %620 = tpu.matmul %618, %421, %cst_79 {dimension_numbers = #tpu.dot_dimension_numbers<[1], [0], [0], [1], [0, 0, 1, 1], [], []>} : vector<2x16xf32>, vector<16x64xf32>, vector<2x64xf32> -> vector<2x64xf32>
    %621 = arith.addf %619, %620 : vector<2x64xf32>
    %622 = arith.negf %621 : vector<2x64xf32>
    %623 = math.exp %622 : vector<2x64xf32>
    %cst_80 = arith.constant 1.000000e+00 : f32
    %624 = vector.broadcast %cst_80 : f32 to vector<2x64xf32>
    %625 = arith.addf %624, %623 : vector<2x64xf32>
    %626 = arith.divf %624, %625 : vector<2x64xf32>
    %627 = math.tanh %621 : vector<2x64xf32>
    %628 = vector.extract_strided_slice %626 {offsets = [0, 0], sizes = [2, 16], strides = [1, 1]} : vector<2x64xf32> to vector<2x16xf32>
    %629 = vector.extract_strided_slice %626 {offsets = [0, 16], sizes = [2, 16], strides = [1, 1]} : vector<2x64xf32> to vector<2x16xf32>
    %630 = vector.extract_strided_slice %626 {offsets = [0, 48], sizes = [2, 16], strides = [1, 1]} : vector<2x64xf32> to vector<2x16xf32>
    %631 = vector.extract_strided_slice %627 {offsets = [0, 32], sizes = [2, 16], strides = [1, 1]} : vector<2x64xf32> to vector<2x16xf32>
    %632 = arith.mulf %629, %616 : vector<2x16xf32>
    %633 = arith.mulf %628, %631 : vector<2x16xf32>
    %634 = arith.addf %632, %633 : vector<2x16xf32>
    %635 = math.tanh %634 : vector<2x16xf32>
    %636 = arith.mulf %630, %635 : vector<2x16xf32>
    %637 = vector.extract_strided_slice %425 {offsets = [24, 0], sizes = [2, 64], strides = [1, 1]} : vector<32x64xf32> to vector<2x64xf32>
    %cst_81 = arith.constant dense<0.000000e+00> : vector<2x64xf32>
    %638 = tpu.matmul %636, %421, %cst_81 {dimension_numbers = #tpu.dot_dimension_numbers<[1], [0], [0], [1], [0, 0, 1, 1], [], []>} : vector<2x16xf32>, vector<16x64xf32>, vector<2x64xf32> -> vector<2x64xf32>
    %639 = arith.addf %637, %638 : vector<2x64xf32>
    %640 = arith.negf %639 : vector<2x64xf32>
    %641 = math.exp %640 : vector<2x64xf32>
    %cst_82 = arith.constant 1.000000e+00 : f32
    %642 = vector.broadcast %cst_82 : f32 to vector<2x64xf32>
    %643 = arith.addf %642, %641 : vector<2x64xf32>
    %644 = arith.divf %642, %643 : vector<2x64xf32>
    %645 = math.tanh %639 : vector<2x64xf32>
    %646 = vector.extract_strided_slice %644 {offsets = [0, 0], sizes = [2, 16], strides = [1, 1]} : vector<2x64xf32> to vector<2x16xf32>
    %647 = vector.extract_strided_slice %644 {offsets = [0, 16], sizes = [2, 16], strides = [1, 1]} : vector<2x64xf32> to vector<2x16xf32>
    %648 = vector.extract_strided_slice %644 {offsets = [0, 48], sizes = [2, 16], strides = [1, 1]} : vector<2x64xf32> to vector<2x16xf32>
    %649 = vector.extract_strided_slice %645 {offsets = [0, 32], sizes = [2, 16], strides = [1, 1]} : vector<2x64xf32> to vector<2x16xf32>
    %650 = arith.mulf %647, %634 : vector<2x16xf32>
    %651 = arith.mulf %646, %649 : vector<2x16xf32>
    %652 = arith.addf %650, %651 : vector<2x16xf32>
    %653 = math.tanh %652 : vector<2x16xf32>
    %654 = arith.mulf %648, %653 : vector<2x16xf32>
    %655 = vector.extract_strided_slice %425 {offsets = [26, 0], sizes = [2, 64], strides = [1, 1]} : vector<32x64xf32> to vector<2x64xf32>
    %cst_83 = arith.constant dense<0.000000e+00> : vector<2x64xf32>
    %656 = tpu.matmul %654, %421, %cst_83 {dimension_numbers = #tpu.dot_dimension_numbers<[1], [0], [0], [1], [0, 0, 1, 1], [], []>} : vector<2x16xf32>, vector<16x64xf32>, vector<2x64xf32> -> vector<2x64xf32>
    %657 = arith.addf %655, %656 : vector<2x64xf32>
    %658 = arith.negf %657 : vector<2x64xf32>
    %659 = math.exp %658 : vector<2x64xf32>
    %cst_84 = arith.constant 1.000000e+00 : f32
    %660 = vector.broadcast %cst_84 : f32 to vector<2x64xf32>
    %661 = arith.addf %660, %659 : vector<2x64xf32>
    %662 = arith.divf %660, %661 : vector<2x64xf32>
    %663 = math.tanh %657 : vector<2x64xf32>
    %664 = vector.extract_strided_slice %662 {offsets = [0, 0], sizes = [2, 16], strides = [1, 1]} : vector<2x64xf32> to vector<2x16xf32>
    %665 = vector.extract_strided_slice %662 {offsets = [0, 16], sizes = [2, 16], strides = [1, 1]} : vector<2x64xf32> to vector<2x16xf32>
    %666 = vector.extract_strided_slice %662 {offsets = [0, 48], sizes = [2, 16], strides = [1, 1]} : vector<2x64xf32> to vector<2x16xf32>
    %667 = vector.extract_strided_slice %663 {offsets = [0, 32], sizes = [2, 16], strides = [1, 1]} : vector<2x64xf32> to vector<2x16xf32>
    %668 = arith.mulf %665, %652 : vector<2x16xf32>
    %669 = arith.mulf %664, %667 : vector<2x16xf32>
    %670 = arith.addf %668, %669 : vector<2x16xf32>
    %671 = math.tanh %670 : vector<2x16xf32>
    %672 = arith.mulf %666, %671 : vector<2x16xf32>
    %673 = vector.extract_strided_slice %425 {offsets = [28, 0], sizes = [2, 64], strides = [1, 1]} : vector<32x64xf32> to vector<2x64xf32>
    %cst_85 = arith.constant dense<0.000000e+00> : vector<2x64xf32>
    %674 = tpu.matmul %672, %421, %cst_85 {dimension_numbers = #tpu.dot_dimension_numbers<[1], [0], [0], [1], [0, 0, 1, 1], [], []>} : vector<2x16xf32>, vector<16x64xf32>, vector<2x64xf32> -> vector<2x64xf32>
    %675 = arith.addf %673, %674 : vector<2x64xf32>
    %676 = arith.negf %675 : vector<2x64xf32>
    %677 = math.exp %676 : vector<2x64xf32>
    %cst_86 = arith.constant 1.000000e+00 : f32
    %678 = vector.broadcast %cst_86 : f32 to vector<2x64xf32>
    %679 = arith.addf %678, %677 : vector<2x64xf32>
    %680 = arith.divf %678, %679 : vector<2x64xf32>
    %681 = math.tanh %675 : vector<2x64xf32>
    %682 = vector.extract_strided_slice %680 {offsets = [0, 0], sizes = [2, 16], strides = [1, 1]} : vector<2x64xf32> to vector<2x16xf32>
    %683 = vector.extract_strided_slice %680 {offsets = [0, 16], sizes = [2, 16], strides = [1, 1]} : vector<2x64xf32> to vector<2x16xf32>
    %684 = vector.extract_strided_slice %680 {offsets = [0, 48], sizes = [2, 16], strides = [1, 1]} : vector<2x64xf32> to vector<2x16xf32>
    %685 = vector.extract_strided_slice %681 {offsets = [0, 32], sizes = [2, 16], strides = [1, 1]} : vector<2x64xf32> to vector<2x16xf32>
    %686 = arith.mulf %683, %670 : vector<2x16xf32>
    %687 = arith.mulf %682, %685 : vector<2x16xf32>
    %688 = arith.addf %686, %687 : vector<2x16xf32>
    %689 = math.tanh %688 : vector<2x16xf32>
    %690 = arith.mulf %684, %689 : vector<2x16xf32>
    %691 = vector.extract_strided_slice %425 {offsets = [30, 0], sizes = [2, 64], strides = [1, 1]} : vector<32x64xf32> to vector<2x64xf32>
    %cst_87 = arith.constant dense<0.000000e+00> : vector<2x64xf32>
    %692 = tpu.matmul %690, %421, %cst_87 {dimension_numbers = #tpu.dot_dimension_numbers<[1], [0], [0], [1], [0, 0, 1, 1], [], []>} : vector<2x16xf32>, vector<16x64xf32>, vector<2x64xf32> -> vector<2x64xf32>
    %693 = arith.addf %691, %692 : vector<2x64xf32>
    %694 = arith.negf %693 : vector<2x64xf32>
    %695 = math.exp %694 : vector<2x64xf32>
    %cst_88 = arith.constant 1.000000e+00 : f32
    %696 = vector.broadcast %cst_88 : f32 to vector<2x64xf32>
    %697 = arith.addf %696, %695 : vector<2x64xf32>
    %698 = arith.divf %696, %697 : vector<2x64xf32>
    %699 = math.tanh %693 : vector<2x64xf32>
    %700 = vector.extract_strided_slice %698 {offsets = [0, 0], sizes = [2, 16], strides = [1, 1]} : vector<2x64xf32> to vector<2x16xf32>
    %701 = vector.extract_strided_slice %698 {offsets = [0, 16], sizes = [2, 16], strides = [1, 1]} : vector<2x64xf32> to vector<2x16xf32>
    %702 = vector.extract_strided_slice %698 {offsets = [0, 48], sizes = [2, 16], strides = [1, 1]} : vector<2x64xf32> to vector<2x16xf32>
    %703 = vector.extract_strided_slice %699 {offsets = [0, 32], sizes = [2, 16], strides = [1, 1]} : vector<2x64xf32> to vector<2x16xf32>
    %704 = arith.mulf %701, %688 : vector<2x16xf32>
    %705 = arith.mulf %700, %703 : vector<2x16xf32>
    %706 = arith.addf %704, %705 : vector<2x16xf32>
    %707 = math.tanh %706 : vector<2x16xf32>
    %708 = arith.mulf %702, %707 : vector<2x16xf32>
    %709 = tpu.concatenate %438, %456, %474, %492, %510, %528, %546, %564, %582, %600, %618, %636, %654, %672, %690, %708 in 0 : vector<2x16xf32>, vector<2x16xf32>, vector<2x16xf32>, vector<2x16xf32>, vector<2x16xf32>, vector<2x16xf32>, vector<2x16xf32>, vector<2x16xf32>, vector<2x16xf32>, vector<2x16xf32>, vector<2x16xf32>, vector<2x16xf32>, vector<2x16xf32>, vector<2x16xf32>, vector<2x16xf32>, vector<2x16xf32> -> vector<32x16xf32>
    %c224 = arith.constant 224 : index
    %c0_89 = arith.constant 0 : index
    %710 = vector.load %arg2[%c224, %c0_89] : memref<456x128xf32, #tpu.memory_space<vmem>>, vector<16x64xf32>
    %c240 = arith.constant 240 : index
    %c0_90 = arith.constant 0 : index
    %711 = vector.load %arg2[%c240, %c0_90] : memref<456x128xf32, #tpu.memory_space<vmem>>, vector<16x64xf32>
    %c256 = arith.constant 256 : index
    %c0_91 = arith.constant 0 : index
    %712 = vector.load %arg2[%c256, %c0_91] : memref<456x128xf32, #tpu.memory_space<vmem>>, vector<1x64xf32>
    %cst_92 = arith.constant dense<0.000000e+00> : vector<32x64xf32>
    %713 = tpu.matmul %709, %710, %cst_92 {dimension_numbers = #tpu.dot_dimension_numbers<[1], [0], [0], [1], [0, 0, 1, 1], [], []>} : vector<32x16xf32>, vector<16x64xf32>, vector<32x64xf32> -> vector<32x64xf32>
    %714 = vector.broadcast %712 : vector<1x64xf32> to vector<32x64xf32>
    %715 = arith.addf %713, %714 : vector<32x64xf32>
    %716 = vector.extract_strided_slice %715 {offsets = [0, 0], sizes = [2, 64], strides = [1, 1]} : vector<32x64xf32> to vector<2x64xf32>
    %717 = arith.negf %716 : vector<2x64xf32>
    %718 = math.exp %717 : vector<2x64xf32>
    %cst_93 = arith.constant 1.000000e+00 : f32
    %719 = vector.broadcast %cst_93 : f32 to vector<2x64xf32>
    %720 = arith.addf %719, %718 : vector<2x64xf32>
    %721 = arith.divf %719, %720 : vector<2x64xf32>
    %722 = math.tanh %716 : vector<2x64xf32>
    %723 = vector.extract_strided_slice %721 {offsets = [0, 0], sizes = [2, 16], strides = [1, 1]} : vector<2x64xf32> to vector<2x16xf32>
    %724 = vector.extract_strided_slice %721 {offsets = [0, 48], sizes = [2, 16], strides = [1, 1]} : vector<2x64xf32> to vector<2x16xf32>
    %725 = vector.extract_strided_slice %722 {offsets = [0, 32], sizes = [2, 16], strides = [1, 1]} : vector<2x64xf32> to vector<2x16xf32>
    %726 = arith.mulf %723, %725 : vector<2x16xf32>
    %727 = math.tanh %726 : vector<2x16xf32>
    %728 = arith.mulf %724, %727 : vector<2x16xf32>
    %729 = vector.extract_strided_slice %715 {offsets = [2, 0], sizes = [2, 64], strides = [1, 1]} : vector<32x64xf32> to vector<2x64xf32>
    %cst_94 = arith.constant dense<0.000000e+00> : vector<2x64xf32>
    %730 = tpu.matmul %728, %711, %cst_94 {dimension_numbers = #tpu.dot_dimension_numbers<[1], [0], [0], [1], [0, 0, 1, 1], [], []>} : vector<2x16xf32>, vector<16x64xf32>, vector<2x64xf32> -> vector<2x64xf32>
    %731 = arith.addf %729, %730 : vector<2x64xf32>
    %732 = arith.negf %731 : vector<2x64xf32>
    %733 = math.exp %732 : vector<2x64xf32>
    %cst_95 = arith.constant 1.000000e+00 : f32
    %734 = vector.broadcast %cst_95 : f32 to vector<2x64xf32>
    %735 = arith.addf %734, %733 : vector<2x64xf32>
    %736 = arith.divf %734, %735 : vector<2x64xf32>
    %737 = math.tanh %731 : vector<2x64xf32>
    %738 = vector.extract_strided_slice %736 {offsets = [0, 0], sizes = [2, 16], strides = [1, 1]} : vector<2x64xf32> to vector<2x16xf32>
    %739 = vector.extract_strided_slice %736 {offsets = [0, 16], sizes = [2, 16], strides = [1, 1]} : vector<2x64xf32> to vector<2x16xf32>
    %740 = vector.extract_strided_slice %736 {offsets = [0, 48], sizes = [2, 16], strides = [1, 1]} : vector<2x64xf32> to vector<2x16xf32>
    %741 = vector.extract_strided_slice %737 {offsets = [0, 32], sizes = [2, 16], strides = [1, 1]} : vector<2x64xf32> to vector<2x16xf32>
    %742 = arith.mulf %739, %726 : vector<2x16xf32>
    %743 = arith.mulf %738, %741 : vector<2x16xf32>
    %744 = arith.addf %742, %743 : vector<2x16xf32>
    %745 = math.tanh %744 : vector<2x16xf32>
    %746 = arith.mulf %740, %745 : vector<2x16xf32>
    %747 = vector.extract_strided_slice %715 {offsets = [4, 0], sizes = [2, 64], strides = [1, 1]} : vector<32x64xf32> to vector<2x64xf32>
    %cst_96 = arith.constant dense<0.000000e+00> : vector<2x64xf32>
    %748 = tpu.matmul %746, %711, %cst_96 {dimension_numbers = #tpu.dot_dimension_numbers<[1], [0], [0], [1], [0, 0, 1, 1], [], []>} : vector<2x16xf32>, vector<16x64xf32>, vector<2x64xf32> -> vector<2x64xf32>
    %749 = arith.addf %747, %748 : vector<2x64xf32>
    %750 = arith.negf %749 : vector<2x64xf32>
    %751 = math.exp %750 : vector<2x64xf32>
    %cst_97 = arith.constant 1.000000e+00 : f32
    %752 = vector.broadcast %cst_97 : f32 to vector<2x64xf32>
    %753 = arith.addf %752, %751 : vector<2x64xf32>
    %754 = arith.divf %752, %753 : vector<2x64xf32>
    %755 = math.tanh %749 : vector<2x64xf32>
    %756 = vector.extract_strided_slice %754 {offsets = [0, 0], sizes = [2, 16], strides = [1, 1]} : vector<2x64xf32> to vector<2x16xf32>
    %757 = vector.extract_strided_slice %754 {offsets = [0, 16], sizes = [2, 16], strides = [1, 1]} : vector<2x64xf32> to vector<2x16xf32>
    %758 = vector.extract_strided_slice %754 {offsets = [0, 48], sizes = [2, 16], strides = [1, 1]} : vector<2x64xf32> to vector<2x16xf32>
    %759 = vector.extract_strided_slice %755 {offsets = [0, 32], sizes = [2, 16], strides = [1, 1]} : vector<2x64xf32> to vector<2x16xf32>
    %760 = arith.mulf %757, %744 : vector<2x16xf32>
    %761 = arith.mulf %756, %759 : vector<2x16xf32>
    %762 = arith.addf %760, %761 : vector<2x16xf32>
    %763 = math.tanh %762 : vector<2x16xf32>
    %764 = arith.mulf %758, %763 : vector<2x16xf32>
    %765 = vector.extract_strided_slice %715 {offsets = [6, 0], sizes = [2, 64], strides = [1, 1]} : vector<32x64xf32> to vector<2x64xf32>
    %cst_98 = arith.constant dense<0.000000e+00> : vector<2x64xf32>
    %766 = tpu.matmul %764, %711, %cst_98 {dimension_numbers = #tpu.dot_dimension_numbers<[1], [0], [0], [1], [0, 0, 1, 1], [], []>} : vector<2x16xf32>, vector<16x64xf32>, vector<2x64xf32> -> vector<2x64xf32>
    %767 = arith.addf %765, %766 : vector<2x64xf32>
    %768 = arith.negf %767 : vector<2x64xf32>
    %769 = math.exp %768 : vector<2x64xf32>
    %cst_99 = arith.constant 1.000000e+00 : f32
    %770 = vector.broadcast %cst_99 : f32 to vector<2x64xf32>
    %771 = arith.addf %770, %769 : vector<2x64xf32>
    %772 = arith.divf %770, %771 : vector<2x64xf32>
    %773 = math.tanh %767 : vector<2x64xf32>
    %774 = vector.extract_strided_slice %772 {offsets = [0, 0], sizes = [2, 16], strides = [1, 1]} : vector<2x64xf32> to vector<2x16xf32>
    %775 = vector.extract_strided_slice %772 {offsets = [0, 16], sizes = [2, 16], strides = [1, 1]} : vector<2x64xf32> to vector<2x16xf32>
    %776 = vector.extract_strided_slice %772 {offsets = [0, 48], sizes = [2, 16], strides = [1, 1]} : vector<2x64xf32> to vector<2x16xf32>
    %777 = vector.extract_strided_slice %773 {offsets = [0, 32], sizes = [2, 16], strides = [1, 1]} : vector<2x64xf32> to vector<2x16xf32>
    %778 = arith.mulf %775, %762 : vector<2x16xf32>
    %779 = arith.mulf %774, %777 : vector<2x16xf32>
    %780 = arith.addf %778, %779 : vector<2x16xf32>
    %781 = math.tanh %780 : vector<2x16xf32>
    %782 = arith.mulf %776, %781 : vector<2x16xf32>
    %783 = vector.extract_strided_slice %715 {offsets = [8, 0], sizes = [2, 64], strides = [1, 1]} : vector<32x64xf32> to vector<2x64xf32>
    %cst_100 = arith.constant dense<0.000000e+00> : vector<2x64xf32>
    %784 = tpu.matmul %782, %711, %cst_100 {dimension_numbers = #tpu.dot_dimension_numbers<[1], [0], [0], [1], [0, 0, 1, 1], [], []>} : vector<2x16xf32>, vector<16x64xf32>, vector<2x64xf32> -> vector<2x64xf32>
    %785 = arith.addf %783, %784 : vector<2x64xf32>
    %786 = arith.negf %785 : vector<2x64xf32>
    %787 = math.exp %786 : vector<2x64xf32>
    %cst_101 = arith.constant 1.000000e+00 : f32
    %788 = vector.broadcast %cst_101 : f32 to vector<2x64xf32>
    %789 = arith.addf %788, %787 : vector<2x64xf32>
    %790 = arith.divf %788, %789 : vector<2x64xf32>
    %791 = math.tanh %785 : vector<2x64xf32>
    %792 = vector.extract_strided_slice %790 {offsets = [0, 0], sizes = [2, 16], strides = [1, 1]} : vector<2x64xf32> to vector<2x16xf32>
    %793 = vector.extract_strided_slice %790 {offsets = [0, 16], sizes = [2, 16], strides = [1, 1]} : vector<2x64xf32> to vector<2x16xf32>
    %794 = vector.extract_strided_slice %790 {offsets = [0, 48], sizes = [2, 16], strides = [1, 1]} : vector<2x64xf32> to vector<2x16xf32>
    %795 = vector.extract_strided_slice %791 {offsets = [0, 32], sizes = [2, 16], strides = [1, 1]} : vector<2x64xf32> to vector<2x16xf32>
    %796 = arith.mulf %793, %780 : vector<2x16xf32>
    %797 = arith.mulf %792, %795 : vector<2x16xf32>
    %798 = arith.addf %796, %797 : vector<2x16xf32>
    %799 = math.tanh %798 : vector<2x16xf32>
    %800 = arith.mulf %794, %799 : vector<2x16xf32>
    %801 = vector.extract_strided_slice %715 {offsets = [10, 0], sizes = [2, 64], strides = [1, 1]} : vector<32x64xf32> to vector<2x64xf32>
    %cst_102 = arith.constant dense<0.000000e+00> : vector<2x64xf32>
    %802 = tpu.matmul %800, %711, %cst_102 {dimension_numbers = #tpu.dot_dimension_numbers<[1], [0], [0], [1], [0, 0, 1, 1], [], []>} : vector<2x16xf32>, vector<16x64xf32>, vector<2x64xf32> -> vector<2x64xf32>
    %803 = arith.addf %801, %802 : vector<2x64xf32>
    %804 = arith.negf %803 : vector<2x64xf32>
    %805 = math.exp %804 : vector<2x64xf32>
    %cst_103 = arith.constant 1.000000e+00 : f32
    %806 = vector.broadcast %cst_103 : f32 to vector<2x64xf32>
    %807 = arith.addf %806, %805 : vector<2x64xf32>
    %808 = arith.divf %806, %807 : vector<2x64xf32>
    %809 = math.tanh %803 : vector<2x64xf32>
    %810 = vector.extract_strided_slice %808 {offsets = [0, 0], sizes = [2, 16], strides = [1, 1]} : vector<2x64xf32> to vector<2x16xf32>
    %811 = vector.extract_strided_slice %808 {offsets = [0, 16], sizes = [2, 16], strides = [1, 1]} : vector<2x64xf32> to vector<2x16xf32>
    %812 = vector.extract_strided_slice %808 {offsets = [0, 48], sizes = [2, 16], strides = [1, 1]} : vector<2x64xf32> to vector<2x16xf32>
    %813 = vector.extract_strided_slice %809 {offsets = [0, 32], sizes = [2, 16], strides = [1, 1]} : vector<2x64xf32> to vector<2x16xf32>
    %814 = arith.mulf %811, %798 : vector<2x16xf32>
    %815 = arith.mulf %810, %813 : vector<2x16xf32>
    %816 = arith.addf %814, %815 : vector<2x16xf32>
    %817 = math.tanh %816 : vector<2x16xf32>
    %818 = arith.mulf %812, %817 : vector<2x16xf32>
    %819 = vector.extract_strided_slice %715 {offsets = [12, 0], sizes = [2, 64], strides = [1, 1]} : vector<32x64xf32> to vector<2x64xf32>
    %cst_104 = arith.constant dense<0.000000e+00> : vector<2x64xf32>
    %820 = tpu.matmul %818, %711, %cst_104 {dimension_numbers = #tpu.dot_dimension_numbers<[1], [0], [0], [1], [0, 0, 1, 1], [], []>} : vector<2x16xf32>, vector<16x64xf32>, vector<2x64xf32> -> vector<2x64xf32>
    %821 = arith.addf %819, %820 : vector<2x64xf32>
    %822 = arith.negf %821 : vector<2x64xf32>
    %823 = math.exp %822 : vector<2x64xf32>
    %cst_105 = arith.constant 1.000000e+00 : f32
    %824 = vector.broadcast %cst_105 : f32 to vector<2x64xf32>
    %825 = arith.addf %824, %823 : vector<2x64xf32>
    %826 = arith.divf %824, %825 : vector<2x64xf32>
    %827 = math.tanh %821 : vector<2x64xf32>
    %828 = vector.extract_strided_slice %826 {offsets = [0, 0], sizes = [2, 16], strides = [1, 1]} : vector<2x64xf32> to vector<2x16xf32>
    %829 = vector.extract_strided_slice %826 {offsets = [0, 16], sizes = [2, 16], strides = [1, 1]} : vector<2x64xf32> to vector<2x16xf32>
    %830 = vector.extract_strided_slice %826 {offsets = [0, 48], sizes = [2, 16], strides = [1, 1]} : vector<2x64xf32> to vector<2x16xf32>
    %831 = vector.extract_strided_slice %827 {offsets = [0, 32], sizes = [2, 16], strides = [1, 1]} : vector<2x64xf32> to vector<2x16xf32>
    %832 = arith.mulf %829, %816 : vector<2x16xf32>
    %833 = arith.mulf %828, %831 : vector<2x16xf32>
    %834 = arith.addf %832, %833 : vector<2x16xf32>
    %835 = math.tanh %834 : vector<2x16xf32>
    %836 = arith.mulf %830, %835 : vector<2x16xf32>
    %837 = vector.extract_strided_slice %715 {offsets = [14, 0], sizes = [2, 64], strides = [1, 1]} : vector<32x64xf32> to vector<2x64xf32>
    %cst_106 = arith.constant dense<0.000000e+00> : vector<2x64xf32>
    %838 = tpu.matmul %836, %711, %cst_106 {dimension_numbers = #tpu.dot_dimension_numbers<[1], [0], [0], [1], [0, 0, 1, 1], [], []>} : vector<2x16xf32>, vector<16x64xf32>, vector<2x64xf32> -> vector<2x64xf32>
    %839 = arith.addf %837, %838 : vector<2x64xf32>
    %840 = arith.negf %839 : vector<2x64xf32>
    %841 = math.exp %840 : vector<2x64xf32>
    %cst_107 = arith.constant 1.000000e+00 : f32
    %842 = vector.broadcast %cst_107 : f32 to vector<2x64xf32>
    %843 = arith.addf %842, %841 : vector<2x64xf32>
    %844 = arith.divf %842, %843 : vector<2x64xf32>
    %845 = math.tanh %839 : vector<2x64xf32>
    %846 = vector.extract_strided_slice %844 {offsets = [0, 0], sizes = [2, 16], strides = [1, 1]} : vector<2x64xf32> to vector<2x16xf32>
    %847 = vector.extract_strided_slice %844 {offsets = [0, 16], sizes = [2, 16], strides = [1, 1]} : vector<2x64xf32> to vector<2x16xf32>
    %848 = vector.extract_strided_slice %844 {offsets = [0, 48], sizes = [2, 16], strides = [1, 1]} : vector<2x64xf32> to vector<2x16xf32>
    %849 = vector.extract_strided_slice %845 {offsets = [0, 32], sizes = [2, 16], strides = [1, 1]} : vector<2x64xf32> to vector<2x16xf32>
    %850 = arith.mulf %847, %834 : vector<2x16xf32>
    %851 = arith.mulf %846, %849 : vector<2x16xf32>
    %852 = arith.addf %850, %851 : vector<2x16xf32>
    %853 = math.tanh %852 : vector<2x16xf32>
    %854 = arith.mulf %848, %853 : vector<2x16xf32>
    %855 = vector.extract_strided_slice %715 {offsets = [16, 0], sizes = [2, 64], strides = [1, 1]} : vector<32x64xf32> to vector<2x64xf32>
    %cst_108 = arith.constant dense<0.000000e+00> : vector<2x64xf32>
    %856 = tpu.matmul %854, %711, %cst_108 {dimension_numbers = #tpu.dot_dimension_numbers<[1], [0], [0], [1], [0, 0, 1, 1], [], []>} : vector<2x16xf32>, vector<16x64xf32>, vector<2x64xf32> -> vector<2x64xf32>
    %857 = arith.addf %855, %856 : vector<2x64xf32>
    %858 = arith.negf %857 : vector<2x64xf32>
    %859 = math.exp %858 : vector<2x64xf32>
    %cst_109 = arith.constant 1.000000e+00 : f32
    %860 = vector.broadcast %cst_109 : f32 to vector<2x64xf32>
    %861 = arith.addf %860, %859 : vector<2x64xf32>
    %862 = arith.divf %860, %861 : vector<2x64xf32>
    %863 = math.tanh %857 : vector<2x64xf32>
    %864 = vector.extract_strided_slice %862 {offsets = [0, 0], sizes = [2, 16], strides = [1, 1]} : vector<2x64xf32> to vector<2x16xf32>
    %865 = vector.extract_strided_slice %862 {offsets = [0, 16], sizes = [2, 16], strides = [1, 1]} : vector<2x64xf32> to vector<2x16xf32>
    %866 = vector.extract_strided_slice %862 {offsets = [0, 48], sizes = [2, 16], strides = [1, 1]} : vector<2x64xf32> to vector<2x16xf32>
    %867 = vector.extract_strided_slice %863 {offsets = [0, 32], sizes = [2, 16], strides = [1, 1]} : vector<2x64xf32> to vector<2x16xf32>
    %868 = arith.mulf %865, %852 : vector<2x16xf32>
    %869 = arith.mulf %864, %867 : vector<2x16xf32>
    %870 = arith.addf %868, %869 : vector<2x16xf32>
    %871 = math.tanh %870 : vector<2x16xf32>
    %872 = arith.mulf %866, %871 : vector<2x16xf32>
    %873 = vector.extract_strided_slice %715 {offsets = [18, 0], sizes = [2, 64], strides = [1, 1]} : vector<32x64xf32> to vector<2x64xf32>
    %cst_110 = arith.constant dense<0.000000e+00> : vector<2x64xf32>
    %874 = tpu.matmul %872, %711, %cst_110 {dimension_numbers = #tpu.dot_dimension_numbers<[1], [0], [0], [1], [0, 0, 1, 1], [], []>} : vector<2x16xf32>, vector<16x64xf32>, vector<2x64xf32> -> vector<2x64xf32>
    %875 = arith.addf %873, %874 : vector<2x64xf32>
    %876 = arith.negf %875 : vector<2x64xf32>
    %877 = math.exp %876 : vector<2x64xf32>
    %cst_111 = arith.constant 1.000000e+00 : f32
    %878 = vector.broadcast %cst_111 : f32 to vector<2x64xf32>
    %879 = arith.addf %878, %877 : vector<2x64xf32>
    %880 = arith.divf %878, %879 : vector<2x64xf32>
    %881 = math.tanh %875 : vector<2x64xf32>
    %882 = vector.extract_strided_slice %880 {offsets = [0, 0], sizes = [2, 16], strides = [1, 1]} : vector<2x64xf32> to vector<2x16xf32>
    %883 = vector.extract_strided_slice %880 {offsets = [0, 16], sizes = [2, 16], strides = [1, 1]} : vector<2x64xf32> to vector<2x16xf32>
    %884 = vector.extract_strided_slice %880 {offsets = [0, 48], sizes = [2, 16], strides = [1, 1]} : vector<2x64xf32> to vector<2x16xf32>
    %885 = vector.extract_strided_slice %881 {offsets = [0, 32], sizes = [2, 16], strides = [1, 1]} : vector<2x64xf32> to vector<2x16xf32>
    %886 = arith.mulf %883, %870 : vector<2x16xf32>
    %887 = arith.mulf %882, %885 : vector<2x16xf32>
    %888 = arith.addf %886, %887 : vector<2x16xf32>
    %889 = math.tanh %888 : vector<2x16xf32>
    %890 = arith.mulf %884, %889 : vector<2x16xf32>
    %891 = vector.extract_strided_slice %715 {offsets = [20, 0], sizes = [2, 64], strides = [1, 1]} : vector<32x64xf32> to vector<2x64xf32>
    %cst_112 = arith.constant dense<0.000000e+00> : vector<2x64xf32>
    %892 = tpu.matmul %890, %711, %cst_112 {dimension_numbers = #tpu.dot_dimension_numbers<[1], [0], [0], [1], [0, 0, 1, 1], [], []>} : vector<2x16xf32>, vector<16x64xf32>, vector<2x64xf32> -> vector<2x64xf32>
    %893 = arith.addf %891, %892 : vector<2x64xf32>
    %894 = arith.negf %893 : vector<2x64xf32>
    %895 = math.exp %894 : vector<2x64xf32>
    %cst_113 = arith.constant 1.000000e+00 : f32
    %896 = vector.broadcast %cst_113 : f32 to vector<2x64xf32>
    %897 = arith.addf %896, %895 : vector<2x64xf32>
    %898 = arith.divf %896, %897 : vector<2x64xf32>
    %899 = math.tanh %893 : vector<2x64xf32>
    %900 = vector.extract_strided_slice %898 {offsets = [0, 0], sizes = [2, 16], strides = [1, 1]} : vector<2x64xf32> to vector<2x16xf32>
    %901 = vector.extract_strided_slice %898 {offsets = [0, 16], sizes = [2, 16], strides = [1, 1]} : vector<2x64xf32> to vector<2x16xf32>
    %902 = vector.extract_strided_slice %898 {offsets = [0, 48], sizes = [2, 16], strides = [1, 1]} : vector<2x64xf32> to vector<2x16xf32>
    %903 = vector.extract_strided_slice %899 {offsets = [0, 32], sizes = [2, 16], strides = [1, 1]} : vector<2x64xf32> to vector<2x16xf32>
    %904 = arith.mulf %901, %888 : vector<2x16xf32>
    %905 = arith.mulf %900, %903 : vector<2x16xf32>
    %906 = arith.addf %904, %905 : vector<2x16xf32>
    %907 = math.tanh %906 : vector<2x16xf32>
    %908 = arith.mulf %902, %907 : vector<2x16xf32>
    %909 = vector.extract_strided_slice %715 {offsets = [22, 0], sizes = [2, 64], strides = [1, 1]} : vector<32x64xf32> to vector<2x64xf32>
    %cst_114 = arith.constant dense<0.000000e+00> : vector<2x64xf32>
    %910 = tpu.matmul %908, %711, %cst_114 {dimension_numbers = #tpu.dot_dimension_numbers<[1], [0], [0], [1], [0, 0, 1, 1], [], []>} : vector<2x16xf32>, vector<16x64xf32>, vector<2x64xf32> -> vector<2x64xf32>
    %911 = arith.addf %909, %910 : vector<2x64xf32>
    %912 = arith.negf %911 : vector<2x64xf32>
    %913 = math.exp %912 : vector<2x64xf32>
    %cst_115 = arith.constant 1.000000e+00 : f32
    %914 = vector.broadcast %cst_115 : f32 to vector<2x64xf32>
    %915 = arith.addf %914, %913 : vector<2x64xf32>
    %916 = arith.divf %914, %915 : vector<2x64xf32>
    %917 = math.tanh %911 : vector<2x64xf32>
    %918 = vector.extract_strided_slice %916 {offsets = [0, 0], sizes = [2, 16], strides = [1, 1]} : vector<2x64xf32> to vector<2x16xf32>
    %919 = vector.extract_strided_slice %916 {offsets = [0, 16], sizes = [2, 16], strides = [1, 1]} : vector<2x64xf32> to vector<2x16xf32>
    %920 = vector.extract_strided_slice %916 {offsets = [0, 48], sizes = [2, 16], strides = [1, 1]} : vector<2x64xf32> to vector<2x16xf32>
    %921 = vector.extract_strided_slice %917 {offsets = [0, 32], sizes = [2, 16], strides = [1, 1]} : vector<2x64xf32> to vector<2x16xf32>
    %922 = arith.mulf %919, %906 : vector<2x16xf32>
    %923 = arith.mulf %918, %921 : vector<2x16xf32>
    %924 = arith.addf %922, %923 : vector<2x16xf32>
    %925 = math.tanh %924 : vector<2x16xf32>
    %926 = arith.mulf %920, %925 : vector<2x16xf32>
    %927 = vector.extract_strided_slice %715 {offsets = [24, 0], sizes = [2, 64], strides = [1, 1]} : vector<32x64xf32> to vector<2x64xf32>
    %cst_116 = arith.constant dense<0.000000e+00> : vector<2x64xf32>
    %928 = tpu.matmul %926, %711, %cst_116 {dimension_numbers = #tpu.dot_dimension_numbers<[1], [0], [0], [1], [0, 0, 1, 1], [], []>} : vector<2x16xf32>, vector<16x64xf32>, vector<2x64xf32> -> vector<2x64xf32>
    %929 = arith.addf %927, %928 : vector<2x64xf32>
    %930 = arith.negf %929 : vector<2x64xf32>
    %931 = math.exp %930 : vector<2x64xf32>
    %cst_117 = arith.constant 1.000000e+00 : f32
    %932 = vector.broadcast %cst_117 : f32 to vector<2x64xf32>
    %933 = arith.addf %932, %931 : vector<2x64xf32>
    %934 = arith.divf %932, %933 : vector<2x64xf32>
    %935 = math.tanh %929 : vector<2x64xf32>
    %936 = vector.extract_strided_slice %934 {offsets = [0, 0], sizes = [2, 16], strides = [1, 1]} : vector<2x64xf32> to vector<2x16xf32>
    %937 = vector.extract_strided_slice %934 {offsets = [0, 16], sizes = [2, 16], strides = [1, 1]} : vector<2x64xf32> to vector<2x16xf32>
    %938 = vector.extract_strided_slice %934 {offsets = [0, 48], sizes = [2, 16], strides = [1, 1]} : vector<2x64xf32> to vector<2x16xf32>
    %939 = vector.extract_strided_slice %935 {offsets = [0, 32], sizes = [2, 16], strides = [1, 1]} : vector<2x64xf32> to vector<2x16xf32>
    %940 = arith.mulf %937, %924 : vector<2x16xf32>
    %941 = arith.mulf %936, %939 : vector<2x16xf32>
    %942 = arith.addf %940, %941 : vector<2x16xf32>
    %943 = math.tanh %942 : vector<2x16xf32>
    %944 = arith.mulf %938, %943 : vector<2x16xf32>
    %945 = vector.extract_strided_slice %715 {offsets = [26, 0], sizes = [2, 64], strides = [1, 1]} : vector<32x64xf32> to vector<2x64xf32>
    %cst_118 = arith.constant dense<0.000000e+00> : vector<2x64xf32>
    %946 = tpu.matmul %944, %711, %cst_118 {dimension_numbers = #tpu.dot_dimension_numbers<[1], [0], [0], [1], [0, 0, 1, 1], [], []>} : vector<2x16xf32>, vector<16x64xf32>, vector<2x64xf32> -> vector<2x64xf32>
    %947 = arith.addf %945, %946 : vector<2x64xf32>
    %948 = arith.negf %947 : vector<2x64xf32>
    %949 = math.exp %948 : vector<2x64xf32>
    %cst_119 = arith.constant 1.000000e+00 : f32
    %950 = vector.broadcast %cst_119 : f32 to vector<2x64xf32>
    %951 = arith.addf %950, %949 : vector<2x64xf32>
    %952 = arith.divf %950, %951 : vector<2x64xf32>
    %953 = math.tanh %947 : vector<2x64xf32>
    %954 = vector.extract_strided_slice %952 {offsets = [0, 0], sizes = [2, 16], strides = [1, 1]} : vector<2x64xf32> to vector<2x16xf32>
    %955 = vector.extract_strided_slice %952 {offsets = [0, 16], sizes = [2, 16], strides = [1, 1]} : vector<2x64xf32> to vector<2x16xf32>
    %956 = vector.extract_strided_slice %952 {offsets = [0, 48], sizes = [2, 16], strides = [1, 1]} : vector<2x64xf32> to vector<2x16xf32>
    %957 = vector.extract_strided_slice %953 {offsets = [0, 32], sizes = [2, 16], strides = [1, 1]} : vector<2x64xf32> to vector<2x16xf32>
    %958 = arith.mulf %955, %942 : vector<2x16xf32>
    %959 = arith.mulf %954, %957 : vector<2x16xf32>
    %960 = arith.addf %958, %959 : vector<2x16xf32>
    %961 = math.tanh %960 : vector<2x16xf32>
    %962 = arith.mulf %956, %961 : vector<2x16xf32>
    %963 = vector.extract_strided_slice %715 {offsets = [28, 0], sizes = [2, 64], strides = [1, 1]} : vector<32x64xf32> to vector<2x64xf32>
    %cst_120 = arith.constant dense<0.000000e+00> : vector<2x64xf32>
    %964 = tpu.matmul %962, %711, %cst_120 {dimension_numbers = #tpu.dot_dimension_numbers<[1], [0], [0], [1], [0, 0, 1, 1], [], []>} : vector<2x16xf32>, vector<16x64xf32>, vector<2x64xf32> -> vector<2x64xf32>
    %965 = arith.addf %963, %964 : vector<2x64xf32>
    %966 = arith.negf %965 : vector<2x64xf32>
    %967 = math.exp %966 : vector<2x64xf32>
    %cst_121 = arith.constant 1.000000e+00 : f32
    %968 = vector.broadcast %cst_121 : f32 to vector<2x64xf32>
    %969 = arith.addf %968, %967 : vector<2x64xf32>
    %970 = arith.divf %968, %969 : vector<2x64xf32>
    %971 = math.tanh %965 : vector<2x64xf32>
    %972 = vector.extract_strided_slice %970 {offsets = [0, 0], sizes = [2, 16], strides = [1, 1]} : vector<2x64xf32> to vector<2x16xf32>
    %973 = vector.extract_strided_slice %970 {offsets = [0, 16], sizes = [2, 16], strides = [1, 1]} : vector<2x64xf32> to vector<2x16xf32>
    %974 = vector.extract_strided_slice %970 {offsets = [0, 48], sizes = [2, 16], strides = [1, 1]} : vector<2x64xf32> to vector<2x16xf32>
    %975 = vector.extract_strided_slice %971 {offsets = [0, 32], sizes = [2, 16], strides = [1, 1]} : vector<2x64xf32> to vector<2x16xf32>
    %976 = arith.mulf %973, %960 : vector<2x16xf32>
    %977 = arith.mulf %972, %975 : vector<2x16xf32>
    %978 = arith.addf %976, %977 : vector<2x16xf32>
    %979 = math.tanh %978 : vector<2x16xf32>
    %980 = arith.mulf %974, %979 : vector<2x16xf32>
    %981 = vector.extract_strided_slice %715 {offsets = [30, 0], sizes = [2, 64], strides = [1, 1]} : vector<32x64xf32> to vector<2x64xf32>
    %cst_122 = arith.constant dense<0.000000e+00> : vector<2x64xf32>
    %982 = tpu.matmul %980, %711, %cst_122 {dimension_numbers = #tpu.dot_dimension_numbers<[1], [0], [0], [1], [0, 0, 1, 1], [], []>} : vector<2x16xf32>, vector<16x64xf32>, vector<2x64xf32> -> vector<2x64xf32>
    %983 = arith.addf %981, %982 : vector<2x64xf32>
    %984 = arith.negf %983 : vector<2x64xf32>
    %985 = math.exp %984 : vector<2x64xf32>
    %cst_123 = arith.constant 1.000000e+00 : f32
    %986 = vector.broadcast %cst_123 : f32 to vector<2x64xf32>
    %987 = arith.addf %986, %985 : vector<2x64xf32>
    %988 = arith.divf %986, %987 : vector<2x64xf32>
    %989 = math.tanh %983 : vector<2x64xf32>
    %990 = vector.extract_strided_slice %988 {offsets = [0, 0], sizes = [2, 16], strides = [1, 1]} : vector<2x64xf32> to vector<2x16xf32>
    %991 = vector.extract_strided_slice %988 {offsets = [0, 16], sizes = [2, 16], strides = [1, 1]} : vector<2x64xf32> to vector<2x16xf32>
    %992 = vector.extract_strided_slice %988 {offsets = [0, 48], sizes = [2, 16], strides = [1, 1]} : vector<2x64xf32> to vector<2x16xf32>
    %993 = vector.extract_strided_slice %989 {offsets = [0, 32], sizes = [2, 16], strides = [1, 1]} : vector<2x64xf32> to vector<2x16xf32>
    %994 = arith.mulf %991, %978 : vector<2x16xf32>
    %995 = arith.mulf %990, %993 : vector<2x16xf32>
    %996 = arith.addf %994, %995 : vector<2x16xf32>
    %997 = math.tanh %996 : vector<2x16xf32>
    %998 = arith.mulf %992, %997 : vector<2x16xf32>
    %999 = vector.extract_strided_slice %998 {offsets = [0, 0], sizes = [2, 4], strides = [1, 1]} : vector<2x16xf32> to vector<2x4xf32>
    %1000 = vector.extract_strided_slice %998 {offsets = [0, 4], sizes = [2, 4], strides = [1, 1]} : vector<2x16xf32> to vector<2x4xf32>
    %1001 = vector.extract_strided_slice %998 {offsets = [0, 8], sizes = [2, 4], strides = [1, 1]} : vector<2x16xf32> to vector<2x4xf32>
    %1002 = vector.extract_strided_slice %998 {offsets = [0, 12], sizes = [2, 4], strides = [1, 1]} : vector<2x16xf32> to vector<2x4xf32>
    %1003 = tpu.concatenate %999, %1000, %1001, %1002 in 0 : vector<2x4xf32>, vector<2x4xf32>, vector<2x4xf32>, vector<2x4xf32> -> vector<8x4xf32>
    %c264 = arith.constant 264 : index
    %c0_124 = arith.constant 0 : index
    %1004 = vector.load %arg2[%c264, %c0_124] : memref<456x128xf32, #tpu.memory_space<vmem>>, vector<4x128xf32>
    %c272 = arith.constant 272 : index
    %c0_125 = arith.constant 0 : index
    %1005 = vector.load %arg2[%c272, %c0_125] : memref<456x128xf32, #tpu.memory_space<vmem>>, vector<32x128xf32>
    %c304 = arith.constant 304 : index
    %c0_126 = arith.constant 0 : index
    %1006 = vector.load %arg2[%c304, %c0_126] : memref<456x128xf32, #tpu.memory_space<vmem>>, vector<1x128xf32>
    %cst_127 = arith.constant dense<0.000000e+00> : vector<8x128xf32>
    %1007 = tpu.matmul %1003, %1004, %cst_127 {dimension_numbers = #tpu.dot_dimension_numbers<[1], [0], [0], [1], [0, 0, 1, 1], [], []>} : vector<8x4xf32>, vector<4x128xf32>, vector<8x128xf32> -> vector<8x128xf32>
    %1008 = vector.broadcast %1006 : vector<1x128xf32> to vector<8x128xf32>
    %1009 = arith.addf %1007, %1008 : vector<8x128xf32>
    %1010 = vector.extract_strided_slice %1009 {offsets = [0, 0], sizes = [2, 128], strides = [1, 1]} : vector<8x128xf32> to vector<2x128xf32>
    %1011 = arith.negf %1010 : vector<2x128xf32>
    %1012 = math.exp %1011 : vector<2x128xf32>
    %cst_128 = arith.constant 1.000000e+00 : f32
    %1013 = vector.broadcast %cst_128 : f32 to vector<2x128xf32>
    %1014 = arith.addf %1013, %1012 : vector<2x128xf32>
    %1015 = arith.divf %1013, %1014 : vector<2x128xf32>
    %1016 = math.tanh %1010 : vector<2x128xf32>
    %1017 = vector.extract_strided_slice %1015 {offsets = [0, 0], sizes = [2, 32], strides = [1, 1]} : vector<2x128xf32> to vector<2x32xf32>
    %1018 = vector.extract_strided_slice %1015 {offsets = [0, 96], sizes = [2, 32], strides = [1, 1]} : vector<2x128xf32> to vector<2x32xf32>
    %1019 = vector.extract_strided_slice %1016 {offsets = [0, 64], sizes = [2, 32], strides = [1, 1]} : vector<2x128xf32> to vector<2x32xf32>
    %1020 = arith.mulf %1017, %1019 : vector<2x32xf32>
    %1021 = math.tanh %1020 : vector<2x32xf32>
    %1022 = arith.mulf %1018, %1021 : vector<2x32xf32>
    %1023 = vector.extract_strided_slice %1009 {offsets = [2, 0], sizes = [2, 128], strides = [1, 1]} : vector<8x128xf32> to vector<2x128xf32>
    %cst_129 = arith.constant dense<0.000000e+00> : vector<2x128xf32>
    %1024 = tpu.matmul %1022, %1005, %cst_129 {dimension_numbers = #tpu.dot_dimension_numbers<[1], [0], [0], [1], [0, 0, 1, 1], [], []>} : vector<2x32xf32>, vector<32x128xf32>, vector<2x128xf32> -> vector<2x128xf32>
    %1025 = arith.addf %1023, %1024 : vector<2x128xf32>
    %1026 = arith.negf %1025 : vector<2x128xf32>
    %1027 = math.exp %1026 : vector<2x128xf32>
    %cst_130 = arith.constant 1.000000e+00 : f32
    %1028 = vector.broadcast %cst_130 : f32 to vector<2x128xf32>
    %1029 = arith.addf %1028, %1027 : vector<2x128xf32>
    %1030 = arith.divf %1028, %1029 : vector<2x128xf32>
    %1031 = math.tanh %1025 : vector<2x128xf32>
    %1032 = vector.extract_strided_slice %1030 {offsets = [0, 0], sizes = [2, 32], strides = [1, 1]} : vector<2x128xf32> to vector<2x32xf32>
    %1033 = vector.extract_strided_slice %1030 {offsets = [0, 32], sizes = [2, 32], strides = [1, 1]} : vector<2x128xf32> to vector<2x32xf32>
    %1034 = vector.extract_strided_slice %1030 {offsets = [0, 96], sizes = [2, 32], strides = [1, 1]} : vector<2x128xf32> to vector<2x32xf32>
    %1035 = vector.extract_strided_slice %1031 {offsets = [0, 64], sizes = [2, 32], strides = [1, 1]} : vector<2x128xf32> to vector<2x32xf32>
    %1036 = arith.mulf %1033, %1020 : vector<2x32xf32>
    %1037 = arith.mulf %1032, %1035 : vector<2x32xf32>
    %1038 = arith.addf %1036, %1037 : vector<2x32xf32>
    %1039 = math.tanh %1038 : vector<2x32xf32>
    %1040 = arith.mulf %1034, %1039 : vector<2x32xf32>
    %1041 = vector.extract_strided_slice %1009 {offsets = [4, 0], sizes = [2, 128], strides = [1, 1]} : vector<8x128xf32> to vector<2x128xf32>
    %cst_131 = arith.constant dense<0.000000e+00> : vector<2x128xf32>
    %1042 = tpu.matmul %1040, %1005, %cst_131 {dimension_numbers = #tpu.dot_dimension_numbers<[1], [0], [0], [1], [0, 0, 1, 1], [], []>} : vector<2x32xf32>, vector<32x128xf32>, vector<2x128xf32> -> vector<2x128xf32>
    %1043 = arith.addf %1041, %1042 : vector<2x128xf32>
    %1044 = arith.negf %1043 : vector<2x128xf32>
    %1045 = math.exp %1044 : vector<2x128xf32>
    %cst_132 = arith.constant 1.000000e+00 : f32
    %1046 = vector.broadcast %cst_132 : f32 to vector<2x128xf32>
    %1047 = arith.addf %1046, %1045 : vector<2x128xf32>
    %1048 = arith.divf %1046, %1047 : vector<2x128xf32>
    %1049 = math.tanh %1043 : vector<2x128xf32>
    %1050 = vector.extract_strided_slice %1048 {offsets = [0, 0], sizes = [2, 32], strides = [1, 1]} : vector<2x128xf32> to vector<2x32xf32>
    %1051 = vector.extract_strided_slice %1048 {offsets = [0, 32], sizes = [2, 32], strides = [1, 1]} : vector<2x128xf32> to vector<2x32xf32>
    %1052 = vector.extract_strided_slice %1048 {offsets = [0, 96], sizes = [2, 32], strides = [1, 1]} : vector<2x128xf32> to vector<2x32xf32>
    %1053 = vector.extract_strided_slice %1049 {offsets = [0, 64], sizes = [2, 32], strides = [1, 1]} : vector<2x128xf32> to vector<2x32xf32>
    %1054 = arith.mulf %1051, %1038 : vector<2x32xf32>
    %1055 = arith.mulf %1050, %1053 : vector<2x32xf32>
    %1056 = arith.addf %1054, %1055 : vector<2x32xf32>
    %1057 = math.tanh %1056 : vector<2x32xf32>
    %1058 = arith.mulf %1052, %1057 : vector<2x32xf32>
    %1059 = vector.extract_strided_slice %1009 {offsets = [6, 0], sizes = [2, 128], strides = [1, 1]} : vector<8x128xf32> to vector<2x128xf32>
    %cst_133 = arith.constant dense<0.000000e+00> : vector<2x128xf32>
    %1060 = tpu.matmul %1058, %1005, %cst_133 {dimension_numbers = #tpu.dot_dimension_numbers<[1], [0], [0], [1], [0, 0, 1, 1], [], []>} : vector<2x32xf32>, vector<32x128xf32>, vector<2x128xf32> -> vector<2x128xf32>
    %1061 = arith.addf %1059, %1060 : vector<2x128xf32>
    %1062 = arith.negf %1061 : vector<2x128xf32>
    %1063 = math.exp %1062 : vector<2x128xf32>
    %cst_134 = arith.constant 1.000000e+00 : f32
    %1064 = vector.broadcast %cst_134 : f32 to vector<2x128xf32>
    %1065 = arith.addf %1064, %1063 : vector<2x128xf32>
    %1066 = arith.divf %1064, %1065 : vector<2x128xf32>
    %1067 = math.tanh %1061 : vector<2x128xf32>
    %1068 = vector.extract_strided_slice %1066 {offsets = [0, 0], sizes = [2, 32], strides = [1, 1]} : vector<2x128xf32> to vector<2x32xf32>
    %1069 = vector.extract_strided_slice %1066 {offsets = [0, 32], sizes = [2, 32], strides = [1, 1]} : vector<2x128xf32> to vector<2x32xf32>
    %1070 = vector.extract_strided_slice %1066 {offsets = [0, 96], sizes = [2, 32], strides = [1, 1]} : vector<2x128xf32> to vector<2x32xf32>
    %1071 = vector.extract_strided_slice %1067 {offsets = [0, 64], sizes = [2, 32], strides = [1, 1]} : vector<2x128xf32> to vector<2x32xf32>
    %1072 = arith.mulf %1069, %1056 : vector<2x32xf32>
    %1073 = arith.mulf %1068, %1071 : vector<2x32xf32>
    %1074 = arith.addf %1072, %1073 : vector<2x32xf32>
    %1075 = math.tanh %1074 : vector<2x32xf32>
    %1076 = arith.mulf %1070, %1075 : vector<2x32xf32>
    %1077 = tpu.concatenate %1022, %1040, %1058, %1076 in 0 : vector<2x32xf32>, vector<2x32xf32>, vector<2x32xf32>, vector<2x32xf32> -> vector<8x32xf32>
    %c312 = arith.constant 312 : index
    %c0_135 = arith.constant 0 : index
    %1078 = vector.load %arg2[%c312, %c0_135] : memref<456x128xf32, #tpu.memory_space<vmem>>, vector<32x128xf32>
    %c344 = arith.constant 344 : index
    %c0_136 = arith.constant 0 : index
    %1079 = vector.load %arg2[%c344, %c0_136] : memref<456x128xf32, #tpu.memory_space<vmem>>, vector<32x128xf32>
    %c376 = arith.constant 376 : index
    %c0_137 = arith.constant 0 : index
    %1080 = vector.load %arg2[%c376, %c0_137] : memref<456x128xf32, #tpu.memory_space<vmem>>, vector<1x128xf32>
    %cst_138 = arith.constant dense<0.000000e+00> : vector<8x128xf32>
    %1081 = tpu.matmul %1077, %1078, %cst_138 {dimension_numbers = #tpu.dot_dimension_numbers<[1], [0], [0], [1], [0, 0, 1, 1], [], []>} : vector<8x32xf32>, vector<32x128xf32>, vector<8x128xf32> -> vector<8x128xf32>
    %1082 = vector.broadcast %1080 : vector<1x128xf32> to vector<8x128xf32>
    %1083 = arith.addf %1081, %1082 : vector<8x128xf32>
    %1084 = vector.extract_strided_slice %1083 {offsets = [0, 0], sizes = [2, 128], strides = [1, 1]} : vector<8x128xf32> to vector<2x128xf32>
    %1085 = arith.negf %1084 : vector<2x128xf32>
    %1086 = math.exp %1085 : vector<2x128xf32>
    %cst_139 = arith.constant 1.000000e+00 : f32
    %1087 = vector.broadcast %cst_139 : f32 to vector<2x128xf32>
    %1088 = arith.addf %1087, %1086 : vector<2x128xf32>
    %1089 = arith.divf %1087, %1088 : vector<2x128xf32>
    %1090 = math.tanh %1084 : vector<2x128xf32>
    %1091 = vector.extract_strided_slice %1089 {offsets = [0, 0], sizes = [2, 32], strides = [1, 1]} : vector<2x128xf32> to vector<2x32xf32>
    %1092 = vector.extract_strided_slice %1089 {offsets = [0, 96], sizes = [2, 32], strides = [1, 1]} : vector<2x128xf32> to vector<2x32xf32>
    %1093 = vector.extract_strided_slice %1090 {offsets = [0, 64], sizes = [2, 32], strides = [1, 1]} : vector<2x128xf32> to vector<2x32xf32>
    %1094 = arith.mulf %1091, %1093 : vector<2x32xf32>
    %1095 = math.tanh %1094 : vector<2x32xf32>
    %1096 = arith.mulf %1092, %1095 : vector<2x32xf32>
    %1097 = vector.extract_strided_slice %1083 {offsets = [2, 0], sizes = [2, 128], strides = [1, 1]} : vector<8x128xf32> to vector<2x128xf32>
    %cst_140 = arith.constant dense<0.000000e+00> : vector<2x128xf32>
    %1098 = tpu.matmul %1096, %1079, %cst_140 {dimension_numbers = #tpu.dot_dimension_numbers<[1], [0], [0], [1], [0, 0, 1, 1], [], []>} : vector<2x32xf32>, vector<32x128xf32>, vector<2x128xf32> -> vector<2x128xf32>
    %1099 = arith.addf %1097, %1098 : vector<2x128xf32>
    %1100 = arith.negf %1099 : vector<2x128xf32>
    %1101 = math.exp %1100 : vector<2x128xf32>
    %cst_141 = arith.constant 1.000000e+00 : f32
    %1102 = vector.broadcast %cst_141 : f32 to vector<2x128xf32>
    %1103 = arith.addf %1102, %1101 : vector<2x128xf32>
    %1104 = arith.divf %1102, %1103 : vector<2x128xf32>
    %1105 = math.tanh %1099 : vector<2x128xf32>
    %1106 = vector.extract_strided_slice %1104 {offsets = [0, 0], sizes = [2, 32], strides = [1, 1]} : vector<2x128xf32> to vector<2x32xf32>
    %1107 = vector.extract_strided_slice %1104 {offsets = [0, 32], sizes = [2, 32], strides = [1, 1]} : vector<2x128xf32> to vector<2x32xf32>
    %1108 = vector.extract_strided_slice %1104 {offsets = [0, 96], sizes = [2, 32], strides = [1, 1]} : vector<2x128xf32> to vector<2x32xf32>
    %1109 = vector.extract_strided_slice %1105 {offsets = [0, 64], sizes = [2, 32], strides = [1, 1]} : vector<2x128xf32> to vector<2x32xf32>
    %1110 = arith.mulf %1107, %1094 : vector<2x32xf32>
    %1111 = arith.mulf %1106, %1109 : vector<2x32xf32>
    %1112 = arith.addf %1110, %1111 : vector<2x32xf32>
    %1113 = math.tanh %1112 : vector<2x32xf32>
    %1114 = arith.mulf %1108, %1113 : vector<2x32xf32>
    %1115 = vector.extract_strided_slice %1083 {offsets = [4, 0], sizes = [2, 128], strides = [1, 1]} : vector<8x128xf32> to vector<2x128xf32>
    %cst_142 = arith.constant dense<0.000000e+00> : vector<2x128xf32>
    %1116 = tpu.matmul %1114, %1079, %cst_142 {dimension_numbers = #tpu.dot_dimension_numbers<[1], [0], [0], [1], [0, 0, 1, 1], [], []>} : vector<2x32xf32>, vector<32x128xf32>, vector<2x128xf32> -> vector<2x128xf32>
    %1117 = arith.addf %1115, %1116 : vector<2x128xf32>
    %1118 = arith.negf %1117 : vector<2x128xf32>
    %1119 = math.exp %1118 : vector<2x128xf32>
    %cst_143 = arith.constant 1.000000e+00 : f32
    %1120 = vector.broadcast %cst_143 : f32 to vector<2x128xf32>
    %1121 = arith.addf %1120, %1119 : vector<2x128xf32>
    %1122 = arith.divf %1120, %1121 : vector<2x128xf32>
    %1123 = math.tanh %1117 : vector<2x128xf32>
    %1124 = vector.extract_strided_slice %1122 {offsets = [0, 0], sizes = [2, 32], strides = [1, 1]} : vector<2x128xf32> to vector<2x32xf32>
    %1125 = vector.extract_strided_slice %1122 {offsets = [0, 32], sizes = [2, 32], strides = [1, 1]} : vector<2x128xf32> to vector<2x32xf32>
    %1126 = vector.extract_strided_slice %1122 {offsets = [0, 96], sizes = [2, 32], strides = [1, 1]} : vector<2x128xf32> to vector<2x32xf32>
    %1127 = vector.extract_strided_slice %1123 {offsets = [0, 64], sizes = [2, 32], strides = [1, 1]} : vector<2x128xf32> to vector<2x32xf32>
    %1128 = arith.mulf %1125, %1112 : vector<2x32xf32>
    %1129 = arith.mulf %1124, %1127 : vector<2x32xf32>
    %1130 = arith.addf %1128, %1129 : vector<2x32xf32>
    %1131 = math.tanh %1130 : vector<2x32xf32>
    %1132 = arith.mulf %1126, %1131 : vector<2x32xf32>
    %1133 = vector.extract_strided_slice %1083 {offsets = [6, 0], sizes = [2, 128], strides = [1, 1]} : vector<8x128xf32> to vector<2x128xf32>
    %cst_144 = arith.constant dense<0.000000e+00> : vector<2x128xf32>
    %1134 = tpu.matmul %1132, %1079, %cst_144 {dimension_numbers = #tpu.dot_dimension_numbers<[1], [0], [0], [1], [0, 0, 1, 1], [], []>} : vector<2x32xf32>, vector<32x128xf32>, vector<2x128xf32> -> vector<2x128xf32>
    %1135 = arith.addf %1133, %1134 : vector<2x128xf32>
    %1136 = arith.negf %1135 : vector<2x128xf32>
    %1137 = math.exp %1136 : vector<2x128xf32>
    %cst_145 = arith.constant 1.000000e+00 : f32
    %1138 = vector.broadcast %cst_145 : f32 to vector<2x128xf32>
    %1139 = arith.addf %1138, %1137 : vector<2x128xf32>
    %1140 = arith.divf %1138, %1139 : vector<2x128xf32>
    %1141 = math.tanh %1135 : vector<2x128xf32>
    %1142 = vector.extract_strided_slice %1140 {offsets = [0, 0], sizes = [2, 32], strides = [1, 1]} : vector<2x128xf32> to vector<2x32xf32>
    %1143 = vector.extract_strided_slice %1140 {offsets = [0, 32], sizes = [2, 32], strides = [1, 1]} : vector<2x128xf32> to vector<2x32xf32>
    %1144 = vector.extract_strided_slice %1140 {offsets = [0, 96], sizes = [2, 32], strides = [1, 1]} : vector<2x128xf32> to vector<2x32xf32>
    %1145 = vector.extract_strided_slice %1141 {offsets = [0, 64], sizes = [2, 32], strides = [1, 1]} : vector<2x128xf32> to vector<2x32xf32>
    %1146 = arith.mulf %1143, %1130 : vector<2x32xf32>
    %1147 = arith.mulf %1142, %1145 : vector<2x32xf32>
    %1148 = arith.addf %1146, %1147 : vector<2x32xf32>
    %1149 = math.tanh %1148 : vector<2x32xf32>
    %1150 = arith.mulf %1144, %1149 : vector<2x32xf32>
    %c384 = arith.constant 384 : index
    %c0_146 = arith.constant 0 : index
    %1151 = vector.load %arg2[%c384, %c0_146] : memref<456x128xf32, #tpu.memory_space<vmem>>, vector<32x4xf32>
    %cst_147 = arith.constant dense<0.000000e+00> : vector<2x4xf32>
    %1152 = tpu.matmul %386, %1151, %cst_147 {dimension_numbers = #tpu.dot_dimension_numbers<[1], [0], [0], [1], [0, 0, 1, 1], [], []>} : vector<2x32xf32>, vector<32x4xf32>, vector<2x4xf32> -> vector<2x4xf32>
    %c416 = arith.constant 416 : index
    %c0_148 = arith.constant 0 : index
    %1153 = vector.load %arg2[%c416, %c0_148] : memref<456x128xf32, #tpu.memory_space<vmem>>, vector<32x4xf32>
    %cst_149 = arith.constant dense<0.000000e+00> : vector<2x4xf32>
    %1154 = tpu.matmul %1150, %1153, %cst_149 {dimension_numbers = #tpu.dot_dimension_numbers<[1], [0], [0], [1], [0, 0, 1, 1], [], []>} : vector<2x32xf32>, vector<32x4xf32>, vector<2x4xf32> -> vector<2x4xf32>
    %1155 = arith.addf %1152, %1154 : vector<2x4xf32>
    %c448 = arith.constant 448 : index
    %c0_150 = arith.constant 0 : index
    %1156 = vector.load %arg2[%c448, %c0_150] : memref<456x128xf32, #tpu.memory_space<vmem>>, vector<1x4xf32>
    %1157 = vector.broadcast %1156 : vector<1x4xf32> to vector<2x4xf32>
    %1158 = arith.addf %1155, %1157 : vector<2x4xf32>
    %c0_151 = arith.constant 0 : index
    %c0_152 = arith.constant 0 : index
    %1159 = vector.load %arg3[%c0_151, %c0_152] : memref<2x4xf32, #tpu.memory_space<vmem>>, vector<2x4xf32>
    tpu.vector_store %arg3[%c0_151, %c0_152], %1158 {strides = array<i32>} : memref<2x4xf32, #tpu.memory_space<vmem>>, vector<2x4xf32>,
    return
  }
  func.func @transform_0(%arg0: i32) -> (i32, i32, i32) {
    %c0_i32 = arith.constant 0 : i32
    %c0_i32_0 = arith.constant 0 : i32
    %c0_i32_1 = arith.constant 0 : i32
    %c0_i32_2 = arith.constant 0 : i32
    return %c0_i32, %c0_i32_0, %c0_i32_1 : i32, i32, i32
  }
  func.func @transform_1(%arg0: i32) -> (i32, i32) {
    %c0_i32 = arith.constant 0 : i32
    %c0_i32_0 = arith.constant 0 : i32
    %c0_i32_1 = arith.constant 0 : i32
    return %c0_i32, %c0_i32_0 : i32, i32
  }
  func.func @transform_2(%arg0: i32) -> (i32, i32) {
    %c0_i32 = arith.constant 0 : i32
    %c0_i32_0 = arith.constant 0 : i32
    %c0_i32_1 = arith.constant 0 : i32
    return %c0_i32, %c0_i32_0 : i32, i32
  }
}

</mosaic_0001>

<llo_original>
// kernel: tpu_custom_call.1
$region0: #{tpu_custom_call.1}
  #allocation0 [shape = 'u32[]', space=smem, size = 0x4, offset = 0x4, fixed_abs, tag = 'smem constant byte address 0x4 - core index']
  #allocation1 [shape = 'u32[144,128]{1,0:T(1,128)}', space=vmem, size = 0x12000, scoped, tag = 'internal scratch']
  %s0 = inlined_call_operand.hbm [shape: f32[2,8,8], index: 0, kind: input, shape index: {}]
  %s1 = inlined_call_operand.hbm [shape: f32[456,128], index: 1, kind: input, shape index: {}]
  %s2 = inlined_call_operand.hbm [shape: f32[2,4], index: 2, kind: output, shape index: {}]
  %s3 = sld [smem:[#allocation0]]
  $region26: #{tpu_custom_call.1} parent=0
    _
  %s5 = ssub.s32 1, %s3
  %s6 = scalar_select 0, %s5, %s3
  $region1: #{tpu_custom_call.1} parent=0
    #allocation2 [shape = 'u8[8192]{0}', space=vmem, size = 0x2000, scoped, tag = 'input window, operand 0, single buffered']
    #allocation3 [shape = 's32[1]{0}', space=sflag, size = 0x4, scoped, tag = 'scoped memory for tpu_custom_call.1']
    #allocation4 [shape = 's32[1]{0}', space=sflag, size = 0x4, scoped, tag = 'scoped memory for tpu_custom_call.1']
    #allocation5 [shape = 'u8[233472]{0}', space=vmem, size = 0x39000, scoped, tag = 'input window, operand 1, single buffered']
    #allocation6 [shape = 's32[1]{0}', space=sflag, size = 0x4, scoped, tag = 'scoped memory for tpu_custom_call.1']
    #allocation7 [shape = 'u8[1024]{0}', space=vmem, size = 0x400, scoped, tag = 'output window, operand 0, single buffered']
    %7 = vsyncpa [#allocation3], 0
    %8 = vsyncpa [#allocation6], 0
    %9 = vsyncpa [#allocation4], 0
    // Predicated region
    $region2: #{tpu_custom_call.1} parent=1 // pred_check
      _
    $region3: #{tpu_custom_call.1} parent=1 // pred_check_branch
      %11 = sbr.rel (0) target = $region5
    $region4: #{tpu_custom_call.1} parent=1 // pred_region
      %s13 = ssub.s32 256, 256
      %14 = vsyncadd [#allocation3], %s13
      %s15 = sshll.u32 [#allocation2], 4
      %s16 = int_to_ptr.vmem [resolvable:$true] %s15
      %21 = dma.hbm_to_vmem [thread:$0]  %s0, 256, %s16, [#allocation3], 128, 128, 8
    $region5: #{tpu_custom_call.1} parent=1 // pred_fallthru
      _
    // Predicated region
    $region6: #{tpu_custom_call.1} parent=1 // pred_check
      _
    $region7: #{tpu_custom_call.1} parent=1 // pred_check_branch
      %23 = sbr.rel (0) target = $region9
    $region8: #{tpu_custom_call.1} parent=1 // pred_region
      %s25 = ssub.s32 7296, 7296
      %26 = vsyncadd [#allocation6], %s25
      %s27 = sshll.u32 [#allocation5], 4
      %s28 = int_to_ptr.vmem [resolvable:$true] %s27
      %33 = dma.hbm_to_vmem [thread:$0]  %s1, 7296, %s28, [#allocation6], 128, 128, 8
    $region9: #{tpu_custom_call.1} parent=1 // pred_fallthru
      _
    // Predicated region
    $region10: #{tpu_custom_call.1} parent=1 // pred_check
      _
    $region11: #{tpu_custom_call.1} parent=1 // pred_check_branch
      %35 = sbr.rel (0) target = $region13
    $region12: #{tpu_custom_call.1} parent=1 // pred_region
      %36 = dma.done [#allocation3], 256
    $region13: #{tpu_custom_call.1} parent=1 // pred_fallthru
      _
    // Predicated region
    $region14: #{tpu_custom_call.1} parent=1 // pred_check
      _
    $region15: #{tpu_custom_call.1} parent=1 // pred_check_branch
      %38 = sbr.rel (0) target = $region17
    $region16: #{tpu_custom_call.1} parent=1 // pred_region
      %39 = dma.done [#allocation6], 7296
    $region17: #{tpu_custom_call.1} parent=1 // pred_fallthru
      _
    %v40 = vld [vmem:[#allocation2] sm:$0xff]
    %v41 = vld [vmem:[#allocation2 + $0x8] sm:$0xff]
    %v44 = vrot.slane %v41, 7
    %vm45 = vcmask 1041409
    %v46 = vsel %vm45, %v44, %v40
    %v48 = vrot.slane %v40, 7
    %v49 = vrot.slane %v41, 6
    %vm50 = vcmask 1043459
    %v51 = vsel %vm50, %v49, %v48
    %v53 = vrot.slane %v40, 6
    %v54 = vrot.slane %v41, 5
    %vm55 = vcmask 1045509
    %v56 = vsel %vm55, %v54, %v53
    %v58 = vrot.slane %v40, 5
    %v59 = vrot.slane %v41, 4
    %vm60 = vcmask 1047559
    %v61 = vsel %vm60, %v59, %v58
    %v63 = vrot.slane %v40, 4
    %v64 = vrot.slane %v41, 3
    %v65 = vsel %vm45, %v64, %v63
    %v67 = vrot.slane %v40, 3
    %v68 = vrot.slane %v41, 2
    %v69 = vsel %vm50, %v68, %v67
    %v71 = vrot.slane %v40, 2
    %v72 = vrot.slane %v41, 1
    %v73 = vsel %vm55, %v72, %v71
    %v75 = vrot.slane %v40, 1
    %v76 = vsel %vm60, %v41, %v75
    %vm78 = vcmask 1041408
    %v79 = vsel %vm78, %v46, %v51
    %vm80 = vcmask 1043456
    %v81 = vsel %vm80, %v79, %v56
    %vm82 = vcmask 1045504
    %v83 = vsel %vm82, %v81, %v61
    %v84 = vsel %vm78, %v65, %v69
    %v85 = vsel %vm80, %v84, %v73
    %v86 = vsel %vm82, %v85, %v76
    %v87 = vld [vmem:[#allocation5] sm:$0xff]
    %v88 = vld [vmem:[#allocation5 + $0x8] sm:$0xff]
    %v89 = vld [vmem:[#allocation5 + $0x10] sm:$0xff]
    %v90 = vld [vmem:[#allocation5 + $0x18] sm:$0x1]
    %v91 = vlaneseq
    %v92 = vshrl.u32 %v91, 7
    %v93 = vsub.s32 0, %v92
    %v94 = vrot.slane %v90, %v93
    %vm95 = vcmask 64512
    %v97 = vsel %vm95, %v83, 0
    %v100 = vsel %vm95, %v86, 0
    %102 = vmatprep.subr.mxu0 0.0
    %103 = vmatpush1.msra.mxu0 %v87
    %104 = vmatprep.subr.mxu0 0.0
    %105 = vmatpush1.msra.mxu0 0.0
    %106 = vmatprep.subr.mxu0 0.0
    %107 = vmatpush1.msra.mxu0 0.0
    %108 = vmatprep.subr.mxu0 0.0
    %109 = vmatpush1.msra.mxu0 0.0
    %110 = vmatprep.subr.mxu0 0.0
    %111 = vmatpush1.msra.mxu0 0.0
    %112 = vmatprep.subr.mxu0 0.0
    %113 = vmatpush1.msra.mxu0 0.0
    %114 = vmatprep.subr.mxu0 0.0
    %115 = vmatpush1.msra.mxu0 0.0
    %116 = vmatprep.subr.mxu0 0.0
    %117 = vmatpush1.msra.mxu0 0.0
    %118 = vmatprep.subr.mxu0 0.0
    %119 = vmatpush1.msra.mxu0 0.0
    %120 = vmatprep.subr.mxu0 0.0
    %121 = vmatpush1.msra.mxu0 0.0
    %122 = vmatprep.subr.mxu0 0.0
    %123 = vmatpush1.msra.mxu0 0.0
    %124 = vmatprep.subr.mxu0 0.0
    %125 = vmatpush1.msra.mxu0 0.0
    %126 = vmatprep.subr.mxu0 0.0
    %127 = vmatpush1.msra.mxu0 0.0
    %128 = vmatprep.subr.mxu0 0.0
    %129 = vmatpush1.msra.mxu0 0.0
    %130 = vmatprep.subr.mxu0 0.0
    %131 = vmatpush1.msra.mxu0 0.0
    %132 = vmatprep.subr.mxu0 0.0
    %133 = vmatpush1.msra.mxu0 0.0
    %134 = vmatprep.subr.mxu0 0.0
    %135 = vmatpush1.msra.mxu0 0.0
    %136 = vmatprep.subr.mxu0 0.0
    %137 = vmatpush1.msra.mxu0 0.0
    %138 = vmatprep.subr.mxu0 0.0
    %139 = vmatpush1.msra.mxu0 0.0
    %140 = vmatprep.subr.mxu0 0.0
    %141 = vmatpush1.msra.mxu0 0.0
    %142 = vmatprep.subr.mxu0 0.0
    %143 = vmatpush1.msra.mxu0 0.0
    %144 = vmatprep.subr.mxu0 0.0
    %145 = vmatpush1.msra.mxu0 0.0
    %146 = vmatprep.subr.mxu0 0.0
    %147 = vmatpush1.msra.mxu0 0.0
    %148 = vmatprep.subr.mxu0 0.0
    %149 = vmatpush1.msra.mxu0 0.0
    %150 = vmatprep.subr.mxu0 0.0
    %151 = vmatpush1.msra.mxu0 0.0
    %152 = vmatprep.subr.mxu0 0.0
    %153 = vmatpush1.msra.mxu0 0.0
    %154 = vmatprep.subr.mxu0 0.0
    %155 = vmatpush1.msra.mxu0 0.0
    %156 = vmatprep.subr.mxu0 0.0
    %157 = vmatpush1.msra.mxu0 0.0
    %158 = vmatprep.subr.mxu0 0.0
    %159 = vmatpush1.msra.mxu0 0.0
    %160 = vmatprep.subr.mxu0 0.0
    %161 = vmatpush1.msra.mxu0 0.0
    %162 = vmatprep.subr.mxu0 0.0
    %163 = vmatpush1.msra.mxu0 0.0
    %164 = vmatprep.subr.mxu0 0.0
    %165 = vmatpush1.msra.mxu0 0.0
    %166 = vmatprep.mubr.f32.mxu0 0.0
    %167 = vmatmul.mubr.f32.gmra.mrb[0].mxu0 %v97
    %v168 = vpop.f32.mrb[0].mxu0
    %v169 = vadd.f32 %v94, %v168
    %v170 = vpop.f32.mrb[0].mxu0
    %171 = vmatprep.mubr.f32.mxu0 0.0
    %172 = vmatmul.mubr.f32.gmra.mrb[0].mxu0 %v100
    %v173 = vpop.f32.mrb[0].mxu0
    %v174 = vadd.f32 %v94, %v173
    %v175 = vpop.f32.mrb[0].mxu0
    %176 = vdwg.mxu0
    %v177 = vxor.u32 %v169, 2147483648
    %v178 = vmul.f32 %v177, 1.442695
    %v179 = vpow.pop %v178
    %v180 = vadd.f32 %v179, 1.0
    %v181 = vrcp.pop %v180
    %v182 = vmul.f32 1.0, %v181
    %v183 = vtanh.pop %v169
    %185 = vrot.lane.b32.xlu0 %v183, 96
    %v186 = vpop.permute.xlu0 %185
    %v188 = vmul.f32 %v182, %v186
    %v189 = vtanh.pop %v188
    %191 = vrot.lane.b32.xlu0 %v189, 48
    %v192 = vpop.permute.xlu0 %191
    %v194 = vmul.f32 %v182, %v192
    %196 = vrot.lane.b32.xlu0 %v194, 80
    %v197 = vpop.permute.xlu0 %196
    %vm198 = vcmask 130048
    %v199 = vsel %vm198, %v197, 0
    %201 = vmatprep.subr.mxu0 0.0
    %202 = vmatpush1.msra.mxu0 %v88
    %203 = vmatprep.subr.mxu0 0.0
    %204 = vmatpush1.msra.mxu0 %v89
    %205 = vmatprep.subr.mxu0 0.0
    %206 = vmatpush1.msra.mxu0 0.0
    %207 = vmatprep.subr.mxu0 0.0
    %208 = vmatpush1.msra.mxu0 0.0
    %209 = vmatprep.subr.mxu0 0.0
    %210 = vmatpush1.msra.mxu0 0.0
    %211 = vmatprep.subr.mxu0 0.0
    %212 = vmatpush1.msra.mxu0 0.0
    %213 = vmatprep.subr.mxu0 0.0
    %214 = vmatpush1.msra.mxu0 0.0
    %215 = vmatprep.subr.mxu0 0.0
    %216 = vmatpush1.msra.mxu0 0.0
    %217 = vmatprep.subr.mxu0 0.0
    %218 = vmatpush1.msra.mxu0 0.0
    %219 = vmatprep.subr.mxu0 0.0
    %220 = vmatpush1.msra.mxu0 0.0
    %221 = vmatprep.subr.mxu0 0.0
    %222 = vmatpush1.msra.mxu0 0.0
    %223 = vmatprep.subr.mxu0 0.0
    %224 = vmatpush1.msra.mxu0 0.0
    %225 = vmatprep.subr.mxu0 0.0
    %226 = vmatpush1.msra.mxu0 0.0
    %227 = vmatprep.subr.mxu0 0.0
    %228 = vmatpush1.msra.mxu0 0.0
    %229 = vmatprep.subr.mxu0 0.0
    %230 = vmatpush1.msra.mxu0 0.0
    %231 = vmatprep.subr.mxu0 0.0
    %232 = vmatpush1.msra.mxu0 0.0
    %233 = vmatprep.subr.mxu0 0.0
    %234 = vmatpush1.msra.mxu0 0.0
    %235 = vmatprep.subr.mxu0 0.0
    %236 = vmatpush1.msra.mxu0 0.0
    %237 = vmatprep.subr.mxu0 0.0
    %238 = vmatpush1.msra.mxu0 0.0
    %239 = vmatprep.subr.mxu0 0.0
    %240 = vmatpush1.msra.mxu0 0.0
    %241 = vmatprep.subr.mxu0 0.0
    %242 = vmatpush1.msra.mxu0 0.0
    %243 = vmatprep.subr.mxu0 0.0
    %244 = vmatpush1.msra.mxu0 0.0
    %245 = vmatprep.subr.mxu0 0.0
    %246 = vmatpush1.msra.mxu0 0.0
    %247 = vmatprep.subr.mxu0 0.0
    %248 = vmatpush1.msra.mxu0 0.0
    %249 = vmatprep.subr.mxu0 0.0
    %250 = vmatpush1.msra.mxu0 0.0
    %251 = vmatprep.subr.mxu0 0.0
    %252 = vmatpush1.msra.mxu0 0.0
    %253 = vmatprep.subr.mxu0 0.0
    %254 = vmatpush1.msra.mxu0 0.0
    %255 = vmatprep.subr.mxu0 0.0
    %256 = vmatpush1.msra.mxu0 0.0
    %257 = vmatprep.subr.mxu0 0.0
    %258 = vmatpush1.msra.mxu0 0.0
    %259 = vmatprep.subr.mxu0 0.0
    %260 = vmatpush1.msra.mxu0 0.0
    %261 = vmatprep.subr.mxu0 0.0
    %262 = vmatpush1.msra.mxu0 0.0
    %263 = vmatprep.subr.mxu0 0.0
    %264 = vmatpush1.msra.mxu0 0.0
    %265 = vmatprep.mubr.f32.mxu0 0.0
    %266 = vmatmul.mubr.f32.gmra.mrb[0].mxu0 %v199
    %v267 = vpop.f32.mrb[0].mxu0
    %v268 = vadd.f32 0.0, %v267
    %v269 = vpop.f32.mrb[0].mxu0
    %270 = vdwg.mxu0
    %v272 = vrot.slane %v268, 6
    %v274 = vadd.f32 %v169, %v272
    %v275 = vxor.u32 %v274, 2147483648
    %v276 = vmul.f32 %v275, 1.442695
    %v277 = vpow.pop %v276
    %v278 = vadd.f32 %v277, 1.0
    %v279 = vrcp.pop %v278
    %v280 = vmul.f32 1.0, %v279
    %v281 = vtanh.pop %v274
    %v283 = vrot.slane %v188, 6
    %284 = vrot.lane.b32.xlu0 %v283, 16
    %v285 = vpop.permute.xlu0 %284
    %v287 = vmul.f32 %v280, %v285
    %289 = vrot.lane.b32.xlu0 %v281, 96
    %v290 = vpop.permute.xlu0 %289
    %v292 = vmul.f32 %v280, %v290
    %294 = vrot.lane.b32.xlu0 %v292, 16
    %v295 = vpop.permute.xlu0 %294
    %v297 = vadd.f32 %v287, %v295
    %v298 = vtanh.pop %v297
    %300 = vrot.lane.b32.xlu0 %v298, 32
    %v301 = vpop.permute.xlu0 %300
    %v303 = vmul.f32 %v280, %v301
    %v305 = vrot.slane %v303, 2
    %306 = vrot.lane.b32.xlu0 %v305, 80
    %v307 = vpop.permute.xlu0 %306
    %v308 = vsel %vm198, %v307, 0
    %310 = vmatprep.subr.mxu0 0.0
    %311 = vmatpush1.msra.mxu0 %v88
    %312 = vmatprep.subr.mxu0 0.0
    %313 = vmatpush1.msra.mxu0 %v89
    %314 = vmatprep.subr.mxu0 0.0
    %315 = vmatpush1.msra.mxu0 0.0
    %316 = vmatprep.subr.mxu0 0.0
    %317 = vmatpush1.msra.mxu0 0.0
    %318 = vmatprep.subr.mxu0 0.0
    %319 = vmatpush1.msra.mxu0 0.0
    %320 = vmatprep.subr.mxu0 0.0
    %321 = vmatpush1.msra.mxu0 0.0
    %322 = vmatprep.subr.mxu0 0.0
    %323 = vmatpush1.msra.mxu0 0.0
    %324 = vmatprep.subr.mxu0 0.0
    %325 = vmatpush1.msra.mxu0 0.0
    %326 = vmatprep.subr.mxu0 0.0
    %327 = vmatpush1.msra.mxu0 0.0
    %328 = vmatprep.subr.mxu0 0.0
    %329 = vmatpush1.msra.mxu0 0.0
    %330 = vmatprep.subr.mxu0 0.0
    %331 = vmatpush1.msra.mxu0 0.0
    %332 = vmatprep.subr.mxu0 0.0
    %333 = vmatpush1.msra.mxu0 0.0
    %334 = vmatprep.subr.mxu0 0.0
    %335 = vmatpush1.msra.mxu0 0.0
    %336 = vmatprep.subr.mxu0 0.0
    %337 = vmatpush1.msra.mxu0 0.0
    %338 = vmatprep.subr.mxu0 0.0
    %339 = vmatpush1.msra.mxu0 0.0
    %340 = vmatprep.subr.mxu0 0.0
    %341 = vmatpush1.msra.mxu0 0.0
    %342 = vmatprep.subr.mxu0 0.0
    %343 = vmatpush1.msra.mxu0 0.0
    %344 = vmatprep.subr.mxu0 0.0
    %345 = vmatpush1.msra.mxu0 0.0
    %346 = vmatprep.subr.mxu0 0.0
    %347 = vmatpush1.msra.mxu0 0.0
    %348 = vmatprep.subr.mxu0 0.0
    %349 = vmatpush1.msra.mxu0 0.0
    %350 = vmatprep.subr.mxu0 0.0
    %351 = vmatpush1.msra.mxu0 0.0
    %352 = vmatprep.subr.mxu0 0.0
    %353 = vmatpush1.msra.mxu0 0.0
    %354 = vmatprep.subr.mxu0 0.0
    %355 = vmatpush1.msra.mxu0 0.0
    %356 = vmatprep.subr.mxu0 0.0
    %357 = vmatpush1.msra.mxu0 0.0
    %358 = vmatprep.subr.mxu0 0.0
    %359 = vmatpush1.msra.mxu0 0.0
    %360 = vmatprep.subr.mxu0 0.0
    %361 = vmatpush1.msra.mxu0 0.0
    %362 = vmatprep.subr.mxu0 0.0
    %363 = vmatpush1.msra.mxu0 0.0
    %364 = vmatprep.subr.mxu0 0.0
    %365 = vmatpush1.msra.mxu0 0.0
    %366 = vmatprep.subr.mxu0 0.0
    %367 = vmatpush1.msra.mxu0 0.0
    %368 = vmatprep.subr.mxu0 0.0
    %369 = vmatpush1.msra.mxu0 0.0
    %370 = vmatprep.subr.mxu0 0.0
    %371 = vmatpush1.msra.mxu0 0.0
    %372 = vmatprep.subr.mxu0 0.0
    %373 = vmatpush1.msra.mxu0 0.0
    %374 = vmatprep.mubr.f32.mxu0 0.0
    %375 = vmatmul.mubr.f32.gmra.mrb[0].mxu0 %v308
    %v376 = vpop.f32.mrb[0].mxu0
    %v377 = vadd.f32 0.0, %v376
    %v378 = vpop.f32.mrb[0].mxu0
    %379 = vdwg.mxu0
    %v381 = vrot.slane %v377, 4
    %v383 = vadd.f32 %v169, %v381
    %v384 = vxor.u32 %v383, 2147483648
    %v385 = vmul.f32 %v384, 1.442695
    %v386 = vpow.pop %v385
    %v387 = vadd.f32 %v386, 1.0
    %v388 = vrcp.pop %v387
    %v389 = vmul.f32 1.0, %v388
    %v390 = vtanh.pop %v383
    %v392 = vrot.slane %v297, 6
    %v394 = vmul.f32 %v389, %v392
    %396 = vrot.lane.b32.xlu0 %v390, 96
    %v397 = vpop.permute.xlu0 %396
    %v399 = vmul.f32 %v389, %v397
    %401 = vrot.lane.b32.xlu0 %v399, 16
    %v402 = vpop.permute.xlu0 %401
    %v404 = vadd.f32 %v394, %v402
    %v405 = vtanh.pop %v404
    %407 = vrot.lane.b32.xlu0 %v405, 32
    %v408 = vpop.permute.xlu0 %407
    %v410 = vmul.f32 %v389, %v408
    %v412 = vrot.slane %v410, 4
    %413 = vrot.lane.b32.xlu0 %v412, 80
    %v414 = vpop.permute.xlu0 %413
    %v415 = vsel %vm198, %v414, 0
    %417 = vmatprep.subr.mxu0 0.0
    %418 = vmatpush1.msra.mxu0 %v88
    %419 = vmatprep.subr.mxu0 0.0
    %420 = vmatpush1.msra.mxu0 %v89
    %421 = vmatprep.subr.mxu0 0.0
    %422 = vmatpush1.msra.mxu0 0.0
    %423 = vmatprep.subr.mxu0 0.0
    %424 = vmatpush1.msra.mxu0 0.0
    %425 = vmatprep.subr.mxu0 0.0
    %426 = vmatpush1.msra.mxu0 0.0
    %427 = vmatprep.subr.mxu0 0.0
    %428 = vmatpush1.msra.mxu0 0.0
    %429 = vmatprep.subr.mxu0 0.0
    %430 = vmatpush1.msra.mxu0 0.0
    %431 = vmatprep.subr.mxu0 0.0
    %432 = vmatpush1.msra.mxu0 0.0
    %433 = vmatprep.subr.mxu0 0.0
    %434 = vmatpush1.msra.mxu0 0.0
    %435 = vmatprep.subr.mxu0 0.0
    %436 = vmatpush1.msra.mxu0 0.0
    %437 = vmatprep.subr.mxu0 0.0
    %438 = vmatpush1.msra.mxu0 0.0
    %439 = vmatprep.subr.mxu0 0.0
    %440 = vmatpush1.msra.mxu0 0.0
    %441 = vmatprep.subr.mxu0 0.0
    %442 = vmatpush1.msra.mxu0 0.0
    %443 = vmatprep.subr.mxu0 0.0
    %444 = vmatpush1.msra.mxu0 0.0
    %445 = vmatprep.subr.mxu0 0.0
    %446 = vmatpush1.msra.mxu0 0.0
    %447 = vmatprep.subr.mxu0 0.0
    %448 = vmatpush1.msra.mxu0 0.0
    %449 = vmatprep.subr.mxu0 0.0
    %450 = vmatpush1.msra.mxu0 0.0
    %451 = vmatprep.subr.mxu0 0.0
    %452 = vmatpush1.msra.mxu0 0.0
    %453 = vmatprep.subr.mxu0 0.0
    %454 = vmatpush1.msra.mxu0 0.0
    %455 = vmatprep.subr.mxu0 0.0
    %456 = vmatpush1.msra.mxu0 0.0
    %457 = vmatprep.subr.mxu0 0.0
    %458 = vmatpush1.msra.mxu0 0.0
    %459 = vmatprep.subr.mxu0 0.0
    %460 = vmatpush1.msra.mxu0 0.0
    %461 = vmatprep.subr.mxu0 0.0
    %462 = vmatpush1.msra.mxu0 0.0
    %463 = vmatprep.subr.mxu0 0.0
    %464 = vmatpush1.msra.mxu0 0.0
    %465 = vmatprep.subr.mxu0 0.0
    %466 = vmatpush1.msra.mxu0 0.0
    %467 = vmatprep.subr.mxu0 0.0
    %468 = vmatpush1.msra.mxu0 0.0
    %469 = vmatprep.subr.mxu0 0.0
    %470 = vmatpush1.msra.mxu0 0.0
    %471 = vmatprep.subr.mxu0 0.0
    %472 = vmatpush1.msra.mxu0 0.0
    %473 = vmatprep.subr.mxu0 0.0
    %474 = vmatpush1.msra.mxu0 0.0
    %475 = vmatprep.subr.mxu0 0.0
    %476 = vmatpush1.msra.mxu0 0.0
    %477 = vmatprep.subr.mxu0 0.0
    %478 = vmatpush1.msra.mxu0 0.0
    %479 = vmatprep.subr.mxu0 0.0
    %480 = vmatpush1.msra.mxu0 0.0
    %481 = vmatprep.mubr.f32.mxu0 0.0
    %482 = vmatmul.mubr.f32.gmra.mrb[0].mxu0 %v415
    %v483 = vpop.f32.mrb[0].mxu0
    %v484 = vadd.f32 0.0, %v483
    %v485 = vpop.f32.mrb[0].mxu0
    %486 = vdwg.mxu0
    %v488 = vrot.slane %v484, 2
    %v490 = vadd.f32 %v169, %v488
    %v491 = vxor.u32 %v490, 2147483648
    %v492 = vmul.f32 %v491, 1.442695
    %v493 = vpow.pop %v492
    %v494 = vadd.f32 %v493, 1.0
    %v495 = vrcp.pop %v494
    %v496 = vmul.f32 1.0, %v495
    %v497 = vtanh.pop %v490
    %v499 = vrot.slane %v404, 6
    %v501 = vmul.f32 %v496, %v499
    %503 = vrot.lane.b32.xlu0 %v497, 96
    %v504 = vpop.permute.xlu0 %503
    %v506 = vmul.f32 %v496, %v504
    %508 = vrot.lane.b32.xlu0 %v506, 16
    %v509 = vpop.permute.xlu0 %508
    %v511 = vadd.f32 %v501, %v509
    %v512 = vtanh.pop %v511
    %514 = vrot.lane.b32.xlu0 %v512, 32
    %v515 = vpop.permute.xlu0 %514
    %v517 = vmul.f32 %v496, %v515
    %v519 = vrot.slane %v517, 6
    %520 = vrot.lane.b32.xlu0 %v519, 80
    %v521 = vpop.permute.xlu0 %520
    %v522 = vsel %vm198, %v521, 0
    %524 = vmatprep.subr.mxu0 0.0
    %525 = vmatpush1.msra.mxu0 %v88
    %526 = vmatprep.subr.mxu0 0.0
    %527 = vmatpush1.msra.mxu0 %v89
    %528 = vmatprep.subr.mxu0 0.0
    %529 = vmatpush1.msra.mxu0 0.0
    %530 = vmatprep.subr.mxu0 0.0
    %531 = vmatpush1.msra.mxu0 0.0
    %532 = vmatprep.subr.mxu0 0.0
    %533 = vmatpush1.msra.mxu0 0.0
    %534 = vmatprep.subr.mxu0 0.0
    %535 = vmatpush1.msra.mxu0 0.0
    %536 = vmatprep.subr.mxu0 0.0
    %537 = vmatpush1.msra.mxu0 0.0
    %538 = vmatprep.subr.mxu0 0.0
    %539 = vmatpush1.msra.mxu0 0.0
    %540 = vmatprep.subr.mxu0 0.0
    %541 = vmatpush1.msra.mxu0 0.0
    %542 = vmatprep.subr.mxu0 0.0
    %543 = vmatpush1.msra.mxu0 0.0
    %544 = vmatprep.subr.mxu0 0.0
    %545 = vmatpush1.msra.mxu0 0.0
    %546 = vmatprep.subr.mxu0 0.0
    %547 = vmatpush1.msra.mxu0 0.0
    %548 = vmatprep.subr.mxu0 0.0
    %549 = vmatpush1.msra.mxu0 0.0
    %550 = vmatprep.subr.mxu0 0.0
    %551 = vmatpush1.msra.mxu0 0.0
    %552 = vmatprep.subr.mxu0 0.0
    %553 = vmatpush1.msra.mxu0 0.0
    %554 = vmatprep.subr.mxu0 0.0
    %555 = vmatpush1.msra.mxu0 0.0
    %556 = vmatprep.subr.mxu0 0.0
    %557 = vmatpush1.msra.mxu0 0.0
    %558 = vmatprep.subr.mxu0 0.0
    %559 = vmatpush1.msra.mxu0 0.0
    %560 = vmatprep.subr.mxu0 0.0
    %561 = vmatpush1.msra.mxu0 0.0
    %562 = vmatprep.subr.mxu0 0.0
    %563 = vmatpush1.msra.mxu0 0.0
    %564 = vmatprep.subr.mxu0 0.0
    %565 = vmatpush1.msra.mxu0 0.0
    %566 = vmatprep.subr.mxu0 0.0
    %567 = vmatpush1.msra.mxu0 0.0
    %568 = vmatprep.subr.mxu0 0.0
    %569 = vmatpush1.msra.mxu0 0.0
    %570 = vmatprep.subr.mxu0 0.0
    %571 = vmatpush1.msra.mxu0 0.0
    %572 = vmatprep.subr.mxu0 0.0
    %573 = vmatpush1.msra.mxu0 0.0
    %574 = vmatprep.subr.mxu0 0.0
    %575 = vmatpush1.msra.mxu0 0.0
    %576 = vmatprep.subr.mxu0 0.0
    %577 = vmatpush1.msra.mxu0 0.0
    %578 = vmatprep.subr.mxu0 0.0
    %579 = vmatpush1.msra.mxu0 0.0
    %580 = vmatprep.subr.mxu0 0.0
    %581 = vmatpush1.msra.mxu0 0.0
    %582 = vmatprep.subr.mxu0 0.0
    %583 = vmatpush1.msra.mxu0 0.0
    %584 = vmatprep.subr.mxu0 0.0
    %585 = vmatpush1.msra.mxu0 0.0
    %586 = vmatprep.subr.mxu0 0.0
    %587 = vmatpush1.msra.mxu0 0.0
    %588 = vmatprep.mubr.f32.mxu0 0.0
    %589 = vmatmul.mubr.f32.gmra.mrb[0].mxu0 %v522
    %v590 = vpop.f32.mrb[0].mxu0
    %v591 = vadd.f32 0.0, %v590
    %v592 = vpop.f32.mrb[0].mxu0
    %593 = vdwg.mxu0
    %v594 = vadd.f32 %v174, %v591
    %v595 = vxor.u32 %v594, 2147483648
    %v596 = vmul.f32 %v595, 1.442695
    %v597 = vpow.pop %v596
    %v598 = vadd.f32 %v597, 1.0
    %v599 = vrcp.pop %v598
    %v600 = vmul.f32 1.0, %v599
    %v601 = vtanh.pop %v594
    %v603 = vrot.slane %v511, 6
    %v605 = vmul.f32 %v600, %v603
    %607 = vrot.lane.b32.xlu0 %v601, 96
    %v608 = vpop.permute.xlu0 %607
    %v610 = vmul.f32 %v600, %v608
    %612 = vrot.lane.b32.xlu0 %v610, 16
    %v613 = vpop.permute.xlu0 %612
    %v615 = vadd.f32 %v605, %v613
    %v616 = vtanh.pop %v615
    %618 = vrot.lane.b32.xlu0 %v616, 32
    %v619 = vpop.permute.xlu0 %618
    %v621 = vmul.f32 %v600, %v619
    %623 = vrot.lane.b32.xlu0 %v621, 80
    %v624 = vpop.permute.xlu0 %623
    %v625 = vsel %vm198, %v624, 0
    %627 = vmatprep.subr.mxu0 0.0
    %628 = vmatpush1.msra.mxu0 %v88
    %629 = vmatprep.subr.mxu0 0.0
    %630 = vmatpush1.msra.mxu0 %v89
    %631 = vmatprep.subr.mxu0 0.0
    %632 = vmatpush1.msra.mxu0 0.0
    %633 = vmatprep.subr.mxu0 0.0
    %634 = vmatpush1.msra.mxu0 0.0
    %635 = vmatprep.subr.mxu0 0.0
    %636 = vmatpush1.msra.mxu0 0.0
    %637 = vmatprep.subr.mxu0 0.0
    %638 = vmatpush1.msra.mxu0 0.0
    %639 = vmatprep.subr.mxu0 0.0
    %640 = vmatpush1.msra.mxu0 0.0
    %641 = vmatprep.subr.mxu0 0.0
    %642 = vmatpush1.msra.mxu0 0.0
    %643 = vmatprep.subr.mxu0 0.0
    %644 = vmatpush1.msra.mxu0 0.0
    %645 = vmatprep.subr.mxu0 0.0
    %646 = vmatpush1.msra.mxu0 0.0
    %647 = vmatprep.subr.mxu0 0.0
    %648 = vmatpush1.msra.mxu0 0.0
    %649 = vmatprep.subr.mxu0 0.0
    %650 = vmatpush1.msra.mxu0 0.0
    %651 = vmatprep.subr.mxu0 0.0
    %652 = vmatpush1.msra.mxu0 0.0
    %653 = vmatprep.subr.mxu0 0.0
    %654 = vmatpush1.msra.mxu0 0.0
    %655 = vmatprep.subr.mxu0 0.0
    %656 = vmatpush1.msra.mxu0 0.0
    %657 = vmatprep.subr.mxu0 0.0
    %658 = vmatpush1.msra.mxu0 0.0
    %659 = vmatprep.subr.mxu0 0.0
    %660 = vmatpush1.msra.mxu0 0.0
    %661 = vmatprep.subr.mxu0 0.0
    %662 = vmatpush1.msra.mxu0 0.0
    %663 = vmatprep.subr.mxu0 0.0
    %664 = vmatpush1.msra.mxu0 0.0
    %665 = vmatprep.subr.mxu0 0.0
    %666 = vmatpush1.msra.mxu0 0.0
    %667 = vmatprep.subr.mxu0 0.0
    %668 = vmatpush1.msra.mxu0 0.0
    %669 = vmatprep.subr.mxu0 0.0
    %670 = vmatpush1.msra.mxu0 0.0
    %671 = vmatprep.subr.mxu0 0.0
    %672 = vmatpush1.msra.mxu0 0.0
    %673 = vmatprep.subr.mxu0 0.0
    %674 = vmatpush1.msra.mxu0 0.0
    %675 = vmatprep.subr.mxu0 0.0
    %676 = vmatpush1.msra.mxu0 0.0
    %677 = vmatprep.subr.mxu0 0.0
    %678 = vmatpush1.msra.mxu0 0.0
    %679 = vmatprep.subr.mxu0 0.0
    %680 = vmatpush1.msra.mxu0 0.0
    %681 = vmatprep.subr.mxu0 0.0
    %682 = vmatpush1.msra.mxu0 0.0
    %683 = vmatprep.subr.mxu0 0.0
    %684 = vmatpush1.msra.mxu0 0.0
    %685 = vmatprep.subr.mxu0 0.0
    %686 = vmatpush1.msra.mxu0 0.0
    %687 = vmatprep.subr.mxu0 0.0
    %688 = vmatpush1.msra.mxu0 0.0
    %689 = vmatprep.subr.mxu0 0.0
    %690 = vmatpush1.msra.mxu0 0.0
    %691 = vmatprep.mubr.f32.mxu0 0.0
    %692 = vmatmul.mubr.f32.gmra.mrb[0].mxu0 %v625
    %v693 = vpop.f32.mrb[0].mxu0
    %v694 = vadd.f32 0.0, %v693
    %v695 = vpop.f32.mrb[0].mxu0
    %696 = vdwg.mxu0
    %v698 = vrot.slane %v694, 6
    %v700 = vadd.f32 %v174, %v698
    %v701 = vxor.u32 %v700, 2147483648
    %v702 = vmul.f32 %v701, 1.442695
    %v703 = vpow.pop %v702
    %v704 = vadd.f32 %v703, 1.0
    %v705 = vrcp.pop %v704
    %v706 = vmul.f32 1.0, %v705
    %v707 = vtanh.pop %v700
    %v709 = vrot.slane %v615, 6
    %v711 = vmul.f32 %v706, %v709
    %713 = vrot.lane.b32.xlu0 %v707, 96
    %v714 = vpop.permute.xlu0 %713
    %v716 = vmul.f32 %v706, %v714
    %718 = vrot.lane.b32.xlu0 %v716, 16
    %v719 = vpop.permute.xlu0 %718
    %v721 = vadd.f32 %v711, %v719
    %v722 = vtanh.pop %v721
    %724 = vrot.lane.b32.xlu0 %v722, 32
    %v725 = vpop.permute.xlu0 %724
    %v727 = vmul.f32 %v706, %v725
    %v729 = vrot.slane %v727, 2
    %730 = vrot.lane.b32.xlu0 %v729, 80
    %v731 = vpop.permute.xlu0 %730
    %v732 = vsel %vm198, %v731, 0
    %734 = vmatprep.subr.mxu0 0.0
    %735 = vmatpush1.msra.mxu0 %v88
    %736 = vmatprep.subr.mxu0 0.0
    %737 = vmatpush1.msra.mxu0 %v89
    %738 = vmatprep.subr.mxu0 0.0
    %739 = vmatpush1.msra.mxu0 0.0
    %740 = vmatprep.subr.mxu0 0.0
    %741 = vmatpush1.msra.mxu0 0.0
    %742 = vmatprep.subr.mxu0 0.0
    %743 = vmatpush1.msra.mxu0 0.0
    %744 = vmatprep.subr.mxu0 0.0
    %745 = vmatpush1.msra.mxu0 0.0
    %746 = vmatprep.subr.mxu0 0.0
    %747 = vmatpush1.msra.mxu0 0.0
    %748 = vmatprep.subr.mxu0 0.0
    %749 = vmatpush1.msra.mxu0 0.0
    %750 = vmatprep.subr.mxu0 0.0
    %751 = vmatpush1.msra.mxu0 0.0
    %752 = vmatprep.subr.mxu0 0.0
    %753 = vmatpush1.msra.mxu0 0.0
    %754 = vmatprep.subr.mxu0 0.0
    %755 = vmatpush1.msra.mxu0 0.0
    %756 = vmatprep.subr.mxu0 0.0
    %757 = vmatpush1.msra.mxu0 0.0
    %758 = vmatprep.subr.mxu0 0.0
    %759 = vmatpush1.msra.mxu0 0.0
    %760 = vmatprep.subr.mxu0 0.0
    %761 = vmatpush1.msra.mxu0 0.0
    %762 = vmatprep.subr.mxu0 0.0
    %763 = vmatpush1.msra.mxu0 0.0
    %764 = vmatprep.subr.mxu0 0.0
    %765 = vmatpush1.msra.mxu0 0.0
    %766 = vmatprep.subr.mxu0 0.0
    %767 = vmatpush1.msra.mxu0 0.0
    %768 = vmatprep.subr.mxu0 0.0
    %769 = vmatpush1.msra.mxu0 0.0
    %770 = vmatprep.subr.mxu0 0.0
    %771 = vmatpush1.msra.mxu0 0.0
    %772 = vmatprep.subr.mxu0 0.0
    %773 = vmatpush1.msra.mxu0 0.0
    %774 = vmatprep.subr.mxu0 0.0
    %775 = vmatpush1.msra.mxu0 0.0
    %776 = vmatprep.subr.mxu0 0.0
    %777 = vmatpush1.msra.mxu0 0.0
    %778 = vmatprep.subr.mxu0 0.0
    %779 = vmatpush1.msra.mxu0 0.0
    %780 = vmatprep.subr.mxu0 0.0
    %781 = vmatpush1.msra.mxu0 0.0
    %782 = vmatprep.subr.mxu0 0.0
    %783 = vmatpush1.msra.mxu0 0.0
    %784 = vmatprep.subr.mxu0 0.0
    %785 = vmatpush1.msra.mxu0 0.0
    %786 = vmatprep.subr.mxu0 0.0
    %787 = vmatpush1.msra.mxu0 0.0
    %788 = vmatprep.subr.mxu0 0.0
    %789 = vmatpush1.msra.mxu0 0.0
    %790 = vmatprep.subr.mxu0 0.0
    %791 = vmatpush1.msra.mxu0 0.0
    %792 = vmatprep.subr.mxu0 0.0
    %793 = vmatpush1.msra.mxu0 0.0
    %794 = vmatprep.subr.mxu0 0.0
    %795 = vmatpush1.msra.mxu0 0.0
    %796 = vmatprep.subr.mxu0 0.0
    %797 = vmatpush1.msra.mxu0 0.0
    %798 = vmatprep.mubr.f32.mxu0 0.0
    %799 = vmatmul.mubr.f32.gmra.mrb[0].mxu0 %v732
    %v800 = vpop.f32.mrb[0].mxu0
    %v801 = vadd.f32 0.0, %v800
    %v802 = vpop.f32.mrb[0].mxu0
    %803 = vdwg.mxu0
    %v805 = vrot.slane %v801, 4
    %v807 = vadd.f32 %v174, %v805
    %v808 = vxor.u32 %v807, 2147483648
    %v809 = vmul.f32 %v808, 1.442695
    %v810 = vpow.pop %v809
    %v811 = vadd.f32 %v810, 1.0
    %v812 = vrcp.pop %v811
    %v813 = vmul.f32 1.0, %v812
    %v814 = vtanh.pop %v807
    %v816 = vrot.slane %v721, 6
    %v818 = vmul.f32 %v813, %v816
    %820 = vrot.lane.b32.xlu0 %v814, 96
    %v821 = vpop.permute.xlu0 %820
    %v823 = vmul.f32 %v813, %v821
    %825 = vrot.lane.b32.xlu0 %v823, 16
    %v826 = vpop.permute.xlu0 %825
    %v828 = vadd.f32 %v818, %v826
    %v829 = vtanh.pop %v828
    %831 = vrot.lane.b32.xlu0 %v829, 32
    %v832 = vpop.permute.xlu0 %831
    %v834 = vmul.f32 %v813, %v832
    %v836 = vrot.slane %v834, 4
    %837 = vrot.lane.b32.xlu0 %v836, 80
    %v838 = vpop.permute.xlu0 %837
    %v839 = vsel %vm198, %v838, 0
    %841 = vmatprep.subr.mxu0 0.0
    %842 = vmatpush1.msra.mxu0 %v88
    %843 = vmatprep.subr.mxu0 0.0
    %844 = vmatpush1.msra.mxu0 %v89
    %845 = vmatprep.subr.mxu0 0.0
    %846 = vmatpush1.msra.mxu0 0.0
    %847 = vmatprep.subr.mxu0 0.0
    %848 = vmatpush1.msra.mxu0 0.0
    %849 = vmatprep.subr.mxu0 0.0
    %850 = vmatpush1.msra.mxu0 0.0
    %851 = vmatprep.subr.mxu0 0.0
    %852 = vmatpush1.msra.mxu0 0.0
    %853 = vmatprep.subr.mxu0 0.0
    %854 = vmatpush1.msra.mxu0 0.0
    %855 = vmatprep.subr.mxu0 0.0
    %856 = vmatpush1.msra.mxu0 0.0
    %857 = vmatprep.subr.mxu0 0.0
    %858 = vmatpush1.msra.mxu0 0.0
    %859 = vmatprep.subr.mxu0 0.0
    %860 = vmatpush1.msra.mxu0 0.0
    %861 = vmatprep.subr.mxu0 0.0
    %862 = vmatpush1.msra.mxu0 0.0
    %863 = vmatprep.subr.mxu0 0.0
    %864 = vmatpush1.msra.mxu0 0.0
    %865 = vmatprep.subr.mxu0 0.0
    %866 = vmatpush1.msra.mxu0 0.0
    %867 = vmatprep.subr.mxu0 0.0
    %868 = vmatpush1.msra.mxu0 0.0
    %869 = vmatprep.subr.mxu0 0.0
    %870 = vmatpush1.msra.mxu0 0.0
    %871 = vmatprep.subr.mxu0 0.0
    %872 = vmatpush1.msra.mxu0 0.0
    %873 = vmatprep.subr.mxu0 0.0
    %874 = vmatpush1.msra.mxu0 0.0
    %875 = vmatprep.subr.mxu0 0.0
    %876 = vmatpush1.msra.mxu0 0.0
    %877 = vmatprep.subr.mxu0 0.0
    %878 = vmatpush1.msra.mxu0 0.0
    %879 = vmatprep.subr.mxu0 0.0
    %880 = vmatpush1.msra.mxu0 0.0
    %881 = vmatprep.subr.mxu0 0.0
    %882 = vmatpush1.msra.mxu0 0.0
    %883 = vmatprep.subr.mxu0 0.0
    %884 = vmatpush1.msra.mxu0 0.0
    %885 = vmatprep.subr.mxu0 0.0
    %886 = vmatpush1.msra.mxu0 0.0
    %887 = vmatprep.subr.mxu0 0.0
    %888 = vmatpush1.msra.mxu0 0.0
    %889 = vmatprep.subr.mxu0 0.0
    %890 = vmatpush1.msra.mxu0 0.0
    %891 = vmatprep.subr.mxu0 0.0
    %892 = vmatpush1.msra.mxu0 0.0
    %893 = vmatprep.subr.mxu0 0.0
    %894 = vmatpush1.msra.mxu0 0.0
    %895 = vmatprep.subr.mxu0 0.0
    %896 = vmatpush1.msra.mxu0 0.0
    %897 = vmatprep.subr.mxu0 0.0
    %898 = vmatpush1.msra.mxu0 0.0
    %899 = vmatprep.subr.mxu0 0.0
    %900 = vmatpush1.msra.mxu0 0.0
    %901 = vmatprep.subr.mxu0 0.0
    %902 = vmatpush1.msra.mxu0 0.0
    %903 = vmatprep.subr.mxu0 0.0
    %904 = vmatpush1.msra.mxu0 0.0
    %905 = vmatprep.mubr.f32.mxu0 0.0
    %906 = vmatmul.mubr.f32.gmra.mrb[0].mxu0 %v839
    %v907 = vpop.f32.mrb[0].mxu0
    %v908 = vadd.f32 0.0, %v907
    %v909 = vpop.f32.mrb[0].mxu0
    %910 = vdwg.mxu0
    %v912 = vrot.slane %v908, 2
    %v914 = vadd.f32 %v174, %v912
    %v915 = vxor.u32 %v914, 2147483648
    %v916 = vmul.f32 %v915, 1.442695
    %v917 = vpow.pop %v916
    %v918 = vadd.f32 %v917, 1.0
    %v919 = vrcp.pop %v918
    %v920 = vmul.f32 1.0, %v919
    %v921 = vtanh.pop %v914
    %v923 = vrot.slane %v828, 6
    %v925 = vmul.f32 %v920, %v923
    %927 = vrot.lane.b32.xlu0 %v921, 96
    %v928 = vpop.permute.xlu0 %927
    %v930 = vmul.f32 %v920, %v928
    %932 = vrot.lane.b32.xlu0 %v930, 16
    %v933 = vpop.permute.xlu0 %932
    %v935 = vadd.f32 %v925, %v933
    %v936 = vtanh.pop %v935
    %938 = vrot.lane.b32.xlu0 %v936, 32
    %v939 = vpop.permute.xlu0 %938
    %v941 = vmul.f32 %v920, %v939
    %v942 = vsel %vm78, %v194, %v303
    %v943 = vsel %vm80, %v942, %v410
    %v944 = vsel %vm82, %v943, %v517
    %v945 = vsel %vm78, %v621, %v727
    %v946 = vsel %vm80, %v945, %v834
    %v947 = vsel %vm82, %v946, %v941
    %v948 = vld [vmem:[#allocation5 + $0x20] sm:$0xff]
    %v949 = vld [vmem:[#allocation5 + $0x28] sm:$0xff]
    %v950 = vld [vmem:[#allocation5 + $0x30] sm:$0xff]
    %v951 = vld [vmem:[#allocation5 + $0x38] sm:$0xff]
    %v952 = vld [vmem:[#allocation5 + $0x40] sm:$0x1]
    %v953 = vlaneseq
    %v954 = vshrl.u32 %v953, 7
    %v955 = vsub.s32 0, %v954
    %v956 = vrot.slane %v952, %v955
    %959 = vrot.lane.b32.xlu0 %v944, 80
    %v960 = vpop.permute.xlu0 %959
    %961 = vrot.lane.b32.xlu0 %v947, 80
    %v962 = vpop.permute.xlu0 %961
    %v963 = vsel %vm198, %v960, 0
    %v965 = vsel %vm198, %v962, 0
    %967 = vmatprep.subr.mxu0 0.0
    %968 = vmatpush1.msra.mxu0 %v948
    %969 = vmatprep.subr.mxu0 0.0
    %970 = vmatpush1.msra.mxu0 %v949
    %971 = vmatprep.subr.mxu0 0.0
    %972 = vmatpush1.msra.mxu0 0.0
    %973 = vmatprep.subr.mxu0 0.0
    %974 = vmatpush1.msra.mxu0 0.0
    %975 = vmatprep.subr.mxu0 0.0
    %976 = vmatpush1.msra.mxu0 0.0
    %977 = vmatprep.subr.mxu0 0.0
    %978 = vmatpush1.msra.mxu0 0.0
    %979 = vmatprep.subr.mxu0 0.0
    %980 = vmatpush1.msra.mxu0 0.0
    %981 = vmatprep.subr.mxu0 0.0
    %982 = vmatpush1.msra.mxu0 0.0
    %983 = vmatprep.subr.mxu0 0.0
    %984 = vmatpush1.msra.mxu0 0.0
    %985 = vmatprep.subr.mxu0 0.0
    %986 = vmatpush1.msra.mxu0 0.0
    %987 = vmatprep.subr.mxu0 0.0
    %988 = vmatpush1.msra.mxu0 0.0
    %989 = vmatprep.subr.mxu0 0.0
    %990 = vmatpush1.msra.mxu0 0.0
    %991 = vmatprep.subr.mxu0 0.0
    %992 = vmatpush1.msra.mxu0 0.0
    %993 = vmatprep.subr.mxu0 0.0
    %994 = vmatpush1.msra.mxu0 0.0
    %995 = vmatprep.subr.mxu0 0.0
    %996 = vmatpush1.msra.mxu0 0.0
    %997 = vmatprep.subr.mxu0 0.0
    %998 = vmatpush1.msra.mxu0 0.0
    %999 = vmatprep.subr.mxu0 0.0
    %1000 = vmatpush1.msra.mxu0 0.0
    %1001 = vmatprep.subr.mxu0 0.0
    %1002 = vmatpush1.msra.mxu0 0.0
    %1003 = vmatprep.subr.mxu0 0.0
    %1004 = vmatpush1.msra.mxu0 0.0
    %1005 = vmatprep.subr.mxu0 0.0
    %1006 = vmatpush1.msra.mxu0 0.0
    %1007 = vmatprep.subr.mxu0 0.0
    %1008 = vmatpush1.msra.mxu0 0.0
    %1009 = vmatprep.subr.mxu0 0.0
    %1010 = vmatpush1.msra.mxu0 0.0
    %1011 = vmatprep.subr.mxu0 0.0
    %1012 = vmatpush1.msra.mxu0 0.0
    %1013 = vmatprep.subr.mxu0 0.0
    %1014 = vmatpush1.msra.mxu0 0.0
    %1015 = vmatprep.subr.mxu0 0.0
    %1016 = vmatpush1.msra.mxu0 0.0
    %1017 = vmatprep.subr.mxu0 0.0
    %1018 = vmatpush1.msra.mxu0 0.0
    %1019 = vmatprep.subr.mxu0 0.0
    %1020 = vmatpush1.msra.mxu0 0.0
    %1021 = vmatprep.subr.mxu0 0.0
    %1022 = vmatpush1.msra.mxu0 0.0
    %1023 = vmatprep.subr.mxu0 0.0
    %1024 = vmatpush1.msra.mxu0 0.0
    %1025 = vmatprep.subr.mxu0 0.0
    %1026 = vmatpush1.msra.mxu0 0.0
    %1027 = vmatprep.subr.mxu0 0.0
    %1028 = vmatpush1.msra.mxu0 0.0
    %1029 = vmatprep.subr.mxu0 0.0
    %1030 = vmatpush1.msra.mxu0 0.0
    %1031 = vmatprep.mubr.f32.mxu0 0.0
    %1032 = vmatmul.mubr.f32.gmra.mrb[0].mxu0 %v963
    %v1033 = vpop.f32.mrb[0].mxu0
    %v1034 = vadd.f32 %v956, %v1033
    %v1035 = vpop.f32.mrb[0].mxu0
    %1036 = vmatprep.mubr.f32.mxu0 0.0
    %1037 = vmatmul.mubr.f32.gmra.mrb[0].mxu0 %v965
    %v1038 = vpop.f32.mrb[0].mxu0
    %v1039 = vadd.f32 %v956, %v1038
    %v1040 = vpop.f32.mrb[0].mxu0
    %1041 = vdwg.mxu0
    %v1042 = vxor.u32 %v1034, 2147483648
    %v1043 = vmul.f32 %v1042, 1.442695
    %v1044 = vpow.pop %v1043
    %v1045 = vadd.f32 %v1044, 1.0
    %v1046 = vrcp.pop %v1045
    %v1047 = vmul.f32 1.0, %v1046
    %v1048 = vtanh.pop %v1034
    %1050 = vrot.lane.b32.xlu0 %v1048, 96
    %v1051 = vpop.permute.xlu0 %1050
    %v1053 = vmul.f32 %v1047, %v1051
    %v1054 = vtanh.pop %v1053
    %1056 = vrot.lane.b32.xlu0 %v1054, 48
    %v1057 = vpop.permute.xlu0 %1056
    %v1059 = vmul.f32 %v1047, %v1057
    %1061 = vrot.lane.b32.xlu0 %v1059, 80
    %v1062 = vpop.permute.xlu0 %1061
    %v1063 = vsel %vm198, %v1062, 0
    %1065 = vmatprep.subr.mxu0 0.0
    %1066 = vmatpush1.msra.mxu0 %v950
    %1067 = vmatprep.subr.mxu0 0.0
    %1068 = vmatpush1.msra.mxu0 %v951
    %1069 = vmatprep.subr.mxu0 0.0
    %1070 = vmatpush1.msra.mxu0 0.0
    %1071 = vmatprep.subr.mxu0 0.0
    %1072 = vmatpush1.msra.mxu0 0.0
    %1073 = vmatprep.subr.mxu0 0.0
    %1074 = vmatpush1.msra.mxu0 0.0
    %1075 = vmatprep.subr.mxu0 0.0
    %1076 = vmatpush1.msra.mxu0 0.0
    %1077 = vmatprep.subr.mxu0 0.0
    %1078 = vmatpush1.msra.mxu0 0.0
    %1079 = vmatprep.subr.mxu0 0.0
    %1080 = vmatpush1.msra.mxu0 0.0
    %1081 = vmatprep.subr.mxu0 0.0
    %1082 = vmatpush1.msra.mxu0 0.0
    %1083 = vmatprep.subr.mxu0 0.0
    %1084 = vmatpush1.msra.mxu0 0.0
    %1085 = vmatprep.subr.mxu0 0.0
    %1086 = vmatpush1.msra.mxu0 0.0
    %1087 = vmatprep.subr.mxu0 0.0
    %1088 = vmatpush1.msra.mxu0 0.0
    %1089 = vmatprep.subr.mxu0 0.0
    %1090 = vmatpush1.msra.mxu0 0.0
    %1091 = vmatprep.subr.mxu0 0.0
    %1092 = vmatpush1.msra.mxu0 0.0
    %1093 = vmatprep.subr.mxu0 0.0
    %1094 = vmatpush1.msra.mxu0 0.0
    %1095 = vmatprep.subr.mxu0 0.0
    %1096 = vmatpush1.msra.mxu0 0.0
    %1097 = vmatprep.subr.mxu0 0.0
    %1098 = vmatpush1.msra.mxu0 0.0
    %1099 = vmatprep.subr.mxu0 0.0
    %1100 = vmatpush1.msra.mxu0 0.0
    %1101 = vmatprep.subr.mxu0 0.0
    %1102 = vmatpush1.msra.mxu0 0.0
    %1103 = vmatprep.subr.mxu0 0.0
    %1104 = vmatpush1.msra.mxu0 0.0
    %1105 = vmatprep.subr.mxu0 0.0
    %1106 = vmatpush1.msra.mxu0 0.0
    %1107 = vmatprep.subr.mxu0 0.0
    %1108 = vmatpush1.msra.mxu0 0.0
    %1109 = vmatprep.subr.mxu0 0.0
    %1110 = vmatpush1.msra.mxu0 0.0
    %1111 = vmatprep.subr.mxu0 0.0
    %1112 = vmatpush1.msra.mxu0 0.0
    %1113 = vmatprep.subr.mxu0 0.0
    %1114 = vmatpush1.msra.mxu0 0.0
    %1115 = vmatprep.subr.mxu0 0.0
    %1116 = vmatpush1.msra.mxu0 0.0
    %1117 = vmatprep.subr.mxu0 0.0
    %1118 = vmatpush1.msra.mxu0 0.0
    %1119 = vmatprep.subr.mxu0 0.0
    %1120 = vmatpush1.msra.mxu0 0.0
    %1121 = vmatprep.subr.mxu0 0.0
    %1122 = vmatpush1.msra.mxu0 0.0
    %1123 = vmatprep.subr.mxu0 0.0
    %1124 = vmatpush1.msra.mxu0 0.0
    %1125 = vmatprep.subr.mxu0 0.0
    %1126 = vmatpush1.msra.mxu0 0.0
    %1127 = vmatprep.subr.mxu0 0.0
    %1128 = vmatpush1.msra.mxu0 0.0
    %1129 = vmatprep.mubr.f32.mxu0 0.0
    %1130 = vmatmul.mubr.f32.gmra.mrb[0].mxu0 %v1063
    %v1131 = vpop.f32.mrb[0].mxu0
    %v1132 = vadd.f32 0.0, %v1131
    %v1133 = vpop.f32.mrb[0].mxu0
    %1134 = vdwg.mxu0
    %v1136 = vrot.slane %v1132, 6
    %v1138 = vadd.f32 %v1034, %v1136
    %v1139 = vxor.u32 %v1138, 2147483648
    %v1140 = vmul.f32 %v1139, 1.442695
    %v1141 = vpow.pop %v1140
    %v1142 = vadd.f32 %v1141, 1.0
    %v1143 = vrcp.pop %v1142
    %v1144 = vmul.f32 1.0, %v1143
    %v1145 = vtanh.pop %v1138
    %v1147 = vrot.slane %v1053, 6
    %1148 = vrot.lane.b32.xlu0 %v1147, 16
    %v1149 = vpop.permute.xlu0 %1148
    %v1151 = vmul.f32 %v1144, %v1149
    %1153 = vrot.lane.b32.xlu0 %v1145, 96
    %v1154 = vpop.permute.xlu0 %1153
    %v1156 = vmul.f32 %v1144, %v1154
    %1158 = vrot.lane.b32.xlu0 %v1156, 16
    %v1159 = vpop.permute.xlu0 %1158
    %v1161 = vadd.f32 %v1151, %v1159
    %v1162 = vtanh.pop %v1161
    %1164 = vrot.lane.b32.xlu0 %v1162, 32
    %v1165 = vpop.permute.xlu0 %1164
    %v1167 = vmul.f32 %v1144, %v1165
    %v1169 = vrot.slane %v1167, 2
    %1170 = vrot.lane.b32.xlu0 %v1169, 80
    %v1171 = vpop.permute.xlu0 %1170
    %v1172 = vsel %vm198, %v1171, 0
    %1174 = vmatprep.subr.mxu0 0.0
    %1175 = vmatpush1.msra.mxu0 %v950
    %1176 = vmatprep.subr.mxu0 0.0
    %1177 = vmatpush1.msra.mxu0 %v951
    %1178 = vmatprep.subr.mxu0 0.0
    %1179 = vmatpush1.msra.mxu0 0.0
    %1180 = vmatprep.subr.mxu0 0.0
    %1181 = vmatpush1.msra.mxu0 0.0
    %1182 = vmatprep.subr.mxu0 0.0
    %1183 = vmatpush1.msra.mxu0 0.0
    %1184 = vmatprep.subr.mxu0 0.0
    %1185 = vmatpush1.msra.mxu0 0.0
    %1186 = vmatprep.subr.mxu0 0.0
    %1187 = vmatpush1.msra.mxu0 0.0
    %1188 = vmatprep.subr.mxu0 0.0
    %1189 = vmatpush1.msra.mxu0 0.0
    %1190 = vmatprep.subr.mxu0 0.0
    %1191 = vmatpush1.msra.mxu0 0.0
    %1192 = vmatprep.subr.mxu0 0.0
    %1193 = vmatpush1.msra.mxu0 0.0
    %1194 = vmatprep.subr.mxu0 0.0
    %1195 = vmatpush1.msra.mxu0 0.0
    %1196 = vmatprep.subr.mxu0 0.0
    %1197 = vmatpush1.msra.mxu0 0.0
    %1198 = vmatprep.subr.mxu0 0.0
    %1199 = vmatpush1.msra.mxu0 0.0
    %1200 = vmatprep.subr.mxu0 0.0
    %1201 = vmatpush1.msra.mxu0 0.0
    %1202 = vmatprep.subr.mxu0 0.0
    %1203 = vmatpush1.msra.mxu0 0.0
    %1204 = vmatprep.subr.mxu0 0.0
    %1205 = vmatpush1.msra.mxu0 0.0
    %1206 = vmatprep.subr.mxu0 0.0
    %1207 = vmatpush1.msra.mxu0 0.0
    %1208 = vmatprep.subr.mxu0 0.0
    %1209 = vmatpush1.msra.mxu0 0.0
    %1210 = vmatprep.subr.mxu0 0.0
    %1211 = vmatpush1.msra.mxu0 0.0
    %1212 = vmatprep.subr.mxu0 0.0
    %1213 = vmatpush1.msra.mxu0 0.0
    %1214 = vmatprep.subr.mxu0 0.0
    %1215 = vmatpush1.msra.mxu0 0.0
    %1216 = vmatprep.subr.mxu0 0.0
    %1217 = vmatpush1.msra.mxu0 0.0
    %1218 = vmatprep.subr.mxu0 0.0
    %1219 = vmatpush1.msra.mxu0 0.0
    %1220 = vmatprep.subr.mxu0 0.0
    %1221 = vmatpush1.msra.mxu0 0.0
    %1222 = vmatprep.subr.mxu0 0.0
    %1223 = vmatpush1.msra.mxu0 0.0
    %1224 = vmatprep.subr.mxu0 0.0
    %1225 = vmatpush1.msra.mxu0 0.0
    %1226 = vmatprep.subr.mxu0 0.0
    %1227 = vmatpush1.msra.mxu0 0.0
    %1228 = vmatprep.subr.mxu0 0.0
    %1229 = vmatpush1.msra.mxu0 0.0
    %1230 = vmatprep.subr.mxu0 0.0
    %1231 = vmatpush1.msra.mxu0 0.0
    %1232 = vmatprep.subr.mxu0 0.0
    %1233 = vmatpush1.msra.mxu0 0.0
    %1234 = vmatprep.subr.mxu0 0.0
    %1235 = vmatpush1.msra.mxu0 0.0
    %1236 = vmatprep.subr.mxu0 0.0
    %1237 = vmatpush1.msra.mxu0 0.0
    %1238 = vmatprep.mubr.f32.mxu0 0.0
    %1239 = vmatmul.mubr.f32.gmra.mrb[0].mxu0 %v1172
    %v1240 = vpop.f32.mrb[0].mxu0
    %v1241 = vadd.f32 0.0, %v1240
    %v1242 = vpop.f32.mrb[0].mxu0
    %1243 = vdwg.mxu0
    %v1245 = vrot.slane %v1241, 4
    %v1247 = vadd.f32 %v1034, %v1245
    %v1248 = vxor.u32 %v1247, 2147483648
    %v1249 = vmul.f32 %v1248, 1.442695
    %v1250 = vpow.pop %v1249
    %v1251 = vadd.f32 %v1250, 1.0
    %v1252 = vrcp.pop %v1251
    %v1253 = vmul.f32 1.0, %v1252
    %v1254 = vtanh.pop %v1247
    %v1256 = vrot.slane %v1161, 6
    %v1258 = vmul.f32 %v1253, %v1256
    %1260 = vrot.lane.b32.xlu0 %v1254, 96
    %v1261 = vpop.permute.xlu0 %1260
    %v1263 = vmul.f32 %v1253, %v1261
    %1265 = vrot.lane.b32.xlu0 %v1263, 16
    %v1266 = vpop.permute.xlu0 %1265
    %v1268 = vadd.f32 %v1258, %v1266
    %v1269 = vtanh.pop %v1268
    %1271 = vrot.lane.b32.xlu0 %v1269, 32
    %v1272 = vpop.permute.xlu0 %1271
    %v1274 = vmul.f32 %v1253, %v1272
    %v1276 = vrot.slane %v1274, 4
    %1277 = vrot.lane.b32.xlu0 %v1276, 80
    %v1278 = vpop.permute.xlu0 %1277
    %v1279 = vsel %vm198, %v1278, 0
    %1281 = vmatprep.subr.mxu0 0.0
    %1282 = vmatpush1.msra.mxu0 %v950
    %1283 = vmatprep.subr.mxu0 0.0
    %1284 = vmatpush1.msra.mxu0 %v951
    %1285 = vmatprep.subr.mxu0 0.0
    %1286 = vmatpush1.msra.mxu0 0.0
    %1287 = vmatprep.subr.mxu0 0.0
    %1288 = vmatpush1.msra.mxu0 0.0
    %1289 = vmatprep.subr.mxu0 0.0
    %1290 = vmatpush1.msra.mxu0 0.0
    %1291 = vmatprep.subr.mxu0 0.0
    %1292 = vmatpush1.msra.mxu0 0.0
    %1293 = vmatprep.subr.mxu0 0.0
    %1294 = vmatpush1.msra.mxu0 0.0
    %1295 = vmatprep.subr.mxu0 0.0
    %1296 = vmatpush1.msra.mxu0 0.0
    %1297 = vmatprep.subr.mxu0 0.0
    %1298 = vmatpush1.msra.mxu0 0.0
    %1299 = vmatprep.subr.mxu0 0.0
    %1300 = vmatpush1.msra.mxu0 0.0
    %1301 = vmatprep.subr.mxu0 0.0
    %1302 = vmatpush1.msra.mxu0 0.0
    %1303 = vmatprep.subr.mxu0 0.0
    %1304 = vmatpush1.msra.mxu0 0.0
    %1305 = vmatprep.subr.mxu0 0.0
    %1306 = vmatpush1.msra.mxu0 0.0
    %1307 = vmatprep.subr.mxu0 0.0
    %1308 = vmatpush1.msra.mxu0 0.0
    %1309 = vmatprep.subr.mxu0 0.0
    %1310 = vmatpush1.msra.mxu0 0.0
    %1311 = vmatprep.subr.mxu0 0.0
    %1312 = vmatpush1.msra.mxu0 0.0
    %1313 = vmatprep.subr.mxu0 0.0
    %1314 = vmatpush1.msra.mxu0 0.0
    %1315 = vmatprep.subr.mxu0 0.0
    %1316 = vmatpush1.msra.mxu0 0.0
    %1317 = vmatprep.subr.mxu0 0.0
    %1318 = vmatpush1.msra.mxu0 0.0
    %1319 = vmatprep.subr.mxu0 0.0
    %1320 = vmatpush1.msra.mxu0 0.0
    %1321 = vmatprep.subr.mxu0 0.0
    %1322 = vmatpush1.msra.mxu0 0.0
    %1323 = vmatprep.subr.mxu0 0.0
    %1324 = vmatpush1.msra.mxu0 0.0
    %1325 = vmatprep.subr.mxu0 0.0
    %1326 = vmatpush1.msra.mxu0 0.0
    %1327 = vmatprep.subr.mxu0 0.0
    %1328 = vmatpush1.msra.mxu0 0.0
    %1329 = vmatprep.subr.mxu0 0.0
    %1330 = vmatpush1.msra.mxu0 0.0
    %1331 = vmatprep.subr.mxu0 0.0
    %1332 = vmatpush1.msra.mxu0 0.0
    %1333 = vmatprep.subr.mxu0 0.0
    %1334 = vmatpush1.msra.mxu0 0.0
    %1335 = vmatprep.subr.mxu0 0.0
    %1336 = vmatpush1.msra.mxu0 0.0
    %1337 = vmatprep.subr.mxu0 0.0
    %1338 = vmatpush1.msra.mxu0 0.0
    %1339 = vmatprep.subr.mxu0 0.0
    %1340 = vmatpush1.msra.mxu0 0.0
    %1341 = vmatprep.subr.mxu0 0.0
    %1342 = vmatpush1.msra.mxu0 0.0
    %1343 = vmatprep.subr.mxu0 0.0
    %1344 = vmatpush1.msra.mxu0 0.0
    %1345 = vmatprep.mubr.f32.mxu0 0.0
    %1346 = vmatmul.mubr.f32.gmra.mrb[0].mxu0 %v1279
    %v1347 = vpop.f32.mrb[0].mxu0
    %v1348 = vadd.f32 0.0, %v1347
    %v1349 = vpop.f32.mrb[0].mxu0
    %1350 = vdwg.mxu0
    %v1352 = vrot.slane %v1348, 2
    %v1354 = vadd.f32 %v1034, %v1352
    %v1355 = vxor.u32 %v1354, 2147483648
    %v1356 = vmul.f32 %v1355, 1.442695
    %v1357 = vpow.pop %v1356
    %v1358 = vadd.f32 %v1357, 1.0
    %v1359 = vrcp.pop %v1358
    %v1360 = vmul.f32 1.0, %v1359
    %v1361 = vtanh.pop %v1354
    %v1363 = vrot.slane %v1268, 6
    %v1365 = vmul.f32 %v1360, %v1363
    %1367 = vrot.lane.b32.xlu0 %v1361, 96
    %v1368 = vpop.permute.xlu0 %1367
    %v1370 = vmul.f32 %v1360, %v1368
    %1372 = vrot.lane.b32.xlu0 %v1370, 16
    %v1373 = vpop.permute.xlu0 %1372
    %v1375 = vadd.f32 %v1365, %v1373
    %v1376 = vtanh.pop %v1375
    %1378 = vrot.lane.b32.xlu0 %v1376, 32
    %v1379 = vpop.permute.xlu0 %1378
    %v1381 = vmul.f32 %v1360, %v1379
    %v1383 = vrot.slane %v1381, 6
    %1384 = vrot.lane.b32.xlu0 %v1383, 80
    %v1385 = vpop.permute.xlu0 %1384
    %v1386 = vsel %vm198, %v1385, 0
    %1388 = vmatprep.subr.mxu0 0.0
    %1389 = vmatpush1.msra.mxu0 %v950
    %1390 = vmatprep.subr.mxu0 0.0
    %1391 = vmatpush1.msra.mxu0 %v951
    %1392 = vmatprep.subr.mxu0 0.0
    %1393 = vmatpush1.msra.mxu0 0.0
    %1394 = vmatprep.subr.mxu0 0.0
    %1395 = vmatpush1.msra.mxu0 0.0
    %1396 = vmatprep.subr.mxu0 0.0
    %1397 = vmatpush1.msra.mxu0 0.0
    %1398 = vmatprep.subr.mxu0 0.0
    %1399 = vmatpush1.msra.mxu0 0.0
    %1400 = vmatprep.subr.mxu0 0.0
    %1401 = vmatpush1.msra.mxu0 0.0
    %1402 = vmatprep.subr.mxu0 0.0
    %1403 = vmatpush1.msra.mxu0 0.0
    %1404 = vmatprep.subr.mxu0 0.0
    %1405 = vmatpush1.msra.mxu0 0.0
    %1406 = vmatprep.subr.mxu0 0.0
    %1407 = vmatpush1.msra.mxu0 0.0
    %1408 = vmatprep.subr.mxu0 0.0
    %1409 = vmatpush1.msra.mxu0 0.0
    %1410 = vmatprep.subr.mxu0 0.0
    %1411 = vmatpush1.msra.mxu0 0.0
    %1412 = vmatprep.subr.mxu0 0.0
    %1413 = vmatpush1.msra.mxu0 0.0
    %1414 = vmatprep.subr.mxu0 0.0
    %1415 = vmatpush1.msra.mxu0 0.0
    %1416 = vmatprep.subr.mxu0 0.0
    %1417 = vmatpush1.msra.mxu0 0.0
    %1418 = vmatprep.subr.mxu0 0.0
    %1419 = vmatpush1.msra.mxu0 0.0
    %1420 = vmatprep.subr.mxu0 0.0
    %1421 = vmatpush1.msra.mxu0 0.0
    %1422 = vmatprep.subr.mxu0 0.0
    %1423 = vmatpush1.msra.mxu0 0.0
    %1424 = vmatprep.subr.mxu0 0.0
    %1425 = vmatpush1.msra.mxu0 0.0
    %1426 = vmatprep.subr.mxu0 0.0
    %1427 = vmatpush1.msra.mxu0 0.0
    %1428 = vmatprep.subr.mxu0 0.0
    %1429 = vmatpush1.msra.mxu0 0.0
    %1430 = vmatprep.subr.mxu0 0.0
    %1431 = vmatpush1.msra.mxu0 0.0
    %1432 = vmatprep.subr.mxu0 0.0
    %1433 = vmatpush1.msra.mxu0 0.0
    %1434 = vmatprep.subr.mxu0 0.0
    %1435 = vmatpush1.msra.mxu0 0.0
    %1436 = vmatprep.subr.mxu0 0.0
    %1437 = vmatpush1.msra.mxu0 0.0
    %1438 = vmatprep.subr.mxu0 0.0
    %1439 = vmatpush1.msra.mxu0 0.0
    %1440 = vmatprep.subr.mxu0 0.0
    %1441 = vmatpush1.msra.mxu0 0.0
    %1442 = vmatprep.subr.mxu0 0.0
    %1443 = vmatpush1.msra.mxu0 0.0
    %1444 = vmatprep.subr.mxu0 0.0
    %1445 = vmatpush1.msra.mxu0 0.0
    %1446 = vmatprep.subr.mxu0 0.0
    %1447 = vmatpush1.msra.mxu0 0.0
    %1448 = vmatprep.subr.mxu0 0.0
    %1449 = vmatpush1.msra.mxu0 0.0
    %1450 = vmatprep.subr.mxu0 0.0
    %1451 = vmatpush1.msra.mxu0 0.0
    %1452 = vmatprep.mubr.f32.mxu0 0.0
    %1453 = vmatmul.mubr.f32.gmra.mrb[0].mxu0 %v1386
    %v1454 = vpop.f32.mrb[0].mxu0
    %v1455 = vadd.f32 0.0, %v1454
    %v1456 = vpop.f32.mrb[0].mxu0
    %1457 = vdwg.mxu0
    %v1458 = vadd.f32 %v1039, %v1455
    %v1459 = vxor.u32 %v1458, 2147483648
    %v1460 = vmul.f32 %v1459, 1.442695
    %v1461 = vpow.pop %v1460
    %v1462 = vadd.f32 %v1461, 1.0
    %v1463 = vrcp.pop %v1462
    %v1464 = vmul.f32 1.0, %v1463
    %v1465 = vtanh.pop %v1458
    %v1467 = vrot.slane %v1375, 6
    %v1469 = vmul.f32 %v1464, %v1467
    %1471 = vrot.lane.b32.xlu0 %v1465, 96
    %v1472 = vpop.permute.xlu0 %1471
    %v1474 = vmul.f32 %v1464, %v1472
    %1476 = vrot.lane.b32.xlu0 %v1474, 16
    %v1477 = vpop.permute.xlu0 %1476
    %v1479 = vadd.f32 %v1469, %v1477
    %v1480 = vtanh.pop %v1479
    %1482 = vrot.lane.b32.xlu0 %v1480, 32
    %v1483 = vpop.permute.xlu0 %1482
    %v1485 = vmul.f32 %v1464, %v1483
    %1487 = vrot.lane.b32.xlu0 %v1485, 80
    %v1488 = vpop.permute.xlu0 %1487
    %v1489 = vsel %vm198, %v1488, 0
    %1491 = vmatprep.subr.mxu0 0.0
    %1492 = vmatpush1.msra.mxu0 %v950
    %1493 = vmatprep.subr.mxu0 0.0
    %1494 = vmatpush1.msra.mxu0 %v951
    %1495 = vmatprep.subr.mxu0 0.0
    %1496 = vmatpush1.msra.mxu0 0.0
    %1497 = vmatprep.subr.mxu0 0.0
    %1498 = vmatpush1.msra.mxu0 0.0
    %1499 = vmatprep.subr.mxu0 0.0
    %1500 = vmatpush1.msra.mxu0 0.0
    %1501 = vmatprep.subr.mxu0 0.0
    %1502 = vmatpush1.msra.mxu0 0.0
    %1503 = vmatprep.subr.mxu0 0.0
    %1504 = vmatpush1.msra.mxu0 0.0
    %1505 = vmatprep.subr.mxu0 0.0
    %1506 = vmatpush1.msra.mxu0 0.0
    %1507 = vmatprep.subr.mxu0 0.0
    %1508 = vmatpush1.msra.mxu0 0.0
    %1509 = vmatprep.subr.mxu0 0.0
    %1510 = vmatpush1.msra.mxu0 0.0
    %1511 = vmatprep.subr.mxu0 0.0
    %1512 = vmatpush1.msra.mxu0 0.0
    %1513 = vmatprep.subr.mxu0 0.0
    %1514 = vmatpush1.msra.mxu0 0.0
    %1515 = vmatprep.subr.mxu0 0.0
    %1516 = vmatpush1.msra.mxu0 0.0
    %1517 = vmatprep.subr.mxu0 0.0
    %1518 = vmatpush1.msra.mxu0 0.0
    %1519 = vmatprep.subr.mxu0 0.0
    %1520 = vmatpush1.msra.mxu0 0.0
    %1521 = vmatprep.subr.mxu0 0.0
    %1522 = vmatpush1.msra.mxu0 0.0
    %1523 = vmatprep.subr.mxu0 0.0
    %1524 = vmatpush1.msra.mxu0 0.0
    %1525 = vmatprep.subr.mxu0 0.0
    %1526 = vmatpush1.msra.mxu0 0.0
    %1527 = vmatprep.subr.mxu0 0.0
    %1528 = vmatpush1.msra.mxu0 0.0
    %1529 = vmatprep.subr.mxu0 0.0
    %1530 = vmatpush1.msra.mxu0 0.0
    %1531 = vmatprep.subr.mxu0 0.0
    %1532 = vmatpush1.msra.mxu0 0.0
    %1533 = vmatprep.subr.mxu0 0.0
    %1534 = vmatpush1.msra.mxu0 0.0
    %1535 = vmatprep.subr.mxu0 0.0
    %1536 = vmatpush1.msra.mxu0 0.0
    %1537 = vmatprep.subr.mxu0 0.0
    %1538 = vmatpush1.msra.mxu0 0.0
    %1539 = vmatprep.subr.mxu0 0.0
    %1540 = vmatpush1.msra.mxu0 0.0
    %1541 = vmatprep.subr.mxu0 0.0
    %1542 = vmatpush1.msra.mxu0 0.0
    %1543 = vmatprep.subr.mxu0 0.0
    %1544 = vmatpush1.msra.mxu0 0.0
    %1545 = vmatprep.subr.mxu0 0.0
    %1546 = vmatpush1.msra.mxu0 0.0
    %1547 = vmatprep.subr.mxu0 0.0
    %1548 = vmatpush1.msra.mxu0 0.0
    %1549 = vmatprep.subr.mxu0 0.0
    %1550 = vmatpush1.msra.mxu0 0.0
    %1551 = vmatprep.subr.mxu0 0.0
    %1552 = vmatpush1.msra.mxu0 0.0
    %1553 = vmatprep.subr.mxu0 0.0
    %1554 = vmatpush1.msra.mxu0 0.0
    %1555 = vmatprep.mubr.f32.mxu0 0.0
    %1556 = vmatmul.mubr.f32.gmra.mrb[0].mxu0 %v1489
    %v1557 = vpop.f32.mrb[0].mxu0
    %v1558 = vadd.f32 0.0, %v1557
    %v1559 = vpop.f32.mrb[0].mxu0
    %1560 = vdwg.mxu0
    %v1562 = vrot.slane %v1558, 6
    %v1564 = vadd.f32 %v1039, %v1562
    %v1565 = vxor.u32 %v1564, 2147483648
    %v1566 = vmul.f32 %v1565, 1.442695
    %v1567 = vpow.pop %v1566
    %v1568 = vadd.f32 %v1567, 1.0
    %v1569 = vrcp.pop %v1568
    %v1570 = vmul.f32 1.0, %v1569
    %v1571 = vtanh.pop %v1564
    %v1573 = vrot.slane %v1479, 6
    %v1575 = vmul.f32 %v1570, %v1573
    %1577 = vrot.lane.b32.xlu0 %v1571, 96
    %v1578 = vpop.permute.xlu0 %1577
    %v1580 = vmul.f32 %v1570, %v1578
    %1582 = vrot.lane.b32.xlu0 %v1580, 16
    %v1583 = vpop.permute.xlu0 %1582
    %v1585 = vadd.f32 %v1575, %v1583
    %v1586 = vtanh.pop %v1585
    %1588 = vrot.lane.b32.xlu0 %v1586, 32
    %v1589 = vpop.permute.xlu0 %1588
    %v1591 = vmul.f32 %v1570, %v1589
    %v1593 = vrot.slane %v1591, 2
    %1594 = vrot.lane.b32.xlu0 %v1593, 80
    %v1595 = vpop.permute.xlu0 %1594
    %v1596 = vsel %vm198, %v1595, 0
    %1598 = vmatprep.subr.mxu0 0.0
    %1599 = vmatpush1.msra.mxu0 %v950
    %1600 = vmatprep.subr.mxu0 0.0
    %1601 = vmatpush1.msra.mxu0 %v951
    %1602 = vmatprep.subr.mxu0 0.0
    %1603 = vmatpush1.msra.mxu0 0.0
    %1604 = vmatprep.subr.mxu0 0.0
    %1605 = vmatpush1.msra.mxu0 0.0
    %1606 = vmatprep.subr.mxu0 0.0
    %1607 = vmatpush1.msra.mxu0 0.0
    %1608 = vmatprep.subr.mxu0 0.0
    %1609 = vmatpush1.msra.mxu0 0.0
    %1610 = vmatprep.subr.mxu0 0.0
    %1611 = vmatpush1.msra.mxu0 0.0
    %1612 = vmatprep.subr.mxu0 0.0
    %1613 = vmatpush1.msra.mxu0 0.0
    %1614 = vmatprep.subr.mxu0 0.0
    %1615 = vmatpush1.msra.mxu0 0.0
    %1616 = vmatprep.subr.mxu0 0.0
    %1617 = vmatpush1.msra.mxu0 0.0
    %1618 = vmatprep.subr.mxu0 0.0
    %1619 = vmatpush1.msra.mxu0 0.0
    %1620 = vmatprep.subr.mxu0 0.0
    %1621 = vmatpush1.msra.mxu0 0.0
    %1622 = vmatprep.subr.mxu0 0.0
    %1623 = vmatpush1.msra.mxu0 0.0
    %1624 = vmatprep.subr.mxu0 0.0
    %1625 = vmatpush1.msra.mxu0 0.0
    %1626 = vmatprep.subr.mxu0 0.0
    %1627 = vmatpush1.msra.mxu0 0.0
    %1628 = vmatprep.subr.mxu0 0.0
    %1629 = vmatpush1.msra.mxu0 0.0
    %1630 = vmatprep.subr.mxu0 0.0
    %1631 = vmatpush1.msra.mxu0 0.0
    %1632 = vmatprep.subr.mxu0 0.0
    %1633 = vmatpush1.msra.mxu0 0.0
    %1634 = vmatprep.subr.mxu0 0.0
    %1635 = vmatpush1.msra.mxu0 0.0
    %1636 = vmatprep.subr.mxu0 0.0
    %1637 = vmatpush1.msra.mxu0 0.0
    %1638 = vmatprep.subr.mxu0 0.0
    %1639 = vmatpush1.msra.mxu0 0.0
    %1640 = vmatprep.subr.mxu0 0.0
    %1641 = vmatpush1.msra.mxu0 0.0
    %1642 = vmatprep.subr.mxu0 0.0
    %1643 = vmatpush1.msra.mxu0 0.0
    %1644 = vmatprep.subr.mxu0 0.0
    %1645 = vmatpush1.msra.mxu0 0.0
    %1646 = vmatprep.subr.mxu0 0.0
    %1647 = vmatpush1.msra.mxu0 0.0
    %1648 = vmatprep.subr.mxu0 0.0
    %1649 = vmatpush1.msra.mxu0 0.0
    %1650 = vmatprep.subr.mxu0 0.0
    %1651 = vmatpush1.msra.mxu0 0.0
    %1652 = vmatprep.subr.mxu0 0.0
    %1653 = vmatpush1.msra.mxu0 0.0
    %1654 = vmatprep.subr.mxu0 0.0
    %1655 = vmatpush1.msra.mxu0 0.0
    %1656 = vmatprep.subr.mxu0 0.0
    %1657 = vmatpush1.msra.mxu0 0.0
    %1658 = vmatprep.subr.mxu0 0.0
    %1659 = vmatpush1.msra.mxu0 0.0
    %1660 = vmatprep.subr.mxu0 0.0
    %1661 = vmatpush1.msra.mxu0 0.0
    %1662 = vmatprep.mubr.f32.mxu0 0.0
    %1663 = vmatmul.mubr.f32.gmra.mrb[0].mxu0 %v1596
    %v1664 = vpop.f32.mrb[0].mxu0
    %v1665 = vadd.f32 0.0, %v1664
    %v1666 = vpop.f32.mrb[0].mxu0
    %1667 = vdwg.mxu0
    %v1669 = vrot.slane %v1665, 4
    %v1671 = vadd.f32 %v1039, %v1669
    %v1672 = vxor.u32 %v1671, 2147483648
    %v1673 = vmul.f32 %v1672, 1.442695
    %v1674 = vpow.pop %v1673
    %v1675 = vadd.f32 %v1674, 1.0
    %v1676 = vrcp.pop %v1675
    %v1677 = vmul.f32 1.0, %v1676
    %v1678 = vtanh.pop %v1671
    %v1680 = vrot.slane %v1585, 6
    %v1682 = vmul.f32 %v1677, %v1680
    %1684 = vrot.lane.b32.xlu0 %v1678, 96
    %v1685 = vpop.permute.xlu0 %1684
    %v1687 = vmul.f32 %v1677, %v1685
    %1689 = vrot.lane.b32.xlu0 %v1687, 16
    %v1690 = vpop.permute.xlu0 %1689
    %v1692 = vadd.f32 %v1682, %v1690
    %v1693 = vtanh.pop %v1692
    %1695 = vrot.lane.b32.xlu0 %v1693, 32
    %v1696 = vpop.permute.xlu0 %1695
    %v1698 = vmul.f32 %v1677, %v1696
    %v1700 = vrot.slane %v1698, 4
    %1701 = vrot.lane.b32.xlu0 %v1700, 80
    %v1702 = vpop.permute.xlu0 %1701
    %v1703 = vsel %vm198, %v1702, 0
    %1705 = vmatprep.subr.mxu0 0.0
    %1706 = vmatpush1.msra.mxu0 %v950
    %1707 = vmatprep.subr.mxu0 0.0
    %1708 = vmatpush1.msra.mxu0 %v951
    %1709 = vmatprep.subr.mxu0 0.0
    %1710 = vmatpush1.msra.mxu0 0.0
    %1711 = vmatprep.subr.mxu0 0.0
    %1712 = vmatpush1.msra.mxu0 0.0
    %1713 = vmatprep.subr.mxu0 0.0
    %1714 = vmatpush1.msra.mxu0 0.0
    %1715 = vmatprep.subr.mxu0 0.0
    %1716 = vmatpush1.msra.mxu0 0.0
    %1717 = vmatprep.subr.mxu0 0.0
    %1718 = vmatpush1.msra.mxu0 0.0
    %1719 = vmatprep.subr.mxu0 0.0
    %1720 = vmatpush1.msra.mxu0 0.0
    %1721 = vmatprep.subr.mxu0 0.0
    %1722 = vmatpush1.msra.mxu0 0.0
    %1723 = vmatprep.subr.mxu0 0.0
    %1724 = vmatpush1.msra.mxu0 0.0
    %1725 = vmatprep.subr.mxu0 0.0
    %1726 = vmatpush1.msra.mxu0 0.0
    %1727 = vmatprep.subr.mxu0 0.0
    %1728 = vmatpush1.msra.mxu0 0.0
    %1729 = vmatprep.subr.mxu0 0.0
    %1730 = vmatpush1.msra.mxu0 0.0
    %1731 = vmatprep.subr.mxu0 0.0
    %1732 = vmatpush1.msra.mxu0 0.0
    %1733 = vmatprep.subr.mxu0 0.0
    %1734 = vmatpush1.msra.mxu0 0.0
    %1735 = vmatprep.subr.mxu0 0.0
    %1736 = vmatpush1.msra.mxu0 0.0
    %1737 = vmatprep.subr.mxu0 0.0
    %1738 = vmatpush1.msra.mxu0 0.0
    %1739 = vmatprep.subr.mxu0 0.0
    %1740 = vmatpush1.msra.mxu0 0.0
    %1741 = vmatprep.subr.mxu0 0.0
    %1742 = vmatpush1.msra.mxu0 0.0
    %1743 = vmatprep.subr.mxu0 0.0
    %1744 = vmatpush1.msra.mxu0 0.0
    %1745 = vmatprep.subr.mxu0 0.0
    %1746 = vmatpush1.msra.mxu0 0.0
    %1747 = vmatprep.subr.mxu0 0.0
    %1748 = vmatpush1.msra.mxu0 0.0
    %1749 = vmatprep.subr.mxu0 0.0
    %1750 = vmatpush1.msra.mxu0 0.0
    %1751 = vmatprep.subr.mxu0 0.0
    %1752 = vmatpush1.msra.mxu0 0.0
    %1753 = vmatprep.subr.mxu0 0.0
    %1754 = vmatpush1.msra.mxu0 0.0
    %1755 = vmatprep.subr.mxu0 0.0
    %1756 = vmatpush1.msra.mxu0 0.0
    %1757 = vmatprep.subr.mxu0 0.0
    %1758 = vmatpush1.msra.mxu0 0.0
    %1759 = vmatprep.subr.mxu0 0.0
    %1760 = vmatpush1.msra.mxu0 0.0
    %1761 = vmatprep.subr.mxu0 0.0
    %1762 = vmatpush1.msra.mxu0 0.0
    %1763 = vmatprep.subr.mxu0 0.0
    %1764 = vmatpush1.msra.mxu0 0.0
    %1765 = vmatprep.subr.mxu0 0.0
    %1766 = vmatpush1.msra.mxu0 0.0
    %1767 = vmatprep.subr.mxu0 0.0
    %1768 = vmatpush1.msra.mxu0 0.0
    %1769 = vmatprep.mubr.f32.mxu0 0.0
    %1770 = vmatmul.mubr.f32.gmra.mrb[0].mxu0 %v1703
    %v1771 = vpop.f32.mrb[0].mxu0
    %v1772 = vadd.f32 0.0, %v1771
    %v1773 = vpop.f32.mrb[0].mxu0
    %1774 = vdwg.mxu0
    %v1776 = vrot.slane %v1772, 2
    %v1778 = vadd.f32 %v1039, %v1776
    %v1779 = vxor.u32 %v1778, 2147483648
    %v1780 = vmul.f32 %v1779, 1.442695
    %v1781 = vpow.pop %v1780
    %v1782 = vadd.f32 %v1781, 1.0
    %v1783 = vrcp.pop %v1782
    %v1784 = vmul.f32 1.0, %v1783
    %v1785 = vtanh.pop %v1778
    %v1787 = vrot.slane %v1692, 6
    %v1789 = vmul.f32 %v1784, %v1787
    %1791 = vrot.lane.b32.xlu0 %v1785, 96
    %v1792 = vpop.permute.xlu0 %1791
    %v1794 = vmul.f32 %v1784, %v1792
    %1796 = vrot.lane.b32.xlu0 %v1794, 16
    %v1797 = vpop.permute.xlu0 %1796
    %v1799 = vadd.f32 %v1789, %v1797
    %v1800 = vtanh.pop %v1799
    %1802 = vrot.lane.b32.xlu0 %v1800, 32
    %v1803 = vpop.permute.xlu0 %1802
    %v1805 = vmul.f32 %v1784, %v1803
    %v1807 = vrot.slane %v1805, 6
    %v1809 = vrot.slane %v1805, 4
    %1810 = vrot.lane.b32.xlu0 %v1809, 120
    %v1811 = vpop.permute.xlu0 %1810
    %v1813 = vsel %vm78, %v1807, %v1811
    %v1814 = vld [vmem:[#allocation5 + $0x48] sm:$0xff]
    %v1815 = vld [vmem:[#allocation5 + $0x50] sm:$0xff]
    %v1816 = vld [vmem:[#allocation5 + $0x58] sm:$0xff]
    %v1817 = vld [vmem:[#allocation5 + $0x60] sm:$0xff]
    %v1818 = vld [vmem:[#allocation5 + $0x68] sm:$0xff]
    %v1819 = vld [vmem:[#allocation5 + $0x70] sm:$0x1]
    %v1820 = vlaneseq
    %v1821 = vshrl.u32 %v1820, 7
    %v1822 = vsub.s32 0, %v1821
    %v1823 = vrot.slane %v1819, %v1822
    %1825 = vrot.lane.b32.xlu0 %v1813, 80
    %v1826 = vpop.permute.xlu0 %1825
    %v1827 = vsel %vm95, %v1826, 0
    %1829 = vmatprep.subr.mxu0 0.0
    %1830 = vmatpush1.msra.mxu0 %v1814
    %1831 = vmatprep.subr.mxu0 0.0
    %1832 = vmatpush1.msra.mxu0 0.0
    %1833 = vmatprep.subr.mxu0 0.0
    %1834 = vmatpush1.msra.mxu0 0.0
    %1835 = vmatprep.subr.mxu0 0.0
    %1836 = vmatpush1.msra.mxu0 0.0
    %1837 = vmatprep.subr.mxu0 0.0
    %1838 = vmatpush1.msra.mxu0 0.0
    %1839 = vmatprep.subr.mxu0 0.0
    %1840 = vmatpush1.msra.mxu0 0.0
    %1841 = vmatprep.subr.mxu0 0.0
    %1842 = vmatpush1.msra.mxu0 0.0
    %1843 = vmatprep.subr.mxu0 0.0
    %1844 = vmatpush1.msra.mxu0 0.0
    %1845 = vmatprep.subr.mxu0 0.0
    %1846 = vmatpush1.msra.mxu0 0.0
    %1847 = vmatprep.subr.mxu0 0.0
    %1848 = vmatpush1.msra.mxu0 0.0
    %1849 = vmatprep.subr.mxu0 0.0
    %1850 = vmatpush1.msra.mxu0 0.0
    %1851 = vmatprep.subr.mxu0 0.0
    %1852 = vmatpush1.msra.mxu0 0.0
    %1853 = vmatprep.subr.mxu0 0.0
    %1854 = vmatpush1.msra.mxu0 0.0
    %1855 = vmatprep.subr.mxu0 0.0
    %1856 = vmatpush1.msra.mxu0 0.0
    %1857 = vmatprep.subr.mxu0 0.0
    %1858 = vmatpush1.msra.mxu0 0.0
    %1859 = vmatprep.subr.mxu0 0.0
    %1860 = vmatpush1.msra.mxu0 0.0
    %1861 = vmatprep.subr.mxu0 0.0
    %1862 = vmatpush1.msra.mxu0 0.0
    %1863 = vmatprep.subr.mxu0 0.0
    %1864 = vmatpush1.msra.mxu0 0.0
    %1865 = vmatprep.subr.mxu0 0.0
    %1866 = vmatpush1.msra.mxu0 0.0
    %1867 = vmatprep.subr.mxu0 0.0
    %1868 = vmatpush1.msra.mxu0 0.0
    %1869 = vmatprep.subr.mxu0 0.0
    %1870 = vmatpush1.msra.mxu0 0.0
    %1871 = vmatprep.subr.mxu0 0.0
    %1872 = vmatpush1.msra.mxu0 0.0
    %1873 = vmatprep.subr.mxu0 0.0
    %1874 = vmatpush1.msra.mxu0 0.0
    %1875 = vmatprep.subr.mxu0 0.0
    %1876 = vmatpush1.msra.mxu0 0.0
    %1877 = vmatprep.subr.mxu0 0.0
    %1878 = vmatpush1.msra.mxu0 0.0
    %1879 = vmatprep.subr.mxu0 0.0
    %1880 = vmatpush1.msra.mxu0 0.0
    %1881 = vmatprep.subr.mxu0 0.0
    %1882 = vmatpush1.msra.mxu0 0.0
    %1883 = vmatprep.subr.mxu0 0.0
    %1884 = vmatpush1.msra.mxu0 0.0
    %1885 = vmatprep.subr.mxu0 0.0
    %1886 = vmatpush1.msra.mxu0 0.0
    %1887 = vmatprep.subr.mxu0 0.0
    %1888 = vmatpush1.msra.mxu0 0.0
    %1889 = vmatprep.subr.mxu0 0.0
    %1890 = vmatpush1.msra.mxu0 0.0
    %1891 = vmatprep.subr.mxu0 0.0
    %1892 = vmatpush1.msra.mxu0 0.0
    %1893 = vmatprep.mubr.f32.mxu0 0.0
    %1894 = vmatmul.mubr.f32.gmra.mrb[0].mxu0 %v1827
    %v1895 = vpop.f32.mrb[0].mxu0
    %v1896 = vadd.f32 %v1823, %v1895
    %v1897 = vpop.f32.mrb[0].mxu0
    %1898 = vdwg.mxu0
    %v1899 = vxor.u32 %v1896, 2147483648
    %v1900 = vmul.f32 %v1899, 1.442695
    %v1901 = vpow.pop %v1900
    %v1902 = vadd.f32 %v1901, 1.0
    %v1903 = vrcp.pop %v1902
    %v1904 = vmul.f32 1.0, %v1903
    %v1905 = vtanh.pop %v1896
    %1907 = vrot.lane.b32.xlu0 %v1905, 64
    %v1908 = vpop.permute.xlu0 %1907
    %v1910 = vmul.f32 %v1904, %v1908
    %v1911 = vtanh.pop %v1910
    %1913 = vrot.lane.b32.xlu0 %v1911, 96
    %v1914 = vpop.permute.xlu0 %1913
    %v1916 = vmul.f32 %v1904, %v1914
    %1918 = vrot.lane.b32.xlu0 %v1916, 32
    %v1919 = vpop.permute.xlu0 %1918
    %vm1920 = vcmask 261120
    %v1921 = vsel %vm1920, %v1919, 0
    %1923 = vmatprep.subr.mxu0 0.0
    %1924 = vmatpush1.msra.mxu0 %v1815
    %1925 = vmatprep.subr.mxu0 0.0
    %1926 = vmatpush1.msra.mxu0 %v1816
    %1927 = vmatprep.subr.mxu0 0.0
    %1928 = vmatpush1.msra.mxu0 %v1817
    %1929 = vmatprep.subr.mxu0 0.0
    %1930 = vmatpush1.msra.mxu0 %v1818
    %1931 = vmatprep.subr.mxu0 0.0
    %1932 = vmatpush1.msra.mxu0 0.0
    %1933 = vmatprep.subr.mxu0 0.0
    %1934 = vmatpush1.msra.mxu0 0.0
    %1935 = vmatprep.subr.mxu0 0.0
    %1936 = vmatpush1.msra.mxu0 0.0
    %1937 = vmatprep.subr.mxu0 0.0
    %1938 = vmatpush1.msra.mxu0 0.0
    %1939 = vmatprep.subr.mxu0 0.0
    %1940 = vmatpush1.msra.mxu0 0.0
    %1941 = vmatprep.subr.mxu0 0.0
    %1942 = vmatpush1.msra.mxu0 0.0
    %1943 = vmatprep.subr.mxu0 0.0
    %1944 = vmatpush1.msra.mxu0 0.0
    %1945 = vmatprep.subr.mxu0 0.0
    %1946 = vmatpush1.msra.mxu0 0.0
    %1947 = vmatprep.subr.mxu0 0.0
    %1948 = vmatpush1.msra.mxu0 0.0
    %1949 = vmatprep.subr.mxu0 0.0
    %1950 = vmatpush1.msra.mxu0 0.0
    %1951 = vmatprep.subr.mxu0 0.0
    %1952 = vmatpush1.msra.mxu0 0.0
    %1953 = vmatprep.subr.mxu0 0.0
    %1954 = vmatpush1.msra.mxu0 0.0
    %1955 = vmatprep.subr.mxu0 0.0
    %1956 = vmatpush1.msra.mxu0 0.0
    %1957 = vmatprep.subr.mxu0 0.0
    %1958 = vmatpush1.msra.mxu0 0.0
    %1959 = vmatprep.subr.mxu0 0.0
    %1960 = vmatpush1.msra.mxu0 0.0
    %1961 = vmatprep.subr.mxu0 0.0
    %1962 = vmatpush1.msra.mxu0 0.0
    %1963 = vmatprep.subr.mxu0 0.0
    %1964 = vmatpush1.msra.mxu0 0.0
    %1965 = vmatprep.subr.mxu0 0.0
    %1966 = vmatpush1.msra.mxu0 0.0
    %1967 = vmatprep.subr.mxu0 0.0
    %1968 = vmatpush1.msra.mxu0 0.0
    %1969 = vmatprep.subr.mxu0 0.0
    %1970 = vmatpush1.msra.mxu0 0.0
    %1971 = vmatprep.subr.mxu0 0.0
    %1972 = vmatpush1.msra.mxu0 0.0
    %1973 = vmatprep.subr.mxu0 0.0
    %1974 = vmatpush1.msra.mxu0 0.0
    %1975 = vmatprep.subr.mxu0 0.0
    %1976 = vmatpush1.msra.mxu0 0.0
    %1977 = vmatprep.subr.mxu0 0.0
    %1978 = vmatpush1.msra.mxu0 0.0
    %1979 = vmatprep.subr.mxu0 0.0
    %1980 = vmatpush1.msra.mxu0 0.0
    %1981 = vmatprep.subr.mxu0 0.0
    %1982 = vmatpush1.msra.mxu0 0.0
    %1983 = vmatprep.subr.mxu0 0.0
    %1984 = vmatpush1.msra.mxu0 0.0
    %1985 = vmatprep.subr.mxu0 0.0
    %1986 = vmatpush1.msra.mxu0 0.0
    %1987 = vmatprep.mubr.f32.mxu0 0.0
    %1988 = vmatmul.mubr.f32.gmra.mrb[0].mxu0 %v1921
    %v1989 = vpop.f32.mrb[0].mxu0
    %v1990 = vadd.f32 0.0, %v1989
    %v1991 = vpop.f32.mrb[0].mxu0
    %1992 = vdwg.mxu0
    %v1994 = vrot.slane %v1990, 6
    %v1996 = vadd.f32 %v1896, %v1994
    %v1997 = vxor.u32 %v1996, 2147483648
    %v1998 = vmul.f32 %v1997, 1.442695
    %v1999 = vpow.pop %v1998
    %v2000 = vadd.f32 %v1999, 1.0
    %v2001 = vrcp.pop %v2000
    %v2002 = vmul.f32 1.0, %v2001
    %v2003 = vtanh.pop %v1996
    %v2005 = vrot.slane %v1910, 6
    %2006 = vrot.lane.b32.xlu0 %v2005, 32
    %v2007 = vpop.permute.xlu0 %2006
    %v2009 = vmul.f32 %v2002, %v2007
    %2011 = vrot.lane.b32.xlu0 %v2003, 64
    %v2012 = vpop.permute.xlu0 %2011
    %v2014 = vmul.f32 %v2002, %v2012
    %2016 = vrot.lane.b32.xlu0 %v2014, 32
    %v2017 = vpop.permute.xlu0 %2016
    %v2019 = vadd.f32 %v2009, %v2017
    %v2020 = vtanh.pop %v2019
    %2022 = vrot.lane.b32.xlu0 %v2020, 64
    %v2023 = vpop.permute.xlu0 %2022
    %v2025 = vmul.f32 %v2002, %v2023
    %v2026 = vsel %vm78, %v1916, %v2025
    %v2027 = vld [vmem:[#allocation5 + $0x78] sm:$0xff]
    %v2028 = vld [vmem:[#allocation5 + $0x80] sm:$0xff]
    %v2029 = vld [vmem:[#allocation5 + $0x88] sm:$0xff]
    %v2030 = vld [vmem:[#allocation5 + $0x90] sm:$0xff]
    %v2031 = vld [vmem:[#allocation5 + $0x98] sm:$0xff]
    %v2032 = vld [vmem:[#allocation5 + $0xa0] sm:$0xff]
    %v2033 = vld [vmem:[#allocation5 + $0xa8] sm:$0xff]
    %v2034 = vld [vmem:[#allocation5 + $0xb0] sm:$0xff]
    %v2035 = vld [vmem:[#allocation5 + $0xb8] sm:$0x1]
    %v2036 = vlaneseq
    %v2037 = vshrl.u32 %v2036, 7
    %v2038 = vsub.s32 0, %v2037
    %v2039 = vrot.slane %v2035, %v2038
    %2041 = vrot.lane.b32.xlu0 %v2026, 32
    %v2042 = vpop.permute.xlu0 %2041
    %v2043 = vsel %vm1920, %v2042, 0
    %2045 = vmatprep.subr.mxu0 0.0
    %2046 = vmatpush1.msra.mxu0 %v2027
    %2047 = vmatprep.subr.mxu0 0.0
    %2048 = vmatpush1.msra.mxu0 %v2028
    %2049 = vmatprep.subr.mxu0 0.0
    %2050 = vmatpush1.msra.mxu0 %v2029
    %2051 = vmatprep.subr.mxu0 0.0
    %2052 = vmatpush1.msra.mxu0 %v2030
    %2053 = vmatprep.subr.mxu0 0.0
    %2054 = vmatpush1.msra.mxu0 0.0
    %2055 = vmatprep.subr.mxu0 0.0
    %2056 = vmatpush1.msra.mxu0 0.0
    %2057 = vmatprep.subr.mxu0 0.0
    %2058 = vmatpush1.msra.mxu0 0.0
    %2059 = vmatprep.subr.mxu0 0.0
    %2060 = vmatpush1.msra.mxu0 0.0
    %2061 = vmatprep.subr.mxu0 0.0
    %2062 = vmatpush1.msra.mxu0 0.0
    %2063 = vmatprep.subr.mxu0 0.0
    %2064 = vmatpush1.msra.mxu0 0.0
    %2065 = vmatprep.subr.mxu0 0.0
    %2066 = vmatpush1.msra.mxu0 0.0
    %2067 = vmatprep.subr.mxu0 0.0
    %2068 = vmatpush1.msra.mxu0 0.0
    %2069 = vmatprep.subr.mxu0 0.0
    %2070 = vmatpush1.msra.mxu0 0.0
    %2071 = vmatprep.subr.mxu0 0.0
    %2072 = vmatpush1.msra.mxu0 0.0
    %2073 = vmatprep.subr.mxu0 0.0
    %2074 = vmatpush1.msra.mxu0 0.0
    %2075 = vmatprep.subr.mxu0 0.0
    %2076 = vmatpush1.msra.mxu0 0.0
    %2077 = vmatprep.subr.mxu0 0.0
    %2078 = vmatpush1.msra.mxu0 0.0
    %2079 = vmatprep.subr.mxu0 0.0
    %2080 = vmatpush1.msra.mxu0 0.0
    %2081 = vmatprep.subr.mxu0 0.0
    %2082 = vmatpush1.msra.mxu0 0.0
    %2083 = vmatprep.subr.mxu0 0.0
    %2084 = vmatpush1.msra.mxu0 0.0
    %2085 = vmatprep.subr.mxu0 0.0
    %2086 = vmatpush1.msra.mxu0 0.0
    %2087 = vmatprep.subr.mxu0 0.0
    %2088 = vmatpush1.msra.mxu0 0.0
    %2089 = vmatprep.subr.mxu0 0.0
    %2090 = vmatpush1.msra.mxu0 0.0
    %2091 = vmatprep.subr.mxu0 0.0
    %2092 = vmatpush1.msra.mxu0 0.0
    %2093 = vmatprep.subr.mxu0 0.0
    %2094 = vmatpush1.msra.mxu0 0.0
    %2095 = vmatprep.subr.mxu0 0.0
    %2096 = vmatpush1.msra.mxu0 0.0
    %2097 = vmatprep.subr.mxu0 0.0
    %2098 = vmatpush1.msra.mxu0 0.0
    %2099 = vmatprep.subr.mxu0 0.0
    %2100 = vmatpush1.msra.mxu0 0.0
    %2101 = vmatprep.subr.mxu0 0.0
    %2102 = vmatpush1.msra.mxu0 0.0
    %2103 = vmatprep.subr.mxu0 0.0
    %2104 = vmatpush1.msra.mxu0 0.0
    %2105 = vmatprep.subr.mxu0 0.0
    %2106 = vmatpush1.msra.mxu0 0.0
    %2107 = vmatprep.subr.mxu0 0.0
    %2108 = vmatpush1.msra.mxu0 0.0
    %2109 = vmatprep.mubr.f32.mxu0 0.0
    %2110 = vmatmul.mubr.f32.gmra.mrb[0].mxu0 %v2043
    %v2111 = vpop.f32.mrb[0].mxu0
    %v2112 = vadd.f32 %v2039, %v2111
    %v2113 = vpop.f32.mrb[0].mxu0
    %2114 = vdwg.mxu0
    %v2115 = vxor.u32 %v2112, 2147483648
    %v2116 = vmul.f32 %v2115, 1.442695
    %v2117 = vpow.pop %v2116
    %v2118 = vadd.f32 %v2117, 1.0
    %v2119 = vrcp.pop %v2118
    %v2120 = vmul.f32 1.0, %v2119
    %v2121 = vtanh.pop %v2112
    %2123 = vrot.lane.b32.xlu0 %v2121, 64
    %v2124 = vpop.permute.xlu0 %2123
    %v2126 = vmul.f32 %v2120, %v2124
    %v2127 = vtanh.pop %v2126
    %2129 = vrot.lane.b32.xlu0 %v2127, 96
    %v2130 = vpop.permute.xlu0 %2129
    %v2132 = vmul.f32 %v2120, %v2130
    %2134 = vrot.lane.b32.xlu0 %v2132, 32
    %v2135 = vpop.permute.xlu0 %2134
    %v2136 = vsel %vm1920, %v2135, 0
    %2138 = vmatprep.subr.mxu0 0.0
    %2139 = vmatpush1.msra.mxu0 %v2031
    %2140 = vmatprep.subr.mxu0 0.0
    %2141 = vmatpush1.msra.mxu0 %v2032
    %2142 = vmatprep.subr.mxu0 0.0
    %2143 = vmatpush1.msra.mxu0 %v2033
    %2144 = vmatprep.subr.mxu0 0.0
    %2145 = vmatpush1.msra.mxu0 %v2034
    %2146 = vmatprep.subr.mxu0 0.0
    %2147 = vmatpush1.msra.mxu0 0.0
    %2148 = vmatprep.subr.mxu0 0.0
    %2149 = vmatpush1.msra.mxu0 0.0
    %2150 = vmatprep.subr.mxu0 0.0
    %2151 = vmatpush1.msra.mxu0 0.0
    %2152 = vmatprep.subr.mxu0 0.0
    %2153 = vmatpush1.msra.mxu0 0.0
    %2154 = vmatprep.subr.mxu0 0.0
    %2155 = vmatpush1.msra.mxu0 0.0
    %2156 = vmatprep.subr.mxu0 0.0
    %2157 = vmatpush1.msra.mxu0 0.0
    %2158 = vmatprep.subr.mxu0 0.0
    %2159 = vmatpush1.msra.mxu0 0.0
    %2160 = vmatprep.subr.mxu0 0.0
    %2161 = vmatpush1.msra.mxu0 0.0
    %2162 = vmatprep.subr.mxu0 0.0
    %2163 = vmatpush1.msra.mxu0 0.0
    %2164 = vmatprep.subr.mxu0 0.0
    %2165 = vmatpush1.msra.mxu0 0.0
    %2166 = vmatprep.subr.mxu0 0.0
    %2167 = vmatpush1.msra.mxu0 0.0
    %2168 = vmatprep.subr.mxu0 0.0
    %2169 = vmatpush1.msra.mxu0 0.0
    %2170 = vmatprep.subr.mxu0 0.0
    %2171 = vmatpush1.msra.mxu0 0.0
    %2172 = vmatprep.subr.mxu0 0.0
    %2173 = vmatpush1.msra.mxu0 0.0
    %2174 = vmatprep.subr.mxu0 0.0
    %2175 = vmatpush1.msra.mxu0 0.0
    %2176 = vmatprep.subr.mxu0 0.0
    %2177 = vmatpush1.msra.mxu0 0.0
    %2178 = vmatprep.subr.mxu0 0.0
    %2179 = vmatpush1.msra.mxu0 0.0
    %2180 = vmatprep.subr.mxu0 0.0
    %2181 = vmatpush1.msra.mxu0 0.0
    %2182 = vmatprep.subr.mxu0 0.0
    %2183 = vmatpush1.msra.mxu0 0.0
    %2184 = vmatprep.subr.mxu0 0.0
    %2185 = vmatpush1.msra.mxu0 0.0
    %2186 = vmatprep.subr.mxu0 0.0
    %2187 = vmatpush1.msra.mxu0 0.0
    %2188 = vmatprep.subr.mxu0 0.0
    %2189 = vmatpush1.msra.mxu0 0.0
    %2190 = vmatprep.subr.mxu0 0.0
    %2191 = vmatpush1.msra.mxu0 0.0
    %2192 = vmatprep.subr.mxu0 0.0
    %2193 = vmatpush1.msra.mxu0 0.0
    %2194 = vmatprep.subr.mxu0 0.0
    %2195 = vmatpush1.msra.mxu0 0.0
    %2196 = vmatprep.subr.mxu0 0.0
    %2197 = vmatpush1.msra.mxu0 0.0
    %2198 = vmatprep.subr.mxu0 0.0
    %2199 = vmatpush1.msra.mxu0 0.0
    %2200 = vmatprep.subr.mxu0 0.0
    %2201 = vmatpush1.msra.mxu0 0.0
    %2202 = vmatprep.mubr.f32.mxu0 0.0
    %2203 = vmatmul.mubr.f32.gmra.mrb[0].mxu0 %v2136
    %v2204 = vpop.f32.mrb[0].mxu0
    %v2205 = vadd.f32 0.0, %v2204
    %v2206 = vpop.f32.mrb[0].mxu0
    %2207 = vdwg.mxu0
    %v2209 = vrot.slane %v2205, 6
    %v2211 = vadd.f32 %v2112, %v2209
    %v2212 = vxor.u32 %v2211, 2147483648
    %v2213 = vmul.f32 %v2212, 1.442695
    %v2214 = vpow.pop %v2213
    %v2215 = vadd.f32 %v2214, 1.0
    %v2216 = vrcp.pop %v2215
    %v2217 = vmul.f32 1.0, %v2216
    %v2218 = vtanh.pop %v2211
    %v2220 = vrot.slane %v2126, 6
    %2221 = vrot.lane.b32.xlu0 %v2220, 32
    %v2222 = vpop.permute.xlu0 %2221
    %v2224 = vmul.f32 %v2217, %v2222
    %2226 = vrot.lane.b32.xlu0 %v2218, 64
    %v2227 = vpop.permute.xlu0 %2226
    %v2229 = vmul.f32 %v2217, %v2227
    %2231 = vrot.lane.b32.xlu0 %v2229, 32
    %v2232 = vpop.permute.xlu0 %2231
    %v2234 = vadd.f32 %v2224, %v2232
    %v2235 = vtanh.pop %v2234
    %2237 = vrot.lane.b32.xlu0 %v2235, 64
    %v2238 = vpop.permute.xlu0 %2237
    %v2240 = vmul.f32 %v2217, %v2238
    %v2241 = vsel %vm50, %v54, %v53
    %2242 = vrot.lane.b32.xlu0 %v2241, 124
    %v2243 = vpop.permute.xlu0 %2242
    %v2245 = vsel %vm55, %v59, %v58
    %v2247 = vsel %vm60, %v68, %v67
    %2248 = vrot.lane.b32.xlu0 %v2247, 124
    %v2249 = vpop.permute.xlu0 %2248
    %v2251 = vsel %vm45, %v72, %v71
    %v2253 = vsel %vm50, %v44, %v40
    %2254 = vrot.lane.b32.xlu0 %v2253, 124
    %v2255 = vpop.permute.xlu0 %2254
    %v2257 = vsel %vm55, %v49, %v48
    %2259 = vrot.lane.b32.xlu0 %v61, 124
    %v2260 = vpop.permute.xlu0 %2259
    %v2262 = vsel %vm50, %v72, %v71
    %2263 = vrot.lane.b32.xlu0 %v2262, 124
    %v2264 = vpop.permute.xlu0 %2263
    %v2266 = vsel %vm55, %v41, %v75
    %v2268 = vsel %vm60, %v49, %v48
    %2269 = vrot.lane.b32.xlu0 %v2268, 124
    %v2270 = vpop.permute.xlu0 %2269
    %v2272 = vsel %vm45, %v54, %v53
    %v2274 = vsel %vm50, %v64, %v63
    %2275 = vrot.lane.b32.xlu0 %v2274, 124
    %v2276 = vpop.permute.xlu0 %2275
    %v2278 = vsel %vm55, %v68, %v67
    %2280 = vrot.lane.b32.xlu0 %v76, 124
    %v2281 = vpop.permute.xlu0 %2280
    %v2283 = vsel %vm78, %v46, %v2243
    %v2284 = vsel %vm80, %v2283, %v2245
    %v2285 = vsel %vm82, %v2284, %v2249
    %v2286 = vsel %vm78, %v2251, %v2255
    %v2287 = vsel %vm80, %v2286, %v2257
    %v2288 = vsel %vm82, %v2287, %v2260
    %v2289 = vsel %vm78, %v65, %v2264
    %v2290 = vsel %vm80, %v2289, %v2266
    %v2291 = vsel %vm82, %v2290, %v2270
    %v2292 = vsel %vm78, %v2272, %v2276
    %v2293 = vsel %vm80, %v2292, %v2278
    %v2294 = vsel %vm82, %v2293, %v2281
    %v2295 = vld [vmem:[#allocation5 + $0xc0] sm:$0xf]
    %v2296 = vld [vmem:[#allocation5 + $0xc8] sm:$0xff]
    %v2297 = vld [vmem:[#allocation5 + $0xd0] sm:$0xff]
    %v2298 = vld [vmem:[#allocation5 + $0xd8] sm:$0x1]
    %v2299 = vlaneseq
    %v2300 = vshrl.u32 %v2299, 7
    %v2301 = vsub.s32 0, %v2300
    %v2302 = vrot.slane %v2298, %v2301
    %vm2303 = vcmask 31744
    %v2305 = vsel %vm2303, %v2285, 0
    %v2308 = vsel %vm2303, %v2288, 0
    %v2311 = vsel %vm2303, %v2291, 0
    %v2314 = vsel %vm2303, %v2294, 0
    %v2317 = vsel %vm80, %v2295, 0
    %2319 = vmatprep.subr.mxu0 0.0
    %2320 = vmatpush1.msra.mxu0 %v2317
    %2321 = vmatprep.subr.mxu0 0.0
    %2322 = vmatpush1.msra.mxu0 0.0
    %2323 = vmatprep.subr.mxu0 0.0
    %2324 = vmatpush1.msra.mxu0 0.0
    %2325 = vmatprep.subr.mxu0 0.0
    %2326 = vmatpush1.msra.mxu0 0.0
    %2327 = vmatprep.subr.mxu0 0.0
    %2328 = vmatpush1.msra.mxu0 0.0
    %2329 = vmatprep.subr.mxu0 0.0
    %2330 = vmatpush1.msra.mxu0 0.0
    %2331 = vmatprep.subr.mxu0 0.0
    %2332 = vmatpush1.msra.mxu0 0.0
    %2333 = vmatprep.subr.mxu0 0.0
    %2334 = vmatpush1.msra.mxu0 0.0
    %2335 = vmatprep.subr.mxu0 0.0
    %2336 = vmatpush1.msra.mxu0 0.0
    %2337 = vmatprep.subr.mxu0 0.0
    %2338 = vmatpush1.msra.mxu0 0.0
    %2339 = vmatprep.subr.mxu0 0.0
    %2340 = vmatpush1.msra.mxu0 0.0
    %2341 = vmatprep.subr.mxu0 0.0
    %2342 = vmatpush1.msra.mxu0 0.0
    %2343 = vmatprep.subr.mxu0 0.0
    %2344 = vmatpush1.msra.mxu0 0.0
    %2345 = vmatprep.subr.mxu0 0.0
    %2346 = vmatpush1.msra.mxu0 0.0
    %2347 = vmatprep.subr.mxu0 0.0
    %2348 = vmatpush1.msra.mxu0 0.0
    %2349 = vmatprep.subr.mxu0 0.0
    %2350 = vmatpush1.msra.mxu0 0.0
    %2351 = vmatprep.subr.mxu0 0.0
    %2352 = vmatpush1.msra.mxu0 0.0
    %2353 = vmatprep.subr.mxu0 0.0
    %2354 = vmatpush1.msra.mxu0 0.0
    %2355 = vmatprep.subr.mxu0 0.0
    %2356 = vmatpush1.msra.mxu0 0.0
    %2357 = vmatprep.subr.mxu0 0.0
    %2358 = vmatpush1.msra.mxu0 0.0
    %2359 = vmatprep.subr.mxu0 0.0
    %2360 = vmatpush1.msra.mxu0 0.0
    %2361 = vmatprep.subr.mxu0 0.0
    %2362 = vmatpush1.msra.mxu0 0.0
    %2363 = vmatprep.subr.mxu0 0.0
    %2364 = vmatpush1.msra.mxu0 0.0
    %2365 = vmatprep.subr.mxu0 0.0
    %2366 = vmatpush1.msra.mxu0 0.0
    %2367 = vmatprep.subr.mxu0 0.0
    %2368 = vmatpush1.msra.mxu0 0.0
    %2369 = vmatprep.subr.mxu0 0.0
    %2370 = vmatpush1.msra.mxu0 0.0
    %2371 = vmatprep.subr.mxu0 0.0
    %2372 = vmatpush1.msra.mxu0 0.0
    %2373 = vmatprep.subr.mxu0 0.0
    %2374 = vmatpush1.msra.mxu0 0.0
    %2375 = vmatprep.subr.mxu0 0.0
    %2376 = vmatpush1.msra.mxu0 0.0
    %2377 = vmatprep.subr.mxu0 0.0
    %2378 = vmatpush1.msra.mxu0 0.0
    %2379 = vmatprep.subr.mxu0 0.0
    %2380 = vmatpush1.msra.mxu0 0.0
    %2381 = vmatprep.subr.mxu0 0.0
    %2382 = vmatpush1.msra.mxu0 0.0
    %2383 = vmatprep.mubr.f32.mxu0 0.0
    %2384 = vmatmul.mubr.f32.gmra.mrb[0].mxu0 %v2305
    %v2385 = vpop.f32.mrb[0].mxu0
    %v2386 = vadd.f32 %v2302, %v2385
    %v2387 = vpop.f32.mrb[0].mxu0
    %2388 = vmatprep.mubr.f32.mxu0 0.0
    %2389 = vmatmul.mubr.f32.gmra.mrb[0].mxu0 %v2308
    %v2390 = vpop.f32.mrb[0].mxu0
    %v2391 = vadd.f32 %v2302, %v2390
    %v2392 = vpop.f32.mrb[0].mxu0
    %2393 = vmatprep.mubr.f32.mxu0 0.0
    %2394 = vmatmul.mubr.f32.gmra.mrb[0].mxu0 %v2311
    %v2395 = vpop.f32.mrb[0].mxu0
    %v2396 = vadd.f32 %v2302, %v2395
    %v2397 = vpop.f32.mrb[0].mxu0
    %2398 = vmatprep.mubr.f32.mxu0 0.0
    %2399 = vmatmul.mubr.f32.gmra.mrb[0].mxu0 %v2314
    %v2400 = vpop.f32.mrb[0].mxu0
    %v2401 = vadd.f32 %v2302, %v2400
    %v2402 = vpop.f32.mrb[0].mxu0
    %2403 = vdwg.mxu0
    %v2404 = vxor.u32 %v2386, 2147483648
    %v2405 = vmul.f32 %v2404, 1.442695
    %v2406 = vpow.pop %v2405
    %v2407 = vadd.f32 %v2406, 1.0
    %v2408 = vrcp.pop %v2407
    %v2409 = vmul.f32 1.0, %v2408
    %v2410 = vtanh.pop %v2386
    %2412 = vrot.lane.b32.xlu0 %v2410, 96
    %v2413 = vpop.permute.xlu0 %2412
    %v2415 = vmul.f32 %v2409, %v2413
    %v2416 = vtanh.pop %v2415
    %2418 = vrot.lane.b32.xlu0 %v2416, 48
    %v2419 = vpop.permute.xlu0 %2418
    %v2421 = vmul.f32 %v2409, %v2419
    %2423 = vrot.lane.b32.xlu0 %v2421, 80
    %v2424 = vpop.permute.xlu0 %2423
    %v2425 = vsel %vm198, %v2424, 0
    %2427 = vmatprep.subr.mxu0 0.0
    %2428 = vmatpush1.msra.mxu0 %v2296
    %2429 = vmatprep.subr.mxu0 0.0
    %2430 = vmatpush1.msra.mxu0 %v2297
    %2431 = vmatprep.subr.mxu0 0.0
    %2432 = vmatpush1.msra.mxu0 0.0
    %2433 = vmatprep.subr.mxu0 0.0
    %2434 = vmatpush1.msra.mxu0 0.0
    %2435 = vmatprep.subr.mxu0 0.0
    %2436 = vmatpush1.msra.mxu0 0.0
    %2437 = vmatprep.subr.mxu0 0.0
    %2438 = vmatpush1.msra.mxu0 0.0
    %2439 = vmatprep.subr.mxu0 0.0
    %2440 = vmatpush1.msra.mxu0 0.0
    %2441 = vmatprep.subr.mxu0 0.0
    %2442 = vmatpush1.msra.mxu0 0.0
    %2443 = vmatprep.subr.mxu0 0.0
    %2444 = vmatpush1.msra.mxu0 0.0
    %2445 = vmatprep.subr.mxu0 0.0
    %2446 = vmatpush1.msra.mxu0 0.0
    %2447 = vmatprep.subr.mxu0 0.0
    %2448 = vmatpush1.msra.mxu0 0.0
    %2449 = vmatprep.subr.mxu0 0.0
    %2450 = vmatpush1.msra.mxu0 0.0
    %2451 = vmatprep.subr.mxu0 0.0
    %2452 = vmatpush1.msra.mxu0 0.0
    %2453 = vmatprep.subr.mxu0 0.0
    %2454 = vmatpush1.msra.mxu0 0.0
    %2455 = vmatprep.subr.mxu0 0.0
    %2456 = vmatpush1.msra.mxu0 0.0
    %2457 = vmatprep.subr.mxu0 0.0
    %2458 = vmatpush1.msra.mxu0 0.0
    %2459 = vmatprep.subr.mxu0 0.0
    %2460 = vmatpush1.msra.mxu0 0.0
    %2461 = vmatprep.subr.mxu0 0.0
    %2462 = vmatpush1.msra.mxu0 0.0
    %2463 = vmatprep.subr.mxu0 0.0
    %2464 = vmatpush1.msra.mxu0 0.0
    %2465 = vmatprep.subr.mxu0 0.0
    %2466 = vmatpush1.msra.mxu0 0.0
    %2467 = vmatprep.subr.mxu0 0.0
    %2468 = vmatpush1.msra.mxu0 0.0
    %2469 = vmatprep.subr.mxu0 0.0
    %2470 = vmatpush1.msra.mxu0 0.0
    %2471 = vmatprep.subr.mxu0 0.0
    %2472 = vmatpush1.msra.mxu0 0.0
    %2473 = vmatprep.subr.mxu0 0.0
    %2474 = vmatpush1.msra.mxu0 0.0
    %2475 = vmatprep.subr.mxu0 0.0
    %2476 = vmatpush1.msra.mxu0 0.0
    %2477 = vmatprep.subr.mxu0 0.0
    %2478 = vmatpush1.msra.mxu0 0.0
    %2479 = vmatprep.subr.mxu0 0.0
    %2480 = vmatpush1.msra.mxu0 0.0
    %2481 = vmatprep.subr.mxu0 0.0
    %2482 = vmatpush1.msra.mxu0 0.0
    %2483 = vmatprep.subr.mxu0 0.0
    %2484 = vmatpush1.msra.mxu0 0.0
    %2485 = vmatprep.subr.mxu0 0.0
    %2486 = vmatpush1.msra.mxu0 0.0
    %2487 = vmatprep.subr.mxu0 0.0
    %2488 = vmatpush1.msra.mxu0 0.0
    %2489 = vmatprep.subr.mxu0 0.0
    %2490 = vmatpush1.msra.mxu0 0.0
    %2491 = vmatprep.mubr.f32.mxu0 0.0
    %2492 = vmatmul.mubr.f32.gmra.mrb[0].mxu0 %v2425
    %v2493 = vpop.f32.mrb[0].mxu0
    %v2494 = vadd.f32 0.0, %v2493
    %v2495 = vpop.f32.mrb[0].mxu0
    %2496 = vdwg.mxu0
    %v2498 = vrot.slane %v2494, 6
    %v2500 = vadd.f32 %v2386, %v2498
    %v2501 = vxor.u32 %v2500, 2147483648
    %v2502 = vmul.f32 %v2501, 1.442695
    %v2503 = vpow.pop %v2502
    %v2504 = vadd.f32 %v2503, 1.0
    %v2505 = vrcp.pop %v2504
    %v2506 = vmul.f32 1.0, %v2505
    %v2507 = vtanh.pop %v2500
    %v2509 = vrot.slane %v2415, 6
    %2510 = vrot.lane.b32.xlu0 %v2509, 16
    %v2511 = vpop.permute.xlu0 %2510
    %v2513 = vmul.f32 %v2506, %v2511
    %2515 = vrot.lane.b32.xlu0 %v2507, 96
    %v2516 = vpop.permute.xlu0 %2515
    %v2518 = vmul.f32 %v2506, %v2516
    %2520 = vrot.lane.b32.xlu0 %v2518, 16
    %v2521 = vpop.permute.xlu0 %2520
    %v2523 = vadd.f32 %v2513, %v2521
    %v2524 = vtanh.pop %v2523
    %2526 = vrot.lane.b32.xlu0 %v2524, 32
    %v2527 = vpop.permute.xlu0 %2526
    %v2529 = vmul.f32 %v2506, %v2527
    %v2531 = vrot.slane %v2529, 2
    %2532 = vrot.lane.b32.xlu0 %v2531, 80
    %v2533 = vpop.permute.xlu0 %2532
    %v2534 = vsel %vm198, %v2533, 0
    %2536 = vmatprep.subr.mxu0 0.0
    %2537 = vmatpush1.msra.mxu0 %v2296
    %2538 = vmatprep.subr.mxu0 0.0
    %2539 = vmatpush1.msra.mxu0 %v2297
    %2540 = vmatprep.subr.mxu0 0.0
    %2541 = vmatpush1.msra.mxu0 0.0
    %2542 = vmatprep.subr.mxu0 0.0
    %2543 = vmatpush1.msra.mxu0 0.0
    %2544 = vmatprep.subr.mxu0 0.0
    %2545 = vmatpush1.msra.mxu0 0.0
    %2546 = vmatprep.subr.mxu0 0.0
    %2547 = vmatpush1.msra.mxu0 0.0
    %2548 = vmatprep.subr.mxu0 0.0
    %2549 = vmatpush1.msra.mxu0 0.0
    %2550 = vmatprep.subr.mxu0 0.0
    %2551 = vmatpush1.msra.mxu0 0.0
    %2552 = vmatprep.subr.mxu0 0.0
    %2553 = vmatpush1.msra.mxu0 0.0
    %2554 = vmatprep.subr.mxu0 0.0
    %2555 = vmatpush1.msra.mxu0 0.0
    %2556 = vmatprep.subr.mxu0 0.0
    %2557 = vmatpush1.msra.mxu0 0.0
    %2558 = vmatprep.subr.mxu0 0.0
    %2559 = vmatpush1.msra.mxu0 0.0
    %2560 = vmatprep.subr.mxu0 0.0
    %2561 = vmatpush1.msra.mxu0 0.0
    %2562 = vmatprep.subr.mxu0 0.0
    %2563 = vmatpush1.msra.mxu0 0.0
    %2564 = vmatprep.subr.mxu0 0.0
    %2565 = vmatpush1.msra.mxu0 0.0
    %2566 = vmatprep.subr.mxu0 0.0
    %2567 = vmatpush1.msra.mxu0 0.0
    %2568 = vmatprep.subr.mxu0 0.0
    %2569 = vmatpush1.msra.mxu0 0.0
    %2570 = vmatprep.subr.mxu0 0.0
    %2571 = vmatpush1.msra.mxu0 0.0
    %2572 = vmatprep.subr.mxu0 0.0
    %2573 = vmatpush1.msra.mxu0 0.0
    %2574 = vmatprep.subr.mxu0 0.0
    %2575 = vmatpush1.msra.mxu0 0.0
    %2576 = vmatprep.subr.mxu0 0.0
    %2577 = vmatpush1.msra.mxu0 0.0
    %2578 = vmatprep.subr.mxu0 0.0
    %2579 = vmatpush1.msra.mxu0 0.0
    %2580 = vmatprep.subr.mxu0 0.0
    %2581 = vmatpush1.msra.mxu0 0.0
    %2582 = vmatprep.subr.mxu0 0.0
    %2583 = vmatpush1.msra.mxu0 0.0
    %2584 = vmatprep.subr.mxu0 0.0
    %2585 = vmatpush1.msra.mxu0 0.0
    %2586 = vmatprep.subr.mxu0 0.0
    %2587 = vmatpush1.msra.mxu0 0.0
    %2588 = vmatprep.subr.mxu0 0.0
    %2589 = vmatpush1.msra.mxu0 0.0
    %2590 = vmatprep.subr.mxu0 0.0
    %2591 = vmatpush1.msra.mxu0 0.0
    %2592 = vmatprep.subr.mxu0 0.0
    %2593 = vmatpush1.msra.mxu0 0.0
    %2594 = vmatprep.subr.mxu0 0.0
    %2595 = vmatpush1.msra.mxu0 0.0
    %2596 = vmatprep.subr.mxu0 0.0
    %2597 = vmatpush1.msra.mxu0 0.0
    %2598 = vmatprep.subr.mxu0 0.0
    %2599 = vmatpush1.msra.mxu0 0.0
    %2600 = vmatprep.mubr.f32.mxu0 0.0
    %2601 = vmatmul.mubr.f32.gmra.mrb[0].mxu0 %v2534
    %v2602 = vpop.f32.mrb[0].mxu0
    %v2603 = vadd.f32 0.0, %v2602
    %v2604 = vpop.f32.mrb[0].mxu0
    %2605 = vdwg.mxu0
    %v2607 = vrot.slane %v2603, 4
    %v2609 = vadd.f32 %v2386, %v2607
    %v2610 = vxor.u32 %v2609, 2147483648
    %v2611 = vmul.f32 %v2610, 1.442695
    %v2612 = vpow.pop %v2611
    %v2613 = vadd.f32 %v2612, 1.0
    %v2614 = vrcp.pop %v2613
    %v2615 = vmul.f32 1.0, %v2614
    %v2616 = vtanh.pop %v2609
    %v2618 = vrot.slane %v2523, 6
    %v2620 = vmul.f32 %v2615, %v2618
    %2622 = vrot.lane.b32.xlu0 %v2616, 96
    %v2623 = vpop.permute.xlu0 %2622
    %v2625 = vmul.f32 %v2615, %v2623
    %2627 = vrot.lane.b32.xlu0 %v2625, 16
    %v2628 = vpop.permute.xlu0 %2627
    %v2630 = vadd.f32 %v2620, %v2628
    %v2631 = vtanh.pop %v2630
    %2633 = vrot.lane.b32.xlu0 %v2631, 32
    %v2634 = vpop.permute.xlu0 %2633
    %v2636 = vmul.f32 %v2615, %v2634
    %v2638 = vrot.slane %v2636, 4
    %2639 = vrot.lane.b32.xlu0 %v2638, 80
    %v2640 = vpop.permute.xlu0 %2639
    %v2641 = vsel %vm198, %v2640, 0
    %2643 = vmatprep.subr.mxu0 0.0
    %2644 = vmatpush1.msra.mxu0 %v2296
    %2645 = vmatprep.subr.mxu0 0.0
    %2646 = vmatpush1.msra.mxu0 %v2297
    %2647 = vmatprep.subr.mxu0 0.0
    %2648 = vmatpush1.msra.mxu0 0.0
    %2649 = vmatprep.subr.mxu0 0.0
    %2650 = vmatpush1.msra.mxu0 0.0
    %2651 = vmatprep.subr.mxu0 0.0
    %2652 = vmatpush1.msra.mxu0 0.0
    %2653 = vmatprep.subr.mxu0 0.0
    %2654 = vmatpush1.msra.mxu0 0.0
    %2655 = vmatprep.subr.mxu0 0.0
    %2656 = vmatpush1.msra.mxu0 0.0
    %2657 = vmatprep.subr.mxu0 0.0
    %2658 = vmatpush1.msra.mxu0 0.0
    %2659 = vmatprep.subr.mxu0 0.0
    %2660 = vmatpush1.msra.mxu0 0.0
    %2661 = vmatprep.subr.mxu0 0.0
    %2662 = vmatpush1.msra.mxu0 0.0
    %2663 = vmatprep.subr.mxu0 0.0
    %2664 = vmatpush1.msra.mxu0 0.0
    %2665 = vmatprep.subr.mxu0 0.0
    %2666 = vmatpush1.msra.mxu0 0.0
    %2667 = vmatprep.subr.mxu0 0.0
    %2668 = vmatpush1.msra.mxu0 0.0
    %2669 = vmatprep.subr.mxu0 0.0
    %2670 = vmatpush1.msra.mxu0 0.0
    %2671 = vmatprep.subr.mxu0 0.0
    %2672 = vmatpush1.msra.mxu0 0.0
    %2673 = vmatprep.subr.mxu0 0.0
    %2674 = vmatpush1.msra.mxu0 0.0
    %2675 = vmatprep.subr.mxu0 0.0
    %2676 = vmatpush1.msra.mxu0 0.0
    %2677 = vmatprep.subr.mxu0 0.0
    %2678 = vmatpush1.msra.mxu0 0.0
    %2679 = vmatprep.subr.mxu0 0.0
    %2680 = vmatpush1.msra.mxu0 0.0
    %2681 = vmatprep.subr.mxu0 0.0
    %2682 = vmatpush1.msra.mxu0 0.0
    %2683 = vmatprep.subr.mxu0 0.0
    %2684 = vmatpush1.msra.mxu0 0.0
    %2685 = vmatprep.subr.mxu0 0.0
    %2686 = vmatpush1.msra.mxu0 0.0
    %2687 = vmatprep.subr.mxu0 0.0
    %2688 = vmatpush1.msra.mxu0 0.0
    %2689 = vmatprep.subr.mxu0 0.0
    %2690 = vmatpush1.msra.mxu0 0.0
    %2691 = vmatprep.subr.mxu0 0.0
    %2692 = vmatpush1.msra.mxu0 0.0
    %2693 = vmatprep.subr.mxu0 0.0
    %2694 = vmatpush1.msra.mxu0 0.0
    %2695 = vmatprep.subr.mxu0 0.0
    %2696 = vmatpush1.msra.mxu0 0.0
    %2697 = vmatprep.subr.mxu0 0.0
    %2698 = vmatpush1.msra.mxu0 0.0
    %2699 = vmatprep.subr.mxu0 0.0
    %2700 = vmatpush1.msra.mxu0 0.0
    %2701 = vmatprep.subr.mxu0 0.0
    %2702 = vmatpush1.msra.mxu0 0.0
    %2703 = vmatprep.subr.mxu0 0.0
    %2704 = vmatpush1.msra.mxu0 0.0
    %2705 = vmatprep.subr.mxu0 0.0
    %2706 = vmatpush1.msra.mxu0 0.0
    %2707 = vmatprep.mubr.f32.mxu0 0.0
    %2708 = vmatmul.mubr.f32.gmra.mrb[0].mxu0 %v2641
    %v2709 = vpop.f32.mrb[0].mxu0
    %v2710 = vadd.f32 0.0, %v2709
    %v2711 = vpop.f32.mrb[0].mxu0
    %2712 = vdwg.mxu0
    %v2714 = vrot.slane %v2710, 2
    %v2716 = vadd.f32 %v2386, %v2714
    %v2717 = vxor.u32 %v2716, 2147483648
    %v2718 = vmul.f32 %v2717, 1.442695
    %v2719 = vpow.pop %v2718
    %v2720 = vadd.f32 %v2719, 1.0
    %v2721 = vrcp.pop %v2720
    %v2722 = vmul.f32 1.0, %v2721
    %v2723 = vtanh.pop %v2716
    %v2725 = vrot.slane %v2630, 6
    %v2727 = vmul.f32 %v2722, %v2725
    %2729 = vrot.lane.b32.xlu0 %v2723, 96
    %v2730 = vpop.permute.xlu0 %2729
    %v2732 = vmul.f32 %v2722, %v2730
    %2734 = vrot.lane.b32.xlu0 %v2732, 16
    %v2735 = vpop.permute.xlu0 %2734
    %v2737 = vadd.f32 %v2727, %v2735
    %v2738 = vtanh.pop %v2737
    %2740 = vrot.lane.b32.xlu0 %v2738, 32
    %v2741 = vpop.permute.xlu0 %2740
    %v2743 = vmul.f32 %v2722, %v2741
    %v2745 = vrot.slane %v2743, 6
    %2746 = vrot.lane.b32.xlu0 %v2745, 80
    %v2747 = vpop.permute.xlu0 %2746
    %v2748 = vsel %vm198, %v2747, 0
    %2750 = vmatprep.subr.mxu0 0.0
    %2751 = vmatpush1.msra.mxu0 %v2296
    %2752 = vmatprep.subr.mxu0 0.0
    %2753 = vmatpush1.msra.mxu0 %v2297
    %2754 = vmatprep.subr.mxu0 0.0
    %2755 = vmatpush1.msra.mxu0 0.0
    %2756 = vmatprep.subr.mxu0 0.0
    %2757 = vmatpush1.msra.mxu0 0.0
    %2758 = vmatprep.subr.mxu0 0.0
    %2759 = vmatpush1.msra.mxu0 0.0
    %2760 = vmatprep.subr.mxu0 0.0
    %2761 = vmatpush1.msra.mxu0 0.0
    %2762 = vmatprep.subr.mxu0 0.0
    %2763 = vmatpush1.msra.mxu0 0.0
    %2764 = vmatprep.subr.mxu0 0.0
    %2765 = vmatpush1.msra.mxu0 0.0
    %2766 = vmatprep.subr.mxu0 0.0
    %2767 = vmatpush1.msra.mxu0 0.0
    %2768 = vmatprep.subr.mxu0 0.0
    %2769 = vmatpush1.msra.mxu0 0.0
    %2770 = vmatprep.subr.mxu0 0.0
    %2771 = vmatpush1.msra.mxu0 0.0
    %2772 = vmatprep.subr.mxu0 0.0
    %2773 = vmatpush1.msra.mxu0 0.0
    %2774 = vmatprep.subr.mxu0 0.0
    %2775 = vmatpush1.msra.mxu0 0.0
    %2776 = vmatprep.subr.mxu0 0.0
    %2777 = vmatpush1.msra.mxu0 0.0
    %2778 = vmatprep.subr.mxu0 0.0
    %2779 = vmatpush1.msra.mxu0 0.0
    %2780 = vmatprep.subr.mxu0 0.0
    %2781 = vmatpush1.msra.mxu0 0.0
    %2782 = vmatprep.subr.mxu0 0.0
    %2783 = vmatpush1.msra.mxu0 0.0
    %2784 = vmatprep.subr.mxu0 0.0
    %2785 = vmatpush1.msra.mxu0 0.0
    %2786 = vmatprep.subr.mxu0 0.0
    %2787 = vmatpush1.msra.mxu0 0.0
    %2788 = vmatprep.subr.mxu0 0.0
    %2789 = vmatpush1.msra.mxu0 0.0
    %2790 = vmatprep.subr.mxu0 0.0
    %2791 = vmatpush1.msra.mxu0 0.0
    %2792 = vmatprep.subr.mxu0 0.0
    %2793 = vmatpush1.msra.mxu0 0.0
    %2794 = vmatprep.subr.mxu0 0.0
    %2795 = vmatpush1.msra.mxu0 0.0
    %2796 = vmatprep.subr.mxu0 0.0
    %2797 = vmatpush1.msra.mxu0 0.0
    %2798 = vmatprep.subr.mxu0 0.0
    %2799 = vmatpush1.msra.mxu0 0.0
    %2800 = vmatprep.subr.mxu0 0.0
    %2801 = vmatpush1.msra.mxu0 0.0
    %2802 = vmatprep.subr.mxu0 0.0
    %2803 = vmatpush1.msra.mxu0 0.0
    %2804 = vmatprep.subr.mxu0 0.0
    %2805 = vmatpush1.msra.mxu0 0.0
    %2806 = vmatprep.subr.mxu0 0.0
    %2807 = vmatpush1.msra.mxu0 0.0
    %2808 = vmatprep.subr.mxu0 0.0
    %2809 = vmatpush1.msra.mxu0 0.0
    %2810 = vmatprep.subr.mxu0 0.0
    %2811 = vmatpush1.msra.mxu0 0.0
    %2812 = vmatprep.subr.mxu0 0.0
    %2813 = vmatpush1.msra.mxu0 0.0
    %2814 = vmatprep.mubr.f32.mxu0 0.0
    %2815 = vmatmul.mubr.f32.gmra.mrb[0].mxu0 %v2748
    %v2816 = vpop.f32.mrb[0].mxu0
    %v2817 = vadd.f32 0.0, %v2816
    %v2818 = vpop.f32.mrb[0].mxu0
    %2819 = vdwg.mxu0
    %v2820 = vadd.f32 %v2391, %v2817
    %v2821 = vxor.u32 %v2820, 2147483648
    %v2822 = vmul.f32 %v2821, 1.442695
    %v2823 = vpow.pop %v2822
    %v2824 = vadd.f32 %v2823, 1.0
    %v2825 = vrcp.pop %v2824
    %v2826 = vmul.f32 1.0, %v2825
    %v2827 = vtanh.pop %v2820
    %v2829 = vrot.slane %v2737, 6
    %v2831 = vmul.f32 %v2826, %v2829
    %2833 = vrot.lane.b32.xlu0 %v2827, 96
    %v2834 = vpop.permute.xlu0 %2833
    %v2836 = vmul.f32 %v2826, %v2834
    %2838 = vrot.lane.b32.xlu0 %v2836, 16
    %v2839 = vpop.permute.xlu0 %2838
    %v2841 = vadd.f32 %v2831, %v2839
    %v2842 = vtanh.pop %v2841
    %2844 = vrot.lane.b32.xlu0 %v2842, 32
    %v2845 = vpop.permute.xlu0 %2844
    %v2847 = vmul.f32 %v2826, %v2845
    %2849 = vrot.lane.b32.xlu0 %v2847, 80
    %v2850 = vpop.permute.xlu0 %2849
    %v2851 = vsel %vm198, %v2850, 0
    %2853 = vmatprep.subr.mxu0 0.0
    %2854 = vmatpush1.msra.mxu0 %v2296
    %2855 = vmatprep.subr.mxu0 0.0
    %2856 = vmatpush1.msra.mxu0 %v2297
    %2857 = vmatprep.subr.mxu0 0.0
    %2858 = vmatpush1.msra.mxu0 0.0
    %2859 = vmatprep.subr.mxu0 0.0
    %2860 = vmatpush1.msra.mxu0 0.0
    %2861 = vmatprep.subr.mxu0 0.0
    %2862 = vmatpush1.msra.mxu0 0.0
    %2863 = vmatprep.subr.mxu0 0.0
    %2864 = vmatpush1.msra.mxu0 0.0
    %2865 = vmatprep.subr.mxu0 0.0
    %2866 = vmatpush1.msra.mxu0 0.0
    %2867 = vmatprep.subr.mxu0 0.0
    %2868 = vmatpush1.msra.mxu0 0.0
    %2869 = vmatprep.subr.mxu0 0.0
    %2870 = vmatpush1.msra.mxu0 0.0
    %2871 = vmatprep.subr.mxu0 0.0
    %2872 = vmatpush1.msra.mxu0 0.0
    %2873 = vmatprep.subr.mxu0 0.0
    %2874 = vmatpush1.msra.mxu0 0.0
    %2875 = vmatprep.subr.mxu0 0.0
    %2876 = vmatpush1.msra.mxu0 0.0
    %2877 = vmatprep.subr.mxu0 0.0
    %2878 = vmatpush1.msra.mxu0 0.0
    %2879 = vmatprep.subr.mxu0 0.0
    %2880 = vmatpush1.msra.mxu0 0.0
    %2881 = vmatprep.subr.mxu0 0.0
    %2882 = vmatpush1.msra.mxu0 0.0
    %2883 = vmatprep.subr.mxu0 0.0
    %2884 = vmatpush1.msra.mxu0 0.0
    %2885 = vmatprep.subr.mxu0 0.0
    %2886 = vmatpush1.msra.mxu0 0.0
    %2887 = vmatprep.subr.mxu0 0.0
    %2888 = vmatpush1.msra.mxu0 0.0
    %2889 = vmatprep.subr.mxu0 0.0
    %2890 = vmatpush1.msra.mxu0 0.0
    %2891 = vmatprep.subr.mxu0 0.0
    %2892 = vmatpush1.msra.mxu0 0.0
    %2893 = vmatprep.subr.mxu0 0.0
    %2894 = vmatpush1.msra.mxu0 0.0
    %2895 = vmatprep.subr.mxu0 0.0
    %2896 = vmatpush1.msra.mxu0 0.0
    %2897 = vmatprep.subr.mxu0 0.0
    %2898 = vmatpush1.msra.mxu0 0.0
    %2899 = vmatprep.subr.mxu0 0.0
    %2900 = vmatpush1.msra.mxu0 0.0
    %2901 = vmatprep.subr.mxu0 0.0
    %2902 = vmatpush1.msra.mxu0 0.0
    %2903 = vmatprep.subr.mxu0 0.0
    %2904 = vmatpush1.msra.mxu0 0.0
    %2905 = vmatprep.subr.mxu0 0.0
    %2906 = vmatpush1.msra.mxu0 0.0
    %2907 = vmatprep.subr.mxu0 0.0
    %2908 = vmatpush1.msra.mxu0 0.0
    %2909 = vmatprep.subr.mxu0 0.0
    %2910 = vmatpush1.msra.mxu0 0.0
    %2911 = vmatprep.subr.mxu0 0.0
    %2912 = vmatpush1.msra.mxu0 0.0
    %2913 = vmatprep.subr.mxu0 0.0
    %2914 = vmatpush1.msra.mxu0 0.0
    %2915 = vmatprep.subr.mxu0 0.0
    %2916 = vmatpush1.msra.mxu0 0.0
    %2917 = vmatprep.mubr.f32.mxu0 0.0
    %2918 = vmatmul.mubr.f32.gmra.mrb[0].mxu0 %v2851
    %v2919 = vpop.f32.mrb[0].mxu0
    %v2920 = vadd.f32 0.0, %v2919
    %v2921 = vpop.f32.mrb[0].mxu0
    %2922 = vdwg.mxu0
    %v2924 = vrot.slane %v2920, 6
    %v2926 = vadd.f32 %v2391, %v2924
    %v2927 = vxor.u32 %v2926, 2147483648
    %v2928 = vmul.f32 %v2927, 1.442695
    %v2929 = vpow.pop %v2928
    %v2930 = vadd.f32 %v2929, 1.0
    %v2931 = vrcp.pop %v2930
    %v2932 = vmul.f32 1.0, %v2931
    %v2933 = vtanh.pop %v2926
    %v2935 = vrot.slane %v2841, 6
    %v2937 = vmul.f32 %v2932, %v2935
    %2939 = vrot.lane.b32.xlu0 %v2933, 96
    %v2940 = vpop.permute.xlu0 %2939
    %v2942 = vmul.f32 %v2932, %v2940
    %2944 = vrot.lane.b32.xlu0 %v2942, 16
    %v2945 = vpop.permute.xlu0 %2944
    %v2947 = vadd.f32 %v2937, %v2945
    %v2948 = vtanh.pop %v2947
    %2950 = vrot.lane.b32.xlu0 %v2948, 32
    %v2951 = vpop.permute.xlu0 %2950
    %v2953 = vmul.f32 %v2932, %v2951
    %v2955 = vrot.slane %v2953, 2
    %2956 = vrot.lane.b32.xlu0 %v2955, 80
    %v2957 = vpop.permute.xlu0 %2956
    %v2958 = vsel %vm198, %v2957, 0
    %2960 = vmatprep.subr.mxu0 0.0
    %2961 = vmatpush1.msra.mxu0 %v2296
    %2962 = vmatprep.subr.mxu0 0.0
    %2963 = vmatpush1.msra.mxu0 %v2297
    %2964 = vmatprep.subr.mxu0 0.0
    %2965 = vmatpush1.msra.mxu0 0.0
    %2966 = vmatprep.subr.mxu0 0.0
    %2967 = vmatpush1.msra.mxu0 0.0
    %2968 = vmatprep.subr.mxu0 0.0
    %2969 = vmatpush1.msra.mxu0 0.0
    %2970 = vmatprep.subr.mxu0 0.0
    %2971 = vmatpush1.msra.mxu0 0.0
    %2972 = vmatprep.subr.mxu0 0.0
    %2973 = vmatpush1.msra.mxu0 0.0
    %2974 = vmatprep.subr.mxu0 0.0
    %2975 = vmatpush1.msra.mxu0 0.0
    %2976 = vmatprep.subr.mxu0 0.0
    %2977 = vmatpush1.msra.mxu0 0.0
    %2978 = vmatprep.subr.mxu0 0.0
    %2979 = vmatpush1.msra.mxu0 0.0
    %2980 = vmatprep.subr.mxu0 0.0
    %2981 = vmatpush1.msra.mxu0 0.0
    %2982 = vmatprep.subr.mxu0 0.0
    %2983 = vmatpush1.msra.mxu0 0.0
    %2984 = vmatprep.subr.mxu0 0.0
    %2985 = vmatpush1.msra.mxu0 0.0
    %2986 = vmatprep.subr.mxu0 0.0
    %2987 = vmatpush1.msra.mxu0 0.0
    %2988 = vmatprep.subr.mxu0 0.0
    %2989 = vmatpush1.msra.mxu0 0.0
    %2990 = vmatprep.subr.mxu0 0.0
    %2991 = vmatpush1.msra.mxu0 0.0
    %2992 = vmatprep.subr.mxu0 0.0
    %2993 = vmatpush1.msra.mxu0 0.0
    %2994 = vmatprep.subr.mxu0 0.0
    %2995 = vmatpush1.msra.mxu0 0.0
    %2996 = vmatprep.subr.mxu0 0.0
    %2997 = vmatpush1.msra.mxu0 0.0
    %2998 = vmatprep.subr.mxu0 0.0
    %2999 = vmatpush1.msra.mxu0 0.0
    %3000 = vmatprep.subr.mxu0 0.0
    %3001 = vmatpush1.msra.mxu0 0.0
    %3002 = vmatprep.subr.mxu0 0.0
    %3003 = vmatpush1.msra.mxu0 0.0
    %3004 = vmatprep.subr.mxu0 0.0
    %3005 = vmatpush1.msra.mxu0 0.0
    %3006 = vmatprep.subr.mxu0 0.0
    %3007 = vmatpush1.msra.mxu0 0.0
    %3008 = vmatprep.subr.mxu0 0.0
    %3009 = vmatpush1.msra.mxu0 0.0
    %3010 = vmatprep.subr.mxu0 0.0
    %3011 = vmatpush1.msra.mxu0 0.0
    %3012 = vmatprep.subr.mxu0 0.0
    %3013 = vmatpush1.msra.mxu0 0.0
    %3014 = vmatprep.subr.mxu0 0.0
    %3015 = vmatpush1.msra.mxu0 0.0
    %3016 = vmatprep.subr.mxu0 0.0
    %3017 = vmatpush1.msra.mxu0 0.0
    %3018 = vmatprep.subr.mxu0 0.0
    %3019 = vmatpush1.msra.mxu0 0.0
    %3020 = vmatprep.subr.mxu0 0.0
    %3021 = vmatpush1.msra.mxu0 0.0
    %3022 = vmatprep.subr.mxu0 0.0
    %3023 = vmatpush1.msra.mxu0 0.0
    %3024 = vmatprep.mubr.f32.mxu0 0.0
    %3025 = vmatmul.mubr.f32.gmra.mrb[0].mxu0 %v2958
    %v3026 = vpop.f32.mrb[0].mxu0
    %v3027 = vadd.f32 0.0, %v3026
    %v3028 = vpop.f32.mrb[0].mxu0
    %3029 = vdwg.mxu0
    %v3031 = vrot.slane %v3027, 4
    %v3033 = vadd.f32 %v2391, %v3031
    %v3034 = vxor.u32 %v3033, 2147483648
    %v3035 = vmul.f32 %v3034, 1.442695
    %v3036 = vpow.pop %v3035
    %v3037 = vadd.f32 %v3036, 1.0
    %v3038 = vrcp.pop %v3037
    %v3039 = vmul.f32 1.0, %v3038
    %v3040 = vtanh.pop %v3033
    %v3042 = vrot.slane %v2947, 6
    %v3044 = vmul.f32 %v3039, %v3042
    %3046 = vrot.lane.b32.xlu0 %v3040, 96
    %v3047 = vpop.permute.xlu0 %3046
    %v3049 = vmul.f32 %v3039, %v3047
    %3051 = vrot.lane.b32.xlu0 %v3049, 16
    %v3052 = vpop.permute.xlu0 %3051
    %v3054 = vadd.f32 %v3044, %v3052
    %v3055 = vtanh.pop %v3054
    %3057 = vrot.lane.b32.xlu0 %v3055, 32
    %v3058 = vpop.permute.xlu0 %3057
    %v3060 = vmul.f32 %v3039, %v3058
    %v3062 = vrot.slane %v3060, 4
    %3063 = vrot.lane.b32.xlu0 %v3062, 80
    %v3064 = vpop.permute.xlu0 %3063
    %v3065 = vsel %vm198, %v3064, 0
    %3067 = vmatprep.subr.mxu0 0.0
    %3068 = vmatpush1.msra.mxu0 %v2296
    %3069 = vmatprep.subr.mxu0 0.0
    %3070 = vmatpush1.msra.mxu0 %v2297
    %3071 = vmatprep.subr.mxu0 0.0
    %3072 = vmatpush1.msra.mxu0 0.0
    %3073 = vmatprep.subr.mxu0 0.0
    %3074 = vmatpush1.msra.mxu0 0.0
    %3075 = vmatprep.subr.mxu0 0.0
    %3076 = vmatpush1.msra.mxu0 0.0
    %3077 = vmatprep.subr.mxu0 0.0
    %3078 = vmatpush1.msra.mxu0 0.0
    %3079 = vmatprep.subr.mxu0 0.0
    %3080 = vmatpush1.msra.mxu0 0.0
    %3081 = vmatprep.subr.mxu0 0.0
    %3082 = vmatpush1.msra.mxu0 0.0
    %3083 = vmatprep.subr.mxu0 0.0
    %3084 = vmatpush1.msra.mxu0 0.0
    %3085 = vmatprep.subr.mxu0 0.0
    %3086 = vmatpush1.msra.mxu0 0.0
    %3087 = vmatprep.subr.mxu0 0.0
    %3088 = vmatpush1.msra.mxu0 0.0
    %3089 = vmatprep.subr.mxu0 0.0
    %3090 = vmatpush1.msra.mxu0 0.0
    %3091 = vmatprep.subr.mxu0 0.0
    %3092 = vmatpush1.msra.mxu0 0.0
    %3093 = vmatprep.subr.mxu0 0.0
    %3094 = vmatpush1.msra.mxu0 0.0
    %3095 = vmatprep.subr.mxu0 0.0
    %3096 = vmatpush1.msra.mxu0 0.0
    %3097 = vmatprep.subr.mxu0 0.0
    %3098 = vmatpush1.msra.mxu0 0.0
    %3099 = vmatprep.subr.mxu0 0.0
    %3100 = vmatpush1.msra.mxu0 0.0
    %3101 = vmatprep.subr.mxu0 0.0
    %3102 = vmatpush1.msra.mxu0 0.0
    %3103 = vmatprep.subr.mxu0 0.0
    %3104 = vmatpush1.msra.mxu0 0.0
    %3105 = vmatprep.subr.mxu0 0.0
    %3106 = vmatpush1.msra.mxu0 0.0
    %3107 = vmatprep.subr.mxu0 0.0
    %3108 = vmatpush1.msra.mxu0 0.0
    %3109 = vmatprep.subr.mxu0 0.0
    %3110 = vmatpush1.msra.mxu0 0.0
    %3111 = vmatprep.subr.mxu0 0.0
    %3112 = vmatpush1.msra.mxu0 0.0
    %3113 = vmatprep.subr.mxu0 0.0
    %3114 = vmatpush1.msra.mxu0 0.0
    %3115 = vmatprep.subr.mxu0 0.0
    %3116 = vmatpush1.msra.mxu0 0.0
    %3117 = vmatprep.subr.mxu0 0.0
    %3118 = vmatpush1.msra.mxu0 0.0
    %3119 = vmatprep.subr.mxu0 0.0
    %3120 = vmatpush1.msra.mxu0 0.0
    %3121 = vmatprep.subr.mxu0 0.0
    %3122 = vmatpush1.msra.mxu0 0.0
    %3123 = vmatprep.subr.mxu0 0.0
    %3124 = vmatpush1.msra.mxu0 0.0
    %3125 = vmatprep.subr.mxu0 0.0
    %3126 = vmatpush1.msra.mxu0 0.0
    %3127 = vmatprep.subr.mxu0 0.0
    %3128 = vmatpush1.msra.mxu0 0.0
    %3129 = vmatprep.subr.mxu0 0.0
    %3130 = vmatpush1.msra.mxu0 0.0
    %3131 = vmatprep.mubr.f32.mxu0 0.0
    %3132 = vmatmul.mubr.f32.gmra.mrb[0].mxu0 %v3065
    %v3133 = vpop.f32.mrb[0].mxu0
    %v3134 = vadd.f32 0.0, %v3133
    %v3135 = vpop.f32.mrb[0].mxu0
    %3136 = vdwg.mxu0
    %v3138 = vrot.slane %v3134, 2
    %v3140 = vadd.f32 %v2391, %v3138
    %v3141 = vxor.u32 %v3140, 2147483648
    %v3142 = vmul.f32 %v3141, 1.442695
    %v3143 = vpow.pop %v3142
    %v3144 = vadd.f32 %v3143, 1.0
    %v3145 = vrcp.pop %v3144
    %v3146 = vmul.f32 1.0, %v3145
    %v3147 = vtanh.pop %v3140
    %v3149 = vrot.slane %v3054, 6
    %v3151 = vmul.f32 %v3146, %v3149
    %3153 = vrot.lane.b32.xlu0 %v3147, 96
    %v3154 = vpop.permute.xlu0 %3153
    %v3156 = vmul.f32 %v3146, %v3154
    %3158 = vrot.lane.b32.xlu0 %v3156, 16
    %v3159 = vpop.permute.xlu0 %3158
    %v3161 = vadd.f32 %v3151, %v3159
    %v3162 = vtanh.pop %v3161
    %3164 = vrot.lane.b32.xlu0 %v3162, 32
    %v3165 = vpop.permute.xlu0 %3164
    %v3167 = vmul.f32 %v3146, %v3165
    %v3169 = vrot.slane %v3167, 6
    %3170 = vrot.lane.b32.xlu0 %v3169, 80
    %v3171 = vpop.permute.xlu0 %3170
    %v3172 = vsel %vm198, %v3171, 0
    %3174 = vmatprep.subr.mxu0 0.0
    %3175 = vmatpush1.msra.mxu0 %v2296
    %3176 = vmatprep.subr.mxu0 0.0
    %3177 = vmatpush1.msra.mxu0 %v2297
    %3178 = vmatprep.subr.mxu0 0.0
    %3179 = vmatpush1.msra.mxu0 0.0
    %3180 = vmatprep.subr.mxu0 0.0
    %3181 = vmatpush1.msra.mxu0 0.0
    %3182 = vmatprep.subr.mxu0 0.0
    %3183 = vmatpush1.msra.mxu0 0.0
    %3184 = vmatprep.subr.mxu0 0.0
    %3185 = vmatpush1.msra.mxu0 0.0
    %3186 = vmatprep.subr.mxu0 0.0
    %3187 = vmatpush1.msra.mxu0 0.0
    %3188 = vmatprep.subr.mxu0 0.0
    %3189 = vmatpush1.msra.mxu0 0.0
    %3190 = vmatprep.subr.mxu0 0.0
    %3191 = vmatpush1.msra.mxu0 0.0
    %3192 = vmatprep.subr.mxu0 0.0
    %3193 = vmatpush1.msra.mxu0 0.0
    %3194 = vmatprep.subr.mxu0 0.0
    %3195 = vmatpush1.msra.mxu0 0.0
    %3196 = vmatprep.subr.mxu0 0.0
    %3197 = vmatpush1.msra.mxu0 0.0
    %3198 = vmatprep.subr.mxu0 0.0
    %3199 = vmatpush1.msra.mxu0 0.0
    %3200 = vmatprep.subr.mxu0 0.0
    %3201 = vmatpush1.msra.mxu0 0.0
    %3202 = vmatprep.subr.mxu0 0.0
    %3203 = vmatpush1.msra.mxu0 0.0
    %3204 = vmatprep.subr.mxu0 0.0
    %3205 = vmatpush1.msra.mxu0 0.0
    %3206 = vmatprep.subr.mxu0 0.0
    %3207 = vmatpush1.msra.mxu0 0.0
    %3208 = vmatprep.subr.mxu0 0.0
    %3209 = vmatpush1.msra.mxu0 0.0
    %3210 = vmatprep.subr.mxu0 0.0
    %3211 = vmatpush1.msra.mxu0 0.0
    %3212 = vmatprep.subr.mxu0 0.0
    %3213 = vmatpush1.msra.mxu0 0.0
    %3214 = vmatprep.subr.mxu0 0.0
    %3215 = vmatpush1.msra.mxu0 0.0
    %3216 = vmatprep.subr.mxu0 0.0
    %3217 = vmatpush1.msra.mxu0 0.0
    %3218 = vmatprep.subr.mxu0 0.0
    %3219 = vmatpush1.msra.mxu0 0.0
    %3220 = vmatprep.subr.mxu0 0.0
    %3221 = vmatpush1.msra.mxu0 0.0
    %3222 = vmatprep.subr.mxu0 0.0
    %3223 = vmatpush1.msra.mxu0 0.0
    %3224 = vmatprep.subr.mxu0 0.0
    %3225 = vmatpush1.msra.mxu0 0.0
    %3226 = vmatprep.subr.mxu0 0.0
    %3227 = vmatpush1.msra.mxu0 0.0
    %3228 = vmatprep.subr.mxu0 0.0
    %3229 = vmatpush1.msra.mxu0 0.0
    %3230 = vmatprep.subr.mxu0 0.0
    %3231 = vmatpush1.msra.mxu0 0.0
    %3232 = vmatprep.subr.mxu0 0.0
    %3233 = vmatpush1.msra.mxu0 0.0
    %3234 = vmatprep.subr.mxu0 0.0
    %3235 = vmatpush1.msra.mxu0 0.0
    %3236 = vmatprep.subr.mxu0 0.0
    %3237 = vmatpush1.msra.mxu0 0.0
    %3238 = vmatprep.mubr.f32.mxu0 0.0
    %3239 = vmatmul.mubr.f32.gmra.mrb[0].mxu0 %v3172
    %v3240 = vpop.f32.mrb[0].mxu0
    %v3241 = vadd.f32 0.0, %v3240
    %v3242 = vpop.f32.mrb[0].mxu0
    %3243 = vdwg.mxu0
    %v3244 = vadd.f32 %v2396, %v3241
    %v3245 = vxor.u32 %v3244, 2147483648
    %v3246 = vmul.f32 %v3245, 1.442695
    %v3247 = vpow.pop %v3246
    %v3248 = vadd.f32 %v3247, 1.0
    %v3249 = vrcp.pop %v3248
    %v3250 = vmul.f32 1.0, %v3249
    %v3251 = vtanh.pop %v3244
    %v3253 = vrot.slane %v3161, 6
    %v3255 = vmul.f32 %v3250, %v3253
    %3257 = vrot.lane.b32.xlu0 %v3251, 96
    %v3258 = vpop.permute.xlu0 %3257
    %v3260 = vmul.f32 %v3250, %v3258
    %3262 = vrot.lane.b32.xlu0 %v3260, 16
    %v3263 = vpop.permute.xlu0 %3262
    %v3265 = vadd.f32 %v3255, %v3263
    %v3266 = vtanh.pop %v3265
    %3268 = vrot.lane.b32.xlu0 %v3266, 32
    %v3269 = vpop.permute.xlu0 %3268
    %v3271 = vmul.f32 %v3250, %v3269
    %3273 = vrot.lane.b32.xlu0 %v3271, 80
    %v3274 = vpop.permute.xlu0 %3273
    %v3275 = vsel %vm198, %v3274, 0
    %3277 = vmatprep.subr.mxu0 0.0
    %3278 = vmatpush1.msra.mxu0 %v2296
    %3279 = vmatprep.subr.mxu0 0.0
    %3280 = vmatpush1.msra.mxu0 %v2297
    %3281 = vmatprep.subr.mxu0 0.0
    %3282 = vmatpush1.msra.mxu0 0.0
    %3283 = vmatprep.subr.mxu0 0.0
    %3284 = vmatpush1.msra.mxu0 0.0
    %3285 = vmatprep.subr.mxu0 0.0
    %3286 = vmatpush1.msra.mxu0 0.0
    %3287 = vmatprep.subr.mxu0 0.0
    %3288 = vmatpush1.msra.mxu0 0.0
    %3289 = vmatprep.subr.mxu0 0.0
    %3290 = vmatpush1.msra.mxu0 0.0
    %3291 = vmatprep.subr.mxu0 0.0
    %3292 = vmatpush1.msra.mxu0 0.0
    %3293 = vmatprep.subr.mxu0 0.0
    %3294 = vmatpush1.msra.mxu0 0.0
    %3295 = vmatprep.subr.mxu0 0.0
    %3296 = vmatpush1.msra.mxu0 0.0
    %3297 = vmatprep.subr.mxu0 0.0
    %3298 = vmatpush1.msra.mxu0 0.0
    %3299 = vmatprep.subr.mxu0 0.0
    %3300 = vmatpush1.msra.mxu0 0.0
    %3301 = vmatprep.subr.mxu0 0.0
    %3302 = vmatpush1.msra.mxu0 0.0
    %3303 = vmatprep.subr.mxu0 0.0
    %3304 = vmatpush1.msra.mxu0 0.0
    %3305 = vmatprep.subr.mxu0 0.0
    %3306 = vmatpush1.msra.mxu0 0.0
    %3307 = vmatprep.subr.mxu0 0.0
    %3308 = vmatpush1.msra.mxu0 0.0
    %3309 = vmatprep.subr.mxu0 0.0
    %3310 = vmatpush1.msra.mxu0 0.0
    %3311 = vmatprep.subr.mxu0 0.0
    %3312 = vmatpush1.msra.mxu0 0.0
    %3313 = vmatprep.subr.mxu0 0.0
    %3314 = vmatpush1.msra.mxu0 0.0
    %3315 = vmatprep.subr.mxu0 0.0
    %3316 = vmatpush1.msra.mxu0 0.0
    %3317 = vmatprep.subr.mxu0 0.0
    %3318 = vmatpush1.msra.mxu0 0.0
    %3319 = vmatprep.subr.mxu0 0.0
    %3320 = vmatpush1.msra.mxu0 0.0
    %3321 = vmatprep.subr.mxu0 0.0
    %3322 = vmatpush1.msra.mxu0 0.0
    %3323 = vmatprep.subr.mxu0 0.0
    %3324 = vmatpush1.msra.mxu0 0.0
    %3325 = vmatprep.subr.mxu0 0.0
    %3326 = vmatpush1.msra.mxu0 0.0
    %3327 = vmatprep.subr.mxu0 0.0
    %3328 = vmatpush1.msra.mxu0 0.0
    %3329 = vmatprep.subr.mxu0 0.0
    %3330 = vmatpush1.msra.mxu0 0.0
    %3331 = vmatprep.subr.mxu0 0.0
    %3332 = vmatpush1.msra.mxu0 0.0
    %3333 = vmatprep.subr.mxu0 0.0
    %3334 = vmatpush1.msra.mxu0 0.0
    %3335 = vmatprep.subr.mxu0 0.0
    %3336 = vmatpush1.msra.mxu0 0.0
    %3337 = vmatprep.subr.mxu0 0.0
    %3338 = vmatpush1.msra.mxu0 0.0
    %3339 = vmatprep.subr.mxu0 0.0
    %3340 = vmatpush1.msra.mxu0 0.0
    %3341 = vmatprep.mubr.f32.mxu0 0.0
    %3342 = vmatmul.mubr.f32.gmra.mrb[0].mxu0 %v3275
    %v3343 = vpop.f32.mrb[0].mxu0
    %v3344 = vadd.f32 0.0, %v3343
    %v3345 = vpop.f32.mrb[0].mxu0
    %3346 = vdwg.mxu0
    %v3348 = vrot.slane %v3344, 6
    %v3350 = vadd.f32 %v2396, %v3348
    %v3351 = vxor.u32 %v3350, 2147483648
    %v3352 = vmul.f32 %v3351, 1.442695
    %v3353 = vpow.pop %v3352
    %v3354 = vadd.f32 %v3353, 1.0
    %v3355 = vrcp.pop %v3354
    %v3356 = vmul.f32 1.0, %v3355
    %v3357 = vtanh.pop %v3350
    %v3359 = vrot.slane %v3265, 6
    %v3361 = vmul.f32 %v3356, %v3359
    %3363 = vrot.lane.b32.xlu0 %v3357, 96
    %v3364 = vpop.permute.xlu0 %3363
    %v3366 = vmul.f32 %v3356, %v3364
    %3368 = vrot.lane.b32.xlu0 %v3366, 16
    %v3369 = vpop.permute.xlu0 %3368
    %v3371 = vadd.f32 %v3361, %v3369
    %v3372 = vtanh.pop %v3371
    %3374 = vrot.lane.b32.xlu0 %v3372, 32
    %v3375 = vpop.permute.xlu0 %3374
    %v3377 = vmul.f32 %v3356, %v3375
    %v3379 = vrot.slane %v3377, 2
    %3380 = vrot.lane.b32.xlu0 %v3379, 80
    %v3381 = vpop.permute.xlu0 %3380
    %v3382 = vsel %vm198, %v3381, 0
    %3384 = vmatprep.subr.mxu0 0.0
    %3385 = vmatpush1.msra.mxu0 %v2296
    %3386 = vmatprep.subr.mxu0 0.0
    %3387 = vmatpush1.msra.mxu0 %v2297
    %3388 = vmatprep.subr.mxu0 0.0
    %3389 = vmatpush1.msra.mxu0 0.0
    %3390 = vmatprep.subr.mxu0 0.0
    %3391 = vmatpush1.msra.mxu0 0.0
    %3392 = vmatprep.subr.mxu0 0.0
    %3393 = vmatpush1.msra.mxu0 0.0
    %3394 = vmatprep.subr.mxu0 0.0
    %3395 = vmatpush1.msra.mxu0 0.0
    %3396 = vmatprep.subr.mxu0 0.0
    %3397 = vmatpush1.msra.mxu0 0.0
    %3398 = vmatprep.subr.mxu0 0.0
    %3399 = vmatpush1.msra.mxu0 0.0
    %3400 = vmatprep.subr.mxu0 0.0
    %3401 = vmatpush1.msra.mxu0 0.0
    %3402 = vmatprep.subr.mxu0 0.0
    %3403 = vmatpush1.msra.mxu0 0.0
    %3404 = vmatprep.subr.mxu0 0.0
    %3405 = vmatpush1.msra.mxu0 0.0
    %3406 = vmatprep.subr.mxu0 0.0
    %3407 = vmatpush1.msra.mxu0 0.0
    %3408 = vmatprep.subr.mxu0 0.0
    %3409 = vmatpush1.msra.mxu0 0.0
    %3410 = vmatprep.subr.mxu0 0.0
    %3411 = vmatpush1.msra.mxu0 0.0
    %3412 = vmatprep.subr.mxu0 0.0
    %3413 = vmatpush1.msra.mxu0 0.0
    %3414 = vmatprep.subr.mxu0 0.0
    %3415 = vmatpush1.msra.mxu0 0.0
    %3416 = vmatprep.subr.mxu0 0.0
    %3417 = vmatpush1.msra.mxu0 0.0
    %3418 = vmatprep.subr.mxu0 0.0
    %3419 = vmatpush1.msra.mxu0 0.0
    %3420 = vmatprep.subr.mxu0 0.0
    %3421 = vmatpush1.msra.mxu0 0.0
    %3422 = vmatprep.subr.mxu0 0.0
    %3423 = vmatpush1.msra.mxu0 0.0
    %3424 = vmatprep.subr.mxu0 0.0
    %3425 = vmatpush1.msra.mxu0 0.0
    %3426 = vmatprep.subr.mxu0 0.0
    %3427 = vmatpush1.msra.mxu0 0.0
    %3428 = vmatprep.subr.mxu0 0.0
    %3429 = vmatpush1.msra.mxu0 0.0
    %3430 = vmatprep.subr.mxu0 0.0
    %3431 = vmatpush1.msra.mxu0 0.0
    %3432 = vmatprep.subr.mxu0 0.0
    %3433 = vmatpush1.msra.mxu0 0.0
    %3434 = vmatprep.subr.mxu0 0.0
    %3435 = vmatpush1.msra.mxu0 0.0
    %3436 = vmatprep.subr.mxu0 0.0
    %3437 = vmatpush1.msra.mxu0 0.0
    %3438 = vmatprep.subr.mxu0 0.0
    %3439 = vmatpush1.msra.mxu0 0.0
    %3440 = vmatprep.subr.mxu0 0.0
    %3441 = vmatpush1.msra.mxu0 0.0
    %3442 = vmatprep.subr.mxu0 0.0
    %3443 = vmatpush1.msra.mxu0 0.0
    %3444 = vmatprep.subr.mxu0 0.0
    %3445 = vmatpush1.msra.mxu0 0.0
    %3446 = vmatprep.subr.mxu0 0.0
    %3447 = vmatpush1.msra.mxu0 0.0
    %3448 = vmatprep.mubr.f32.mxu0 0.0
    %3449 = vmatmul.mubr.f32.gmra.mrb[0].mxu0 %v3382
    %v3450 = vpop.f32.mrb[0].mxu0
    %v3451 = vadd.f32 0.0, %v3450
    %v3452 = vpop.f32.mrb[0].mxu0
    %3453 = vdwg.mxu0
    %v3455 = vrot.slane %v3451, 4
    %v3457 = vadd.f32 %v2396, %v3455
    %v3458 = vxor.u32 %v3457, 2147483648
    %v3459 = vmul.f32 %v3458, 1.442695
    %v3460 = vpow.pop %v3459
    %v3461 = vadd.f32 %v3460, 1.0
    %v3462 = vrcp.pop %v3461
    %v3463 = vmul.f32 1.0, %v3462
    %v3464 = vtanh.pop %v3457
    %v3466 = vrot.slane %v3371, 6
    %v3468 = vmul.f32 %v3463, %v3466
    %3470 = vrot.lane.b32.xlu0 %v3464, 96
    %v3471 = vpop.permute.xlu0 %3470
    %v3473 = vmul.f32 %v3463, %v3471
    %3475 = vrot.lane.b32.xlu0 %v3473, 16
    %v3476 = vpop.permute.xlu0 %3475
    %v3478 = vadd.f32 %v3468, %v3476
    %v3479 = vtanh.pop %v3478
    %3481 = vrot.lane.b32.xlu0 %v3479, 32
    %v3482 = vpop.permute.xlu0 %3481
    %v3484 = vmul.f32 %v3463, %v3482
    %v3486 = vrot.slane %v3484, 4
    %3487 = vrot.lane.b32.xlu0 %v3486, 80
    %v3488 = vpop.permute.xlu0 %3487
    %v3489 = vsel %vm198, %v3488, 0
    %3491 = vmatprep.subr.mxu0 0.0
    %3492 = vmatpush1.msra.mxu0 %v2296
    %3493 = vmatprep.subr.mxu0 0.0
    %3494 = vmatpush1.msra.mxu0 %v2297
    %3495 = vmatprep.subr.mxu0 0.0
    %3496 = vmatpush1.msra.mxu0 0.0
    %3497 = vmatprep.subr.mxu0 0.0
    %3498 = vmatpush1.msra.mxu0 0.0
    %3499 = vmatprep.subr.mxu0 0.0
    %3500 = vmatpush1.msra.mxu0 0.0
    %3501 = vmatprep.subr.mxu0 0.0
    %3502 = vmatpush1.msra.mxu0 0.0
    %3503 = vmatprep.subr.mxu0 0.0
    %3504 = vmatpush1.msra.mxu0 0.0
    %3505 = vmatprep.subr.mxu0 0.0
    %3506 = vmatpush1.msra.mxu0 0.0
    %3507 = vmatprep.subr.mxu0 0.0
    %3508 = vmatpush1.msra.mxu0 0.0
    %3509 = vmatprep.subr.mxu0 0.0
    %3510 = vmatpush1.msra.mxu0 0.0
    %3511 = vmatprep.subr.mxu0 0.0
    %3512 = vmatpush1.msra.mxu0 0.0
    %3513 = vmatprep.subr.mxu0 0.0
    %3514 = vmatpush1.msra.mxu0 0.0
    %3515 = vmatprep.subr.mxu0 0.0
    %3516 = vmatpush1.msra.mxu0 0.0
    %3517 = vmatprep.subr.mxu0 0.0
    %3518 = vmatpush1.msra.mxu0 0.0
    %3519 = vmatprep.subr.mxu0 0.0
    %3520 = vmatpush1.msra.mxu0 0.0
    %3521 = vmatprep.subr.mxu0 0.0
    %3522 = vmatpush1.msra.mxu0 0.0
    %3523 = vmatprep.subr.mxu0 0.0
    %3524 = vmatpush1.msra.mxu0 0.0
    %3525 = vmatprep.subr.mxu0 0.0
    %3526 = vmatpush1.msra.mxu0 0.0
    %3527 = vmatprep.subr.mxu0 0.0
    %3528 = vmatpush1.msra.mxu0 0.0
    %3529 = vmatprep.subr.mxu0 0.0
    %3530 = vmatpush1.msra.mxu0 0.0
    %3531 = vmatprep.subr.mxu0 0.0
    %3532 = vmatpush1.msra.mxu0 0.0
    %3533 = vmatprep.subr.mxu0 0.0
    %3534 = vmatpush1.msra.mxu0 0.0
    %3535 = vmatprep.subr.mxu0 0.0
    %3536 = vmatpush1.msra.mxu0 0.0
    %3537 = vmatprep.subr.mxu0 0.0
    %3538 = vmatpush1.msra.mxu0 0.0
    %3539 = vmatprep.subr.mxu0 0.0
    %3540 = vmatpush1.msra.mxu0 0.0
    %3541 = vmatprep.subr.mxu0 0.0
    %3542 = vmatpush1.msra.mxu0 0.0
    %3543 = vmatprep.subr.mxu0 0.0
    %3544 = vmatpush1.msra.mxu0 0.0
    %3545 = vmatprep.subr.mxu0 0.0
    %3546 = vmatpush1.msra.mxu0 0.0
    %3547 = vmatprep.subr.mxu0 0.0
    %3548 = vmatpush1.msra.mxu0 0.0
    %3549 = vmatprep.subr.mxu0 0.0
    %3550 = vmatpush1.msra.mxu0 0.0
    %3551 = vmatprep.subr.mxu0 0.0
    %3552 = vmatpush1.msra.mxu0 0.0
    %3553 = vmatprep.subr.mxu0 0.0
    %3554 = vmatpush1.msra.mxu0 0.0
    %3555 = vmatprep.mubr.f32.mxu0 0.0
    %3556 = vmatmul.mubr.f32.gmra.mrb[0].mxu0 %v3489
    %v3557 = vpop.f32.mrb[0].mxu0
    %v3558 = vadd.f32 0.0, %v3557
    %v3559 = vpop.f32.mrb[0].mxu0
    %3560 = vdwg.mxu0
    %v3562 = vrot.slane %v3558, 2
    %v3564 = vadd.f32 %v2396, %v3562
    %v3565 = vxor.u32 %v3564, 2147483648
    %v3566 = vmul.f32 %v3565, 1.442695
    %v3567 = vpow.pop %v3566
    %v3568 = vadd.f32 %v3567, 1.0
    %v3569 = vrcp.pop %v3568
    %v3570 = vmul.f32 1.0, %v3569
    %v3571 = vtanh.pop %v3564
    %v3573 = vrot.slane %v3478, 6
    %v3575 = vmul.f32 %v3570, %v3573
    %3577 = vrot.lane.b32.xlu0 %v3571, 96
    %v3578 = vpop.permute.xlu0 %3577
    %v3580 = vmul.f32 %v3570, %v3578
    %3582 = vrot.lane.b32.xlu0 %v3580, 16
    %v3583 = vpop.permute.xlu0 %3582
    %v3585 = vadd.f32 %v3575, %v3583
    %v3586 = vtanh.pop %v3585
    %3588 = vrot.lane.b32.xlu0 %v3586, 32
    %v3589 = vpop.permute.xlu0 %3588
    %v3591 = vmul.f32 %v3570, %v3589
    %v3593 = vrot.slane %v3591, 6
    %3594 = vrot.lane.b32.xlu0 %v3593, 80
    %v3595 = vpop.permute.xlu0 %3594
    %v3596 = vsel %vm198, %v3595, 0
    %3598 = vmatprep.subr.mxu0 0.0
    %3599 = vmatpush1.msra.mxu0 %v2296
    %3600 = vmatprep.subr.mxu0 0.0
    %3601 = vmatpush1.msra.mxu0 %v2297
    %3602 = vmatprep.subr.mxu0 0.0
    %3603 = vmatpush1.msra.mxu0 0.0
    %3604 = vmatprep.subr.mxu0 0.0
    %3605 = vmatpush1.msra.mxu0 0.0
    %3606 = vmatprep.subr.mxu0 0.0
    %3607 = vmatpush1.msra.mxu0 0.0
    %3608 = vmatprep.subr.mxu0 0.0
    %3609 = vmatpush1.msra.mxu0 0.0
    %3610 = vmatprep.subr.mxu0 0.0
    %3611 = vmatpush1.msra.mxu0 0.0
    %3612 = vmatprep.subr.mxu0 0.0
    %3613 = vmatpush1.msra.mxu0 0.0
    %3614 = vmatprep.subr.mxu0 0.0
    %3615 = vmatpush1.msra.mxu0 0.0
    %3616 = vmatprep.subr.mxu0 0.0
    %3617 = vmatpush1.msra.mxu0 0.0
    %3618 = vmatprep.subr.mxu0 0.0
    %3619 = vmatpush1.msra.mxu0 0.0
    %3620 = vmatprep.subr.mxu0 0.0
    %3621 = vmatpush1.msra.mxu0 0.0
    %3622 = vmatprep.subr.mxu0 0.0
    %3623 = vmatpush1.msra.mxu0 0.0
    %3624 = vmatprep.subr.mxu0 0.0
    %3625 = vmatpush1.msra.mxu0 0.0
    %3626 = vmatprep.subr.mxu0 0.0
    %3627 = vmatpush1.msra.mxu0 0.0
    %3628 = vmatprep.subr.mxu0 0.0
    %3629 = vmatpush1.msra.mxu0 0.0
    %3630 = vmatprep.subr.mxu0 0.0
    %3631 = vmatpush1.msra.mxu0 0.0
    %3632 = vmatprep.subr.mxu0 0.0
    %3633 = vmatpush1.msra.mxu0 0.0
    %3634 = vmatprep.subr.mxu0 0.0
    %3635 = vmatpush1.msra.mxu0 0.0
    %3636 = vmatprep.subr.mxu0 0.0
    %3637 = vmatpush1.msra.mxu0 0.0
    %3638 = vmatprep.subr.mxu0 0.0
    %3639 = vmatpush1.msra.mxu0 0.0
    %3640 = vmatprep.subr.mxu0 0.0
    %3641 = vmatpush1.msra.mxu0 0.0
    %3642 = vmatprep.subr.mxu0 0.0
    %3643 = vmatpush1.msra.mxu0 0.0
    %3644 = vmatprep.subr.mxu0 0.0
    %3645 = vmatpush1.msra.mxu0 0.0
    %3646 = vmatprep.subr.mxu0 0.0
    %3647 = vmatpush1.msra.mxu0 0.0
    %3648 = vmatprep.subr.mxu0 0.0
    %3649 = vmatpush1.msra.mxu0 0.0
    %3650 = vmatprep.subr.mxu0 0.0
    %3651 = vmatpush1.msra.mxu0 0.0
    %3652 = vmatprep.subr.mxu0 0.0
    %3653 = vmatpush1.msra.mxu0 0.0
    %3654 = vmatprep.subr.mxu0 0.0
    %3655 = vmatpush1.msra.mxu0 0.0
    %3656 = vmatprep.subr.mxu0 0.0
    %3657 = vmatpush1.msra.mxu0 0.0
    %3658 = vmatprep.subr.mxu0 0.0
    %3659 = vmatpush1.msra.mxu0 0.0
    %3660 = vmatprep.subr.mxu0 0.0
    %3661 = vmatpush1.msra.mxu0 0.0
    %3662 = vmatprep.mubr.f32.mxu0 0.0
    %3663 = vmatmul.mubr.f32.gmra.mrb[0].mxu0 %v3596
    %v3664 = vpop.f32.mrb[0].mxu0
    %v3665 = vadd.f32 0.0, %v3664
    %v3666 = vpop.f32.mrb[0].mxu0
    %3667 = vdwg.mxu0
    %v3668 = vadd.f32 %v2401, %v3665
    %v3669 = vxor.u32 %v3668, 2147483648
    %v3670 = vmul.f32 %v3669, 1.442695
    %v3671 = vpow.pop %v3670
    %v3672 = vadd.f32 %v3671, 1.0
    %v3673 = vrcp.pop %v3672
    %v3674 = vmul.f32 1.0, %v3673
    %v3675 = vtanh.pop %v3668
    %v3677 = vrot.slane %v3585, 6
    %v3679 = vmul.f32 %v3674, %v3677
    %3681 = vrot.lane.b32.xlu0 %v3675, 96
    %v3682 = vpop.permute.xlu0 %3681
    %v3684 = vmul.f32 %v3674, %v3682
    %3686 = vrot.lane.b32.xlu0 %v3684, 16
    %v3687 = vpop.permute.xlu0 %3686
    %v3689 = vadd.f32 %v3679, %v3687
    %v3690 = vtanh.pop %v3689
    %3692 = vrot.lane.b32.xlu0 %v3690, 32
    %v3693 = vpop.permute.xlu0 %3692
    %v3695 = vmul.f32 %v3674, %v3693
    %3697 = vrot.lane.b32.xlu0 %v3695, 80
    %v3698 = vpop.permute.xlu0 %3697
    %v3699 = vsel %vm198, %v3698, 0
    %3701 = vmatprep.subr.mxu0 0.0
    %3702 = vmatpush1.msra.mxu0 %v2296
    %3703 = vmatprep.subr.mxu0 0.0
    %3704 = vmatpush1.msra.mxu0 %v2297
    %3705 = vmatprep.subr.mxu0 0.0
    %3706 = vmatpush1.msra.mxu0 0.0
    %3707 = vmatprep.subr.mxu0 0.0
    %3708 = vmatpush1.msra.mxu0 0.0
    %3709 = vmatprep.subr.mxu0 0.0
    %3710 = vmatpush1.msra.mxu0 0.0
    %3711 = vmatprep.subr.mxu0 0.0
    %3712 = vmatpush1.msra.mxu0 0.0
    %3713 = vmatprep.subr.mxu0 0.0
    %3714 = vmatpush1.msra.mxu0 0.0
    %3715 = vmatprep.subr.mxu0 0.0
    %3716 = vmatpush1.msra.mxu0 0.0
    %3717 = vmatprep.subr.mxu0 0.0
    %3718 = vmatpush1.msra.mxu0 0.0
    %3719 = vmatprep.subr.mxu0 0.0
    %3720 = vmatpush1.msra.mxu0 0.0
    %3721 = vmatprep.subr.mxu0 0.0
    %3722 = vmatpush1.msra.mxu0 0.0
    %3723 = vmatprep.subr.mxu0 0.0
    %3724 = vmatpush1.msra.mxu0 0.0
    %3725 = vmatprep.subr.mxu0 0.0
    %3726 = vmatpush1.msra.mxu0 0.0
    %3727 = vmatprep.subr.mxu0 0.0
    %3728 = vmatpush1.msra.mxu0 0.0
    %3729 = vmatprep.subr.mxu0 0.0
    %3730 = vmatpush1.msra.mxu0 0.0
    %3731 = vmatprep.subr.mxu0 0.0
    %3732 = vmatpush1.msra.mxu0 0.0
    %3733 = vmatprep.subr.mxu0 0.0
    %3734 = vmatpush1.msra.mxu0 0.0
    %3735 = vmatprep.subr.mxu0 0.0
    %3736 = vmatpush1.msra.mxu0 0.0
    %3737 = vmatprep.subr.mxu0 0.0
    %3738 = vmatpush1.msra.mxu0 0.0
    %3739 = vmatprep.subr.mxu0 0.0
    %3740 = vmatpush1.msra.mxu0 0.0
    %3741 = vmatprep.subr.mxu0 0.0
    %3742 = vmatpush1.msra.mxu0 0.0
    %3743 = vmatprep.subr.mxu0 0.0
    %3744 = vmatpush1.msra.mxu0 0.0
    %3745 = vmatprep.subr.mxu0 0.0
    %3746 = vmatpush1.msra.mxu0 0.0
    %3747 = vmatprep.subr.mxu0 0.0
    %3748 = vmatpush1.msra.mxu0 0.0
    %3749 = vmatprep.subr.mxu0 0.0
    %3750 = vmatpush1.msra.mxu0 0.0
    %3751 = vmatprep.subr.mxu0 0.0
    %3752 = vmatpush1.msra.mxu0 0.0
    %3753 = vmatprep.subr.mxu0 0.0
    %3754 = vmatpush1.msra.mxu0 0.0
    %3755 = vmatprep.subr.mxu0 0.0
    %3756 = vmatpush1.msra.mxu0 0.0
    %3757 = vmatprep.subr.mxu0 0.0
    %3758 = vmatpush1.msra.mxu0 0.0
    %3759 = vmatprep.subr.mxu0 0.0
    %3760 = vmatpush1.msra.mxu0 0.0
    %3761 = vmatprep.subr.mxu0 0.0
    %3762 = vmatpush1.msra.mxu0 0.0
    %3763 = vmatprep.subr.mxu0 0.0
    %3764 = vmatpush1.msra.mxu0 0.0
    %3765 = vmatprep.mubr.f32.mxu0 0.0
    %3766 = vmatmul.mubr.f32.gmra.mrb[0].mxu0 %v3699
    %v3767 = vpop.f32.mrb[0].mxu0
    %v3768 = vadd.f32 0.0, %v3767
    %v3769 = vpop.f32.mrb[0].mxu0
    %3770 = vdwg.mxu0
    %v3772 = vrot.slane %v3768, 6
    %v3774 = vadd.f32 %v2401, %v3772
    %v3775 = vxor.u32 %v3774, 2147483648
    %v3776 = vmul.f32 %v3775, 1.442695
    %v3777 = vpow.pop %v3776
    %v3778 = vadd.f32 %v3777, 1.0
    %v3779 = vrcp.pop %v3778
    %v3780 = vmul.f32 1.0, %v3779
    %v3781 = vtanh.pop %v3774
    %v3783 = vrot.slane %v3689, 6
    %v3785 = vmul.f32 %v3780, %v3783
    %3787 = vrot.lane.b32.xlu0 %v3781, 96
    %v3788 = vpop.permute.xlu0 %3787
    %v3790 = vmul.f32 %v3780, %v3788
    %3792 = vrot.lane.b32.xlu0 %v3790, 16
    %v3793 = vpop.permute.xlu0 %3792
    %v3795 = vadd.f32 %v3785, %v3793
    %v3796 = vtanh.pop %v3795
    %3798 = vrot.lane.b32.xlu0 %v3796, 32
    %v3799 = vpop.permute.xlu0 %3798
    %v3801 = vmul.f32 %v3780, %v3799
    %v3803 = vrot.slane %v3801, 2
    %3804 = vrot.lane.b32.xlu0 %v3803, 80
    %v3805 = vpop.permute.xlu0 %3804
    %v3806 = vsel %vm198, %v3805, 0
    %3808 = vmatprep.subr.mxu0 0.0
    %3809 = vmatpush1.msra.mxu0 %v2296
    %3810 = vmatprep.subr.mxu0 0.0
    %3811 = vmatpush1.msra.mxu0 %v2297
    %3812 = vmatprep.subr.mxu0 0.0
    %3813 = vmatpush1.msra.mxu0 0.0
    %3814 = vmatprep.subr.mxu0 0.0
    %3815 = vmatpush1.msra.mxu0 0.0
    %3816 = vmatprep.subr.mxu0 0.0
    %3817 = vmatpush1.msra.mxu0 0.0
    %3818 = vmatprep.subr.mxu0 0.0
    %3819 = vmatpush1.msra.mxu0 0.0
    %3820 = vmatprep.subr.mxu0 0.0
    %3821 = vmatpush1.msra.mxu0 0.0
    %3822 = vmatprep.subr.mxu0 0.0
    %3823 = vmatpush1.msra.mxu0 0.0
    %3824 = vmatprep.subr.mxu0 0.0
    %3825 = vmatpush1.msra.mxu0 0.0
    %3826 = vmatprep.subr.mxu0 0.0
    %3827 = vmatpush1.msra.mxu0 0.0
    %3828 = vmatprep.subr.mxu0 0.0
    %3829 = vmatpush1.msra.mxu0 0.0
    %3830 = vmatprep.subr.mxu0 0.0
    %3831 = vmatpush1.msra.mxu0 0.0
    %3832 = vmatprep.subr.mxu0 0.0
    %3833 = vmatpush1.msra.mxu0 0.0
    %3834 = vmatprep.subr.mxu0 0.0
    %3835 = vmatpush1.msra.mxu0 0.0
    %3836 = vmatprep.subr.mxu0 0.0
    %3837 = vmatpush1.msra.mxu0 0.0
    %3838 = vmatprep.subr.mxu0 0.0
    %3839 = vmatpush1.msra.mxu0 0.0
    %3840 = vmatprep.subr.mxu0 0.0
    %3841 = vmatpush1.msra.mxu0 0.0
    %3842 = vmatprep.subr.mxu0 0.0
    %3843 = vmatpush1.msra.mxu0 0.0
    %3844 = vmatprep.subr.mxu0 0.0
    %3845 = vmatpush1.msra.mxu0 0.0
    %3846 = vmatprep.subr.mxu0 0.0
    %3847 = vmatpush1.msra.mxu0 0.0
    %3848 = vmatprep.subr.mxu0 0.0
    %3849 = vmatpush1.msra.mxu0 0.0
    %3850 = vmatprep.subr.mxu0 0.0
    %3851 = vmatpush1.msra.mxu0 0.0
    %3852 = vmatprep.subr.mxu0 0.0
    %3853 = vmatpush1.msra.mxu0 0.0
    %3854 = vmatprep.subr.mxu0 0.0
    %3855 = vmatpush1.msra.mxu0 0.0
    %3856 = vmatprep.subr.mxu0 0.0
    %3857 = vmatpush1.msra.mxu0 0.0
    %3858 = vmatprep.subr.mxu0 0.0
    %3859 = vmatpush1.msra.mxu0 0.0
    %3860 = vmatprep.subr.mxu0 0.0
    %3861 = vmatpush1.msra.mxu0 0.0
    %3862 = vmatprep.subr.mxu0 0.0
    %3863 = vmatpush1.msra.mxu0 0.0
    %3864 = vmatprep.subr.mxu0 0.0
    %3865 = vmatpush1.msra.mxu0 0.0
    %3866 = vmatprep.subr.mxu0 0.0
    %3867 = vmatpush1.msra.mxu0 0.0
    %3868 = vmatprep.subr.mxu0 0.0
    %3869 = vmatpush1.msra.mxu0 0.0
    %3870 = vmatprep.subr.mxu0 0.0
    %3871 = vmatpush1.msra.mxu0 0.0
    %3872 = vmatprep.mubr.f32.mxu0 0.0
    %3873 = vmatmul.mubr.f32.gmra.mrb[0].mxu0 %v3806
    %v3874 = vpop.f32.mrb[0].mxu0
    %v3875 = vadd.f32 0.0, %v3874
    %v3876 = vpop.f32.mrb[0].mxu0
    %3877 = vdwg.mxu0
    %v3879 = vrot.slane %v3875, 4
    %v3881 = vadd.f32 %v2401, %v3879
    %v3882 = vxor.u32 %v3881, 2147483648
    %v3883 = vmul.f32 %v3882, 1.442695
    %v3884 = vpow.pop %v3883
    %v3885 = vadd.f32 %v3884, 1.0
    %v3886 = vrcp.pop %v3885
    %v3887 = vmul.f32 1.0, %v3886
    %v3888 = vtanh.pop %v3881
    %v3890 = vrot.slane %v3795, 6
    %v3892 = vmul.f32 %v3887, %v3890
    %3894 = vrot.lane.b32.xlu0 %v3888, 96
    %v3895 = vpop.permute.xlu0 %3894
    %v3897 = vmul.f32 %v3887, %v3895
    %3899 = vrot.lane.b32.xlu0 %v3897, 16
    %v3900 = vpop.permute.xlu0 %3899
    %v3902 = vadd.f32 %v3892, %v3900
    %v3903 = vtanh.pop %v3902
    %3905 = vrot.lane.b32.xlu0 %v3903, 32
    %v3906 = vpop.permute.xlu0 %3905
    %v3908 = vmul.f32 %v3887, %v3906
    %v3910 = vrot.slane %v3908, 4
    %3911 = vrot.lane.b32.xlu0 %v3910, 80
    %v3912 = vpop.permute.xlu0 %3911
    %v3913 = vsel %vm198, %v3912, 0
    %3915 = vmatprep.subr.mxu0 0.0
    %3916 = vmatpush1.msra.mxu0 %v2296
    %3917 = vmatprep.subr.mxu0 0.0
    %3918 = vmatpush1.msra.mxu0 %v2297
    %3919 = vmatprep.subr.mxu0 0.0
    %3920 = vmatpush1.msra.mxu0 0.0
    %3921 = vmatprep.subr.mxu0 0.0
    %3922 = vmatpush1.msra.mxu0 0.0
    %3923 = vmatprep.subr.mxu0 0.0
    %3924 = vmatpush1.msra.mxu0 0.0
    %3925 = vmatprep.subr.mxu0 0.0
    %3926 = vmatpush1.msra.mxu0 0.0
    %3927 = vmatprep.subr.mxu0 0.0
    %3928 = vmatpush1.msra.mxu0 0.0
    %3929 = vmatprep.subr.mxu0 0.0
    %3930 = vmatpush1.msra.mxu0 0.0
    %3931 = vmatprep.subr.mxu0 0.0
    %3932 = vmatpush1.msra.mxu0 0.0
    %3933 = vmatprep.subr.mxu0 0.0
    %3934 = vmatpush1.msra.mxu0 0.0
    %3935 = vmatprep.subr.mxu0 0.0
    %3936 = vmatpush1.msra.mxu0 0.0
    %3937 = vmatprep.subr.mxu0 0.0
    %3938 = vmatpush1.msra.mxu0 0.0
    %3939 = vmatprep.subr.mxu0 0.0
    %3940 = vmatpush1.msra.mxu0 0.0
    %3941 = vmatprep.subr.mxu0 0.0
    %3942 = vmatpush1.msra.mxu0 0.0
    %3943 = vmatprep.subr.mxu0 0.0
    %3944 = vmatpush1.msra.mxu0 0.0
    %3945 = vmatprep.subr.mxu0 0.0
    %3946 = vmatpush1.msra.mxu0 0.0
    %3947 = vmatprep.subr.mxu0 0.0
    %3948 = vmatpush1.msra.mxu0 0.0
    %3949 = vmatprep.subr.mxu0 0.0
    %3950 = vmatpush1.msra.mxu0 0.0
    %3951 = vmatprep.subr.mxu0 0.0
    %3952 = vmatpush1.msra.mxu0 0.0
    %3953 = vmatprep.subr.mxu0 0.0
    %3954 = vmatpush1.msra.mxu0 0.0
    %3955 = vmatprep.subr.mxu0 0.0
    %3956 = vmatpush1.msra.mxu0 0.0
    %3957 = vmatprep.subr.mxu0 0.0
    %3958 = vmatpush1.msra.mxu0 0.0
    %3959 = vmatprep.subr.mxu0 0.0
    %3960 = vmatpush1.msra.mxu0 0.0
    %3961 = vmatprep.subr.mxu0 0.0
    %3962 = vmatpush1.msra.mxu0 0.0
    %3963 = vmatprep.subr.mxu0 0.0
    %3964 = vmatpush1.msra.mxu0 0.0
    %3965 = vmatprep.subr.mxu0 0.0
    %3966 = vmatpush1.msra.mxu0 0.0
    %3967 = vmatprep.subr.mxu0 0.0
    %3968 = vmatpush1.msra.mxu0 0.0
    %3969 = vmatprep.subr.mxu0 0.0
    %3970 = vmatpush1.msra.mxu0 0.0
    %3971 = vmatprep.subr.mxu0 0.0
    %3972 = vmatpush1.msra.mxu0 0.0
    %3973 = vmatprep.subr.mxu0 0.0
    %3974 = vmatpush1.msra.mxu0 0.0
    %3975 = vmatprep.subr.mxu0 0.0
    %3976 = vmatpush1.msra.mxu0 0.0
    %3977 = vmatprep.subr.mxu0 0.0
    %3978 = vmatpush1.msra.mxu0 0.0
    %3979 = vmatprep.mubr.f32.mxu0 0.0
    %3980 = vmatmul.mubr.f32.gmra.mrb[0].mxu0 %v3913
    %v3981 = vpop.f32.mrb[0].mxu0
    %v3982 = vadd.f32 0.0, %v3981
    %v3983 = vpop.f32.mrb[0].mxu0
    %3984 = vdwg.mxu0
    %v3986 = vrot.slane %v3982, 2
    %v3988 = vadd.f32 %v2401, %v3986
    %v3989 = vxor.u32 %v3988, 2147483648
    %v3990 = vmul.f32 %v3989, 1.442695
    %v3991 = vpow.pop %v3990
    %v3992 = vadd.f32 %v3991, 1.0
    %v3993 = vrcp.pop %v3992
    %v3994 = vmul.f32 1.0, %v3993
    %v3995 = vtanh.pop %v3988
    %v3997 = vrot.slane %v3902, 6
    %v3999 = vmul.f32 %v3994, %v3997
    %4001 = vrot.lane.b32.xlu0 %v3995, 96
    %v4002 = vpop.permute.xlu0 %4001
    %v4004 = vmul.f32 %v3994, %v4002
    %4006 = vrot.lane.b32.xlu0 %v4004, 16
    %v4007 = vpop.permute.xlu0 %4006
    %v4009 = vadd.f32 %v3999, %v4007
    %v4010 = vtanh.pop %v4009
    %4012 = vrot.lane.b32.xlu0 %v4010, 32
    %v4013 = vpop.permute.xlu0 %4012
    %v4015 = vmul.f32 %v3994, %v4013
    %v4016 = vsel %vm78, %v2421, %v2529
    %v4017 = vsel %vm80, %v4016, %v2636
    %v4018 = vsel %vm82, %v4017, %v2743
    %v4019 = vsel %vm78, %v2847, %v2953
    %v4020 = vsel %vm80, %v4019, %v3060
    %v4021 = vsel %vm82, %v4020, %v3167
    %v4022 = vsel %vm78, %v3271, %v3377
    %v4023 = vsel %vm80, %v4022, %v3484
    %v4024 = vsel %vm82, %v4023, %v3591
    %v4025 = vsel %vm78, %v3695, %v3801
    %v4026 = vsel %vm80, %v4025, %v3908
    %v4027 = vsel %vm82, %v4026, %v4015
    %v4028 = vld [vmem:[#allocation5 + $0xe0] sm:$0xff]
    %v4029 = vld [vmem:[#allocation5 + $0xe8] sm:$0xff]
    %v4030 = vld [vmem:[#allocation5 + $0xf0] sm:$0xff]
    %v4031 = vld [vmem:[#allocation5 + $0xf8] sm:$0xff]
    %v4032 = vld [vmem:[#allocation5 + $0x100] sm:$0x1]
    %v4033 = vlaneseq
    %v4034 = vshrl.u32 %v4033, 7
    %v4035 = vsub.s32 0, %v4034
    %v4036 = vrot.slane %v4032, %v4035
    %4041 = vrot.lane.b32.xlu0 %v4018, 80
    %v4042 = vpop.permute.xlu0 %4041
    %4043 = vrot.lane.b32.xlu0 %v4021, 80
    %v4044 = vpop.permute.xlu0 %4043
    %4045 = vrot.lane.b32.xlu0 %v4024, 80
    %v4046 = vpop.permute.xlu0 %4045
    %4047 = vrot.lane.b32.xlu0 %v4027, 80
    %v4048 = vpop.permute.xlu0 %4047
    %v4049 = vsel %vm198, %v4042, 0
    %v4051 = vsel %vm198, %v4044, 0
    %v4053 = vsel %vm198, %v4046, 0
    %v4055 = vsel %vm198, %v4048, 0
    %4057 = vmatprep.subr.mxu0 0.0
    %4058 = vmatpush1.msra.mxu0 %v4028
    %4059 = vmatprep.subr.mxu0 0.0
    %4060 = vmatpush1.msra.mxu0 %v4029
    %4061 = vmatprep.subr.mxu0 0.0
    %4062 = vmatpush1.msra.mxu0 0.0
    %4063 = vmatprep.subr.mxu0 0.0
    %4064 = vmatpush1.msra.mxu0 0.0
    %4065 = vmatprep.subr.mxu0 0.0
    %4066 = vmatpush1.msra.mxu0 0.0
    %4067 = vmatprep.subr.mxu0 0.0
    %4068 = vmatpush1.msra.mxu0 0.0
    %4069 = vmatprep.subr.mxu0 0.0
    %4070 = vmatpush1.msra.mxu0 0.0
    %4071 = vmatprep.subr.mxu0 0.0
    %4072 = vmatpush1.msra.mxu0 0.0
    %4073 = vmatprep.subr.mxu0 0.0
    %4074 = vmatpush1.msra.mxu0 0.0
    %4075 = vmatprep.subr.mxu0 0.0
    %4076 = vmatpush1.msra.mxu0 0.0
    %4077 = vmatprep.subr.mxu0 0.0
    %4078 = vmatpush1.msra.mxu0 0.0
    %4079 = vmatprep.subr.mxu0 0.0
    %4080 = vmatpush1.msra.mxu0 0.0
    %4081 = vmatprep.subr.mxu0 0.0
    %4082 = vmatpush1.msra.mxu0 0.0
    %4083 = vmatprep.subr.mxu0 0.0
    %4084 = vmatpush1.msra.mxu0 0.0
    %4085 = vmatprep.subr.mxu0 0.0
    %4086 = vmatpush1.msra.mxu0 0.0
    %4087 = vmatprep.subr.mxu0 0.0
    %4088 = vmatpush1.msra.mxu0 0.0
    %4089 = vmatprep.subr.mxu0 0.0
    %4090 = vmatpush1.msra.mxu0 0.0
    %4091 = vmatprep.subr.mxu0 0.0
    %4092 = vmatpush1.msra.mxu0 0.0
    %4093 = vmatprep.subr.mxu0 0.0
    %4094 = vmatpush1.msra.mxu0 0.0
    %4095 = vmatprep.subr.mxu0 0.0
    %4096 = vmatpush1.msra.mxu0 0.0
    %4097 = vmatprep.subr.mxu0 0.0
    %4098 = vmatpush1.msra.mxu0 0.0
    %4099 = vmatprep.subr.mxu0 0.0
    %4100 = vmatpush1.msra.mxu0 0.0
    %4101 = vmatprep.subr.mxu0 0.0
    %4102 = vmatpush1.msra.mxu0 0.0
    %4103 = vmatprep.subr.mxu0 0.0
    %4104 = vmatpush1.msra.mxu0 0.0
    %4105 = vmatprep.subr.mxu0 0.0
    %4106 = vmatpush1.msra.mxu0 0.0
    %4107 = vmatprep.subr.mxu0 0.0
    %4108 = vmatpush1.msra.mxu0 0.0
    %4109 = vmatprep.subr.mxu0 0.0
    %4110 = vmatpush1.msra.mxu0 0.0
    %4111 = vmatprep.subr.mxu0 0.0
    %4112 = vmatpush1.msra.mxu0 0.0
    %4113 = vmatprep.subr.mxu0 0.0
    %4114 = vmatpush1.msra.mxu0 0.0
    %4115 = vmatprep.subr.mxu0 0.0
    %4116 = vmatpush1.msra.mxu0 0.0
    %4117 = vmatprep.subr.mxu0 0.0
    %4118 = vmatpush1.msra.mxu0 0.0
    %4119 = vmatprep.subr.mxu0 0.0
    %4120 = vmatpush1.msra.mxu0 0.0
    %4121 = vmatprep.mubr.f32.mxu0 0.0
    %4122 = vmatmul.mubr.f32.gmra.mrb[0].mxu0 %v4049
    %v4123 = vpop.f32.mrb[0].mxu0
    %v4124 = vadd.f32 %v4036, %v4123
    %v4125 = vpop.f32.mrb[0].mxu0
    %4126 = vmatprep.mubr.f32.mxu0 0.0
    %4127 = vmatmul.mubr.f32.gmra.mrb[0].mxu0 %v4051
    %v4128 = vpop.f32.mrb[0].mxu0
    %v4129 = vadd.f32 %v4036, %v4128
    %v4130 = vpop.f32.mrb[0].mxu0
    %4131 = vmatprep.mubr.f32.mxu0 0.0
    %4132 = vmatmul.mubr.f32.gmra.mrb[0].mxu0 %v4053
    %v4133 = vpop.f32.mrb[0].mxu0
    %v4134 = vadd.f32 %v4036, %v4133
    %v4135 = vpop.f32.mrb[0].mxu0
    %4136 = vmatprep.mubr.f32.mxu0 0.0
    %4137 = vmatmul.mubr.f32.gmra.mrb[0].mxu0 %v4055
    %v4138 = vpop.f32.mrb[0].mxu0
    %v4139 = vadd.f32 %v4036, %v4138
    %v4140 = vpop.f32.mrb[0].mxu0
    %4141 = vdwg.mxu0
    %v4142 = vxor.u32 %v4124, 2147483648
    %v4143 = vmul.f32 %v4142, 1.442695
    %v4144 = vpow.pop %v4143
    %v4145 = vadd.f32 %v4144, 1.0
    %v4146 = vrcp.pop %v4145
    %v4147 = vmul.f32 1.0, %v4146
    %v4148 = vtanh.pop %v4124
    %4150 = vrot.lane.b32.xlu0 %v4148, 96
    %v4151 = vpop.permute.xlu0 %4150
    %v4153 = vmul.f32 %v4147, %v4151
    %v4154 = vtanh.pop %v4153
    %4156 = vrot.lane.b32.xlu0 %v4154, 48
    %v4157 = vpop.permute.xlu0 %4156
    %v4159 = vmul.f32 %v4147, %v4157
    %4161 = vrot.lane.b32.xlu0 %v4159, 80
    %v4162 = vpop.permute.xlu0 %4161
    %v4163 = vsel %vm198, %v4162, 0
    %4165 = vmatprep.subr.mxu0 0.0
    %4166 = vmatpush1.msra.mxu0 %v4030
    %4167 = vmatprep.subr.mxu0 0.0
    %4168 = vmatpush1.msra.mxu0 %v4031
    %4169 = vmatprep.subr.mxu0 0.0
    %4170 = vmatpush1.msra.mxu0 0.0
    %4171 = vmatprep.subr.mxu0 0.0
    %4172 = vmatpush1.msra.mxu0 0.0
    %4173 = vmatprep.subr.mxu0 0.0
    %4174 = vmatpush1.msra.mxu0 0.0
    %4175 = vmatprep.subr.mxu0 0.0
    %4176 = vmatpush1.msra.mxu0 0.0
    %4177 = vmatprep.subr.mxu0 0.0
    %4178 = vmatpush1.msra.mxu0 0.0
    %4179 = vmatprep.subr.mxu0 0.0
    %4180 = vmatpush1.msra.mxu0 0.0
    %4181 = vmatprep.subr.mxu0 0.0
    %4182 = vmatpush1.msra.mxu0 0.0
    %4183 = vmatprep.subr.mxu0 0.0
    %4184 = vmatpush1.msra.mxu0 0.0
    %4185 = vmatprep.subr.mxu0 0.0
    %4186 = vmatpush1.msra.mxu0 0.0
    %4187 = vmatprep.subr.mxu0 0.0
    %4188 = vmatpush1.msra.mxu0 0.0
    %4189 = vmatprep.subr.mxu0 0.0
    %4190 = vmatpush1.msra.mxu0 0.0
    %4191 = vmatprep.subr.mxu0 0.0
    %4192 = vmatpush1.msra.mxu0 0.0
    %4193 = vmatprep.subr.mxu0 0.0
    %4194 = vmatpush1.msra.mxu0 0.0
    %4195 = vmatprep.subr.mxu0 0.0
    %4196 = vmatpush1.msra.mxu0 0.0
    %4197 = vmatprep.subr.mxu0 0.0
    %4198 = vmatpush1.msra.mxu0 0.0
    %4199 = vmatprep.subr.mxu0 0.0
    %4200 = vmatpush1.msra.mxu0 0.0
    %4201 = vmatprep.subr.mxu0 0.0
    %4202 = vmatpush1.msra.mxu0 0.0
    %4203 = vmatprep.subr.mxu0 0.0
    %4204 = vmatpush1.msra.mxu0 0.0
    %4205 = vmatprep.subr.mxu0 0.0
    %4206 = vmatpush1.msra.mxu0 0.0
    %4207 = vmatprep.subr.mxu0 0.0
    %4208 = vmatpush1.msra.mxu0 0.0
    %4209 = vmatprep.subr.mxu0 0.0
    %4210 = vmatpush1.msra.mxu0 0.0
    %4211 = vmatprep.subr.mxu0 0.0
    %4212 = vmatpush1.msra.mxu0 0.0
    %4213 = vmatprep.subr.mxu0 0.0
    %4214 = vmatpush1.msra.mxu0 0.0
    %4215 = vmatprep.subr.mxu0 0.0
    %4216 = vmatpush1.msra.mxu0 0.0
    %4217 = vmatprep.subr.mxu0 0.0
    %4218 = vmatpush1.msra.mxu0 0.0
    %4219 = vmatprep.subr.mxu0 0.0
    %4220 = vmatpush1.msra.mxu0 0.0
    %4221 = vmatprep.subr.mxu0 0.0
    %4222 = vmatpush1.msra.mxu0 0.0
    %4223 = vmatprep.subr.mxu0 0.0
    %4224 = vmatpush1.msra.mxu0 0.0
    %4225 = vmatprep.subr.mxu0 0.0
    %4226 = vmatpush1.msra.mxu0 0.0
    %4227 = vmatprep.subr.mxu0 0.0
    %4228 = vmatpush1.msra.mxu0 0.0
    %4229 = vmatprep.mubr.f32.mxu0 0.0
    %4230 = vmatmul.mubr.f32.gmra.mrb[0].mxu0 %v4163
    %v4231 = vpop.f32.mrb[0].mxu0
    %v4232 = vadd.f32 0.0, %v4231
    %v4233 = vpop.f32.mrb[0].mxu0
    %4234 = vdwg.mxu0
    %v4236 = vrot.slane %v4232, 6
    %v4238 = vadd.f32 %v4124, %v4236
    %v4239 = vxor.u32 %v4238, 2147483648
    %v4240 = vmul.f32 %v4239, 1.442695
    %v4241 = vpow.pop %v4240
    %v4242 = vadd.f32 %v4241, 1.0
    %v4243 = vrcp.pop %v4242
    %v4244 = vmul.f32 1.0, %v4243
    %v4245 = vtanh.pop %v4238
    %v4247 = vrot.slane %v4153, 6
    %4248 = vrot.lane.b32.xlu0 %v4247, 16
    %v4249 = vpop.permute.xlu0 %4248
    %v4251 = vmul.f32 %v4244, %v4249
    %4253 = vrot.lane.b32.xlu0 %v4245, 96
    %v4254 = vpop.permute.xlu0 %4253
    %v4256 = vmul.f32 %v4244, %v4254
    %4258 = vrot.lane.b32.xlu0 %v4256, 16
    %v4259 = vpop.permute.xlu0 %4258
    %v4261 = vadd.f32 %v4251, %v4259
    %v4262 = vtanh.pop %v4261
    %4264 = vrot.lane.b32.xlu0 %v4262, 32
    %v4265 = vpop.permute.xlu0 %4264
    %v4267 = vmul.f32 %v4244, %v4265
    %v4269 = vrot.slane %v4267, 2
    %4270 = vrot.lane.b32.xlu0 %v4269, 80
    %v4271 = vpop.permute.xlu0 %4270
    %v4272 = vsel %vm198, %v4271, 0
    %4274 = vmatprep.subr.mxu0 0.0
    %4275 = vmatpush1.msra.mxu0 %v4030
    %4276 = vmatprep.subr.mxu0 0.0
    %4277 = vmatpush1.msra.mxu0 %v4031
    %4278 = vmatprep.subr.mxu0 0.0
    %4279 = vmatpush1.msra.mxu0 0.0
    %4280 = vmatprep.subr.mxu0 0.0
    %4281 = vmatpush1.msra.mxu0 0.0
    %4282 = vmatprep.subr.mxu0 0.0
    %4283 = vmatpush1.msra.mxu0 0.0
    %4284 = vmatprep.subr.mxu0 0.0
    %4285 = vmatpush1.msra.mxu0 0.0
    %4286 = vmatprep.subr.mxu0 0.0
    %4287 = vmatpush1.msra.mxu0 0.0
    %4288 = vmatprep.subr.mxu0 0.0
    %4289 = vmatpush1.msra.mxu0 0.0
    %4290 = vmatprep.subr.mxu0 0.0
    %4291 = vmatpush1.msra.mxu0 0.0
    %4292 = vmatprep.subr.mxu0 0.0
    %4293 = vmatpush1.msra.mxu0 0.0
    %4294 = vmatprep.subr.mxu0 0.0
    %4295 = vmatpush1.msra.mxu0 0.0
    %4296 = vmatprep.subr.mxu0 0.0
    %4297 = vmatpush1.msra.mxu0 0.0
    %4298 = vmatprep.subr.mxu0 0.0
    %4299 = vmatpush1.msra.mxu0 0.0
    %4300 = vmatprep.subr.mxu0 0.0
    %4301 = vmatpush1.msra.mxu0 0.0
    %4302 = vmatprep.subr.mxu0 0.0
    %4303 = vmatpush1.msra.mxu0 0.0
    %4304 = vmatprep.subr.mxu0 0.0
    %4305 = vmatpush1.msra.mxu0 0.0
    %4306 = vmatprep.subr.mxu0 0.0
    %4307 = vmatpush1.msra.mxu0 0.0
    %4308 = vmatprep.subr.mxu0 0.0
    %4309 = vmatpush1.msra.mxu0 0.0
    %4310 = vmatprep.subr.mxu0 0.0
    %4311 = vmatpush1.msra.mxu0 0.0
    %4312 = vmatprep.subr.mxu0 0.0
    %4313 = vmatpush1.msra.mxu0 0.0
    %4314 = vmatprep.subr.mxu0 0.0
    %4315 = vmatpush1.msra.mxu0 0.0
    %4316 = vmatprep.subr.mxu0 0.0
    %4317 = vmatpush1.msra.mxu0 0.0
    %4318 = vmatprep.subr.mxu0 0.0
    %4319 = vmatpush1.msra.mxu0 0.0
    %4320 = vmatprep.subr.mxu0 0.0
    %4321 = vmatpush1.msra.mxu0 0.0
    %4322 = vmatprep.subr.mxu0 0.0
    %4323 = vmatpush1.msra.mxu0 0.0
    %4324 = vmatprep.subr.mxu0 0.0
    %4325 = vmatpush1.msra.mxu0 0.0
    %4326 = vmatprep.subr.mxu0 0.0
    %4327 = vmatpush1.msra.mxu0 0.0
    %4328 = vmatprep.subr.mxu0 0.0
    %4329 = vmatpush1.msra.mxu0 0.0
    %4330 = vmatprep.subr.mxu0 0.0
    %4331 = vmatpush1.msra.mxu0 0.0
    %4332 = vmatprep.subr.mxu0 0.0
    %4333 = vmatpush1.msra.mxu0 0.0
    %4334 = vmatprep.subr.mxu0 0.0
    %4335 = vmatpush1.msra.mxu0 0.0
    %4336 = vmatprep.subr.mxu0 0.0
    %4337 = vmatpush1.msra.mxu0 0.0
    %4338 = vmatprep.mubr.f32.mxu0 0.0
    %4339 = vmatmul.mubr.f32.gmra.mrb[0].mxu0 %v4272
    %v4340 = vpop.f32.mrb[0].mxu0
    %v4341 = vadd.f32 0.0, %v4340
    %v4342 = vpop.f32.mrb[0].mxu0
    %4343 = vdwg.mxu0
    %v4345 = vrot.slane %v4341, 4
    %v4347 = vadd.f32 %v4124, %v4345
    %v4348 = vxor.u32 %v4347, 2147483648
    %v4349 = vmul.f32 %v4348, 1.442695
    %v4350 = vpow.pop %v4349
    %v4351 = vadd.f32 %v4350, 1.0
    %v4352 = vrcp.pop %v4351
    %v4353 = vmul.f32 1.0, %v4352
    %v4354 = vtanh.pop %v4347
    %v4356 = vrot.slane %v4261, 6
    %v4358 = vmul.f32 %v4353, %v4356
    %4360 = vrot.lane.b32.xlu0 %v4354, 96
    %v4361 = vpop.permute.xlu0 %4360
    %v4363 = vmul.f32 %v4353, %v4361
    %4365 = vrot.lane.b32.xlu0 %v4363, 16
    %v4366 = vpop.permute.xlu0 %4365
    %v4368 = vadd.f32 %v4358, %v4366
    %v4369 = vtanh.pop %v4368
    %4371 = vrot.lane.b32.xlu0 %v4369, 32
    %v4372 = vpop.permute.xlu0 %4371
    %v4374 = vmul.f32 %v4353, %v4372
    %v4376 = vrot.slane %v4374, 4
    %4377 = vrot.lane.b32.xlu0 %v4376, 80
    %v4378 = vpop.permute.xlu0 %4377
    %v4379 = vsel %vm198, %v4378, 0
    %4381 = vmatprep.subr.mxu0 0.0
    %4382 = vmatpush1.msra.mxu0 %v4030
    %4383 = vmatprep.subr.mxu0 0.0
    %4384 = vmatpush1.msra.mxu0 %v4031
    %4385 = vmatprep.subr.mxu0 0.0
    %4386 = vmatpush1.msra.mxu0 0.0
    %4387 = vmatprep.subr.mxu0 0.0
    %4388 = vmatpush1.msra.mxu0 0.0
    %4389 = vmatprep.subr.mxu0 0.0
    %4390 = vmatpush1.msra.mxu0 0.0
    %4391 = vmatprep.subr.mxu0 0.0
    %4392 = vmatpush1.msra.mxu0 0.0
    %4393 = vmatprep.subr.mxu0 0.0
    %4394 = vmatpush1.msra.mxu0 0.0
    %4395 = vmatprep.subr.mxu0 0.0
    %4396 = vmatpush1.msra.mxu0 0.0
    %4397 = vmatprep.subr.mxu0 0.0
    %4398 = vmatpush1.msra.mxu0 0.0
    %4399 = vmatprep.subr.mxu0 0.0
    %4400 = vmatpush1.msra.mxu0 0.0
    %4401 = vmatprep.subr.mxu0 0.0
    %4402 = vmatpush1.msra.mxu0 0.0
    %4403 = vmatprep.subr.mxu0 0.0
    %4404 = vmatpush1.msra.mxu0 0.0
    %4405 = vmatprep.subr.mxu0 0.0
    %4406 = vmatpush1.msra.mxu0 0.0
    %4407 = vmatprep.subr.mxu0 0.0
    %4408 = vmatpush1.msra.mxu0 0.0
    %4409 = vmatprep.subr.mxu0 0.0
    %4410 = vmatpush1.msra.mxu0 0.0
    %4411 = vmatprep.subr.mxu0 0.0
    %4412 = vmatpush1.msra.mxu0 0.0
    %4413 = vmatprep.subr.mxu0 0.0
    %4414 = vmatpush1.msra.mxu0 0.0
    %4415 = vmatprep.subr.mxu0 0.0
    %4416 = vmatpush1.msra.mxu0 0.0
    %4417 = vmatprep.subr.mxu0 0.0
    %4418 = vmatpush1.msra.mxu0 0.0
    %4419 = vmatprep.subr.mxu0 0.0
    %4420 = vmatpush1.msra.mxu0 0.0
    %4421 = vmatprep.subr.mxu0 0.0
    %4422 = vmatpush1.msra.mxu0 0.0
    %4423 = vmatprep.subr.mxu0 0.0
    %4424 = vmatpush1.msra.mxu0 0.0
    %4425 = vmatprep.subr.mxu0 0.0
    %4426 = vmatpush1.msra.mxu0 0.0
    %4427 = vmatprep.subr.mxu0 0.0
    %4428 = vmatpush1.msra.mxu0 0.0
    %4429 = vmatprep.subr.mxu0 0.0
    %4430 = vmatpush1.msra.mxu0 0.0
    %4431 = vmatprep.subr.mxu0 0.0
    %4432 = vmatpush1.msra.mxu0 0.0
    %4433 = vmatprep.subr.mxu0 0.0
    %4434 = vmatpush1.msra.mxu0 0.0
    %4435 = vmatprep.subr.mxu0 0.0
    %4436 = vmatpush1.msra.mxu0 0.0
    %4437 = vmatprep.subr.mxu0 0.0
    %4438 = vmatpush1.msra.mxu0 0.0
    %4439 = vmatprep.subr.mxu0 0.0
    %4440 = vmatpush1.msra.mxu0 0.0
    %4441 = vmatprep.subr.mxu0 0.0
    %4442 = vmatpush1.msra.mxu0 0.0
    %4443 = vmatprep.subr.mxu0 0.0
    %4444 = vmatpush1.msra.mxu0 0.0
    %4445 = vmatprep.mubr.f32.mxu0 0.0
    %4446 = vmatmul.mubr.f32.gmra.mrb[0].mxu0 %v4379
    %v4447 = vpop.f32.mrb[0].mxu0
    %v4448 = vadd.f32 0.0, %v4447
    %v4449 = vpop.f32.mrb[0].mxu0
    %4450 = vdwg.mxu0
    %v4452 = vrot.slane %v4448, 2
    %v4454 = vadd.f32 %v4124, %v4452
    %v4455 = vxor.u32 %v4454, 2147483648
    %v4456 = vmul.f32 %v4455, 1.442695
    %v4457 = vpow.pop %v4456
    %v4458 = vadd.f32 %v4457, 1.0
    %v4459 = vrcp.pop %v4458
    %v4460 = vmul.f32 1.0, %v4459
    %v4461 = vtanh.pop %v4454
    %v4463 = vrot.slane %v4368, 6
    %v4465 = vmul.f32 %v4460, %v4463
    %4467 = vrot.lane.b32.xlu0 %v4461, 96
    %v4468 = vpop.permute.xlu0 %4467
    %v4470 = vmul.f32 %v4460, %v4468
    %4472 = vrot.lane.b32.xlu0 %v4470, 16
    %v4473 = vpop.permute.xlu0 %4472
    %v4475 = vadd.f32 %v4465, %v4473
    %v4476 = vtanh.pop %v4475
    %4478 = vrot.lane.b32.xlu0 %v4476, 32
    %v4479 = vpop.permute.xlu0 %4478
    %v4481 = vmul.f32 %v4460, %v4479
    %v4483 = vrot.slane %v4481, 6
    %4484 = vrot.lane.b32.xlu0 %v4483, 80
    %v4485 = vpop.permute.xlu0 %4484
    %v4486 = vsel %vm198, %v4485, 0
    %4488 = vmatprep.subr.mxu0 0.0
    %4489 = vmatpush1.msra.mxu0 %v4030
    %4490 = vmatprep.subr.mxu0 0.0
    %4491 = vmatpush1.msra.mxu0 %v4031
    %4492 = vmatprep.subr.mxu0 0.0
    %4493 = vmatpush1.msra.mxu0 0.0
    %4494 = vmatprep.subr.mxu0 0.0
    %4495 = vmatpush1.msra.mxu0 0.0
    %4496 = vmatprep.subr.mxu0 0.0
    %4497 = vmatpush1.msra.mxu0 0.0
    %4498 = vmatprep.subr.mxu0 0.0
    %4499 = vmatpush1.msra.mxu0 0.0
    %4500 = vmatprep.subr.mxu0 0.0
    %4501 = vmatpush1.msra.mxu0 0.0
    %4502 = vmatprep.subr.mxu0 0.0
    %4503 = vmatpush1.msra.mxu0 0.0
    %4504 = vmatprep.subr.mxu0 0.0
    %4505 = vmatpush1.msra.mxu0 0.0
    %4506 = vmatprep.subr.mxu0 0.0
    %4507 = vmatpush1.msra.mxu0 0.0
    %4508 = vmatprep.subr.mxu0 0.0
    %4509 = vmatpush1.msra.mxu0 0.0
    %4510 = vmatprep.subr.mxu0 0.0
    %4511 = vmatpush1.msra.mxu0 0.0
    %4512 = vmatprep.subr.mxu0 0.0
    %4513 = vmatpush1.msra.mxu0 0.0
    %4514 = vmatprep.subr.mxu0 0.0
    %4515 = vmatpush1.msra.mxu0 0.0
    %4516 = vmatprep.subr.mxu0 0.0
    %4517 = vmatpush1.msra.mxu0 0.0
    %4518 = vmatprep.subr.mxu0 0.0
    %4519 = vmatpush1.msra.mxu0 0.0
    %4520 = vmatprep.subr.mxu0 0.0
    %4521 = vmatpush1.msra.mxu0 0.0
    %4522 = vmatprep.subr.mxu0 0.0
    %4523 = vmatpush1.msra.mxu0 0.0
    %4524 = vmatprep.subr.mxu0 0.0
    %4525 = vmatpush1.msra.mxu0 0.0
    %4526 = vmatprep.subr.mxu0 0.0
    %4527 = vmatpush1.msra.mxu0 0.0
    %4528 = vmatprep.subr.mxu0 0.0
    %4529 = vmatpush1.msra.mxu0 0.0
    %4530 = vmatprep.subr.mxu0 0.0
    %4531 = vmatpush1.msra.mxu0 0.0
    %4532 = vmatprep.subr.mxu0 0.0
    %4533 = vmatpush1.msra.mxu0 0.0
    %4534 = vmatprep.subr.mxu0 0.0
    %4535 = vmatpush1.msra.mxu0 0.0
    %4536 = vmatprep.subr.mxu0 0.0
    %4537 = vmatpush1.msra.mxu0 0.0
    %4538 = vmatprep.subr.mxu0 0.0
    %4539 = vmatpush1.msra.mxu0 0.0
    %4540 = vmatprep.subr.mxu0 0.0
    %4541 = vmatpush1.msra.mxu0 0.0
    %4542 = vmatprep.subr.mxu0 0.0
    %4543 = vmatpush1.msra.mxu0 0.0
    %4544 = vmatprep.subr.mxu0 0.0
    %4545 = vmatpush1.msra.mxu0 0.0
    %4546 = vmatprep.subr.mxu0 0.0
    %4547 = vmatpush1.msra.mxu0 0.0
    %4548 = vmatprep.subr.mxu0 0.0
    %4549 = vmatpush1.msra.mxu0 0.0
    %4550 = vmatprep.subr.mxu0 0.0
    %4551 = vmatpush1.msra.mxu0 0.0
    %4552 = vmatprep.mubr.f32.mxu0 0.0
    %4553 = vmatmul.mubr.f32.gmra.mrb[0].mxu0 %v4486
    %v4554 = vpop.f32.mrb[0].mxu0
    %v4555 = vadd.f32 0.0, %v4554
    %v4556 = vpop.f32.mrb[0].mxu0
    %4557 = vdwg.mxu0
    %v4558 = vadd.f32 %v4129, %v4555
    %v4559 = vxor.u32 %v4558, 2147483648
    %v4560 = vmul.f32 %v4559, 1.442695
    %v4561 = vpow.pop %v4560
    %v4562 = vadd.f32 %v4561, 1.0
    %v4563 = vrcp.pop %v4562
    %v4564 = vmul.f32 1.0, %v4563
    %v4565 = vtanh.pop %v4558
    %v4567 = vrot.slane %v4475, 6
    %v4569 = vmul.f32 %v4564, %v4567
    %4571 = vrot.lane.b32.xlu0 %v4565, 96
    %v4572 = vpop.permute.xlu0 %4571
    %v4574 = vmul.f32 %v4564, %v4572
    %4576 = vrot.lane.b32.xlu0 %v4574, 16
    %v4577 = vpop.permute.xlu0 %4576
    %v4579 = vadd.f32 %v4569, %v4577
    %v4580 = vtanh.pop %v4579
    %4582 = vrot.lane.b32.xlu0 %v4580, 32
    %v4583 = vpop.permute.xlu0 %4582
    %v4585 = vmul.f32 %v4564, %v4583
    %4587 = vrot.lane.b32.xlu0 %v4585, 80
    %v4588 = vpop.permute.xlu0 %4587
    %v4589 = vsel %vm198, %v4588, 0
    %4591 = vmatprep.subr.mxu0 0.0
    %4592 = vmatpush1.msra.mxu0 %v4030
    %4593 = vmatprep.subr.mxu0 0.0
    %4594 = vmatpush1.msra.mxu0 %v4031
    %4595 = vmatprep.subr.mxu0 0.0
    %4596 = vmatpush1.msra.mxu0 0.0
    %4597 = vmatprep.subr.mxu0 0.0
    %4598 = vmatpush1.msra.mxu0 0.0
    %4599 = vmatprep.subr.mxu0 0.0
    %4600 = vmatpush1.msra.mxu0 0.0
    %4601 = vmatprep.subr.mxu0 0.0
    %4602 = vmatpush1.msra.mxu0 0.0
    %4603 = vmatprep.subr.mxu0 0.0
    %4604 = vmatpush1.msra.mxu0 0.0
    %4605 = vmatprep.subr.mxu0 0.0
    %4606 = vmatpush1.msra.mxu0 0.0
    %4607 = vmatprep.subr.mxu0 0.0
    %4608 = vmatpush1.msra.mxu0 0.0
    %4609 = vmatprep.subr.mxu0 0.0
    %4610 = vmatpush1.msra.mxu0 0.0
    %4611 = vmatprep.subr.mxu0 0.0
    %4612 = vmatpush1.msra.mxu0 0.0
    %4613 = vmatprep.subr.mxu0 0.0
    %4614 = vmatpush1.msra.mxu0 0.0
    %4615 = vmatprep.subr.mxu0 0.0
    %4616 = vmatpush1.msra.mxu0 0.0
    %4617 = vmatprep.subr.mxu0 0.0
    %4618 = vmatpush1.msra.mxu0 0.0
    %4619 = vmatprep.subr.mxu0 0.0
    %4620 = vmatpush1.msra.mxu0 0.0
    %4621 = vmatprep.subr.mxu0 0.0
    %4622 = vmatpush1.msra.mxu0 0.0
    %4623 = vmatprep.subr.mxu0 0.0
    %4624 = vmatpush1.msra.mxu0 0.0
    %4625 = vmatprep.subr.mxu0 0.0
    %4626 = vmatpush1.msra.mxu0 0.0
    %4627 = vmatprep.subr.mxu0 0.0
    %4628 = vmatpush1.msra.mxu0 0.0
    %4629 = vmatprep.subr.mxu0 0.0
    %4630 = vmatpush1.msra.mxu0 0.0
    %4631 = vmatprep.subr.mxu0 0.0
    %4632 = vmatpush1.msra.mxu0 0.0
    %4633 = vmatprep.subr.mxu0 0.0
    %4634 = vmatpush1.msra.mxu0 0.0
    %4635 = vmatprep.subr.mxu0 0.0
    %4636 = vmatpush1.msra.mxu0 0.0
    %4637 = vmatprep.subr.mxu0 0.0
    %4638 = vmatpush1.msra.mxu0 0.0
    %4639 = vmatprep.subr.mxu0 0.0
    %4640 = vmatpush1.msra.mxu0 0.0
    %4641 = vmatprep.subr.mxu0 0.0
    %4642 = vmatpush1.msra.mxu0 0.0
    %4643 = vmatprep.subr.mxu0 0.0
    %4644 = vmatpush1.msra.mxu0 0.0
    %4645 = vmatprep.subr.mxu0 0.0
    %4646 = vmatpush1.msra.mxu0 0.0
    %4647 = vmatprep.subr.mxu0 0.0
    %4648 = vmatpush1.msra.mxu0 0.0
    %4649 = vmatprep.subr.mxu0 0.0
    %4650 = vmatpush1.msra.mxu0 0.0
    %4651 = vmatprep.subr.mxu0 0.0
    %4652 = vmatpush1.msra.mxu0 0.0
    %4653 = vmatprep.subr.mxu0 0.0
    %4654 = vmatpush1.msra.mxu0 0.0
    %4655 = vmatprep.mubr.f32.mxu0 0.0
    %4656 = vmatmul.mubr.f32.gmra.mrb[0].mxu0 %v4589
    %v4657 = vpop.f32.mrb[0].mxu0
    %v4658 = vadd.f32 0.0, %v4657
    %v4659 = vpop.f32.mrb[0].mxu0
    %4660 = vdwg.mxu0
    %v4662 = vrot.slane %v4658, 6
    %v4664 = vadd.f32 %v4129, %v4662
    %v4665 = vxor.u32 %v4664, 2147483648
    %v4666 = vmul.f32 %v4665, 1.442695
    %v4667 = vpow.pop %v4666
    %v4668 = vadd.f32 %v4667, 1.0
    %v4669 = vrcp.pop %v4668
    %v4670 = vmul.f32 1.0, %v4669
    %v4671 = vtanh.pop %v4664
    %v4673 = vrot.slane %v4579, 6
    %v4675 = vmul.f32 %v4670, %v4673
    %4677 = vrot.lane.b32.xlu0 %v4671, 96
    %v4678 = vpop.permute.xlu0 %4677
    %v4680 = vmul.f32 %v4670, %v4678
    %4682 = vrot.lane.b32.xlu0 %v4680, 16
    %v4683 = vpop.permute.xlu0 %4682
    %v4685 = vadd.f32 %v4675, %v4683
    %v4686 = vtanh.pop %v4685
    %4688 = vrot.lane.b32.xlu0 %v4686, 32
    %v4689 = vpop.permute.xlu0 %4688
    %v4691 = vmul.f32 %v4670, %v4689
    %v4693 = vrot.slane %v4691, 2
    %4694 = vrot.lane.b32.xlu0 %v4693, 80
    %v4695 = vpop.permute.xlu0 %4694
    %v4696 = vsel %vm198, %v4695, 0
    %4698 = vmatprep.subr.mxu0 0.0
    %4699 = vmatpush1.msra.mxu0 %v4030
    %4700 = vmatprep.subr.mxu0 0.0
    %4701 = vmatpush1.msra.mxu0 %v4031
    %4702 = vmatprep.subr.mxu0 0.0
    %4703 = vmatpush1.msra.mxu0 0.0
    %4704 = vmatprep.subr.mxu0 0.0
    %4705 = vmatpush1.msra.mxu0 0.0
    %4706 = vmatprep.subr.mxu0 0.0
    %4707 = vmatpush1.msra.mxu0 0.0
    %4708 = vmatprep.subr.mxu0 0.0
    %4709 = vmatpush1.msra.mxu0 0.0
    %4710 = vmatprep.subr.mxu0 0.0
    %4711 = vmatpush1.msra.mxu0 0.0
    %4712 = vmatprep.subr.mxu0 0.0
    %4713 = vmatpush1.msra.mxu0 0.0
    %4714 = vmatprep.subr.mxu0 0.0
    %4715 = vmatpush1.msra.mxu0 0.0
    %4716 = vmatprep.subr.mxu0 0.0
    %4717 = vmatpush1.msra.mxu0 0.0
    %4718 = vmatprep.subr.mxu0 0.0
    %4719 = vmatpush1.msra.mxu0 0.0
    %4720 = vmatprep.subr.mxu0 0.0
    %4721 = vmatpush1.msra.mxu0 0.0
    %4722 = vmatprep.subr.mxu0 0.0
    %4723 = vmatpush1.msra.mxu0 0.0
    %4724 = vmatprep.subr.mxu0 0.0
    %4725 = vmatpush1.msra.mxu0 0.0
    %4726 = vmatprep.subr.mxu0 0.0
    %4727 = vmatpush1.msra.mxu0 0.0
    %4728 = vmatprep.subr.mxu0 0.0
    %4729 = vmatpush1.msra.mxu0 0.0
    %4730 = vmatprep.subr.mxu0 0.0
    %4731 = vmatpush1.msra.mxu0 0.0
    %4732 = vmatprep.subr.mxu0 0.0
    %4733 = vmatpush1.msra.mxu0 0.0
    %4734 = vmatprep.subr.mxu0 0.0
    %4735 = vmatpush1.msra.mxu0 0.0
    %4736 = vmatprep.subr.mxu0 0.0
    %4737 = vmatpush1.msra.mxu0 0.0
    %4738 = vmatprep.subr.mxu0 0.0
    %4739 = vmatpush1.msra.mxu0 0.0
    %4740 = vmatprep.subr.mxu0 0.0
    %4741 = vmatpush1.msra.mxu0 0.0
    %4742 = vmatprep.subr.mxu0 0.0
    %4743 = vmatpush1.msra.mxu0 0.0
    %4744 = vmatprep.subr.mxu0 0.0
    %4745 = vmatpush1.msra.mxu0 0.0
    %4746 = vmatprep.subr.mxu0 0.0
    %4747 = vmatpush1.msra.mxu0 0.0
    %4748 = vmatprep.subr.mxu0 0.0
    %4749 = vmatpush1.msra.mxu0 0.0
    %4750 = vmatprep.subr.mxu0 0.0
    %4751 = vmatpush1.msra.mxu0 0.0
    %4752 = vmatprep.subr.mxu0 0.0
    %4753 = vmatpush1.msra.mxu0 0.0
    %4754 = vmatprep.subr.mxu0 0.0
    %4755 = vmatpush1.msra.mxu0 0.0
    %4756 = vmatprep.subr.mxu0 0.0
    %4757 = vmatpush1.msra.mxu0 0.0
    %4758 = vmatprep.subr.mxu0 0.0
    %4759 = vmatpush1.msra.mxu0 0.0
    %4760 = vmatprep.subr.mxu0 0.0
    %4761 = vmatpush1.msra.mxu0 0.0
    %4762 = vmatprep.mubr.f32.mxu0 0.0
    %4763 = vmatmul.mubr.f32.gmra.mrb[0].mxu0 %v4696
    %v4764 = vpop.f32.mrb[0].mxu0
    %v4765 = vadd.f32 0.0, %v4764
    %v4766 = vpop.f32.mrb[0].mxu0
    %4767 = vdwg.mxu0
    %v4769 = vrot.slane %v4765, 4
    %v4771 = vadd.f32 %v4129, %v4769
    %v4772 = vxor.u32 %v4771, 2147483648
    %v4773 = vmul.f32 %v4772, 1.442695
    %v4774 = vpow.pop %v4773
    %v4775 = vadd.f32 %v4774, 1.0
    %v4776 = vrcp.pop %v4775
    %v4777 = vmul.f32 1.0, %v4776
    %v4778 = vtanh.pop %v4771
    %v4780 = vrot.slane %v4685, 6
    %v4782 = vmul.f32 %v4777, %v4780
    %4784 = vrot.lane.b32.xlu0 %v4778, 96
    %v4785 = vpop.permute.xlu0 %4784
    %v4787 = vmul.f32 %v4777, %v4785
    %4789 = vrot.lane.b32.xlu0 %v4787, 16
    %v4790 = vpop.permute.xlu0 %4789
    %v4792 = vadd.f32 %v4782, %v4790
    %v4793 = vtanh.pop %v4792
    %4795 = vrot.lane.b32.xlu0 %v4793, 32
    %v4796 = vpop.permute.xlu0 %4795
    %v4798 = vmul.f32 %v4777, %v4796
    %v4800 = vrot.slane %v4798, 4
    %4801 = vrot.lane.b32.xlu0 %v4800, 80
    %v4802 = vpop.permute.xlu0 %4801
    %v4803 = vsel %vm198, %v4802, 0
    %4805 = vmatprep.subr.mxu0 0.0
    %4806 = vmatpush1.msra.mxu0 %v4030
    %4807 = vmatprep.subr.mxu0 0.0
    %4808 = vmatpush1.msra.mxu0 %v4031
    %4809 = vmatprep.subr.mxu0 0.0
    %4810 = vmatpush1.msra.mxu0 0.0
    %4811 = vmatprep.subr.mxu0 0.0
    %4812 = vmatpush1.msra.mxu0 0.0
    %4813 = vmatprep.subr.mxu0 0.0
    %4814 = vmatpush1.msra.mxu0 0.0
    %4815 = vmatprep.subr.mxu0 0.0
    %4816 = vmatpush1.msra.mxu0 0.0
    %4817 = vmatprep.subr.mxu0 0.0
    %4818 = vmatpush1.msra.mxu0 0.0
    %4819 = vmatprep.subr.mxu0 0.0
    %4820 = vmatpush1.msra.mxu0 0.0
    %4821 = vmatprep.subr.mxu0 0.0
    %4822 = vmatpush1.msra.mxu0 0.0
    %4823 = vmatprep.subr.mxu0 0.0
    %4824 = vmatpush1.msra.mxu0 0.0
    %4825 = vmatprep.subr.mxu0 0.0
    %4826 = vmatpush1.msra.mxu0 0.0
    %4827 = vmatprep.subr.mxu0 0.0
    %4828 = vmatpush1.msra.mxu0 0.0
    %4829 = vmatprep.subr.mxu0 0.0
    %4830 = vmatpush1.msra.mxu0 0.0
    %4831 = vmatprep.subr.mxu0 0.0
    %4832 = vmatpush1.msra.mxu0 0.0
    %4833 = vmatprep.subr.mxu0 0.0
    %4834 = vmatpush1.msra.mxu0 0.0
    %4835 = vmatprep.subr.mxu0 0.0
    %4836 = vmatpush1.msra.mxu0 0.0
    %4837 = vmatprep.subr.mxu0 0.0
    %4838 = vmatpush1.msra.mxu0 0.0
    %4839 = vmatprep.subr.mxu0 0.0
    %4840 = vmatpush1.msra.mxu0 0.0
    %4841 = vmatprep.subr.mxu0 0.0
    %4842 = vmatpush1.msra.mxu0 0.0
    %4843 = vmatprep.subr.mxu0 0.0
    %4844 = vmatpush1.msra.mxu0 0.0
    %4845 = vmatprep.subr.mxu0 0.0
    %4846 = vmatpush1.msra.mxu0 0.0
    %4847 = vmatprep.subr.mxu0 0.0
    %4848 = vmatpush1.msra.mxu0 0.0
    %4849 = vmatprep.subr.mxu0 0.0
    %4850 = vmatpush1.msra.mxu0 0.0
    %4851 = vmatprep.subr.mxu0 0.0
    %4852 = vmatpush1.msra.mxu0 0.0
    %4853 = vmatprep.subr.mxu0 0.0
    %4854 = vmatpush1.msra.mxu0 0.0
    %4855 = vmatprep.subr.mxu0 0.0
    %4856 = vmatpush1.msra.mxu0 0.0
    %4857 = vmatprep.subr.mxu0 0.0
    %4858 = vmatpush1.msra.mxu0 0.0
    %4859 = vmatprep.subr.mxu0 0.0
    %4860 = vmatpush1.msra.mxu0 0.0
    %4861 = vmatprep.subr.mxu0 0.0
    %4862 = vmatpush1.msra.mxu0 0.0
    %4863 = vmatprep.subr.mxu0 0.0
    %4864 = vmatpush1.msra.mxu0 0.0
    %4865 = vmatprep.subr.mxu0 0.0
    %4866 = vmatpush1.msra.mxu0 0.0
    %4867 = vmatprep.subr.mxu0 0.0
    %4868 = vmatpush1.msra.mxu0 0.0
    %4869 = vmatprep.mubr.f32.mxu0 0.0
    %4870 = vmatmul.mubr.f32.gmra.mrb[0].mxu0 %v4803
    %v4871 = vpop.f32.mrb[0].mxu0
    %v4872 = vadd.f32 0.0, %v4871
    %v4873 = vpop.f32.mrb[0].mxu0
    %4874 = vdwg.mxu0
    %v4876 = vrot.slane %v4872, 2
    %v4878 = vadd.f32 %v4129, %v4876
    %v4879 = vxor.u32 %v4878, 2147483648
    %v4880 = vmul.f32 %v4879, 1.442695
    %v4881 = vpow.pop %v4880
    %v4882 = vadd.f32 %v4881, 1.0
    %v4883 = vrcp.pop %v4882
    %v4884 = vmul.f32 1.0, %v4883
    %v4885 = vtanh.pop %v4878
    %v4887 = vrot.slane %v4792, 6
    %v4889 = vmul.f32 %v4884, %v4887
    %4891 = vrot.lane.b32.xlu0 %v4885, 96
    %v4892 = vpop.permute.xlu0 %4891
    %v4894 = vmul.f32 %v4884, %v4892
    %4896 = vrot.lane.b32.xlu0 %v4894, 16
    %v4897 = vpop.permute.xlu0 %4896
    %v4899 = vadd.f32 %v4889, %v4897
    %v4900 = vtanh.pop %v4899
    %4902 = vrot.lane.b32.xlu0 %v4900, 32
    %v4903 = vpop.permute.xlu0 %4902
    %v4905 = vmul.f32 %v4884, %v4903
    %v4907 = vrot.slane %v4905, 6
    %4908 = vrot.lane.b32.xlu0 %v4907, 80
    %v4909 = vpop.permute.xlu0 %4908
    %v4910 = vsel %vm198, %v4909, 0
    %4912 = vmatprep.subr.mxu0 0.0
    %4913 = vmatpush1.msra.mxu0 %v4030
    %4914 = vmatprep.subr.mxu0 0.0
    %4915 = vmatpush1.msra.mxu0 %v4031
    %4916 = vmatprep.subr.mxu0 0.0
    %4917 = vmatpush1.msra.mxu0 0.0
    %4918 = vmatprep.subr.mxu0 0.0
    %4919 = vmatpush1.msra.mxu0 0.0
    %4920 = vmatprep.subr.mxu0 0.0
    %4921 = vmatpush1.msra.mxu0 0.0
    %4922 = vmatprep.subr.mxu0 0.0
    %4923 = vmatpush1.msra.mxu0 0.0
    %4924 = vmatprep.subr.mxu0 0.0
    %4925 = vmatpush1.msra.mxu0 0.0
    %4926 = vmatprep.subr.mxu0 0.0
    %4927 = vmatpush1.msra.mxu0 0.0
    %4928 = vmatprep.subr.mxu0 0.0
    %4929 = vmatpush1.msra.mxu0 0.0
    %4930 = vmatprep.subr.mxu0 0.0
    %4931 = vmatpush1.msra.mxu0 0.0
    %4932 = vmatprep.subr.mxu0 0.0
    %4933 = vmatpush1.msra.mxu0 0.0
    %4934 = vmatprep.subr.mxu0 0.0
    %4935 = vmatpush1.msra.mxu0 0.0
    %4936 = vmatprep.subr.mxu0 0.0
    %4937 = vmatpush1.msra.mxu0 0.0
    %4938 = vmatprep.subr.mxu0 0.0
    %4939 = vmatpush1.msra.mxu0 0.0
    %4940 = vmatprep.subr.mxu0 0.0
    %4941 = vmatpush1.msra.mxu0 0.0
    %4942 = vmatprep.subr.mxu0 0.0
    %4943 = vmatpush1.msra.mxu0 0.0
    %4944 = vmatprep.subr.mxu0 0.0
    %4945 = vmatpush1.msra.mxu0 0.0
    %4946 = vmatprep.subr.mxu0 0.0
    %4947 = vmatpush1.msra.mxu0 0.0
    %4948 = vmatprep.subr.mxu0 0.0
    %4949 = vmatpush1.msra.mxu0 0.0
    %4950 = vmatprep.subr.mxu0 0.0
    %4951 = vmatpush1.msra.mxu0 0.0
    %4952 = vmatprep.subr.mxu0 0.0
    %4953 = vmatpush1.msra.mxu0 0.0
    %4954 = vmatprep.subr.mxu0 0.0
    %4955 = vmatpush1.msra.mxu0 0.0
    %4956 = vmatprep.subr.mxu0 0.0
    %4957 = vmatpush1.msra.mxu0 0.0
    %4958 = vmatprep.subr.mxu0 0.0
    %4959 = vmatpush1.msra.mxu0 0.0
    %4960 = vmatprep.subr.mxu0 0.0
    %4961 = vmatpush1.msra.mxu0 0.0
    %4962 = vmatprep.subr.mxu0 0.0
    %4963 = vmatpush1.msra.mxu0 0.0
    %4964 = vmatprep.subr.mxu0 0.0
    %4965 = vmatpush1.msra.mxu0 0.0
    %4966 = vmatprep.subr.mxu0 0.0
    %4967 = vmatpush1.msra.mxu0 0.0
    %4968 = vmatprep.subr.mxu0 0.0
    %4969 = vmatpush1.msra.mxu0 0.0
    %4970 = vmatprep.subr.mxu0 0.0
    %4971 = vmatpush1.msra.mxu0 0.0
    %4972 = vmatprep.subr.mxu0 0.0
    %4973 = vmatpush1.msra.mxu0 0.0
    %4974 = vmatprep.subr.mxu0 0.0
    %4975 = vmatpush1.msra.mxu0 0.0
    %4976 = vmatprep.mubr.f32.mxu0 0.0
    %4977 = vmatmul.mubr.f32.gmra.mrb[0].mxu0 %v4910
    %v4978 = vpop.f32.mrb[0].mxu0
    %v4979 = vadd.f32 0.0, %v4978
    %v4980 = vpop.f32.mrb[0].mxu0
    %4981 = vdwg.mxu0
    %v4982 = vadd.f32 %v4134, %v4979
    %v4983 = vxor.u32 %v4982, 2147483648
    %v4984 = vmul.f32 %v4983, 1.442695
    %v4985 = vpow.pop %v4984
    %v4986 = vadd.f32 %v4985, 1.0
    %v4987 = vrcp.pop %v4986
    %v4988 = vmul.f32 1.0, %v4987
    %v4989 = vtanh.pop %v4982
    %v4991 = vrot.slane %v4899, 6
    %v4993 = vmul.f32 %v4988, %v4991
    %4995 = vrot.lane.b32.xlu0 %v4989, 96
    %v4996 = vpop.permute.xlu0 %4995
    %v4998 = vmul.f32 %v4988, %v4996
    %5000 = vrot.lane.b32.xlu0 %v4998, 16
    %v5001 = vpop.permute.xlu0 %5000
    %v5003 = vadd.f32 %v4993, %v5001
    %v5004 = vtanh.pop %v5003
    %5006 = vrot.lane.b32.xlu0 %v5004, 32
    %v5007 = vpop.permute.xlu0 %5006
    %v5009 = vmul.f32 %v4988, %v5007
    %5011 = vrot.lane.b32.xlu0 %v5009, 80
    %v5012 = vpop.permute.xlu0 %5011
    %v5013 = vsel %vm198, %v5012, 0
    %5015 = vmatprep.subr.mxu0 0.0
    %5016 = vmatpush1.msra.mxu0 %v4030
    %5017 = vmatprep.subr.mxu0 0.0
    %5018 = vmatpush1.msra.mxu0 %v4031
    %5019 = vmatprep.subr.mxu0 0.0
    %5020 = vmatpush1.msra.mxu0 0.0
    %5021 = vmatprep.subr.mxu0 0.0
    %5022 = vmatpush1.msra.mxu0 0.0
    %5023 = vmatprep.subr.mxu0 0.0
    %5024 = vmatpush1.msra.mxu0 0.0
    %5025 = vmatprep.subr.mxu0 0.0
    %5026 = vmatpush1.msra.mxu0 0.0
    %5027 = vmatprep.subr.mxu0 0.0
    %5028 = vmatpush1.msra.mxu0 0.0
    %5029 = vmatprep.subr.mxu0 0.0
    %5030 = vmatpush1.msra.mxu0 0.0
    %5031 = vmatprep.subr.mxu0 0.0
    %5032 = vmatpush1.msra.mxu0 0.0
    %5033 = vmatprep.subr.mxu0 0.0
    %5034 = vmatpush1.msra.mxu0 0.0
    %5035 = vmatprep.subr.mxu0 0.0
    %5036 = vmatpush1.msra.mxu0 0.0
    %5037 = vmatprep.subr.mxu0 0.0
    %5038 = vmatpush1.msra.mxu0 0.0
    %5039 = vmatprep.subr.mxu0 0.0
    %5040 = vmatpush1.msra.mxu0 0.0
    %5041 = vmatprep.subr.mxu0 0.0
    %5042 = vmatpush1.msra.mxu0 0.0
    %5043 = vmatprep.subr.mxu0 0.0
    %5044 = vmatpush1.msra.mxu0 0.0
    %5045 = vmatprep.subr.mxu0 0.0
    %5046 = vmatpush1.msra.mxu0 0.0
    %5047 = vmatprep.subr.mxu0 0.0
    %5048 = vmatpush1.msra.mxu0 0.0
    %5049 = vmatprep.subr.mxu0 0.0
    %5050 = vmatpush1.msra.mxu0 0.0
    %5051 = vmatprep.subr.mxu0 0.0
    %5052 = vmatpush1.msra.mxu0 0.0
    %5053 = vmatprep.subr.mxu0 0.0
    %5054 = vmatpush1.msra.mxu0 0.0
    %5055 = vmatprep.subr.mxu0 0.0
    %5056 = vmatpush1.msra.mxu0 0.0
    %5057 = vmatprep.subr.mxu0 0.0
    %5058 = vmatpush1.msra.mxu0 0.0
    %5059 = vmatprep.subr.mxu0 0.0
    %5060 = vmatpush1.msra.mxu0 0.0
    %5061 = vmatprep.subr.mxu0 0.0
    %5062 = vmatpush1.msra.mxu0 0.0
    %5063 = vmatprep.subr.mxu0 0.0
    %5064 = vmatpush1.msra.mxu0 0.0
    %5065 = vmatprep.subr.mxu0 0.0
    %5066 = vmatpush1.msra.mxu0 0.0
    %5067 = vmatprep.subr.mxu0 0.0
    %5068 = vmatpush1.msra.mxu0 0.0
    %5069 = vmatprep.subr.mxu0 0.0
    %5070 = vmatpush1.msra.mxu0 0.0
    %5071 = vmatprep.subr.mxu0 0.0
    %5072 = vmatpush1.msra.mxu0 0.0
    %5073 = vmatprep.subr.mxu0 0.0
    %5074 = vmatpush1.msra.mxu0 0.0
    %5075 = vmatprep.subr.mxu0 0.0
    %5076 = vmatpush1.msra.mxu0 0.0
    %5077 = vmatprep.subr.mxu0 0.0
    %5078 = vmatpush1.msra.mxu0 0.0
    %5079 = vmatprep.mubr.f32.mxu0 0.0
    %5080 = vmatmul.mubr.f32.gmra.mrb[0].mxu0 %v5013
    %v5081 = vpop.f32.mrb[0].mxu0
    %v5082 = vadd.f32 0.0, %v5081
    %v5083 = vpop.f32.mrb[0].mxu0
    %5084 = vdwg.mxu0
    %v5086 = vrot.slane %v5082, 6
    %v5088 = vadd.f32 %v4134, %v5086
    %v5089 = vxor.u32 %v5088, 2147483648
    %v5090 = vmul.f32 %v5089, 1.442695
    %v5091 = vpow.pop %v5090
    %v5092 = vadd.f32 %v5091, 1.0
    %v5093 = vrcp.pop %v5092
    %v5094 = vmul.f32 1.0, %v5093
    %v5095 = vtanh.pop %v5088
    %v5097 = vrot.slane %v5003, 6
    %v5099 = vmul.f32 %v5094, %v5097
    %5101 = vrot.lane.b32.xlu0 %v5095, 96
    %v5102 = vpop.permute.xlu0 %5101
    %v5104 = vmul.f32 %v5094, %v5102
    %5106 = vrot.lane.b32.xlu0 %v5104, 16
    %v5107 = vpop.permute.xlu0 %5106
    %v5109 = vadd.f32 %v5099, %v5107
    %v5110 = vtanh.pop %v5109
    %5112 = vrot.lane.b32.xlu0 %v5110, 32
    %v5113 = vpop.permute.xlu0 %5112
    %v5115 = vmul.f32 %v5094, %v5113
    %v5117 = vrot.slane %v5115, 2
    %5118 = vrot.lane.b32.xlu0 %v5117, 80
    %v5119 = vpop.permute.xlu0 %5118
    %v5120 = vsel %vm198, %v5119, 0
    %5122 = vmatprep.subr.mxu0 0.0
    %5123 = vmatpush1.msra.mxu0 %v4030
    %5124 = vmatprep.subr.mxu0 0.0
    %5125 = vmatpush1.msra.mxu0 %v4031
    %5126 = vmatprep.subr.mxu0 0.0
    %5127 = vmatpush1.msra.mxu0 0.0
    %5128 = vmatprep.subr.mxu0 0.0
    %5129 = vmatpush1.msra.mxu0 0.0
    %5130 = vmatprep.subr.mxu0 0.0
    %5131 = vmatpush1.msra.mxu0 0.0
    %5132 = vmatprep.subr.mxu0 0.0
    %5133 = vmatpush1.msra.mxu0 0.0
    %5134 = vmatprep.subr.mxu0 0.0
    %5135 = vmatpush1.msra.mxu0 0.0
    %5136 = vmatprep.subr.mxu0 0.0
    %5137 = vmatpush1.msra.mxu0 0.0
    %5138 = vmatprep.subr.mxu0 0.0
    %5139 = vmatpush1.msra.mxu0 0.0
    %5140 = vmatprep.subr.mxu0 0.0
    %5141 = vmatpush1.msra.mxu0 0.0
    %5142 = vmatprep.subr.mxu0 0.0
    %5143 = vmatpush1.msra.mxu0 0.0
    %5144 = vmatprep.subr.mxu0 0.0
    %5145 = vmatpush1.msra.mxu0 0.0
    %5146 = vmatprep.subr.mxu0 0.0
    %5147 = vmatpush1.msra.mxu0 0.0
    %5148 = vmatprep.subr.mxu0 0.0
    %5149 = vmatpush1.msra.mxu0 0.0
    %5150 = vmatprep.subr.mxu0 0.0
    %5151 = vmatpush1.msra.mxu0 0.0
    %5152 = vmatprep.subr.mxu0 0.0
    %5153 = vmatpush1.msra.mxu0 0.0
    %5154 = vmatprep.subr.mxu0 0.0
    %5155 = vmatpush1.msra.mxu0 0.0
    %5156 = vmatprep.subr.mxu0 0.0
    %5157 = vmatpush1.msra.mxu0 0.0
    %5158 = vmatprep.subr.mxu0 0.0
    %5159 = vmatpush1.msra.mxu0 0.0
    %5160 = vmatprep.subr.mxu0 0.0
    %5161 = vmatpush1.msra.mxu0 0.0
    %5162 = vmatprep.subr.mxu0 0.0
    %5163 = vmatpush1.msra.mxu0 0.0
    %5164 = vmatprep.subr.mxu0 0.0
    %5165 = vmatpush1.msra.mxu0 0.0
    %5166 = vmatprep.subr.mxu0 0.0
    %5167 = vmatpush1.msra.mxu0 0.0
    %5168 = vmatprep.subr.mxu0 0.0
    %5169 = vmatpush1.msra.mxu0 0.0
    %5170 = vmatprep.subr.mxu0 0.0
    %5171 = vmatpush1.msra.mxu0 0.0
    %5172 = vmatprep.subr.mxu0 0.0
    %5173 = vmatpush1.msra.mxu0 0.0
    %5174 = vmatprep.subr.mxu0 0.0
    %5175 = vmatpush1.msra.mxu0 0.0
    %5176 = vmatprep.subr.mxu0 0.0
    %5177 = vmatpush1.msra.mxu0 0.0
    %5178 = vmatprep.subr.mxu0 0.0
    %5179 = vmatpush1.msra.mxu0 0.0
    %5180 = vmatprep.subr.mxu0 0.0
    %5181 = vmatpush1.msra.mxu0 0.0
    %5182 = vmatprep.subr.mxu0 0.0
    %5183 = vmatpush1.msra.mxu0 0.0
    %5184 = vmatprep.subr.mxu0 0.0
    %5185 = vmatpush1.msra.mxu0 0.0
    %5186 = vmatprep.mubr.f32.mxu0 0.0
    %5187 = vmatmul.mubr.f32.gmra.mrb[0].mxu0 %v5120
    %v5188 = vpop.f32.mrb[0].mxu0
    %v5189 = vadd.f32 0.0, %v5188
    %v5190 = vpop.f32.mrb[0].mxu0
    %5191 = vdwg.mxu0
    %v5193 = vrot.slane %v5189, 4
    %v5195 = vadd.f32 %v4134, %v5193
    %v5196 = vxor.u32 %v5195, 2147483648
    %v5197 = vmul.f32 %v5196, 1.442695
    %v5198 = vpow.pop %v5197
    %v5199 = vadd.f32 %v5198, 1.0
    %v5200 = vrcp.pop %v5199
    %v5201 = vmul.f32 1.0, %v5200
    %v5202 = vtanh.pop %v5195
    %v5204 = vrot.slane %v5109, 6
    %v5206 = vmul.f32 %v5201, %v5204
    %5208 = vrot.lane.b32.xlu0 %v5202, 96
    %v5209 = vpop.permute.xlu0 %5208
    %v5211 = vmul.f32 %v5201, %v5209
    %5213 = vrot.lane.b32.xlu0 %v5211, 16
    %v5214 = vpop.permute.xlu0 %5213
    %v5216 = vadd.f32 %v5206, %v5214
    %v5217 = vtanh.pop %v5216
    %5219 = vrot.lane.b32.xlu0 %v5217, 32
    %v5220 = vpop.permute.xlu0 %5219
    %v5222 = vmul.f32 %v5201, %v5220
    %v5224 = vrot.slane %v5222, 4
    %5225 = vrot.lane.b32.xlu0 %v5224, 80
    %v5226 = vpop.permute.xlu0 %5225
    %v5227 = vsel %vm198, %v5226, 0
    %5229 = vmatprep.subr.mxu0 0.0
    %5230 = vmatpush1.msra.mxu0 %v4030
    %5231 = vmatprep.subr.mxu0 0.0
    %5232 = vmatpush1.msra.mxu0 %v4031
    %5233 = vmatprep.subr.mxu0 0.0
    %5234 = vmatpush1.msra.mxu0 0.0
    %5235 = vmatprep.subr.mxu0 0.0
    %5236 = vmatpush1.msra.mxu0 0.0
    %5237 = vmatprep.subr.mxu0 0.0
    %5238 = vmatpush1.msra.mxu0 0.0
    %5239 = vmatprep.subr.mxu0 0.0
    %5240 = vmatpush1.msra.mxu0 0.0
    %5241 = vmatprep.subr.mxu0 0.0
    %5242 = vmatpush1.msra.mxu0 0.0
    %5243 = vmatprep.subr.mxu0 0.0
    %5244 = vmatpush1.msra.mxu0 0.0
    %5245 = vmatprep.subr.mxu0 0.0
    %5246 = vmatpush1.msra.mxu0 0.0
    %5247 = vmatprep.subr.mxu0 0.0
    %5248 = vmatpush1.msra.mxu0 0.0
    %5249 = vmatprep.subr.mxu0 0.0
    %5250 = vmatpush1.msra.mxu0 0.0
    %5251 = vmatprep.subr.mxu0 0.0
    %5252 = vmatpush1.msra.mxu0 0.0
    %5253 = vmatprep.subr.mxu0 0.0
    %5254 = vmatpush1.msra.mxu0 0.0
    %5255 = vmatprep.subr.mxu0 0.0
    %5256 = vmatpush1.msra.mxu0 0.0
    %5257 = vmatprep.subr.mxu0 0.0
    %5258 = vmatpush1.msra.mxu0 0.0
    %5259 = vmatprep.subr.mxu0 0.0
    %5260 = vmatpush1.msra.mxu0 0.0
    %5261 = vmatprep.subr.mxu0 0.0
    %5262 = vmatpush1.msra.mxu0 0.0
    %5263 = vmatprep.subr.mxu0 0.0
    %5264 = vmatpush1.msra.mxu0 0.0
    %5265 = vmatprep.subr.mxu0 0.0
    %5266 = vmatpush1.msra.mxu0 0.0
    %5267 = vmatprep.subr.mxu0 0.0
    %5268 = vmatpush1.msra.mxu0 0.0
    %5269 = vmatprep.subr.mxu0 0.0
    %5270 = vmatpush1.msra.mxu0 0.0
    %5271 = vmatprep.subr.mxu0 0.0
    %5272 = vmatpush1.msra.mxu0 0.0
    %5273 = vmatprep.subr.mxu0 0.0
    %5274 = vmatpush1.msra.mxu0 0.0
    %5275 = vmatprep.subr.mxu0 0.0
    %5276 = vmatpush1.msra.mxu0 0.0
    %5277 = vmatprep.subr.mxu0 0.0
    %5278 = vmatpush1.msra.mxu0 0.0
    %5279 = vmatprep.subr.mxu0 0.0
    %5280 = vmatpush1.msra.mxu0 0.0
    %5281 = vmatprep.subr.mxu0 0.0
    %5282 = vmatpush1.msra.mxu0 0.0
    %5283 = vmatprep.subr.mxu0 0.0
    %5284 = vmatpush1.msra.mxu0 0.0
    %5285 = vmatprep.subr.mxu0 0.0
    %5286 = vmatpush1.msra.mxu0 0.0
    %5287 = vmatprep.subr.mxu0 0.0
    %5288 = vmatpush1.msra.mxu0 0.0
    %5289 = vmatprep.subr.mxu0 0.0
    %5290 = vmatpush1.msra.mxu0 0.0
    %5291 = vmatprep.subr.mxu0 0.0
    %5292 = vmatpush1.msra.mxu0 0.0
    %5293 = vmatprep.mubr.f32.mxu0 0.0
    %5294 = vmatmul.mubr.f32.gmra.mrb[0].mxu0 %v5227
    %v5295 = vpop.f32.mrb[0].mxu0
    %v5296 = vadd.f32 0.0, %v5295
    %v5297 = vpop.f32.mrb[0].mxu0
    %5298 = vdwg.mxu0
    %v5300 = vrot.slane %v5296, 2
    %v5302 = vadd.f32 %v4134, %v5300
    %v5303 = vxor.u32 %v5302, 2147483648
    %v5304 = vmul.f32 %v5303, 1.442695
    %v5305 = vpow.pop %v5304
    %v5306 = vadd.f32 %v5305, 1.0
    %v5307 = vrcp.pop %v5306
    %v5308 = vmul.f32 1.0, %v5307
    %v5309 = vtanh.pop %v5302
    %v5311 = vrot.slane %v5216, 6
    %v5313 = vmul.f32 %v5308, %v5311
    %5315 = vrot.lane.b32.xlu0 %v5309, 96
    %v5316 = vpop.permute.xlu0 %5315
    %v5318 = vmul.f32 %v5308, %v5316
    %5320 = vrot.lane.b32.xlu0 %v5318, 16
    %v5321 = vpop.permute.xlu0 %5320
    %v5323 = vadd.f32 %v5313, %v5321
    %v5324 = vtanh.pop %v5323
    %5326 = vrot.lane.b32.xlu0 %v5324, 32
    %v5327 = vpop.permute.xlu0 %5326
    %v5329 = vmul.f32 %v5308, %v5327
    %v5331 = vrot.slane %v5329, 6
    %5332 = vrot.lane.b32.xlu0 %v5331, 80
    %v5333 = vpop.permute.xlu0 %5332
    %v5334 = vsel %vm198, %v5333, 0
    %5336 = vmatprep.subr.mxu0 0.0
    %5337 = vmatpush1.msra.mxu0 %v4030
    %5338 = vmatprep.subr.mxu0 0.0
    %5339 = vmatpush1.msra.mxu0 %v4031
    %5340 = vmatprep.subr.mxu0 0.0
    %5341 = vmatpush1.msra.mxu0 0.0
    %5342 = vmatprep.subr.mxu0 0.0
    %5343 = vmatpush1.msra.mxu0 0.0
    %5344 = vmatprep.subr.mxu0 0.0
    %5345 = vmatpush1.msra.mxu0 0.0
    %5346 = vmatprep.subr.mxu0 0.0
    %5347 = vmatpush1.msra.mxu0 0.0
    %5348 = vmatprep.subr.mxu0 0.0
    %5349 = vmatpush1.msra.mxu0 0.0
    %5350 = vmatprep.subr.mxu0 0.0
    %5351 = vmatpush1.msra.mxu0 0.0
    %5352 = vmatprep.subr.mxu0 0.0
    %5353 = vmatpush1.msra.mxu0 0.0
    %5354 = vmatprep.subr.mxu0 0.0
    %5355 = vmatpush1.msra.mxu0 0.0
    %5356 = vmatprep.subr.mxu0 0.0
    %5357 = vmatpush1.msra.mxu0 0.0
    %5358 = vmatprep.subr.mxu0 0.0
    %5359 = vmatpush1.msra.mxu0 0.0
    %5360 = vmatprep.subr.mxu0 0.0
    %5361 = vmatpush1.msra.mxu0 0.0
    %5362 = vmatprep.subr.mxu0 0.0
    %5363 = vmatpush1.msra.mxu0 0.0
    %5364 = vmatprep.subr.mxu0 0.0
    %5365 = vmatpush1.msra.mxu0 0.0
    %5366 = vmatprep.subr.mxu0 0.0
    %5367 = vmatpush1.msra.mxu0 0.0
    %5368 = vmatprep.subr.mxu0 0.0
    %5369 = vmatpush1.msra.mxu0 0.0
    %5370 = vmatprep.subr.mxu0 0.0
    %5371 = vmatpush1.msra.mxu0 0.0
    %5372 = vmatprep.subr.mxu0 0.0
    %5373 = vmatpush1.msra.mxu0 0.0
    %5374 = vmatprep.subr.mxu0 0.0
    %5375 = vmatpush1.msra.mxu0 0.0
    %5376 = vmatprep.subr.mxu0 0.0
    %5377 = vmatpush1.msra.mxu0 0.0
    %5378 = vmatprep.subr.mxu0 0.0
    %5379 = vmatpush1.msra.mxu0 0.0
    %5380 = vmatprep.subr.mxu0 0.0
    %5381 = vmatpush1.msra.mxu0 0.0
    %5382 = vmatprep.subr.mxu0 0.0
    %5383 = vmatpush1.msra.mxu0 0.0
    %5384 = vmatprep.subr.mxu0 0.0
    %5385 = vmatpush1.msra.mxu0 0.0
    %5386 = vmatprep.subr.mxu0 0.0
    %5387 = vmatpush1.msra.mxu0 0.0
    %5388 = vmatprep.subr.mxu0 0.0
    %5389 = vmatpush1.msra.mxu0 0.0
    %5390 = vmatprep.subr.mxu0 0.0
    %5391 = vmatpush1.msra.mxu0 0.0
    %5392 = vmatprep.subr.mxu0 0.0
    %5393 = vmatpush1.msra.mxu0 0.0
    %5394 = vmatprep.subr.mxu0 0.0
    %5395 = vmatpush1.msra.mxu0 0.0
    %5396 = vmatprep.subr.mxu0 0.0
    %5397 = vmatpush1.msra.mxu0 0.0
    %5398 = vmatprep.subr.mxu0 0.0
    %5399 = vmatpush1.msra.mxu0 0.0
    %5400 = vmatprep.mubr.f32.mxu0 0.0
    %5401 = vmatmul.mubr.f32.gmra.mrb[0].mxu0 %v5334
    %v5402 = vpop.f32.mrb[0].mxu0
    %v5403 = vadd.f32 0.0, %v5402
    %v5404 = vpop.f32.mrb[0].mxu0
    %5405 = vdwg.mxu0
    %v5406 = vadd.f32 %v4139, %v5403
    %v5407 = vxor.u32 %v5406, 2147483648
    %v5408 = vmul.f32 %v5407, 1.442695
    %v5409 = vpow.pop %v5408
    %v5410 = vadd.f32 %v5409, 1.0
    %v5411 = vrcp.pop %v5410
    %v5412 = vmul.f32 1.0, %v5411
    %v5413 = vtanh.pop %v5406
    %v5415 = vrot.slane %v5323, 6
    %v5417 = vmul.f32 %v5412, %v5415
    %5419 = vrot.lane.b32.xlu0 %v5413, 96
    %v5420 = vpop.permute.xlu0 %5419
    %v5422 = vmul.f32 %v5412, %v5420
    %5424 = vrot.lane.b32.xlu0 %v5422, 16
    %v5425 = vpop.permute.xlu0 %5424
    %v5427 = vadd.f32 %v5417, %v5425
    %v5428 = vtanh.pop %v5427
    %5430 = vrot.lane.b32.xlu0 %v5428, 32
    %v5431 = vpop.permute.xlu0 %5430
    %v5433 = vmul.f32 %v5412, %v5431
    %5435 = vrot.lane.b32.xlu0 %v5433, 80
    %v5436 = vpop.permute.xlu0 %5435
    %v5437 = vsel %vm198, %v5436, 0
    %5439 = vmatprep.subr.mxu0 0.0
    %5440 = vmatpush1.msra.mxu0 %v4030
    %5441 = vmatprep.subr.mxu0 0.0
    %5442 = vmatpush1.msra.mxu0 %v4031
    %5443 = vmatprep.subr.mxu0 0.0
    %5444 = vmatpush1.msra.mxu0 0.0
    %5445 = vmatprep.subr.mxu0 0.0
    %5446 = vmatpush1.msra.mxu0 0.0
    %5447 = vmatprep.subr.mxu0 0.0
    %5448 = vmatpush1.msra.mxu0 0.0
    %5449 = vmatprep.subr.mxu0 0.0
    %5450 = vmatpush1.msra.mxu0 0.0
    %5451 = vmatprep.subr.mxu0 0.0
    %5452 = vmatpush1.msra.mxu0 0.0
    %5453 = vmatprep.subr.mxu0 0.0
    %5454 = vmatpush1.msra.mxu0 0.0
    %5455 = vmatprep.subr.mxu0 0.0
    %5456 = vmatpush1.msra.mxu0 0.0
    %5457 = vmatprep.subr.mxu0 0.0
    %5458 = vmatpush1.msra.mxu0 0.0
    %5459 = vmatprep.subr.mxu0 0.0
    %5460 = vmatpush1.msra.mxu0 0.0
    %5461 = vmatprep.subr.mxu0 0.0
    %5462 = vmatpush1.msra.mxu0 0.0
    %5463 = vmatprep.subr.mxu0 0.0
    %5464 = vmatpush1.msra.mxu0 0.0
    %5465 = vmatprep.subr.mxu0 0.0
    %5466 = vmatpush1.msra.mxu0 0.0
    %5467 = vmatprep.subr.mxu0 0.0
    %5468 = vmatpush1.msra.mxu0 0.0
    %5469 = vmatprep.subr.mxu0 0.0
    %5470 = vmatpush1.msra.mxu0 0.0
    %5471 = vmatprep.subr.mxu0 0.0
    %5472 = vmatpush1.msra.mxu0 0.0
    %5473 = vmatprep.subr.mxu0 0.0
    %5474 = vmatpush1.msra.mxu0 0.0
    %5475 = vmatprep.subr.mxu0 0.0
    %5476 = vmatpush1.msra.mxu0 0.0
    %5477 = vmatprep.subr.mxu0 0.0
    %5478 = vmatpush1.msra.mxu0 0.0
    %5479 = vmatprep.subr.mxu0 0.0
    %5480 = vmatpush1.msra.mxu0 0.0
    %5481 = vmatprep.subr.mxu0 0.0
    %5482 = vmatpush1.msra.mxu0 0.0
    %5483 = vmatprep.subr.mxu0 0.0
    %5484 = vmatpush1.msra.mxu0 0.0
    %5485 = vmatprep.subr.mxu0 0.0
    %5486 = vmatpush1.msra.mxu0 0.0
    %5487 = vmatprep.subr.mxu0 0.0
    %5488 = vmatpush1.msra.mxu0 0.0
    %5489 = vmatprep.subr.mxu0 0.0
    %5490 = vmatpush1.msra.mxu0 0.0
    %5491 = vmatprep.subr.mxu0 0.0
    %5492 = vmatpush1.msra.mxu0 0.0
    %5493 = vmatprep.subr.mxu0 0.0
    %5494 = vmatpush1.msra.mxu0 0.0
    %5495 = vmatprep.subr.mxu0 0.0
    %5496 = vmatpush1.msra.mxu0 0.0
    %5497 = vmatprep.subr.mxu0 0.0
    %5498 = vmatpush1.msra.mxu0 0.0
    %5499 = vmatprep.subr.mxu0 0.0
    %5500 = vmatpush1.msra.mxu0 0.0
    %5501 = vmatprep.subr.mxu0 0.0
    %5502 = vmatpush1.msra.mxu0 0.0
    %5503 = vmatprep.mubr.f32.mxu0 0.0
    %5504 = vmatmul.mubr.f32.gmra.mrb[0].mxu0 %v5437
    %v5505 = vpop.f32.mrb[0].mxu0
    %v5506 = vadd.f32 0.0, %v5505
    %v5507 = vpop.f32.mrb[0].mxu0
    %5508 = vdwg.mxu0
    %v5510 = vrot.slane %v5506, 6
    %v5512 = vadd.f32 %v4139, %v5510
    %v5513 = vxor.u32 %v5512, 2147483648
    %v5514 = vmul.f32 %v5513, 1.442695
    %v5515 = vpow.pop %v5514
    %v5516 = vadd.f32 %v5515, 1.0
    %v5517 = vrcp.pop %v5516
    %v5518 = vmul.f32 1.0, %v5517
    %v5519 = vtanh.pop %v5512
    %v5521 = vrot.slane %v5427, 6
    %v5523 = vmul.f32 %v5518, %v5521
    %5525 = vrot.lane.b32.xlu0 %v5519, 96
    %v5526 = vpop.permute.xlu0 %5525
    %v5528 = vmul.f32 %v5518, %v5526
    %5530 = vrot.lane.b32.xlu0 %v5528, 16
    %v5531 = vpop.permute.xlu0 %5530
    %v5533 = vadd.f32 %v5523, %v5531
    %v5534 = vtanh.pop %v5533
    %5536 = vrot.lane.b32.xlu0 %v5534, 32
    %v5537 = vpop.permute.xlu0 %5536
    %v5539 = vmul.f32 %v5518, %v5537
    %v5541 = vrot.slane %v5539, 2
    %5542 = vrot.lane.b32.xlu0 %v5541, 80
    %v5543 = vpop.permute.xlu0 %5542
    %v5544 = vsel %vm198, %v5543, 0
    %5546 = vmatprep.subr.mxu0 0.0
    %5547 = vmatpush1.msra.mxu0 %v4030
    %5548 = vmatprep.subr.mxu0 0.0
    %5549 = vmatpush1.msra.mxu0 %v4031
    %5550 = vmatprep.subr.mxu0 0.0
    %5551 = vmatpush1.msra.mxu0 0.0
    %5552 = vmatprep.subr.mxu0 0.0
    %5553 = vmatpush1.msra.mxu0 0.0
    %5554 = vmatprep.subr.mxu0 0.0
    %5555 = vmatpush1.msra.mxu0 0.0
    %5556 = vmatprep.subr.mxu0 0.0
    %5557 = vmatpush1.msra.mxu0 0.0
    %5558 = vmatprep.subr.mxu0 0.0
    %5559 = vmatpush1.msra.mxu0 0.0
    %5560 = vmatprep.subr.mxu0 0.0
    %5561 = vmatpush1.msra.mxu0 0.0
    %5562 = vmatprep.subr.mxu0 0.0
    %5563 = vmatpush1.msra.mxu0 0.0
    %5564 = vmatprep.subr.mxu0 0.0
    %5565 = vmatpush1.msra.mxu0 0.0
    %5566 = vmatprep.subr.mxu0 0.0
    %5567 = vmatpush1.msra.mxu0 0.0
    %5568 = vmatprep.subr.mxu0 0.0
    %5569 = vmatpush1.msra.mxu0 0.0
    %5570 = vmatprep.subr.mxu0 0.0
    %5571 = vmatpush1.msra.mxu0 0.0
    %5572 = vmatprep.subr.mxu0 0.0
    %5573 = vmatpush1.msra.mxu0 0.0
    %5574 = vmatprep.subr.mxu0 0.0
    %5575 = vmatpush1.msra.mxu0 0.0
    %5576 = vmatprep.subr.mxu0 0.0
    %5577 = vmatpush1.msra.mxu0 0.0
    %5578 = vmatprep.subr.mxu0 0.0
    %5579 = vmatpush1.msra.mxu0 0.0
    %5580 = vmatprep.subr.mxu0 0.0
    %5581 = vmatpush1.msra.mxu0 0.0
    %5582 = vmatprep.subr.mxu0 0.0
    %5583 = vmatpush1.msra.mxu0 0.0
    %5584 = vmatprep.subr.mxu0 0.0
    %5585 = vmatpush1.msra.mxu0 0.0
    %5586 = vmatprep.subr.mxu0 0.0
    %5587 = vmatpush1.msra.mxu0 0.0
    %5588 = vmatprep.subr.mxu0 0.0
    %5589 = vmatpush1.msra.mxu0 0.0
    %5590 = vmatprep.subr.mxu0 0.0
    %5591 = vmatpush1.msra.mxu0 0.0
    %5592 = vmatprep.subr.mxu0 0.0
    %5593 = vmatpush1.msra.mxu0 0.0
    %5594 = vmatprep.subr.mxu0 0.0
    %5595 = vmatpush1.msra.mxu0 0.0
    %5596 = vmatprep.subr.mxu0 0.0
    %5597 = vmatpush1.msra.mxu0 0.0
    %5598 = vmatprep.subr.mxu0 0.0
    %5599 = vmatpush1.msra.mxu0 0.0
    %5600 = vmatprep.subr.mxu0 0.0
    %5601 = vmatpush1.msra.mxu0 0.0
    %5602 = vmatprep.subr.mxu0 0.0
    %5603 = vmatpush1.msra.mxu0 0.0
    %5604 = vmatprep.subr.mxu0 0.0
    %5605 = vmatpush1.msra.mxu0 0.0
    %5606 = vmatprep.subr.mxu0 0.0
    %5607 = vmatpush1.msra.mxu0 0.0
    %5608 = vmatprep.subr.mxu0 0.0
    %5609 = vmatpush1.msra.mxu0 0.0
    %5610 = vmatprep.mubr.f32.mxu0 0.0
    %5611 = vmatmul.mubr.f32.gmra.mrb[0].mxu0 %v5544
    %v5612 = vpop.f32.mrb[0].mxu0
    %v5613 = vadd.f32 0.0, %v5612
    %v5614 = vpop.f32.mrb[0].mxu0
    %5615 = vdwg.mxu0
    %v5617 = vrot.slane %v5613, 4
    %v5619 = vadd.f32 %v4139, %v5617
    %v5620 = vxor.u32 %v5619, 2147483648
    %v5621 = vmul.f32 %v5620, 1.442695
    %v5622 = vpow.pop %v5621
    %v5623 = vadd.f32 %v5622, 1.0
    %v5624 = vrcp.pop %v5623
    %v5625 = vmul.f32 1.0, %v5624
    %v5626 = vtanh.pop %v5619
    %v5628 = vrot.slane %v5533, 6
    %v5630 = vmul.f32 %v5625, %v5628
    %5632 = vrot.lane.b32.xlu0 %v5626, 96
    %v5633 = vpop.permute.xlu0 %5632
    %v5635 = vmul.f32 %v5625, %v5633
    %5637 = vrot.lane.b32.xlu0 %v5635, 16
    %v5638 = vpop.permute.xlu0 %5637
    %v5640 = vadd.f32 %v5630, %v5638
    %v5641 = vtanh.pop %v5640
    %5643 = vrot.lane.b32.xlu0 %v5641, 32
    %v5644 = vpop.permute.xlu0 %5643
    %v5646 = vmul.f32 %v5625, %v5644
    %v5648 = vrot.slane %v5646, 4
    %5649 = vrot.lane.b32.xlu0 %v5648, 80
    %v5650 = vpop.permute.xlu0 %5649
    %v5651 = vsel %vm198, %v5650, 0
    %5653 = vmatprep.subr.mxu0 0.0
    %5654 = vmatpush1.msra.mxu0 %v4030
    %5655 = vmatprep.subr.mxu0 0.0
    %5656 = vmatpush1.msra.mxu0 %v4031
    %5657 = vmatprep.subr.mxu0 0.0
    %5658 = vmatpush1.msra.mxu0 0.0
    %5659 = vmatprep.subr.mxu0 0.0
    %5660 = vmatpush1.msra.mxu0 0.0
    %5661 = vmatprep.subr.mxu0 0.0
    %5662 = vmatpush1.msra.mxu0 0.0
    %5663 = vmatprep.subr.mxu0 0.0
    %5664 = vmatpush1.msra.mxu0 0.0
    %5665 = vmatprep.subr.mxu0 0.0
    %5666 = vmatpush1.msra.mxu0 0.0
    %5667 = vmatprep.subr.mxu0 0.0
    %5668 = vmatpush1.msra.mxu0 0.0
    %5669 = vmatprep.subr.mxu0 0.0
    %5670 = vmatpush1.msra.mxu0 0.0
    %5671 = vmatprep.subr.mxu0 0.0
    %5672 = vmatpush1.msra.mxu0 0.0
    %5673 = vmatprep.subr.mxu0 0.0
    %5674 = vmatpush1.msra.mxu0 0.0
    %5675 = vmatprep.subr.mxu0 0.0
    %5676 = vmatpush1.msra.mxu0 0.0
    %5677 = vmatprep.subr.mxu0 0.0
    %5678 = vmatpush1.msra.mxu0 0.0
    %5679 = vmatprep.subr.mxu0 0.0
    %5680 = vmatpush1.msra.mxu0 0.0
    %5681 = vmatprep.subr.mxu0 0.0
    %5682 = vmatpush1.msra.mxu0 0.0
    %5683 = vmatprep.subr.mxu0 0.0
    %5684 = vmatpush1.msra.mxu0 0.0
    %5685 = vmatprep.subr.mxu0 0.0
    %5686 = vmatpush1.msra.mxu0 0.0
    %5687 = vmatprep.subr.mxu0 0.0
    %5688 = vmatpush1.msra.mxu0 0.0
    %5689 = vmatprep.subr.mxu0 0.0
    %5690 = vmatpush1.msra.mxu0 0.0
    %5691 = vmatprep.subr.mxu0 0.0
    %5692 = vmatpush1.msra.mxu0 0.0
    %5693 = vmatprep.subr.mxu0 0.0
    %5694 = vmatpush1.msra.mxu0 0.0
    %5695 = vmatprep.subr.mxu0 0.0
    %5696 = vmatpush1.msra.mxu0 0.0
    %5697 = vmatprep.subr.mxu0 0.0
    %5698 = vmatpush1.msra.mxu0 0.0
    %5699 = vmatprep.subr.mxu0 0.0
    %5700 = vmatpush1.msra.mxu0 0.0
    %5701 = vmatprep.subr.mxu0 0.0
    %5702 = vmatpush1.msra.mxu0 0.0
    %5703 = vmatprep.subr.mxu0 0.0
    %5704 = vmatpush1.msra.mxu0 0.0
    %5705 = vmatprep.subr.mxu0 0.0
    %5706 = vmatpush1.msra.mxu0 0.0
    %5707 = vmatprep.subr.mxu0 0.0
    %5708 = vmatpush1.msra.mxu0 0.0
    %5709 = vmatprep.subr.mxu0 0.0
    %5710 = vmatpush1.msra.mxu0 0.0
    %5711 = vmatprep.subr.mxu0 0.0
    %5712 = vmatpush1.msra.mxu0 0.0
    %5713 = vmatprep.subr.mxu0 0.0
    %5714 = vmatpush1.msra.mxu0 0.0
    %5715 = vmatprep.subr.mxu0 0.0
    %5716 = vmatpush1.msra.mxu0 0.0
    %5717 = vmatprep.mubr.f32.mxu0 0.0
    %5718 = vmatmul.mubr.f32.gmra.mrb[0].mxu0 %v5651
    %v5719 = vpop.f32.mrb[0].mxu0
    %v5720 = vadd.f32 0.0, %v5719
    %v5721 = vpop.f32.mrb[0].mxu0
    %5722 = vdwg.mxu0
    %v5724 = vrot.slane %v5720, 2
    %v5726 = vadd.f32 %v4139, %v5724
    %v5727 = vxor.u32 %v5726, 2147483648
    %v5728 = vmul.f32 %v5727, 1.442695
    %v5729 = vpow.pop %v5728
    %v5730 = vadd.f32 %v5729, 1.0
    %v5731 = vrcp.pop %v5730
    %v5732 = vmul.f32 1.0, %v5731
    %v5733 = vtanh.pop %v5726
    %v5735 = vrot.slane %v5640, 6
    %v5737 = vmul.f32 %v5732, %v5735
    %5739 = vrot.lane.b32.xlu0 %v5733, 96
    %v5740 = vpop.permute.xlu0 %5739
    %v5742 = vmul.f32 %v5732, %v5740
    %5744 = vrot.lane.b32.xlu0 %v5742, 16
    %v5745 = vpop.permute.xlu0 %5744
    %v5747 = vadd.f32 %v5737, %v5745
    %v5748 = vtanh.pop %v5747
    %5750 = vrot.lane.b32.xlu0 %v5748, 32
    %v5751 = vpop.permute.xlu0 %5750
    %v5753 = vmul.f32 %v5732, %v5751
    %v5755 = vrot.slane %v5753, 6
    %v5757 = vrot.slane %v5753, 4
    %5758 = vrot.lane.b32.xlu0 %v5757, 124
    %v5759 = vpop.permute.xlu0 %5758
    %v5761 = vrot.slane %v5753, 2
    %5762 = vrot.lane.b32.xlu0 %v5761, 120
    %v5763 = vpop.permute.xlu0 %5762
    %5765 = vrot.lane.b32.xlu0 %v5753, 116
    %v5766 = vpop.permute.xlu0 %5765
    %v5768 = vsel %vm78, %v5755, %v5759
    %v5769 = vsel %vm80, %v5768, %v5763
    %v5770 = vsel %vm82, %v5769, %v5766
    %v5771 = vld [vmem:[#allocation5 + $0x108] sm:$0xf]
    %v5772 = vld [vmem:[#allocation5 + $0x110] sm:$0xff]
    %v5773 = vld [vmem:[#allocation5 + $0x118] sm:$0xff]
    %v5774 = vld [vmem:[#allocation5 + $0x120] sm:$0xff]
    %v5775 = vld [vmem:[#allocation5 + $0x128] sm:$0xff]
    %v5776 = vld [vmem:[#allocation5 + $0x130] sm:$0x1]
    %v5777 = vlaneseq
    %v5778 = vshrl.u32 %v5777, 7
    %v5779 = vsub.s32 0, %v5778
    %v5780 = vrot.slane %v5776, %v5779
    %5782 = vrot.lane.b32.xlu0 %v5770, 80
    %v5783 = vpop.permute.xlu0 %5782
    %v5784 = vsel %vm2303, %v5783, 0
    %v5787 = vsel %vm80, %v5771, 0
    %5789 = vmatprep.subr.mxu0 0.0
    %5790 = vmatpush1.msra.mxu0 %v5787
    %5791 = vmatprep.subr.mxu0 0.0
    %5792 = vmatpush1.msra.mxu0 0.0
    %5793 = vmatprep.subr.mxu0 0.0
    %5794 = vmatpush1.msra.mxu0 0.0
    %5795 = vmatprep.subr.mxu0 0.0
    %5796 = vmatpush1.msra.mxu0 0.0
    %5797 = vmatprep.subr.mxu0 0.0
    %5798 = vmatpush1.msra.mxu0 0.0
    %5799 = vmatprep.subr.mxu0 0.0
    %5800 = vmatpush1.msra.mxu0 0.0
    %5801 = vmatprep.subr.mxu0 0.0
    %5802 = vmatpush1.msra.mxu0 0.0
    %5803 = vmatprep.subr.mxu0 0.0
    %5804 = vmatpush1.msra.mxu0 0.0
    %5805 = vmatprep.subr.mxu0 0.0
    %5806 = vmatpush1.msra.mxu0 0.0
    %5807 = vmatprep.subr.mxu0 0.0
    %5808 = vmatpush1.msra.mxu0 0.0
    %5809 = vmatprep.subr.mxu0 0.0
    %5810 = vmatpush1.msra.mxu0 0.0
    %5811 = vmatprep.subr.mxu0 0.0
    %5812 = vmatpush1.msra.mxu0 0.0
    %5813 = vmatprep.subr.mxu0 0.0
    %5814 = vmatpush1.msra.mxu0 0.0
    %5815 = vmatprep.subr.mxu0 0.0
    %5816 = vmatpush1.msra.mxu0 0.0
    %5817 = vmatprep.subr.mxu0 0.0
    %5818 = vmatpush1.msra.mxu0 0.0
    %5819 = vmatprep.subr.mxu0 0.0
    %5820 = vmatpush1.msra.mxu0 0.0
    %5821 = vmatprep.subr.mxu0 0.0
    %5822 = vmatpush1.msra.mxu0 0.0
    %5823 = vmatprep.subr.mxu0 0.0
    %5824 = vmatpush1.msra.mxu0 0.0
    %5825 = vmatprep.subr.mxu0 0.0
    %5826 = vmatpush1.msra.mxu0 0.0
    %5827 = vmatprep.subr.mxu0 0.0
    %5828 = vmatpush1.msra.mxu0 0.0
    %5829 = vmatprep.subr.mxu0 0.0
    %5830 = vmatpush1.msra.mxu0 0.0
    %5831 = vmatprep.subr.mxu0 0.0
    %5832 = vmatpush1.msra.mxu0 0.0
    %5833 = vmatprep.subr.mxu0 0.0
    %5834 = vmatpush1.msra.mxu0 0.0
    %5835 = vmatprep.subr.mxu0 0.0
    %5836 = vmatpush1.msra.mxu0 0.0
    %5837 = vmatprep.subr.mxu0 0.0
    %5838 = vmatpush1.msra.mxu0 0.0
    %5839 = vmatprep.subr.mxu0 0.0
    %5840 = vmatpush1.msra.mxu0 0.0
    %5841 = vmatprep.subr.mxu0 0.0
    %5842 = vmatpush1.msra.mxu0 0.0
    %5843 = vmatprep.subr.mxu0 0.0
    %5844 = vmatpush1.msra.mxu0 0.0
    %5845 = vmatprep.subr.mxu0 0.0
    %5846 = vmatpush1.msra.mxu0 0.0
    %5847 = vmatprep.subr.mxu0 0.0
    %5848 = vmatpush1.msra.mxu0 0.0
    %5849 = vmatprep.subr.mxu0 0.0
    %5850 = vmatpush1.msra.mxu0 0.0
    %5851 = vmatprep.subr.mxu0 0.0
    %5852 = vmatpush1.msra.mxu0 0.0
    %5853 = vmatprep.mubr.f32.mxu0 0.0
    %5854 = vmatmul.mubr.f32.gmra.mrb[0].mxu0 %v5784
    %v5855 = vpop.f32.mrb[0].mxu0
    %v5856 = vadd.f32 %v5780, %v5855
    %v5857 = vpop.f32.mrb[0].mxu0
    %5858 = vdwg.mxu0
    %v5859 = vxor.u32 %v5856, 2147483648
    %v5860 = vmul.f32 %v5859, 1.442695
    %v5861 = vpow.pop %v5860
    %v5862 = vadd.f32 %v5861, 1.0
    %v5863 = vrcp.pop %v5862
    %v5864 = vmul.f32 1.0, %v5863
    %v5865 = vtanh.pop %v5856
    %5867 = vrot.lane.b32.xlu0 %v5865, 64
    %v5868 = vpop.permute.xlu0 %5867
    %v5870 = vmul.f32 %v5864, %v5868
    %v5871 = vtanh.pop %v5870
    %5873 = vrot.lane.b32.xlu0 %v5871, 96
    %v5874 = vpop.permute.xlu0 %5873
    %v5876 = vmul.f32 %v5864, %v5874
    %5878 = vrot.lane.b32.xlu0 %v5876, 32
    %v5879 = vpop.permute.xlu0 %5878
    %v5880 = vsel %vm1920, %v5879, 0
    %5882 = vmatprep.subr.mxu0 0.0
    %5883 = vmatpush1.msra.mxu0 %v5772
    %5884 = vmatprep.subr.mxu0 0.0
    %5885 = vmatpush1.msra.mxu0 %v5773
    %5886 = vmatprep.subr.mxu0 0.0
    %5887 = vmatpush1.msra.mxu0 %v5774
    %5888 = vmatprep.subr.mxu0 0.0
    %5889 = vmatpush1.msra.mxu0 %v5775
    %5890 = vmatprep.subr.mxu0 0.0
    %5891 = vmatpush1.msra.mxu0 0.0
    %5892 = vmatprep.subr.mxu0 0.0
    %5893 = vmatpush1.msra.mxu0 0.0
    %5894 = vmatprep.subr.mxu0 0.0
    %5895 = vmatpush1.msra.mxu0 0.0
    %5896 = vmatprep.subr.mxu0 0.0
    %5897 = vmatpush1.msra.mxu0 0.0
    %5898 = vmatprep.subr.mxu0 0.0
    %5899 = vmatpush1.msra.mxu0 0.0
    %5900 = vmatprep.subr.mxu0 0.0
    %5901 = vmatpush1.msra.mxu0 0.0
    %5902 = vmatprep.subr.mxu0 0.0
    %5903 = vmatpush1.msra.mxu0 0.0
    %5904 = vmatprep.subr.mxu0 0.0
    %5905 = vmatpush1.msra.mxu0 0.0
    %5906 = vmatprep.subr.mxu0 0.0
    %5907 = vmatpush1.msra.mxu0 0.0
    %5908 = vmatprep.subr.mxu0 0.0
    %5909 = vmatpush1.msra.mxu0 0.0
    %5910 = vmatprep.subr.mxu0 0.0
    %5911 = vmatpush1.msra.mxu0 0.0
    %5912 = vmatprep.subr.mxu0 0.0
    %5913 = vmatpush1.msra.mxu0 0.0
    %5914 = vmatprep.subr.mxu0 0.0
    %5915 = vmatpush1.msra.mxu0 0.0
    %5916 = vmatprep.subr.mxu0 0.0
    %5917 = vmatpush1.msra.mxu0 0.0
    %5918 = vmatprep.subr.mxu0 0.0
    %5919 = vmatpush1.msra.mxu0 0.0
    %5920 = vmatprep.subr.mxu0 0.0
    %5921 = vmatpush1.msra.mxu0 0.0
    %5922 = vmatprep.subr.mxu0 0.0
    %5923 = vmatpush1.msra.mxu0 0.0
    %5924 = vmatprep.subr.mxu0 0.0
    %5925 = vmatpush1.msra.mxu0 0.0
    %5926 = vmatprep.subr.mxu0 0.0
    %5927 = vmatpush1.msra.mxu0 0.0
    %5928 = vmatprep.subr.mxu0 0.0
    %5929 = vmatpush1.msra.mxu0 0.0
    %5930 = vmatprep.subr.mxu0 0.0
    %5931 = vmatpush1.msra.mxu0 0.0
    %5932 = vmatprep.subr.mxu0 0.0
    %5933 = vmatpush1.msra.mxu0 0.0
    %5934 = vmatprep.subr.mxu0 0.0
    %5935 = vmatpush1.msra.mxu0 0.0
    %5936 = vmatprep.subr.mxu0 0.0
    %5937 = vmatpush1.msra.mxu0 0.0
    %5938 = vmatprep.subr.mxu0 0.0
    %5939 = vmatpush1.msra.mxu0 0.0
    %5940 = vmatprep.subr.mxu0 0.0
    %5941 = vmatpush1.msra.mxu0 0.0
    %5942 = vmatprep.subr.mxu0 0.0
    %5943 = vmatpush1.msra.mxu0 0.0
    %5944 = vmatprep.subr.mxu0 0.0
    %5945 = vmatpush1.msra.mxu0 0.0
    %5946 = vmatprep.mubr.f32.mxu0 0.0
    %5947 = vmatmul.mubr.f32.gmra.mrb[0].mxu0 %v5880
    %v5948 = vpop.f32.mrb[0].mxu0
    %v5949 = vadd.f32 0.0, %v5948
    %v5950 = vpop.f32.mrb[0].mxu0
    %5951 = vdwg.mxu0
    %v5953 = vrot.slane %v5949, 6
    %v5955 = vadd.f32 %v5856, %v5953
    %v5956 = vxor.u32 %v5955, 2147483648
    %v5957 = vmul.f32 %v5956, 1.442695
    %v5958 = vpow.pop %v5957
    %v5959 = vadd.f32 %v5958, 1.0
    %v5960 = vrcp.pop %v5959
    %v5961 = vmul.f32 1.0, %v5960
    %v5962 = vtanh.pop %v5955
    %v5964 = vrot.slane %v5870, 6
    %5965 = vrot.lane.b32.xlu0 %v5964, 32
    %v5966 = vpop.permute.xlu0 %5965
    %v5968 = vmul.f32 %v5961, %v5966
    %5970 = vrot.lane.b32.xlu0 %v5962, 64
    %v5971 = vpop.permute.xlu0 %5970
    %v5973 = vmul.f32 %v5961, %v5971
    %5975 = vrot.lane.b32.xlu0 %v5973, 32
    %v5976 = vpop.permute.xlu0 %5975
    %v5978 = vadd.f32 %v5968, %v5976
    %v5979 = vtanh.pop %v5978
    %5981 = vrot.lane.b32.xlu0 %v5979, 64
    %v5982 = vpop.permute.xlu0 %5981
    %v5984 = vmul.f32 %v5961, %v5982
    %v5986 = vrot.slane %v5984, 2
    %5987 = vrot.lane.b32.xlu0 %v5986, 32
    %v5988 = vpop.permute.xlu0 %5987
    %v5989 = vsel %vm1920, %v5988, 0
    %5991 = vmatprep.subr.mxu0 0.0
    %5992 = vmatpush1.msra.mxu0 %v5772
    %5993 = vmatprep.subr.mxu0 0.0
    %5994 = vmatpush1.msra.mxu0 %v5773
    %5995 = vmatprep.subr.mxu0 0.0
    %5996 = vmatpush1.msra.mxu0 %v5774
    %5997 = vmatprep.subr.mxu0 0.0
    %5998 = vmatpush1.msra.mxu0 %v5775
    %5999 = vmatprep.subr.mxu0 0.0
    %6000 = vmatpush1.msra.mxu0 0.0
    %6001 = vmatprep.subr.mxu0 0.0
    %6002 = vmatpush1.msra.mxu0 0.0
    %6003 = vmatprep.subr.mxu0 0.0
    %6004 = vmatpush1.msra.mxu0 0.0
    %6005 = vmatprep.subr.mxu0 0.0
    %6006 = vmatpush1.msra.mxu0 0.0
    %6007 = vmatprep.subr.mxu0 0.0
    %6008 = vmatpush1.msra.mxu0 0.0
    %6009 = vmatprep.subr.mxu0 0.0
    %6010 = vmatpush1.msra.mxu0 0.0
    %6011 = vmatprep.subr.mxu0 0.0
    %6012 = vmatpush1.msra.mxu0 0.0
    %6013 = vmatprep.subr.mxu0 0.0
    %6014 = vmatpush1.msra.mxu0 0.0
    %6015 = vmatprep.subr.mxu0 0.0
    %6016 = vmatpush1.msra.mxu0 0.0
    %6017 = vmatprep.subr.mxu0 0.0
    %6018 = vmatpush1.msra.mxu0 0.0
    %6019 = vmatprep.subr.mxu0 0.0
    %6020 = vmatpush1.msra.mxu0 0.0
    %6021 = vmatprep.subr.mxu0 0.0
    %6022 = vmatpush1.msra.mxu0 0.0
    %6023 = vmatprep.subr.mxu0 0.0
    %6024 = vmatpush1.msra.mxu0 0.0
    %6025 = vmatprep.subr.mxu0 0.0
    %6026 = vmatpush1.msra.mxu0 0.0
    %6027 = vmatprep.subr.mxu0 0.0
    %6028 = vmatpush1.msra.mxu0 0.0
    %6029 = vmatprep.subr.mxu0 0.0
    %6030 = vmatpush1.msra.mxu0 0.0
    %6031 = vmatprep.subr.mxu0 0.0
    %6032 = vmatpush1.msra.mxu0 0.0
    %6033 = vmatprep.subr.mxu0 0.0
    %6034 = vmatpush1.msra.mxu0 0.0
    %6035 = vmatprep.subr.mxu0 0.0
    %6036 = vmatpush1.msra.mxu0 0.0
    %6037 = vmatprep.subr.mxu0 0.0
    %6038 = vmatpush1.msra.mxu0 0.0
    %6039 = vmatprep.subr.mxu0 0.0
    %6040 = vmatpush1.msra.mxu0 0.0
    %6041 = vmatprep.subr.mxu0 0.0
    %6042 = vmatpush1.msra.mxu0 0.0
    %6043 = vmatprep.subr.mxu0 0.0
    %6044 = vmatpush1.msra.mxu0 0.0
    %6045 = vmatprep.subr.mxu0 0.0
    %6046 = vmatpush1.msra.mxu0 0.0
    %6047 = vmatprep.subr.mxu0 0.0
    %6048 = vmatpush1.msra.mxu0 0.0
    %6049 = vmatprep.subr.mxu0 0.0
    %6050 = vmatpush1.msra.mxu0 0.0
    %6051 = vmatprep.subr.mxu0 0.0
    %6052 = vmatpush1.msra.mxu0 0.0
    %6053 = vmatprep.subr.mxu0 0.0
    %6054 = vmatpush1.msra.mxu0 0.0
    %6055 = vmatprep.mubr.f32.mxu0 0.0
    %6056 = vmatmul.mubr.f32.gmra.mrb[0].mxu0 %v5989
    %v6057 = vpop.f32.mrb[0].mxu0
    %v6058 = vadd.f32 0.0, %v6057
    %v6059 = vpop.f32.mrb[0].mxu0
    %6060 = vdwg.mxu0
    %v6062 = vrot.slane %v6058, 4
    %v6064 = vadd.f32 %v5856, %v6062
    %v6065 = vxor.u32 %v6064, 2147483648
    %v6066 = vmul.f32 %v6065, 1.442695
    %v6067 = vpow.pop %v6066
    %v6068 = vadd.f32 %v6067, 1.0
    %v6069 = vrcp.pop %v6068
    %v6070 = vmul.f32 1.0, %v6069
    %v6071 = vtanh.pop %v6064
    %v6073 = vrot.slane %v5978, 6
    %v6075 = vmul.f32 %v6070, %v6073
    %6077 = vrot.lane.b32.xlu0 %v6071, 64
    %v6078 = vpop.permute.xlu0 %6077
    %v6080 = vmul.f32 %v6070, %v6078
    %6082 = vrot.lane.b32.xlu0 %v6080, 32
    %v6083 = vpop.permute.xlu0 %6082
    %v6085 = vadd.f32 %v6075, %v6083
    %v6086 = vtanh.pop %v6085
    %6088 = vrot.lane.b32.xlu0 %v6086, 64
    %v6089 = vpop.permute.xlu0 %6088
    %v6091 = vmul.f32 %v6070, %v6089
    %v6093 = vrot.slane %v6091, 4
    %6094 = vrot.lane.b32.xlu0 %v6093, 32
    %v6095 = vpop.permute.xlu0 %6094
    %v6096 = vsel %vm1920, %v6095, 0
    %6098 = vmatprep.subr.mxu0 0.0
    %6099 = vmatpush1.msra.mxu0 %v5772
    %6100 = vmatprep.subr.mxu0 0.0
    %6101 = vmatpush1.msra.mxu0 %v5773
    %6102 = vmatprep.subr.mxu0 0.0
    %6103 = vmatpush1.msra.mxu0 %v5774
    %6104 = vmatprep.subr.mxu0 0.0
    %6105 = vmatpush1.msra.mxu0 %v5775
    %6106 = vmatprep.subr.mxu0 0.0
    %6107 = vmatpush1.msra.mxu0 0.0
    %6108 = vmatprep.subr.mxu0 0.0
    %6109 = vmatpush1.msra.mxu0 0.0
    %6110 = vmatprep.subr.mxu0 0.0
    %6111 = vmatpush1.msra.mxu0 0.0
    %6112 = vmatprep.subr.mxu0 0.0
    %6113 = vmatpush1.msra.mxu0 0.0
    %6114 = vmatprep.subr.mxu0 0.0
    %6115 = vmatpush1.msra.mxu0 0.0
    %6116 = vmatprep.subr.mxu0 0.0
    %6117 = vmatpush1.msra.mxu0 0.0
    %6118 = vmatprep.subr.mxu0 0.0
    %6119 = vmatpush1.msra.mxu0 0.0
    %6120 = vmatprep.subr.mxu0 0.0
    %6121 = vmatpush1.msra.mxu0 0.0
    %6122 = vmatprep.subr.mxu0 0.0
    %6123 = vmatpush1.msra.mxu0 0.0
    %6124 = vmatprep.subr.mxu0 0.0
    %6125 = vmatpush1.msra.mxu0 0.0
    %6126 = vmatprep.subr.mxu0 0.0
    %6127 = vmatpush1.msra.mxu0 0.0
    %6128 = vmatprep.subr.mxu0 0.0
    %6129 = vmatpush1.msra.mxu0 0.0
    %6130 = vmatprep.subr.mxu0 0.0
    %6131 = vmatpush1.msra.mxu0 0.0
    %6132 = vmatprep.subr.mxu0 0.0
    %6133 = vmatpush1.msra.mxu0 0.0
    %6134 = vmatprep.subr.mxu0 0.0
    %6135 = vmatpush1.msra.mxu0 0.0
    %6136 = vmatprep.subr.mxu0 0.0
    %6137 = vmatpush1.msra.mxu0 0.0
    %6138 = vmatprep.subr.mxu0 0.0
    %6139 = vmatpush1.msra.mxu0 0.0
    %6140 = vmatprep.subr.mxu0 0.0
    %6141 = vmatpush1.msra.mxu0 0.0
    %6142 = vmatprep.subr.mxu0 0.0
    %6143 = vmatpush1.msra.mxu0 0.0
    %6144 = vmatprep.subr.mxu0 0.0
    %6145 = vmatpush1.msra.mxu0 0.0
    %6146 = vmatprep.subr.mxu0 0.0
    %6147 = vmatpush1.msra.mxu0 0.0
    %6148 = vmatprep.subr.mxu0 0.0
    %6149 = vmatpush1.msra.mxu0 0.0
    %6150 = vmatprep.subr.mxu0 0.0
    %6151 = vmatpush1.msra.mxu0 0.0
    %6152 = vmatprep.subr.mxu0 0.0
    %6153 = vmatpush1.msra.mxu0 0.0
    %6154 = vmatprep.subr.mxu0 0.0
    %6155 = vmatpush1.msra.mxu0 0.0
    %6156 = vmatprep.subr.mxu0 0.0
    %6157 = vmatpush1.msra.mxu0 0.0
    %6158 = vmatprep.subr.mxu0 0.0
    %6159 = vmatpush1.msra.mxu0 0.0
    %6160 = vmatprep.subr.mxu0 0.0
    %6161 = vmatpush1.msra.mxu0 0.0
    %6162 = vmatprep.mubr.f32.mxu0 0.0
    %6163 = vmatmul.mubr.f32.gmra.mrb[0].mxu0 %v6096
    %v6164 = vpop.f32.mrb[0].mxu0
    %v6165 = vadd.f32 0.0, %v6164
    %v6166 = vpop.f32.mrb[0].mxu0
    %6167 = vdwg.mxu0
    %v6169 = vrot.slane %v6165, 2
    %v6171 = vadd.f32 %v5856, %v6169
    %v6172 = vxor.u32 %v6171, 2147483648
    %v6173 = vmul.f32 %v6172, 1.442695
    %v6174 = vpow.pop %v6173
    %v6175 = vadd.f32 %v6174, 1.0
    %v6176 = vrcp.pop %v6175
    %v6177 = vmul.f32 1.0, %v6176
    %v6178 = vtanh.pop %v6171
    %v6180 = vrot.slane %v6085, 6
    %v6182 = vmul.f32 %v6177, %v6180
    %6184 = vrot.lane.b32.xlu0 %v6178, 64
    %v6185 = vpop.permute.xlu0 %6184
    %v6187 = vmul.f32 %v6177, %v6185
    %6189 = vrot.lane.b32.xlu0 %v6187, 32
    %v6190 = vpop.permute.xlu0 %6189
    %v6192 = vadd.f32 %v6182, %v6190
    %v6193 = vtanh.pop %v6192
    %6195 = vrot.lane.b32.xlu0 %v6193, 64
    %v6196 = vpop.permute.xlu0 %6195
    %v6198 = vmul.f32 %v6177, %v6196
    %v6199 = vsel %vm78, %v5876, %v5984
    %v6200 = vsel %vm80, %v6199, %v6091
    %v6201 = vsel %vm82, %v6200, %v6198
    %v6202 = vld [vmem:[#allocation5 + $0x138] sm:$0xff]
    %v6203 = vld [vmem:[#allocation5 + $0x140] sm:$0xff]
    %v6204 = vld [vmem:[#allocation5 + $0x148] sm:$0xff]
    %v6205 = vld [vmem:[#allocation5 + $0x150] sm:$0xff]
    %v6206 = vld [vmem:[#allocation5 + $0x158] sm:$0xff]
    %v6207 = vld [vmem:[#allocation5 + $0x160] sm:$0xff]
    %v6208 = vld [vmem:[#allocation5 + $0x168] sm:$0xff]
    %v6209 = vld [vmem:[#allocation5 + $0x170] sm:$0xff]
    %v6210 = vld [vmem:[#allocation5 + $0x178] sm:$0x1]
    %v6211 = vlaneseq
    %v6212 = vshrl.u32 %v6211, 7
    %v6213 = vsub.s32 0, %v6212
    %v6214 = vrot.slane %v6210, %v6213
    %6216 = vrot.lane.b32.xlu0 %v6201, 32
    %v6217 = vpop.permute.xlu0 %6216
    %v6218 = vsel %vm1920, %v6217, 0
    %6220 = vmatprep.subr.mxu0 0.0
    %6221 = vmatpush1.msra.mxu0 %v6202
    %6222 = vmatprep.subr.mxu0 0.0
    %6223 = vmatpush1.msra.mxu0 %v6203
    %6224 = vmatprep.subr.mxu0 0.0
    %6225 = vmatpush1.msra.mxu0 %v6204
    %6226 = vmatprep.subr.mxu0 0.0
    %6227 = vmatpush1.msra.mxu0 %v6205
    %6228 = vmatprep.subr.mxu0 0.0
    %6229 = vmatpush1.msra.mxu0 0.0
    %6230 = vmatprep.subr.mxu0 0.0
    %6231 = vmatpush1.msra.mxu0 0.0
    %6232 = vmatprep.subr.mxu0 0.0
    %6233 = vmatpush1.msra.mxu0 0.0
    %6234 = vmatprep.subr.mxu0 0.0
    %6235 = vmatpush1.msra.mxu0 0.0
    %6236 = vmatprep.subr.mxu0 0.0
    %6237 = vmatpush1.msra.mxu0 0.0
    %6238 = vmatprep.subr.mxu0 0.0
    %6239 = vmatpush1.msra.mxu0 0.0
    %6240 = vmatprep.subr.mxu0 0.0
    %6241 = vmatpush1.msra.mxu0 0.0
    %6242 = vmatprep.subr.mxu0 0.0
    %6243 = vmatpush1.msra.mxu0 0.0
    %6244 = vmatprep.subr.mxu0 0.0
    %6245 = vmatpush1.msra.mxu0 0.0
    %6246 = vmatprep.subr.mxu0 0.0
    %6247 = vmatpush1.msra.mxu0 0.0
    %6248 = vmatprep.subr.mxu0 0.0
    %6249 = vmatpush1.msra.mxu0 0.0
    %6250 = vmatprep.subr.mxu0 0.0
    %6251 = vmatpush1.msra.mxu0 0.0
    %6252 = vmatprep.subr.mxu0 0.0
    %6253 = vmatpush1.msra.mxu0 0.0
    %6254 = vmatprep.subr.mxu0 0.0
    %6255 = vmatpush1.msra.mxu0 0.0
    %6256 = vmatprep.subr.mxu0 0.0
    %6257 = vmatpush1.msra.mxu0 0.0
    %6258 = vmatprep.subr.mxu0 0.0
    %6259 = vmatpush1.msra.mxu0 0.0
    %6260 = vmatprep.subr.mxu0 0.0
    %6261 = vmatpush1.msra.mxu0 0.0
    %6262 = vmatprep.subr.mxu0 0.0
    %6263 = vmatpush1.msra.mxu0 0.0
    %6264 = vmatprep.subr.mxu0 0.0
    %6265 = vmatpush1.msra.mxu0 0.0
    %6266 = vmatprep.subr.mxu0 0.0
    %6267 = vmatpush1.msra.mxu0 0.0
    %6268 = vmatprep.subr.mxu0 0.0
    %6269 = vmatpush1.msra.mxu0 0.0
    %6270 = vmatprep.subr.mxu0 0.0
    %6271 = vmatpush1.msra.mxu0 0.0
    %6272 = vmatprep.subr.mxu0 0.0
    %6273 = vmatpush1.msra.mxu0 0.0
    %6274 = vmatprep.subr.mxu0 0.0
    %6275 = vmatpush1.msra.mxu0 0.0
    %6276 = vmatprep.subr.mxu0 0.0
    %6277 = vmatpush1.msra.mxu0 0.0
    %6278 = vmatprep.subr.mxu0 0.0
    %6279 = vmatpush1.msra.mxu0 0.0
    %6280 = vmatprep.subr.mxu0 0.0
    %6281 = vmatpush1.msra.mxu0 0.0
    %6282 = vmatprep.subr.mxu0 0.0
    %6283 = vmatpush1.msra.mxu0 0.0
    %6284 = vmatprep.mubr.f32.mxu0 0.0
    %6285 = vmatmul.mubr.f32.gmra.mrb[0].mxu0 %v6218
    %v6286 = vpop.f32.mrb[0].mxu0
    %v6287 = vadd.f32 %v6214, %v6286
    %v6288 = vpop.f32.mrb[0].mxu0
    %6289 = vdwg.mxu0
    %v6290 = vxor.u32 %v6287, 2147483648
    %v6291 = vmul.f32 %v6290, 1.442695
    %v6292 = vpow.pop %v6291
    %v6293 = vadd.f32 %v6292, 1.0
    %v6294 = vrcp.pop %v6293
    %v6295 = vmul.f32 1.0, %v6294
    %v6296 = vtanh.pop %v6287
    %6298 = vrot.lane.b32.xlu0 %v6296, 64
    %v6299 = vpop.permute.xlu0 %6298
    %v6301 = vmul.f32 %v6295, %v6299
    %v6302 = vtanh.pop %v6301
    %6304 = vrot.lane.b32.xlu0 %v6302, 96
    %v6305 = vpop.permute.xlu0 %6304
    %v6307 = vmul.f32 %v6295, %v6305
    %6309 = vrot.lane.b32.xlu0 %v6307, 32
    %v6310 = vpop.permute.xlu0 %6309
    %v6311 = vsel %vm1920, %v6310, 0
    %6313 = vmatprep.subr.mxu0 0.0
    %6314 = vmatpush1.msra.mxu0 %v6206
    %6315 = vmatprep.subr.mxu0 0.0
    %6316 = vmatpush1.msra.mxu0 %v6207
    %6317 = vmatprep.subr.mxu0 0.0
    %6318 = vmatpush1.msra.mxu0 %v6208
    %6319 = vmatprep.subr.mxu0 0.0
    %6320 = vmatpush1.msra.mxu0 %v6209
    %6321 = vmatprep.subr.mxu0 0.0
    %6322 = vmatpush1.msra.mxu0 0.0
    %6323 = vmatprep.subr.mxu0 0.0
    %6324 = vmatpush1.msra.mxu0 0.0
    %6325 = vmatprep.subr.mxu0 0.0
    %6326 = vmatpush1.msra.mxu0 0.0
    %6327 = vmatprep.subr.mxu0 0.0
    %6328 = vmatpush1.msra.mxu0 0.0
    %6329 = vmatprep.subr.mxu0 0.0
    %6330 = vmatpush1.msra.mxu0 0.0
    %6331 = vmatprep.subr.mxu0 0.0
    %6332 = vmatpush1.msra.mxu0 0.0
    %6333 = vmatprep.subr.mxu0 0.0
    %6334 = vmatpush1.msra.mxu0 0.0
    %6335 = vmatprep.subr.mxu0 0.0
    %6336 = vmatpush1.msra.mxu0 0.0
    %6337 = vmatprep.subr.mxu0 0.0
    %6338 = vmatpush1.msra.mxu0 0.0
    %6339 = vmatprep.subr.mxu0 0.0
    %6340 = vmatpush1.msra.mxu0 0.0
    %6341 = vmatprep.subr.mxu0 0.0
    %6342 = vmatpush1.msra.mxu0 0.0
    %6343 = vmatprep.subr.mxu0 0.0
    %6344 = vmatpush1.msra.mxu0 0.0
    %6345 = vmatprep.subr.mxu0 0.0
    %6346 = vmatpush1.msra.mxu0 0.0
    %6347 = vmatprep.subr.mxu0 0.0
    %6348 = vmatpush1.msra.mxu0 0.0
    %6349 = vmatprep.subr.mxu0 0.0
    %6350 = vmatpush1.msra.mxu0 0.0
    %6351 = vmatprep.subr.mxu0 0.0
    %6352 = vmatpush1.msra.mxu0 0.0
    %6353 = vmatprep.subr.mxu0 0.0
    %6354 = vmatpush1.msra.mxu0 0.0
    %6355 = vmatprep.subr.mxu0 0.0
    %6356 = vmatpush1.msra.mxu0 0.0
    %6357 = vmatprep.subr.mxu0 0.0
    %6358 = vmatpush1.msra.mxu0 0.0
    %6359 = vmatprep.subr.mxu0 0.0
    %6360 = vmatpush1.msra.mxu0 0.0
    %6361 = vmatprep.subr.mxu0 0.0
    %6362 = vmatpush1.msra.mxu0 0.0
    %6363 = vmatprep.subr.mxu0 0.0
    %6364 = vmatpush1.msra.mxu0 0.0
    %6365 = vmatprep.subr.mxu0 0.0
    %6366 = vmatpush1.msra.mxu0 0.0
    %6367 = vmatprep.subr.mxu0 0.0
    %6368 = vmatpush1.msra.mxu0 0.0
    %6369 = vmatprep.subr.mxu0 0.0
    %6370 = vmatpush1.msra.mxu0 0.0
    %6371 = vmatprep.subr.mxu0 0.0
    %6372 = vmatpush1.msra.mxu0 0.0
    %6373 = vmatprep.subr.mxu0 0.0
    %6374 = vmatpush1.msra.mxu0 0.0
    %6375 = vmatprep.subr.mxu0 0.0
    %6376 = vmatpush1.msra.mxu0 0.0
    %6377 = vmatprep.mubr.f32.mxu0 0.0
    %6378 = vmatmul.mubr.f32.gmra.mrb[0].mxu0 %v6311
    %v6379 = vpop.f32.mrb[0].mxu0
    %v6380 = vadd.f32 0.0, %v6379
    %v6381 = vpop.f32.mrb[0].mxu0
    %6382 = vdwg.mxu0
    %v6384 = vrot.slane %v6380, 6
    %v6386 = vadd.f32 %v6287, %v6384
    %v6387 = vxor.u32 %v6386, 2147483648
    %v6388 = vmul.f32 %v6387, 1.442695
    %v6389 = vpow.pop %v6388
    %v6390 = vadd.f32 %v6389, 1.0
    %v6391 = vrcp.pop %v6390
    %v6392 = vmul.f32 1.0, %v6391
    %v6393 = vtanh.pop %v6386
    %v6395 = vrot.slane %v6301, 6
    %6396 = vrot.lane.b32.xlu0 %v6395, 32
    %v6397 = vpop.permute.xlu0 %6396
    %v6399 = vmul.f32 %v6392, %v6397
    %6401 = vrot.lane.b32.xlu0 %v6393, 64
    %v6402 = vpop.permute.xlu0 %6401
    %v6404 = vmul.f32 %v6392, %v6402
    %6406 = vrot.lane.b32.xlu0 %v6404, 32
    %v6407 = vpop.permute.xlu0 %6406
    %v6409 = vadd.f32 %v6399, %v6407
    %v6410 = vtanh.pop %v6409
    %6412 = vrot.lane.b32.xlu0 %v6410, 64
    %v6413 = vpop.permute.xlu0 %6412
    %v6415 = vmul.f32 %v6392, %v6413
    %v6417 = vrot.slane %v6415, 2
    %6418 = vrot.lane.b32.xlu0 %v6417, 32
    %v6419 = vpop.permute.xlu0 %6418
    %v6420 = vsel %vm1920, %v6419, 0
    %6422 = vmatprep.subr.mxu0 0.0
    %6423 = vmatpush1.msra.mxu0 %v6206
    %6424 = vmatprep.subr.mxu0 0.0
    %6425 = vmatpush1.msra.mxu0 %v6207
    %6426 = vmatprep.subr.mxu0 0.0
    %6427 = vmatpush1.msra.mxu0 %v6208
    %6428 = vmatprep.subr.mxu0 0.0
    %6429 = vmatpush1.msra.mxu0 %v6209
    %6430 = vmatprep.subr.mxu0 0.0
    %6431 = vmatpush1.msra.mxu0 0.0
    %6432 = vmatprep.subr.mxu0 0.0
    %6433 = vmatpush1.msra.mxu0 0.0
    %6434 = vmatprep.subr.mxu0 0.0
    %6435 = vmatpush1.msra.mxu0 0.0
    %6436 = vmatprep.subr.mxu0 0.0
    %6437 = vmatpush1.msra.mxu0 0.0
    %6438 = vmatprep.subr.mxu0 0.0
    %6439 = vmatpush1.msra.mxu0 0.0
    %6440 = vmatprep.subr.mxu0 0.0
    %6441 = vmatpush1.msra.mxu0 0.0
    %6442 = vmatprep.subr.mxu0 0.0
    %6443 = vmatpush1.msra.mxu0 0.0
    %6444 = vmatprep.subr.mxu0 0.0
    %6445 = vmatpush1.msra.mxu0 0.0
    %6446 = vmatprep.subr.mxu0 0.0
    %6447 = vmatpush1.msra.mxu0 0.0
    %6448 = vmatprep.subr.mxu0 0.0
    %6449 = vmatpush1.msra.mxu0 0.0
    %6450 = vmatprep.subr.mxu0 0.0
    %6451 = vmatpush1.msra.mxu0 0.0
    %6452 = vmatprep.subr.mxu0 0.0
    %6453 = vmatpush1.msra.mxu0 0.0
    %6454 = vmatprep.subr.mxu0 0.0
    %6455 = vmatpush1.msra.mxu0 0.0
    %6456 = vmatprep.subr.mxu0 0.0
    %6457 = vmatpush1.msra.mxu0 0.0
    %6458 = vmatprep.subr.mxu0 0.0
    %6459 = vmatpush1.msra.mxu0 0.0
    %6460 = vmatprep.subr.mxu0 0.0
    %6461 = vmatpush1.msra.mxu0 0.0
    %6462 = vmatprep.subr.mxu0 0.0
    %6463 = vmatpush1.msra.mxu0 0.0
    %6464 = vmatprep.subr.mxu0 0.0
    %6465 = vmatpush1.msra.mxu0 0.0
    %6466 = vmatprep.subr.mxu0 0.0
    %6467 = vmatpush1.msra.mxu0 0.0
    %6468 = vmatprep.subr.mxu0 0.0
    %6469 = vmatpush1.msra.mxu0 0.0
    %6470 = vmatprep.subr.mxu0 0.0
    %6471 = vmatpush1.msra.mxu0 0.0
    %6472 = vmatprep.subr.mxu0 0.0
    %6473 = vmatpush1.msra.mxu0 0.0
    %6474 = vmatprep.subr.mxu0 0.0
    %6475 = vmatpush1.msra.mxu0 0.0
    %6476 = vmatprep.subr.mxu0 0.0
    %6477 = vmatpush1.msra.mxu0 0.0
    %6478 = vmatprep.subr.mxu0 0.0
    %6479 = vmatpush1.msra.mxu0 0.0
    %6480 = vmatprep.subr.mxu0 0.0
    %6481 = vmatpush1.msra.mxu0 0.0
    %6482 = vmatprep.subr.mxu0 0.0
    %6483 = vmatpush1.msra.mxu0 0.0
    %6484 = vmatprep.subr.mxu0 0.0
    %6485 = vmatpush1.msra.mxu0 0.0
    %6486 = vmatprep.mubr.f32.mxu0 0.0
    %6487 = vmatmul.mubr.f32.gmra.mrb[0].mxu0 %v6420
    %v6488 = vpop.f32.mrb[0].mxu0
    %v6489 = vadd.f32 0.0, %v6488
    %v6490 = vpop.f32.mrb[0].mxu0
    %6491 = vdwg.mxu0
    %v6493 = vrot.slane %v6489, 4
    %v6495 = vadd.f32 %v6287, %v6493
    %v6496 = vxor.u32 %v6495, 2147483648
    %v6497 = vmul.f32 %v6496, 1.442695
    %v6498 = vpow.pop %v6497
    %v6499 = vadd.f32 %v6498, 1.0
    %v6500 = vrcp.pop %v6499
    %v6501 = vmul.f32 1.0, %v6500
    %v6502 = vtanh.pop %v6495
    %v6504 = vrot.slane %v6409, 6
    %v6506 = vmul.f32 %v6501, %v6504
    %6508 = vrot.lane.b32.xlu0 %v6502, 64
    %v6509 = vpop.permute.xlu0 %6508
    %v6511 = vmul.f32 %v6501, %v6509
    %6513 = vrot.lane.b32.xlu0 %v6511, 32
    %v6514 = vpop.permute.xlu0 %6513
    %v6516 = vadd.f32 %v6506, %v6514
    %v6517 = vtanh.pop %v6516
    %6519 = vrot.lane.b32.xlu0 %v6517, 64
    %v6520 = vpop.permute.xlu0 %6519
    %v6522 = vmul.f32 %v6501, %v6520
    %v6524 = vrot.slane %v6522, 4
    %6525 = vrot.lane.b32.xlu0 %v6524, 32
    %v6526 = vpop.permute.xlu0 %6525
    %v6527 = vsel %vm1920, %v6526, 0
    %6529 = vmatprep.subr.mxu0 0.0
    %6530 = vmatpush1.msra.mxu0 %v6206
    %6531 = vmatprep.subr.mxu0 0.0
    %6532 = vmatpush1.msra.mxu0 %v6207
    %6533 = vmatprep.subr.mxu0 0.0
    %6534 = vmatpush1.msra.mxu0 %v6208
    %6535 = vmatprep.subr.mxu0 0.0
    %6536 = vmatpush1.msra.mxu0 %v6209
    %6537 = vmatprep.subr.mxu0 0.0
    %6538 = vmatpush1.msra.mxu0 0.0
    %6539 = vmatprep.subr.mxu0 0.0
    %6540 = vmatpush1.msra.mxu0 0.0
    %6541 = vmatprep.subr.mxu0 0.0
    %6542 = vmatpush1.msra.mxu0 0.0
    %6543 = vmatprep.subr.mxu0 0.0
    %6544 = vmatpush1.msra.mxu0 0.0
    %6545 = vmatprep.subr.mxu0 0.0
    %6546 = vmatpush1.msra.mxu0 0.0
    %6547 = vmatprep.subr.mxu0 0.0
    %6548 = vmatpush1.msra.mxu0 0.0
    %6549 = vmatprep.subr.mxu0 0.0
    %6550 = vmatpush1.msra.mxu0 0.0
    %6551 = vmatprep.subr.mxu0 0.0
    %6552 = vmatpush1.msra.mxu0 0.0
    %6553 = vmatprep.subr.mxu0 0.0
    %6554 = vmatpush1.msra.mxu0 0.0
    %6555 = vmatprep.subr.mxu0 0.0
    %6556 = vmatpush1.msra.mxu0 0.0
    %6557 = vmatprep.subr.mxu0 0.0
    %6558 = vmatpush1.msra.mxu0 0.0
    %6559 = vmatprep.subr.mxu0 0.0
    %6560 = vmatpush1.msra.mxu0 0.0
    %6561 = vmatprep.subr.mxu0 0.0
    %6562 = vmatpush1.msra.mxu0 0.0
    %6563 = vmatprep.subr.mxu0 0.0
    %6564 = vmatpush1.msra.mxu0 0.0
    %6565 = vmatprep.subr.mxu0 0.0
    %6566 = vmatpush1.msra.mxu0 0.0
    %6567 = vmatprep.subr.mxu0 0.0
    %6568 = vmatpush1.msra.mxu0 0.0
    %6569 = vmatprep.subr.mxu0 0.0
    %6570 = vmatpush1.msra.mxu0 0.0
    %6571 = vmatprep.subr.mxu0 0.0
    %6572 = vmatpush1.msra.mxu0 0.0
    %6573 = vmatprep.subr.mxu0 0.0
    %6574 = vmatpush1.msra.mxu0 0.0
    %6575 = vmatprep.subr.mxu0 0.0
    %6576 = vmatpush1.msra.mxu0 0.0
    %6577 = vmatprep.subr.mxu0 0.0
    %6578 = vmatpush1.msra.mxu0 0.0
    %6579 = vmatprep.subr.mxu0 0.0
    %6580 = vmatpush1.msra.mxu0 0.0
    %6581 = vmatprep.subr.mxu0 0.0
    %6582 = vmatpush1.msra.mxu0 0.0
    %6583 = vmatprep.subr.mxu0 0.0
    %6584 = vmatpush1.msra.mxu0 0.0
    %6585 = vmatprep.subr.mxu0 0.0
    %6586 = vmatpush1.msra.mxu0 0.0
    %6587 = vmatprep.subr.mxu0 0.0
    %6588 = vmatpush1.msra.mxu0 0.0
    %6589 = vmatprep.subr.mxu0 0.0
    %6590 = vmatpush1.msra.mxu0 0.0
    %6591 = vmatprep.subr.mxu0 0.0
    %6592 = vmatpush1.msra.mxu0 0.0
    %6593 = vmatprep.mubr.f32.mxu0 0.0
    %6594 = vmatmul.mubr.f32.gmra.mrb[0].mxu0 %v6527
    %v6595 = vpop.f32.mrb[0].mxu0
    %v6596 = vadd.f32 0.0, %v6595
    %v6597 = vpop.f32.mrb[0].mxu0
    %6598 = vdwg.mxu0
    %v6600 = vrot.slane %v6596, 2
    %v6602 = vadd.f32 %v6287, %v6600
    %v6603 = vxor.u32 %v6602, 2147483648
    %v6604 = vmul.f32 %v6603, 1.442695
    %v6605 = vpow.pop %v6604
    %v6606 = vadd.f32 %v6605, 1.0
    %v6607 = vrcp.pop %v6606
    %v6608 = vmul.f32 1.0, %v6607
    %v6609 = vtanh.pop %v6602
    %v6611 = vrot.slane %v6516, 6
    %v6613 = vmul.f32 %v6608, %v6611
    %6615 = vrot.lane.b32.xlu0 %v6609, 64
    %v6616 = vpop.permute.xlu0 %6615
    %v6618 = vmul.f32 %v6608, %v6616
    %6620 = vrot.lane.b32.xlu0 %v6618, 32
    %v6621 = vpop.permute.xlu0 %6620
    %v6623 = vadd.f32 %v6613, %v6621
    %v6624 = vtanh.pop %v6623
    %6626 = vrot.lane.b32.xlu0 %v6624, 64
    %v6627 = vpop.permute.xlu0 %6626
    %v6629 = vmul.f32 %v6608, %v6627
    %v6630 = vld [vmem:[#allocation5 + $0x180] sm:$0xff]
    %v6631 = vld [vmem:[#allocation5 + $0x188] sm:$0xff]
    %v6632 = vld [vmem:[#allocation5 + $0x190] sm:$0xff]
    %v6633 = vld [vmem:[#allocation5 + $0x198] sm:$0xff]
    %v6634 = vld [vmem:[#allocation5 + $0x1a0] sm:$0xff]
    %v6635 = vld [vmem:[#allocation5 + $0x1a8] sm:$0xff]
    %v6636 = vld [vmem:[#allocation5 + $0x1b0] sm:$0xff]
    %v6637 = vld [vmem:[#allocation5 + $0x1b8] sm:$0xff]
    %v6639 = vrot.slane %v6629, 6
    %6640 = vrot.lane.b32.xlu0 %v6639, 32
    %v6641 = vpop.permute.xlu0 %6640
    %v6642 = vsel %vm1920, %v6641, 0
    %6644 = vmatprep.subr.mxu0 0.0
    %6645 = vmatpush1.msra.mxu0 %v6634
    %6646 = vmatprep.subr.mxu0 0.0
    %6647 = vmatpush1.msra.mxu0 %v6635
    %6648 = vmatprep.subr.mxu0 0.0
    %6649 = vmatpush1.msra.mxu0 %v6636
    %6650 = vmatprep.subr.mxu0 0.0
    %6651 = vmatpush1.msra.mxu0 %v6637
    %6652 = vmatprep.subr.mxu0 0.0
    %6653 = vmatpush1.msra.mxu0 0.0
    %6654 = vmatprep.subr.mxu0 0.0
    %6655 = vmatpush1.msra.mxu0 0.0
    %6656 = vmatprep.subr.mxu0 0.0
    %6657 = vmatpush1.msra.mxu0 0.0
    %6658 = vmatprep.subr.mxu0 0.0
    %6659 = vmatpush1.msra.mxu0 0.0
    %6660 = vmatprep.subr.mxu0 0.0
    %6661 = vmatpush1.msra.mxu0 0.0
    %6662 = vmatprep.subr.mxu0 0.0
    %6663 = vmatpush1.msra.mxu0 0.0
    %6664 = vmatprep.subr.mxu0 0.0
    %6665 = vmatpush1.msra.mxu0 0.0
    %6666 = vmatprep.subr.mxu0 0.0
    %6667 = vmatpush1.msra.mxu0 0.0
    %6668 = vmatprep.subr.mxu0 0.0
    %6669 = vmatpush1.msra.mxu0 0.0
    %6670 = vmatprep.subr.mxu0 0.0
    %6671 = vmatpush1.msra.mxu0 0.0
    %6672 = vmatprep.subr.mxu0 0.0
    %6673 = vmatpush1.msra.mxu0 0.0
    %6674 = vmatprep.subr.mxu0 0.0
    %6675 = vmatpush1.msra.mxu0 0.0
    %6676 = vmatprep.subr.mxu0 0.0
    %6677 = vmatpush1.msra.mxu0 0.0
    %6678 = vmatprep.subr.mxu0 0.0
    %6679 = vmatpush1.msra.mxu0 0.0
    %6680 = vmatprep.subr.mxu0 0.0
    %6681 = vmatpush1.msra.mxu0 0.0
    %6682 = vmatprep.subr.mxu0 0.0
    %6683 = vmatpush1.msra.mxu0 0.0
    %6684 = vmatprep.subr.mxu0 0.0
    %6685 = vmatpush1.msra.mxu0 0.0
    %6686 = vmatprep.subr.mxu0 0.0
    %6687 = vmatpush1.msra.mxu0 0.0
    %6688 = vmatprep.subr.mxu0 0.0
    %6689 = vmatpush1.msra.mxu0 0.0
    %6690 = vmatprep.subr.mxu0 0.0
    %6691 = vmatpush1.msra.mxu0 0.0
    %6692 = vmatprep.subr.mxu0 0.0
    %6693 = vmatpush1.msra.mxu0 0.0
    %6694 = vmatprep.subr.mxu0 0.0
    %6695 = vmatpush1.msra.mxu0 0.0
    %6696 = vmatprep.subr.mxu0 0.0
    %6697 = vmatpush1.msra.mxu0 0.0
    %6698 = vmatprep.subr.mxu0 0.0
    %6699 = vmatpush1.msra.mxu0 0.0
    %6700 = vmatprep.subr.mxu0 0.0
    %6701 = vmatpush1.msra.mxu0 0.0
    %6702 = vmatprep.subr.mxu0 0.0
    %6703 = vmatpush1.msra.mxu0 0.0
    %6704 = vmatprep.subr.mxu0 0.0
    %6705 = vmatpush1.msra.mxu0 0.0
    %6706 = vmatprep.subr.mxu0 0.0
    %6707 = vmatpush1.msra.mxu0 0.0
    %6708 = vmatprep.mubr.f32.mxu0 0.0
    %6709 = vmatmul.mubr.f32.gmra.mrb[0].mxu0 %v6642
    %v6710 = vpop.f32.mrb[0].mxu0
    %v6711 = vadd.f32 0.0, %v6710
    %v6712 = vpop.f32.mrb[0].mxu0
    %6713 = vdwg.mxu0
    %v6715 = vrot.slane %v2240, 2
    %6716 = vrot.lane.b32.xlu0 %v6715, 32
    %v6717 = vpop.permute.xlu0 %6716
    %v6718 = vsel %vm1920, %v6717, 0
    %6720 = vmatprep.subr.mxu0 0.0
    %6721 = vmatpush1.msra.mxu0 %v6630
    %6722 = vmatprep.subr.mxu0 0.0
    %6723 = vmatpush1.msra.mxu0 %v6631
    %6724 = vmatprep.subr.mxu0 0.0
    %6725 = vmatpush1.msra.mxu0 %v6632
    %6726 = vmatprep.subr.mxu0 0.0
    %6727 = vmatpush1.msra.mxu0 %v6633
    %6728 = vmatprep.subr.mxu0 0.0
    %6729 = vmatpush1.msra.mxu0 0.0
    %6730 = vmatprep.subr.mxu0 0.0
    %6731 = vmatpush1.msra.mxu0 0.0
    %6732 = vmatprep.subr.mxu0 0.0
    %6733 = vmatpush1.msra.mxu0 0.0
    %6734 = vmatprep.subr.mxu0 0.0
    %6735 = vmatpush1.msra.mxu0 0.0
    %6736 = vmatprep.subr.mxu0 0.0
    %6737 = vmatpush1.msra.mxu0 0.0
    %6738 = vmatprep.subr.mxu0 0.0
    %6739 = vmatpush1.msra.mxu0 0.0
    %6740 = vmatprep.subr.mxu0 0.0
    %6741 = vmatpush1.msra.mxu0 0.0
    %6742 = vmatprep.subr.mxu0 0.0
    %6743 = vmatpush1.msra.mxu0 0.0
    %6744 = vmatprep.subr.mxu0 0.0
    %6745 = vmatpush1.msra.mxu0 0.0
    %6746 = vmatprep.subr.mxu0 0.0
    %6747 = vmatpush1.msra.mxu0 0.0
    %6748 = vmatprep.subr.mxu0 0.0
    %6749 = vmatpush1.msra.mxu0 0.0
    %6750 = vmatprep.subr.mxu0 0.0
    %6751 = vmatpush1.msra.mxu0 0.0
    %6752 = vmatprep.subr.mxu0 0.0
    %6753 = vmatpush1.msra.mxu0 0.0
    %6754 = vmatprep.subr.mxu0 0.0
    %6755 = vmatpush1.msra.mxu0 0.0
    %6756 = vmatprep.subr.mxu0 0.0
    %6757 = vmatpush1.msra.mxu0 0.0
    %6758 = vmatprep.subr.mxu0 0.0
    %6759 = vmatpush1.msra.mxu0 0.0
    %6760 = vmatprep.subr.mxu0 0.0
    %6761 = vmatpush1.msra.mxu0 0.0
    %6762 = vmatprep.subr.mxu0 0.0
    %6763 = vmatpush1.msra.mxu0 0.0
    %6764 = vmatprep.subr.mxu0 0.0
    %6765 = vmatpush1.msra.mxu0 0.0
    %6766 = vmatprep.subr.mxu0 0.0
    %6767 = vmatpush1.msra.mxu0 0.0
    %6768 = vmatprep.subr.mxu0 0.0
    %6769 = vmatpush1.msra.mxu0 0.0
    %6770 = vmatprep.subr.mxu0 0.0
    %6771 = vmatpush1.msra.mxu0 0.0
    %6772 = vmatprep.subr.mxu0 0.0
    %6773 = vmatpush1.msra.mxu0 0.0
    %6774 = vmatprep.subr.mxu0 0.0
    %6775 = vmatpush1.msra.mxu0 0.0
    %6776 = vmatprep.subr.mxu0 0.0
    %6777 = vmatpush1.msra.mxu0 0.0
    %6778 = vmatprep.subr.mxu0 0.0
    %6779 = vmatpush1.msra.mxu0 0.0
    %6780 = vmatprep.subr.mxu0 0.0
    %6781 = vmatpush1.msra.mxu0 0.0
    %6782 = vmatprep.subr.mxu0 0.0
    %6783 = vmatpush1.msra.mxu0 0.0
    %6784 = vmatprep.mubr.f32.mxu0 0.0
    %6785 = vmatmul.mubr.f32.gmra.mrb[0].mxu0 %v6718
    %v6786 = vpop.f32.mrb[0].mxu0
    %v6787 = vadd.f32 %v6711, %v6786
    %v6788 = vpop.f32.mrb[0].mxu0
    %6789 = vdwg.mxu0
    %v6790 = vld [vmem:[#allocation5 + $0x1c0] sm:$0x1]
    %v6791 = vlaneseq
    %v6792 = vshrl.u32 %v6791, 7
    %v6793 = vsub.s32 0, %v6792
    %v6794 = vrot.slane %v6790, %v6793
    %v6795 = vadd.f32 %v6787, %v6794
    %vm6796 = vcmask 25600
    %6797 = vst.msk [vmem:[#allocation7] sm:$0x3] %vm6796, %v6795
    // Predicated region
    $region18: #{tpu_custom_call.1} parent=1 // pred_check
      _
    $region19: #{tpu_custom_call.1} parent=1 // pred_check_branch
      %6799 = sbr.rel (0) target = $region21
    $region20: #{tpu_custom_call.1} parent=1 // pred_region
      %s6801 = ssub.s32 32, 32
      %6802 = vsyncadd [#allocation4], %s6801
      %s6804 = sshll.u32 [#allocation7], 4
      %s6805 = int_to_ptr.vmem [resolvable:$true] %s6804
      %6807 = dma.vmem_to_hbm [thread:$0]  %s6805, 32, %s2, [#allocation4]
    $region21: #{tpu_custom_call.1} parent=1 // pred_fallthru
      _
    // Predicated region
    $region22: #{tpu_custom_call.1} parent=1 // pred_check
      _
    $region23: #{tpu_custom_call.1} parent=1 // pred_check_branch
      %6809 = sbr.rel (0) target = $region25
    $region24: #{tpu_custom_call.1} parent=1 // pred_region
      %6810 = dma.done [#allocation4], 32
    $region25: #{tpu_custom_call.1} parent=1 // pred_fallthru
      _
    %6811 = vsyncpa [#allocation3], 1
    %6812 = vsyncpa [#allocation6], 1
    %6813 = vsyncpa [#allocation4], 1

</llo_original>
